<compile_context>
chip_gen: v5e
topology: v5e:2x2
jax: 0.10.0
libtpu: 0.0.40
codegen_flags: <defaults>
</compile_context>

<pallas_src>
import functools

import jax
import jax.numpy as jnp
from jax.experimental import pallas as pl
from jax.experimental.pallas import tpu as pltpu


_VMEM_LIMIT = 32 * 1024 * 1024  # explicit scoped-VMEM budget; safe on v5e/v6e/v7x


def _pick_tile(dim, target, align):
    """Largest divisor of `dim` that is <= target and a multiple of `align`;
    falls back to the full extent (always a legal BlockSpec block)."""
    if dim <= target:
        return dim
    for t in range(target, align - 1, -1):
        if dim % t == 0 and t % align == 0:
            return t
    return dim


@functools.lru_cache(maxsize=None)
def _num_tensorcores():
    """Best-effort TensorCores-per-chip count (2 on v7x, 1 on v5e/v6e)."""
    try:
        dev = jax.devices()[0]
        if dev.platform != "tpu":
            return 1
        kind = (getattr(dev, "device_kind", "") or "").lower()
        if "v7" in kind:
            return 2
        return int(getattr(dev, "num_cores", 1) or 1)
    except Exception:  # pragma: no cover - defensive
        return 1


# ---------------------------------------------------------------------------
# Dense (used for the two im2col convs)
# ---------------------------------------------------------------------------
def _dense_kernel(x_ref, w_ref, b_ref, o_ref, *, apply_relu):
    """(tm, K) x (K, tn) MXU matmul tile + bias (+ ReLU), f32 accumulation."""
    acc = jnp.dot(x_ref[...], w_ref[...], preferred_element_type=jnp.float32)
    acc = acc + b_ref[...]
    if apply_relu:
        acc = jnp.maximum(acc, 0.0)
    o_ref[...] = acc.astype(o_ref.dtype)


def dense(x, w, b, *, relu, out_dtype=jnp.float32):
    """y = x @ w + b (optional ReLU).  x:(M,K) bf16, w:(K,N) bf16, b:(N,) f32."""
    M, K = x.shape
    Kw, N = w.shape
    assert K == Kw and b.shape == (N,)

    # 16-sublane alignment keeps bf16 activation/output blocks on native tiles.
    tm = _pick_tile(M, 512, 16)    # row tile: bounds VMEM, gives a parallel axis
    tn = _pick_tile(N, 512, 128)   # feature tile: lane-dense
    # Only force an extra grid split when there are 2 TensorCores to feed
    # (v7x); on single-TC v5e/v6e extra grid steps are pure per-step overhead.
    if _num_tensorcores() >= 2 and (M // tm) * (N // tn) == 1:
        tm2 = _pick_tile(M, max(16, tm // 2), 16)
        if M // tm2 > 1:
            tm = tm2

    grid = (M // tm, N // tn)
    kernel = functools.partial(_dense_kernel, apply_relu=relu)
    return pl.pallas_call(
        kernel,
        out_shape=jax.ShapeDtypeStruct((M, N), out_dtype),
        grid=grid,
        in_specs=[
            pl.BlockSpec((tm, K), lambda i, j: (i, 0)),   # bf16 activation row-tile
            pl.BlockSpec((K, tn), lambda i, j: (0, j)),   # bf16 weight column-tile
            pl.BlockSpec((1, tn), lambda i, j: (0, j)),   # f32 bias column-tile
        ],
        out_specs=pl.BlockSpec((tm, tn), lambda i, j: (i, j)),
        compiler_params=pltpu.CompilerParams(
            dimension_semantics=("parallel", "parallel"),
            vmem_limit_bytes=_VMEM_LIMIT,
        ),
    )(x, w, b.reshape(1, N))


# ---------------------------------------------------------------------------
# Fused fc1 -> ReLU -> fc2 -> ReLU -> fc3 (single pallas_call)
# ---------------------------------------------------------------------------
def _fc_fused_kernel(x_ref, w1_ref, b1_ref, w2_ref, b2_ref, w3_ref, b3_ref,
                     o_ref, acc2_ref):
    """One grid step = one fc1 output tile.

    The fc1 tile is ReLU'd and immediately contracted against the matching
    row-tile of fc2's weights into a (B, 256) f32 accumulator, so the
    (B, 2048) hidden never leaves VMEM.  The last step adds fc2's bias,
    applies ReLU and runs fc3 on the (padded-to-128) output columns.
    """
    j = pl.program_id(0)

    @pl.when(j == 0)
    def _init():
        acc2_ref[...] = jnp.zeros_like(acc2_ref)

    h1 = jnp.dot(x_ref[...], w1_ref[...], preferred_element_type=jnp.float32)
    h1 = jnp.maximum(h1 + b1_ref[...], 0.0).astype(jnp.bfloat16)
    acc2_ref[...] += jnp.dot(h1, w2_ref[...], preferred_element_type=jnp.float32)

    @pl.when(j == pl.num_programs(0) - 1)
    def _final():
        h2 = jnp.maximum(acc2_ref[...] + b2_ref[...], 0.0).astype(jnp.bfloat16)
        o_ref[...] = (
            jnp.dot(h2, w3_ref[...], preferred_element_type=jnp.float32)
            + b3_ref[...]
        )


def fused_fc(x, w1, b1, w2, b2, w3, b3, *, tn1=512):
    """relu(relu(x@w1+b1)@w2+b2)@w3+b3 in one pallas_call.

    x:(B,1600) bf16; w1:(1600,2048) bf16; w2:(2048,256) bf16;
    w3:(256,128) bf16 (fc3 padded to 128 lane-dense columns); biases f32.
    """
    B, K1 = x.shape
    N1 = w1.shape[1]
    N2 = w2.shape[1]
    N3 = w3.shape[1]
    assert w1.shape[0] == K1 and w2.shape[0] == N1 and w3.shape[0] == N2
    assert N1 % tn1 == 0

    return pl.pallas_call(
        _fc_fused_kernel,
        out_shape=jax.ShapeDtypeStruct((B, N3), jnp.float32),
        grid=(N1 // tn1,),
        in_specs=[
            pl.BlockSpec((B, K1), lambda j: (0, 0)),     # activations (resident)
            pl.BlockSpec((K1, tn1), lambda j: (0, j)),   # fc1 weight tile (streamed)
            pl.BlockSpec((1, tn1), lambda j: (0, j)),    # fc1 bias tile
            pl.BlockSpec((tn1, N2), lambda j: (j, 0)),   # matching fc2 weight rows
            pl.BlockSpec((1, N2), lambda j: (0, 0)),     # fc2 bias (resident)
            pl.BlockSpec((N2, N3), lambda j: (0, 0)),    # fc3 weight (resident)
            pl.BlockSpec((1, N3), lambda j: (0, 0)),     # fc3 bias (resident)
        ],
        out_specs=pl.BlockSpec((B, N3), lambda j: (0, 0)),
        scratch_shapes=[pltpu.VMEM((B, N2), jnp.float32)],
        compiler_params=pltpu.CompilerParams(
            dimension_semantics=("arbitrary",),   # fc2 accumulates across steps
            vmem_limit_bytes=_VMEM_LIMIT,
        ),
    )(x, w1, b1.reshape(1, N1), w2, b2.reshape(1, N2), w3, b3.reshape(1, N3))


# ---------------------------------------------------------------------------
# Lane-dense 2x2 max pool
# ---------------------------------------------------------------------------
def _pool_kernel(x_ref, o_ref, *, wo, c):
    # x_ref: (R, 2, W*C); the lane dim W*C is a multiple of 128 for both pools.
    v = x_ref[...]
    m = jnp.maximum(v[:, 0, :], v[:, 1, :])        # max over the 2 window rows
    m = m.reshape(m.shape[0], wo, 2 * c)           # lanes regrouped as (Wo, 2*C)
    m = jnp.maximum(m[:, :, :c], m[:, :, c:])      # max over the 2 window cols
    o_ref[...] = m.reshape(m.shape[0], wo * c)     # lane-dense (R, Wo*C) store


def maxpool2x2(x):
    """2x2 / stride-2 max pool on NHWC, fused in a single Pallas kernel.

    (B,H,W,C) -> (B*Ho, 2, W*C) is a pure row-major reshape (no data
    movement); both the input block (last dim 896 / 640) and the output
    block (Wo*C wide) are lane-dense, avoiding masked vld/vst and the
    (8,128)-padding blowup of the old (.., 2, C) trailing dims.
    """
    B, H, W, C = x.shape
    Ho, Wo = H // 2, W // 2
    xr = x.reshape(B * Ho, 2, W * C)
    kernel = functools.partial(_pool_kernel, wo=Wo, c=C)
    out = pl.pallas_call(
        kernel,
        out_shape=jax.ShapeDtypeStruct((B * Ho, Wo * C), x.dtype),
        grid=(1,),   # whole pool fits VMEM easily at these sizes
        in_specs=[pl.BlockSpec((B * Ho, 2, W * C), lambda i: (0, 0, 0))],
        out_specs=pl.BlockSpec((B * Ho, Wo * C), lambda i: (0, 0)),
        compiler_params=pltpu.CompilerParams(
            dimension_semantics=("arbitrary",),
            vmem_limit_bytes=_VMEM_LIMIT,
        ),
    )(xr)
    return out.reshape(B, Ho, Wo, C)


# ---------------------------------------------------------------------------
# Conv-as-im2col glue (the matmul hot path runs in the Pallas dense kernel)
# ---------------------------------------------------------------------------
def _im2col(x, kh, kw):
    """x:(B,H,W,C) -> (B*Ho*Wo, kh*kw*C); patch feature order is (kh, kw, C)."""
    B, H, W, C = x.shape
    Ho, Wo = H - kh + 1, W - kw + 1
    cols = [x[:, i:i + Ho, j:j + Wo, :] for i in range(kh) for j in range(kw)]
    patches = jnp.concatenate(cols, axis=-1)          # (B, Ho, Wo, kh*kw*C)
    return patches.reshape(B * Ho * Wo, kh * kw * C)


def conv2d_relu(x, w_mat, b, *, kh, kw):
    """Valid cross-correlation + bias + ReLU via im2col + Pallas matmul.
    x:(B,H,W,Cin) NHWC bf16; w_mat:(K_pad, Cout) bf16; b:(Cout,) f32."""
    B, H, W, Cin = x.shape
    K_pad, Cout = w_mat.shape
    Ho, Wo = H - kh + 1, W - kw + 1
    patches = _im2col(x, kh, kw)                      # (B*Ho*Wo, kh*kw*Cin) bf16
    k = patches.shape[1]
    if K_pad > k:                                     # conv1: K 75 -> 128
        patches = jnp.pad(patches, ((0, 0), (0, K_pad - k)))
    y = dense(patches, w_mat, b, relu=True, out_dtype=jnp.bfloat16)
    return y.reshape(B, Ho, Wo, Cout)


# ---------------------------------------------------------------------------
# Model: deterministic parameter init + one-time prepare + forward
# ---------------------------------------------------------------------------
def init_params(key):
    """PyTorch-layout f32 parameters (same shapes as the nn.Module)."""
    ks = jax.random.split(key, 10)

    def u(k, shape, fan_in):
        bound = 1.0 / jnp.sqrt(float(fan_in))
        return jax.random.uniform(k, shape, jnp.float32, -bound, bound)

    return {
        "conv1_w": u(ks[0], (32, 3, 5, 5), 3 * 5 * 5),
        "conv1_b": u(ks[1], (32,), 3 * 5 * 5),
        "conv2_w": u(ks[2], (64, 32, 5, 5), 32 * 5 * 5),
        "conv2_b": u(ks[3], (64,), 32 * 5 * 5),
        "fc1_w": u(ks[4], (2048, 1600), 1600),
        "fc1_b": u(ks[5], (2048,), 1600),
        "fc2_w": u(ks[6], (256, 2048), 2048),
        "fc2_b": u(ks[7], (256,), 2048),
        "fc3_w": u(ks[8], (100, 256), 256),
        "fc3_b": u(ks[9], (100,), 256),
    }


def prepare_params(params):
    """One-time (offline) layout + dtype transform of the PyTorch parameters.

    * conv filters -> (kh*kw*Cin, Cout) matmul operands in bf16; conv1 also
      absorbs the 1/255 input scaling and pads its K dim 75 -> 128.
    * fc weights   -> (K, N) bf16; fc1's rows are permuted from PyTorch's
      NCHW-flatten order (c, h, w) to the NHWC order (h, w, c) produced by
      the conv/pool pipeline; fc3 is padded 100 -> 128 output columns (the
      extra logits are zero and sliced off after the fused FC kernel).
    * biases stay f32.
    """
    def conv_mat(w):
        cout, cin, kh, kw = w.shape
        return jnp.transpose(w, (2, 3, 1, 0)).reshape(kh * kw * cin, cout)

    w1 = conv_mat(params["conv1_w"] / 255.0)                     # (75, 32)
    w1 = jnp.pad(w1, ((0, 128 - w1.shape[0]), (0, 0)))           # (128, 32)

    fc1 = params["fc1_w"].reshape(2048, 64, 5, 5)                # (out, c, h, w)
    fc1 = jnp.transpose(fc1, (2, 3, 1, 0)).reshape(1600, 2048)   # (h*w*c, out)

    fc3 = params["fc3_w"].T                                      # (256, 100)
    fc3 = jnp.pad(fc3, ((0, 0), (0, 128 - fc3.shape[1])))        # (256, 128)
    fc3_b = jnp.pad(params["fc3_b"], (0, 128 - 100))

    return {
        "conv1_w": w1.astype(jnp.bfloat16),
        "conv1_b": params["conv1_b"],
        "conv2_w": conv_mat(params["conv2_w"]).astype(jnp.bfloat16),  # (800, 64)
        "conv2_b": params["conv2_b"],
        "fc1_w": fc1.astype(jnp.bfloat16),                       # (1600, 2048)
        "fc1_b": params["fc1_b"],
        "fc2_w": params["fc2_w"].T.astype(jnp.bfloat16),         # (2048, 256)
        "fc2_b": params["fc2_b"],
        "fc3_w": fc3.astype(jnp.bfloat16),                       # (256, 128)
        "fc3_b": fc3_b,
    }


def forward(params, x):
    """Matches CIFAR100.forward; `params` must come from prepare_params()."""
    B = x.shape[0]
    # PyTorch: reshape (B,3,32,32) + .float(); the /255 is folded into conv1_w.
    x = x.reshape(B, 3, 32, 32).astype(jnp.float32)
    x = jnp.transpose(x, (0, 2, 3, 1))                           # NCHW -> NHWC
    x = x.astype(jnp.bfloat16)          # uint8 pixel values are exact in bf16
    x = conv2d_relu(x, params["conv1_w"], params["conv1_b"], kh=5, kw=5)  # (B,28,28,32)
    x = maxpool2x2(x)                                            # (B,14,14,32)
    x = conv2d_relu(x, params["conv2_w"], params["conv2_b"], kh=5, kw=5)  # (B,10,10,64)
    x = maxpool2x2(x)                                            # (B,5,5,64)
    # NHWC flatten; fc1_w rows were pre-permuted to match PyTorch's NCHW flatten.
    x = x.reshape(B, 5 * 5 * 64)                                 # (B,1600) bf16
    logits = fused_fc(x, params["fc1_w"], params["fc1_b"],
                      params["fc2_w"], params["fc2_b"],
                      params["fc3_w"], params["fc3_b"])          # (B,128) f32
    return logits[:, :100]


if __name__ == "__main__":
    key = jax.random.PRNGKey(0)
    pkey, xkey = jax.random.split(key)
    params = prepare_params(init_params(pkey))
    # Simulated uint8 CIFAR pixels; the model itself forces 3x32x32, batch=2.
    x = jax.random.randint(xkey, (2, 3, 32, 32), 0, 256, dtype=jnp.int32).astype(
        jnp.float32
    )
    out = jax.jit(forward)(params, x)
    out = jax.block_until_ready(out)
    assert out.shape == (2, 100) and out.dtype == jnp.float32
    print("KERNEL_OK")
</pallas_src>

<mosaic_0001>
module attributes {stable_mosaic.version = 11 : i64} {
  func.func @_dense_kernel(%arg0: i32, %arg1: i32, %arg2: memref<224x128xbf16, #tpu.memory_space<vmem>>, %arg3: memref<128x32xbf16, #tpu.memory_space<vmem>>, %arg4: memref<1x32xf32, #tpu.memory_space<vmem>>, %arg5: memref<224x32xbf16, #tpu.memory_space<vmem>>) attributes {dimension_semantics = [#tpu.dimension_semantics<parallel>, #tpu.dimension_semantics<parallel>], iteration_bounds = array<i64: 7, 1>, scalar_prefetch = 0 : i64, scratch_operands = 0 : i64, tpu.core_type = #tpu.core_type<tc>, window_params = [{transform_indices = @transform_0, window_bounds = array<i64: 224, 128>}, {transform_indices = @transform_1, window_bounds = array<i64: 128, 32>}, {transform_indices = @transform_2, window_bounds = array<i64: 1, 32>}, {transform_indices = @transform_3, window_bounds = array<i64: 224, 32>}]} {
    %c0 = arith.constant 0 : index
    %c0_0 = arith.constant 0 : index
    %0 = vector.load %arg2[%c0, %c0_0] : memref<224x128xbf16, #tpu.memory_space<vmem>>, vector<224x128xbf16>
    %c0_1 = arith.constant 0 : index
    %c0_2 = arith.constant 0 : index
    %1 = vector.load %arg3[%c0_1, %c0_2] : memref<128x32xbf16, #tpu.memory_space<vmem>>, vector<128x32xbf16>
    %cst = arith.constant dense<0.000000e+00> : vector<224x32xf32>
    %2 = tpu.matmul %0, %1, %cst {dimension_numbers = #tpu.dot_dimension_numbers<[1], [0], [0], [1], [0, 0, 1, 1], [], []>} : vector<224x128xbf16>, vector<128x32xbf16>, vector<224x32xf32> -> vector<224x32xf32>
    %c0_3 = arith.constant 0 : index
    %c0_4 = arith.constant 0 : index
    %3 = vector.load %arg4[%c0_3, %c0_4] : memref<1x32xf32, #tpu.memory_space<vmem>>, vector<1x32xf32>
    %4 = vector.broadcast %3 : vector<1x32xf32> to vector<224x32xf32>
    %5 = arith.addf %2, %4 : vector<224x32xf32>
    %cst_5 = arith.constant 0.000000e+00 : f32
    %6 = vector.broadcast %cst_5 : f32 to vector<224x32xf32>
    %7 = arith.maximumf %5, %6 : vector<224x32xf32>
    %8 = arith.truncf %7 : vector<224x32xf32> to vector<224x32xbf16>
    %c0_6 = arith.constant 0 : index
    %c0_7 = arith.constant 0 : index
    %9 = vector.load %arg5[%c0_6, %c0_7] : memref<224x32xbf16, #tpu.memory_space<vmem>>, vector<224x32xbf16>
    tpu.vector_store %arg5[%c0_6, %c0_7], %8 {strides = array<i32>} : memref<224x32xbf16, #tpu.memory_space<vmem>>, vector<224x32xbf16>,
    return
  }
  func.func @transform_0(%arg0: i32, %arg1: i32) -> (i32, i32) {
    %c0_i32 = arith.constant 0 : i32
    %c0_i32_0 = arith.constant 0 : i32
    return %arg0, %c0_i32 : i32, i32
  }
  func.func @transform_1(%arg0: i32, %arg1: i32) -> (i32, i32) {
    %c0_i32 = arith.constant 0 : i32
    %c0_i32_0 = arith.constant 0 : i32
    return %c0_i32, %arg1 : i32, i32
  }
  func.func @transform_2(%arg0: i32, %arg1: i32) -> (i32, i32) {
    %c0_i32 = arith.constant 0 : i32
    %c0_i32_0 = arith.constant 0 : i32
    return %c0_i32, %arg1 : i32, i32
  }
  func.func @transform_3(%arg0: i32, %arg1: i32) -> (i32, i32) {
    %c0_i32 = arith.constant 0 : i32
    return %arg0, %arg1 : i32, i32
  }
}

module attributes {stable_mosaic.version = 11 : i64} {
  func.func @_pool_kernel(%arg0: i32, %arg1: memref<28x2x896xbf16, #tpu.memory_space<vmem>>, %arg2: memref<28x448xbf16, #tpu.memory_space<vmem>>) attributes {dimension_semantics = [#tpu.dimension_semantics<arbitrary>], iteration_bounds = array<i64: 1>, scalar_prefetch = 0 : i64, scratch_operands = 0 : i64, tpu.core_type = #tpu.core_type<tc>, window_params = [{pipeline_mode = #tpu.pipeline_mode<synchronous>, transform_indices = @transform_0, window_bounds = array<i64: 28, 2, 896>}, {pipeline_mode = #tpu.pipeline_mode<synchronous>, transform_indices = @transform_1, window_bounds = array<i64: 28, 448>}]} {
    %c0 = arith.constant 0 : index
    %c0_0 = arith.constant 0 : index
    %c0_1 = arith.constant 0 : index
    %0 = vector.load %arg1[%c0, %c0_0, %c0_1] : memref<28x2x896xbf16, #tpu.memory_space<vmem>>, vector<28x2x896xbf16>
    %1 = vector.extract_strided_slice %0 {offsets = [0, 0, 0], sizes = [28, 1, 896], strides = [1, 1, 1]} : vector<28x2x896xbf16> to vector<28x1x896xbf16>
    %2 = vector.shape_cast %1 : vector<28x1x896xbf16> to vector<28x896xbf16>
    %3 = vector.extract_strided_slice %0 {offsets = [0, 1, 0], sizes = [28, 1, 896], strides = [1, 1, 1]} : vector<28x2x896xbf16> to vector<28x1x896xbf16>
    %4 = vector.shape_cast %3 : vector<28x1x896xbf16> to vector<28x896xbf16>
    %5 = arith.maximumf %2, %4 : vector<28x896xbf16>
    %6 = vector.shape_cast %5 : vector<28x896xbf16> to vector<28x14x64xbf16>
    %7 = vector.extract_strided_slice %6 {offsets = [0, 0, 0], sizes = [28, 14, 32], strides = [1, 1, 1]} : vector<28x14x64xbf16> to vector<28x14x32xbf16>
    %8 = vector.extract_strided_slice %6 {offsets = [0, 0, 32], sizes = [28, 14, 32], strides = [1, 1, 1]} : vector<28x14x64xbf16> to vector<28x14x32xbf16>
    %9 = arith.maximumf %7, %8 : vector<28x14x32xbf16>
    %10 = vector.shape_cast %9 : vector<28x14x32xbf16> to vector<28x448xbf16>
    %c0_2 = arith.constant 0 : index
    %c0_3 = arith.constant 0 : index
    %11 = vector.load %arg2[%c0_2, %c0_3] : memref<28x448xbf16, #tpu.memory_space<vmem>>, vector<28x448xbf16>
    tpu.vector_store %arg2[%c0_2, %c0_3], %10 {strides = array<i32>} : memref<28x448xbf16, #tpu.memory_space<vmem>>, vector<28x448xbf16>,
    return
  }
  func.func @transform_0(%arg0: i32) -> (i32, i32, i32) {
    %c0_i32 = arith.constant 0 : i32
    %c0_i32_0 = arith.constant 0 : i32
    %c0_i32_1 = arith.constant 0 : i32
    %c0_i32_2 = arith.constant 0 : i32
    return %c0_i32, %c0_i32_0, %c0_i32_1 : i32, i32, i32
  }
  func.func @transform_1(%arg0: i32) -> (i32, i32) {
    %c0_i32 = arith.constant 0 : i32
    %c0_i32_0 = arith.constant 0 : i32
    %c0_i32_1 = arith.constant 0 : i32
    return %c0_i32, %c0_i32_0 : i32, i32
  }
}

module attributes {stable_mosaic.version = 11 : i64} {
  func.func @_dense_kernel(%arg0: i32, %arg1: i32, %arg2: memref<200x800xbf16, #tpu.memory_space<vmem>>, %arg3: memref<800x64xbf16, #tpu.memory_space<vmem>>, %arg4: memref<1x64xf32, #tpu.memory_space<vmem>>, %arg5: memref<200x64xbf16, #tpu.memory_space<vmem>>) attributes {dimension_semantics = [#tpu.dimension_semantics<parallel>, #tpu.dimension_semantics<parallel>], iteration_bounds = array<i64: 1, 1>, scalar_prefetch = 0 : i64, scratch_operands = 0 : i64, tpu.core_type = #tpu.core_type<tc>, window_params = [{transform_indices = @transform_0, window_bounds = array<i64: 200, 800>}, {transform_indices = @transform_1, window_bounds = array<i64: 800, 64>}, {transform_indices = @transform_2, window_bounds = array<i64: 1, 64>}, {transform_indices = @transform_3, window_bounds = array<i64: 200, 64>}]} {
    %c0 = arith.constant 0 : index
    %c0_0 = arith.constant 0 : index
    %0 = vector.load %arg2[%c0, %c0_0] : memref<200x800xbf16, #tpu.memory_space<vmem>>, vector<200x800xbf16>
    %c0_1 = arith.constant 0 : index
    %c0_2 = arith.constant 0 : index
    %1 = vector.load %arg3[%c0_1, %c0_2] : memref<800x64xbf16, #tpu.memory_space<vmem>>, vector<800x64xbf16>
    %cst = arith.constant dense<0.000000e+00> : vector<200x64xf32>
    %2 = tpu.matmul %0, %1, %cst {dimension_numbers = #tpu.dot_dimension_numbers<[1], [0], [0], [1], [0, 0, 1, 1], [], []>} : vector<200x800xbf16>, vector<800x64xbf16>, vector<200x64xf32> -> vector<200x64xf32>
    %c0_3 = arith.constant 0 : index
    %c0_4 = arith.constant 0 : index
    %3 = vector.load %arg4[%c0_3, %c0_4] : memref<1x64xf32, #tpu.memory_space<vmem>>, vector<1x64xf32>
    %4 = vector.broadcast %3 : vector<1x64xf32> to vector<200x64xf32>
    %5 = arith.addf %2, %4 : vector<200x64xf32>
    %cst_5 = arith.constant 0.000000e+00 : f32
    %6 = vector.broadcast %cst_5 : f32 to vector<200x64xf32>
    %7 = arith.maximumf %5, %6 : vector<200x64xf32>
    %8 = arith.truncf %7 : vector<200x64xf32> to vector<200x64xbf16>
    %c0_6 = arith.constant 0 : index
    %c0_7 = arith.constant 0 : index
    %9 = vector.load %arg5[%c0_6, %c0_7] : memref<200x64xbf16, #tpu.memory_space<vmem>>, vector<200x64xbf16>
    tpu.vector_store %arg5[%c0_6, %c0_7], %8 {strides = array<i32>} : memref<200x64xbf16, #tpu.memory_space<vmem>>, vector<200x64xbf16>,
    return
  }
  func.func @transform_0(%arg0: i32, %arg1: i32) -> (i32, i32) {
    %c0_i32 = arith.constant 0 : i32
    %c0_i32_0 = arith.constant 0 : i32
    return %arg0, %c0_i32 : i32, i32
  }
  func.func @transform_1(%arg0: i32, %arg1: i32) -> (i32, i32) {
    %c0_i32 = arith.constant 0 : i32
    %c0_i32_0 = arith.constant 0 : i32
    return %c0_i32, %arg1 : i32, i32
  }
  func.func @transform_2(%arg0: i32, %arg1: i32) -> (i32, i32) {
    %c0_i32 = arith.constant 0 : i32
    %c0_i32_0 = arith.constant 0 : i32
    return %c0_i32, %arg1 : i32, i32
  }
  func.func @transform_3(%arg0: i32, %arg1: i32) -> (i32, i32) {
    %c0_i32 = arith.constant 0 : i32
    return %arg0, %arg1 : i32, i32
  }
}

module attributes {stable_mosaic.version = 11 : i64} {
  func.func @_pool_kernel(%arg0: i32, %arg1: memref<10x2x640xbf16, #tpu.memory_space<vmem>>, %arg2: memref<10x320xbf16, #tpu.memory_space<vmem>>) attributes {dimension_semantics = [#tpu.dimension_semantics<arbitrary>], iteration_bounds = array<i64: 1>, scalar_prefetch = 0 : i64, scratch_operands = 0 : i64, tpu.core_type = #tpu.core_type<tc>, window_params = [{pipeline_mode = #tpu.pipeline_mode<synchronous>, transform_indices = @transform_0, window_bounds = array<i64: 10, 2, 640>}, {pipeline_mode = #tpu.pipeline_mode<synchronous>, transform_indices = @transform_1, window_bounds = array<i64: 10, 320>}]} {
    %c0 = arith.constant 0 : index
    %c0_0 = arith.constant 0 : index
    %c0_1 = arith.constant 0 : index
    %0 = vector.load %arg1[%c0, %c0_0, %c0_1] : memref<10x2x640xbf16, #tpu.memory_space<vmem>>, vector<10x2x640xbf16>
    %1 = vector.extract_strided_slice %0 {offsets = [0, 0, 0], sizes = [10, 1, 640], strides = [1, 1, 1]} : vector<10x2x640xbf16> to vector<10x1x640xbf16>
    %2 = vector.shape_cast %1 : vector<10x1x640xbf16> to vector<10x640xbf16>
    %3 = vector.extract_strided_slice %0 {offsets = [0, 1, 0], sizes = [10, 1, 640], strides = [1, 1, 1]} : vector<10x2x640xbf16> to vector<10x1x640xbf16>
    %4 = vector.shape_cast %3 : vector<10x1x640xbf16> to vector<10x640xbf16>
    %5 = arith.maximumf %2, %4 : vector<10x640xbf16>
    %6 = vector.shape_cast %5 : vector<10x640xbf16> to vector<10x5x128xbf16>
    %7 = vector.extract_strided_slice %6 {offsets = [0, 0, 0], sizes = [10, 5, 64], strides = [1, 1, 1]} : vector<10x5x128xbf16> to vector<10x5x64xbf16>
    %8 = vector.extract_strided_slice %6 {offsets = [0, 0, 64], sizes = [10, 5, 64], strides = [1, 1, 1]} : vector<10x5x128xbf16> to vector<10x5x64xbf16>
    %9 = arith.maximumf %7, %8 : vector<10x5x64xbf16>
    %10 = vector.shape_cast %9 : vector<10x5x64xbf16> to vector<10x320xbf16>
    %c0_2 = arith.constant 0 : index
    %c0_3 = arith.constant 0 : index
    %11 = vector.load %arg2[%c0_2, %c0_3] : memref<10x320xbf16, #tpu.memory_space<vmem>>, vector<10x320xbf16>
    tpu.vector_store %arg2[%c0_2, %c0_3], %10 {strides = array<i32>} : memref<10x320xbf16, #tpu.memory_space<vmem>>, vector<10x320xbf16>,
    return
  }
  func.func @transform_0(%arg0: i32) -> (i32, i32, i32) {
    %c0_i32 = arith.constant 0 : i32
    %c0_i32_0 = arith.constant 0 : i32
    %c0_i32_1 = arith.constant 0 : i32
    %c0_i32_2 = arith.constant 0 : i32
    return %c0_i32, %c0_i32_0, %c0_i32_1 : i32, i32, i32
  }
  func.func @transform_1(%arg0: i32) -> (i32, i32) {
    %c0_i32 = arith.constant 0 : i32
    %c0_i32_0 = arith.constant 0 : i32
    %c0_i32_1 = arith.constant 0 : i32
    return %c0_i32, %c0_i32_0 : i32, i32
  }
}

module attributes {stable_mosaic.version = 11 : i64} {
  func.func @_fc_fused_kernel(%arg0: i32, %arg1: memref<2x1600xbf16, #tpu.memory_space<vmem>>, %arg2: memref<1600x512xbf16, #tpu.memory_space<vmem>>, %arg3: memref<1x512xf32, #tpu.memory_space<vmem>>, %arg4: memref<512x256xbf16, #tpu.memory_space<vmem>>, %arg5: memref<1x256xf32, #tpu.memory_space<vmem>>, %arg6: memref<256x128xbf16, #tpu.memory_space<vmem>>, %arg7: memref<1x128xf32, #tpu.memory_space<vmem>>, %arg8: memref<2x128xf32, #tpu.memory_space<vmem>>, %arg9: memref<2x256xf32, #tpu.memory_space<vmem>>) attributes {dimension_semantics = [#tpu.dimension_semantics<arbitrary>], iteration_bounds = array<i64: 4>, scalar_prefetch = 0 : i64, scratch_operands = 1 : i64, tpu.core_type = #tpu.core_type<tc>, window_params = [{pipeline_mode = #tpu.pipeline_mode<synchronous>, transform_indices = @transform_0, window_bounds = array<i64: 2, 1600>}, {transform_indices = @transform_1, window_bounds = array<i64: 1600, 512>}, {transform_indices = @transform_2, window_bounds = array<i64: 1, 512>}, {transform_indices = @transform_3, window_bounds = array<i64: 512, 256>}, {pipeline_mode = #tpu.pipeline_mode<synchronous>, transform_indices = @transform_4, window_bounds = array<i64: 1, 256>}, {pipeline_mode = #tpu.pipeline_mode<synchronous>, transform_indices = @transform_5, window_bounds = array<i64: 256, 128>}, {pipeline_mode = #tpu.pipeline_mode<synchronous>, transform_indices = @transform_6, window_bounds = array<i64: 1, 128>}, {pipeline_mode = #tpu.pipeline_mode<synchronous>, transform_indices = @transform_7, window_bounds = array<i64: 2, 128>}]} {
    %c0_i32 = arith.constant 0 : i32
    %0 = arith.cmpi eq, %arg0, %c0_i32 : i32
    %1 = arith.extui %0 : i1 to i32
    %c0_i32_0 = arith.constant 0 : i32
    %2 = arith.cmpi ne, %1, %c0_i32_0 : i32
    scf.if %2 {
      %cst_15 = arith.constant 0.000000e+00 : f32
      %20 = vector.broadcast %cst_15 : f32 to vector<2x256xf32>
      %c0_16 = arith.constant 0 : index
      %c0_17 = arith.constant 0 : index
      %21 = vector.load %arg9[%c0_16, %c0_17] : memref<2x256xf32, #tpu.memory_space<vmem>>, vector<2x256xf32>
      tpu.vector_store %arg9[%c0_16, %c0_17], %20 {strides = array<i32>} : memref<2x256xf32, #tpu.memory_space<vmem>>, vector<2x256xf32>,
    } else {
    }
    %c0 = arith.constant 0 : index
    %c0_1 = arith.constant 0 : index
    %3 = vector.load %arg1[%c0, %c0_1] : memref<2x1600xbf16, #tpu.memory_space<vmem>>, vector<2x1600xbf16>
    %c0_2 = arith.constant 0 : index
    %c0_3 = arith.constant 0 : index
    %4 = vector.load %arg2[%c0_2, %c0_3] : memref<1600x512xbf16, #tpu.memory_space<vmem>>, vector<1600x512xbf16>
    %cst = arith.constant dense<0.000000e+00> : vector<2x512xf32>
    %5 = tpu.matmul %3, %4, %cst {dimension_numbers = #tpu.dot_dimension_numbers<[1], [0], [0], [1], [0, 0, 1, 1], [], []>} : vector<2x1600xbf16>, vector<1600x512xbf16>, vector<2x512xf32> -> vector<2x512xf32>
    %c0_4 = arith.constant 0 : index
    %c0_5 = arith.constant 0 : index
    %6 = vector.load %arg3[%c0_4, %c0_5] : memref<1x512xf32, #tpu.memory_space<vmem>>, vector<1x512xf32>
    %7 = vector.broadcast %6 : vector<1x512xf32> to vector<2x512xf32>
    %8 = arith.addf %5, %7 : vector<2x512xf32>
    %cst_6 = arith.constant 0.000000e+00 : f32
    %9 = vector.broadcast %cst_6 : f32 to vector<2x512xf32>
    %10 = arith.maximumf %8, %9 : vector<2x512xf32>
    %11 = arith.truncf %10 : vector<2x512xf32> to vector<2x512xbf16>
    %c0_7 = arith.constant 0 : index
    %c0_8 = arith.constant 0 : index
    %12 = vector.load %arg9[%c0_7, %c0_8] : memref<2x256xf32, #tpu.memory_space<vmem>>, vector<2x256xf32>
    %c0_9 = arith.constant 0 : index
    %c0_10 = arith.constant 0 : index
    %13 = vector.load %arg4[%c0_9, %c0_10] : memref<512x256xbf16, #tpu.memory_space<vmem>>, vector<512x256xbf16>
    %cst_11 = arith.constant dense<0.000000e+00> : vector<2x256xf32>
    %14 = tpu.matmul %11, %13, %cst_11 {dimension_numbers = #tpu.dot_dimension_numbers<[1], [0], [0], [1], [0, 0, 1, 1], [], []>} : vector<2x512xbf16>, vector<512x256xbf16>, vector<2x256xf32> -> vector<2x256xf32>
    %15 = arith.addf %12, %14 : vector<2x256xf32>
    %c0_12 = arith.constant 0 : index
    %c0_13 = arith.constant 0 : index
    %16 = vector.load %arg9[%c0_12, %c0_13] : memref<2x256xf32, #tpu.memory_space<vmem>>, vector<2x256xf32>
    tpu.vector_store %arg9[%c0_12, %c0_13], %15 {strides = array<i32>} : memref<2x256xf32, #tpu.memory_space<vmem>>, vector<2x256xf32>,
    %c3_i32 = arith.constant 3 : i32
    %17 = arith.cmpi eq, %arg0, %c3_i32 : i32
    %18 = arith.extui %17 : i1 to i32
    %c0_i32_14 = arith.constant 0 : i32
    %19 = arith.cmpi ne, %18, %c0_i32_14 : i32
    scf.if %19 {
      %c0_15 = arith.constant 0 : index
      %c0_16 = arith.constant 0 : index
      %20 = vector.load %arg9[%c0_15, %c0_16] : memref<2x256xf32, #tpu.memory_space<vmem>>, vector<2x256xf32>
      %c0_17 = arith.constant 0 : index
      %c0_18 = arith.constant 0 : index
      %21 = vector.load %arg5[%c0_17, %c0_18] : memref<1x256xf32, #tpu.memory_space<vmem>>, vector<1x256xf32>
      %22 = vector.broadcast %21 : vector<1x256xf32> to vector<2x256xf32>
      %23 = arith.addf %20, %22 : vector<2x256xf32>
      %cst_19 = arith.constant 0.000000e+00 : f32
      %24 = vector.broadcast %cst_19 : f32 to vector<2x256xf32>
      %25 = arith.maximumf %23, %24 : vector<2x256xf32>
      %26 = arith.truncf %25 : vector<2x256xf32> to vector<2x256xbf16>
      %c0_20 = arith.constant 0 : index
      %c0_21 = arith.constant 0 : index
      %27 = vector.load %arg6[%c0_20, %c0_21] : memref<256x128xbf16, #tpu.memory_space<vmem>>, vector<256x128xbf16>
      %cst_22 = arith.constant dense<0.000000e+00> : vector<2x128xf32>
      %28 = tpu.matmul %26, %27, %cst_22 {dimension_numbers = #tpu.dot_dimension_numbers<[1], [0], [0], [1], [0, 0, 1, 1], [], []>} : vector<2x256xbf16>, vector<256x128xbf16>, vector<2x128xf32> -> vector<2x128xf32>
      %c0_23 = arith.constant 0 : index
      %c0_24 = arith.constant 0 : index
      %29 = vector.load %arg7[%c0_23, %c0_24] : memref<1x128xf32, #tpu.memory_space<vmem>>, vector<1x128xf32>
      %30 = vector.broadcast %29 : vector<1x128xf32> to vector<2x128xf32>
      %31 = arith.addf %28, %30 : vector<2x128xf32>
      %c0_25 = arith.constant 0 : index
      %c0_26 = arith.constant 0 : index
      %32 = vector.load %arg8[%c0_25, %c0_26] : memref<2x128xf32, #tpu.memory_space<vmem>>, vector<2x128xf32>
      tpu.vector_store %arg8[%c0_25, %c0_26], %31 {strides = array<i32>} : memref<2x128xf32, #tpu.memory_space<vmem>>, vector<2x128xf32>,
    } else {
    }
    return
  }
  func.func @transform_0(%arg0: i32) -> (i32, i32) {
    %c0_i32 = arith.constant 0 : i32
    %c0_i32_0 = arith.constant 0 : i32
    %c0_i32_1 = arith.constant 0 : i32
    return %c0_i32, %c0_i32_0 : i32, i32
  }
  func.func @transform_1(%arg0: i32) -> (i32, i32) {
    %c0_i32 = arith.constant 0 : i32
    %c0_i32_0 = arith.constant 0 : i32
    return %c0_i32, %arg0 : i32, i32
  }
  func.func @transform_2(%arg0: i32) -> (i32, i32) {
    %c0_i32 = arith.constant 0 : i32
    %c0_i32_0 = arith.constant 0 : i32
    return %c0_i32, %arg0 : i32, i32
  }
  func.func @transform_3(%arg0: i32) -> (i32, i32) {
    %c0_i32 = arith.constant 0 : i32
    %c0_i32_0 = arith.constant 0 : i32
    return %arg0, %c0_i32 : i32, i32
  }
  func.func @transform_4(%arg0: i32) -> (i32, i32) {
    %c0_i32 = arith.constant 0 : i32
    %c0_i32_0 = arith.constant 0 : i32
    %c0_i32_1 = arith.constant 0 : i32
    return %c0_i32, %c0_i32_0 : i32, i32
  }
  func.func @transform_5(%arg0: i32) -> (i32, i32) {
    %c0_i32 = arith.constant 0 : i32
    %c0_i32_0 = arith.constant 0 : i32
    %c0_i32_1 = arith.constant 0 : i32
    return %c0_i32, %c0_i32_0 : i32, i32
  }
  func.func @transform_6(%arg0: i32) -> (i32, i32) {
    %c0_i32 = arith.constant 0 : i32
    %c0_i32_0 = arith.constant 0 : i32
    %c0_i32_1 = arith.constant 0 : i32
    return %c0_i32, %c0_i32_0 : i32, i32
  }
  func.func @transform_7(%arg0: i32) -> (i32, i32) {
    %c0_i32 = arith.constant 0 : i32
    %c0_i32_0 = arith.constant 0 : i32
    %c0_i32_1 = arith.constant 0 : i32
    return %c0_i32, %c0_i32_0 : i32, i32
  }
}

</mosaic_0001>

<llo_original>
// kernel: forward.5
$region0: #{forward.5}
  #allocation0 [shape = 'u32[]', space=smem, size = 0x4, offset = 0x4, fixed_abs, tag = 'smem constant byte address 0x4 - core index']
  #allocation1 [shape = 'u32[72,128]{1,0:T(1,128)}', space=vmem, size = 0x9000, scoped, tag = 'internal scratch']
  %s0 = inlined_call_operand.vmem [shape: bf16[1568,128], index: 0, kind: input, shape index: {}]
  %s1 = inlined_call_operand.vmem [shape: bf16[128,32], index: 1, kind: input, shape index: {}]
  %s2 = inlined_call_operand.vmem [shape: f32[1,32], index: 2, kind: input, shape index: {}]
  %s3 = inlined_call_operand.vmem [shape: bf16[1568,32], index: 3, kind: output, shape index: {}]
  %s4 = sld [smem:[#allocation0]]
  $region45: #{forward.5} parent=0
    _
  %s6 = ssub.s32 1, %s4
  %s7 = scalar_select 0, %s6, %s4
  loop: start=0, step=1, limit=9
  $region2: #{forward.5} parent=0 // loop_pre_header
    _
  $region3: #{forward.5} parent=0 // loop_header
    %s9 = sphi 0, %s13
    %p10 = scmp.ge.s32.totalorder %s9, 9
    %s16 = sphi 0, %s28
    %s17 = sphi 0, %s24
    %s18 = sphi 0, %s16
    %s19 = sphi 0, %s17
    %s20 = sphi 0, %s18
    %s21 = sphi 0, %s19
    %s31 = sphi 0, %s33
    %s34 = sphi 0, %s31
    %s35 = sphi 0, %s34
    %s51 = sphi 0, %s35
    %s57 = sphi 0, %s59
    %s60 = sphi 0, %s57
    %s61 = sphi 0, %s60
    %s77 = sphi 0, %s61
    %s83 = sphi 0, %s85
    %s86 = sphi 0, %s83
    %s87 = sphi 0, %s86
    %s103 = sphi 0, %s87
    %s111 = sphi 0, %s113
    %s114 = sphi 0, %s111
    %s115 = sphi 0, %s114
    %s131 = sphi 0, %s115
  $region4: #{forward.5} parent=0 // loop_header_branch
    %12 = sbr.rel (%p10) target = $region8
  $region5: #{forward.5} parent=0 // loop_body
    %s14 = ssub.s32 %s9, 1
    %s15 = ssub.s32 %s9, 2
    %s22 = sadd.s32 1, %s17
    %p23 = scmp.ge.s32.totalorder %s22, 1
    %s24 = scalar_select %p23, 0, %s22
    %s25 = sadd.s32 1, %s16
    %s26 = scalar_select %p23, %s25, %s16
    %p27 = scmp.ge.s32.totalorder %s26, 7
    %s28 = scalar_select %p27, 0, %s26
    %s29 = ssub.s32 %s16, %s28
    %p30 = scmp.eq.s32.totalorder %s29, 0
    %s32 = sadd.s32 %s31, 1
    %s33 = scalar_select %p30, %s31, %s32
    %p36 = pneg %p30
    %p37 = scmp.eq.s32.totalorder %s9, 6
    %p38 = por %p36, %p37
    %p39 = scmp.ne.s32.totalorder %s31, %s34
    %p40 = scmp.eq.s32.totalorder %s9, 0
    %p41 = por %p39, %p40
    %p42 = scmp.ne.s32.totalorder %s31, %s34
    %p43 = scmp.eq.s32.totalorder %s14, 6
    %p44 = por %p42, %p43
    %p45 = scmp.ne.s32.totalorder %s34, %s35
    %p46 = scmp.eq.s32.totalorder %s14, 0
    %p47 = por %p45, %p46
    %p48 = scmp.ne.s32.totalorder %s34, %s35
    %p49 = scmp.eq.s32.totalorder %s15, 6
    %p50 = por %p48, %p49
    %p52 = scmp.ne.s32.totalorder %s35, %s51
    %p53 = scmp.eq.s32.totalorder %s15, 0
    %p54 = por %p52, %p53
    %s55 = ssub.s32 %s17, %s24
    %p56 = scmp.eq.s32.totalorder %s55, 0
    %s58 = sadd.s32 %s57, 1
    %s59 = scalar_select %p56, %s57, %s58
    %p62 = pneg %p56
    %p63 = scmp.eq.s32.totalorder %s9, 6
    %p64 = por %p62, %p63
    %p65 = scmp.ne.s32.totalorder %s57, %s60
    %p66 = scmp.eq.s32.totalorder %s9, 0
    %p67 = por %p65, %p66
    %p68 = scmp.ne.s32.totalorder %s57, %s60
    %p69 = scmp.eq.s32.totalorder %s14, 6
    %p70 = por %p68, %p69
    %p71 = scmp.ne.s32.totalorder %s60, %s61
    %p72 = scmp.eq.s32.totalorder %s14, 0
    %p73 = por %p71, %p72
    %p74 = scmp.ne.s32.totalorder %s60, %s61
    %p75 = scmp.eq.s32.totalorder %s15, 6
    %p76 = por %p74, %p75
    %p78 = scmp.ne.s32.totalorder %s61, %s77
    %p79 = scmp.eq.s32.totalorder %s15, 0
    %p80 = por %p78, %p79
    %s81 = ssub.s32 %s17, %s24
    %p82 = scmp.eq.s32.totalorder %s81, 0
    %s84 = sadd.s32 %s83, 1
    %s85 = scalar_select %p82, %s83, %s84
    %p88 = pneg %p82
    %p89 = scmp.eq.s32.totalorder %s9, 6
    %p90 = por %p88, %p89
    %p91 = scmp.ne.s32.totalorder %s83, %s86
    %p92 = scmp.eq.s32.totalorder %s9, 0
    %p93 = por %p91, %p92
    %p94 = scmp.ne.s32.totalorder %s83, %s86
    %p95 = scmp.eq.s32.totalorder %s14, 6
    %p96 = por %p94, %p95
    %p97 = scmp.ne.s32.totalorder %s86, %s87
    %p98 = scmp.eq.s32.totalorder %s14, 0
    %p99 = por %p97, %p98
    %p100 = scmp.ne.s32.totalorder %s86, %s87
    %p101 = scmp.eq.s32.totalorder %s15, 6
    %p102 = por %p100, %p101
    %p104 = scmp.ne.s32.totalorder %s87, %s103
    %p105 = scmp.eq.s32.totalorder %s15, 0
    %p106 = por %p104, %p105
    %s107 = ssub.s32 %s16, %s28
    %s108 = ssub.s32 %s17, %s24
    %s109 = sor.u32 %s107, %s108
    %p110 = scmp.eq.s32.totalorder %s109, 0
    %s112 = sadd.s32 %s111, 1
    %s113 = scalar_select %p110, %s111, %s112
    %p116 = pneg %p110
    %p117 = scmp.eq.s32.totalorder %s9, 6
    %p118 = por %p116, %p117
    %p119 = scmp.ne.s32.totalorder %s111, %s114
    %p120 = scmp.eq.s32.totalorder %s9, 0
    %p121 = por %p119, %p120
    %p122 = scmp.ne.s32.totalorder %s111, %s114
    %p123 = scmp.eq.s32.totalorder %s14, 6
    %p124 = por %p122, %p123
    %p125 = scmp.ne.s32.totalorder %s114, %s115
    %p126 = scmp.eq.s32.totalorder %s14, 0
    %p127 = por %p125, %p126
    %p128 = scmp.ne.s32.totalorder %s114, %s115
    %p129 = scmp.eq.s32.totalorder %s15, 6
    %p130 = por %p128, %p129
    %p132 = scmp.ne.s32.totalorder %s115, %s131
    %p133 = scmp.eq.s32.totalorder %s15, 0
    %p134 = por %p132, %p133
    %p135 = scmp.le.s32.totalorder 1, %s9
    %p136 = scmp.lt.s32.totalorder %s9, 8
    %p137 = pnand %p135, %p136
    %p138 = pneg %p137
    // Predicated region
    $region9: #{forward.5} parent=5 // pred_check
      _
    $region10: #{forward.5} parent=5 // pred_check_branch
      %140 = sbr.rel (%p137) target = $region12
    $region11: #{forward.5} parent=5 // pred_region
      %s141 = ssub.s32 %s9, 1
      // Predicated region
      $region13: #{forward.5} parent=11 // pred_check
        %p142 = pneg %p73
      $region14: #{forward.5} parent=11 // pred_check_branch
        %144 = sbr.rel (%p142) target = $region16
      $region15: #{forward.5} parent=11 // pred_region
        %p145 = scmp.lt.s32.totalorder %s19, 0
        %s146 = scalar_select %p145, %s19, 0
        %s147 = smul.addr %s146, 4
        %s148 = scalar_lea.vmem %s1, %s147
      $region16: #{forward.5} parent=11 // pred_fallthru
        _
      // Predicated region
      $region17: #{forward.5} parent=11 // pred_check
        %p149 = pneg %p99
      $region18: #{forward.5} parent=11 // pred_check_branch
        %151 = sbr.rel (%p149) target = $region20
      $region19: #{forward.5} parent=11 // pred_region
        %p152 = scmp.lt.s32.totalorder %s19, 0
        %s153 = scalar_select %p152, %s19, 0
        %s154 = scalar_lea.vmem %s2, %s153
      $region20: #{forward.5} parent=11 // pred_fallthru
        _
    $region12: #{forward.5} parent=5 // pred_fallthru
      _
    %p155 = scmp.lt.s32.totalorder %s9, 7
    // Predicated region
    $region21: #{forward.5} parent=5 // pred_check
      %p156 = pneg %p155
    $region22: #{forward.5} parent=5 // pred_check_branch
      %158 = sbr.rel (%p156) target = $region24
    $region23: #{forward.5} parent=5 // pred_region
      // Predicated region
      $region25: #{forward.5} parent=23 // pred_check
        %p159 = pneg %p41
      $region26: #{forward.5} parent=23 // pred_check_branch
        %161 = sbr.rel (%p159) target = $region28
      $region27: #{forward.5} parent=23 // pred_region
        %s162 = smul.u32 28, %s16
        %p163 = scmp.lt.s32.totalorder %s162, 195
        %s164 = scalar_select %p163, %s162, 195
        %s165 = smul.addr %s164, 4
        %s166 = scalar_lea.vmem %s0, %s165
        %s167 = smul.u32 28, %s16
      $region28: #{forward.5} parent=23 // pred_fallthru
        _
    $region24: #{forward.5} parent=5 // pred_fallthru
      _
    %p168 = scmp.le.s32.totalorder 1, %s9
    %p169 = scmp.lt.s32.totalorder %s9, 8
    %p170 = pnand %p168, %p169
    %p171 = pneg %p170
    // Predicated region
    $region29: #{forward.5} parent=5 // pred_check
      _
    $region30: #{forward.5} parent=5 // pred_check_branch
      %173 = sbr.rel (%p170) target = $region32
    $region31: #{forward.5} parent=5 // pred_region
      %s174 = ssub.s32 %s9, 1
      %s175 = smul.u32 28, %s18
      %p176 = scmp.lt.s32.totalorder %s175, 195
      %s177 = scalar_select %p176, %s175, 195
      %s178 = smul.addr %s177, 4
      %s179 = scalar_lea.vmem %s0, %s178
      %p180 = pneg %p47
      %p181 = pneg %p44
      %p182 = scmp.lt.s32.totalorder %s19, 0
      %s183 = scalar_select %p182, %s19, 0
      %s184 = smul.addr %s183, 4
      %s185 = scalar_lea.vmem %s1, %s184
      %p186 = pneg %p73
      %p187 = pneg %p70
      %p188 = scmp.lt.s32.totalorder %s19, 0
      %s189 = scalar_select %p188, %s19, 0
      %s190 = scalar_lea.vmem %s2, %s189
      %p191 = pneg %p99
      %p192 = pneg %p96
      %p193 = pneg %p127
      %p194 = pneg %p124
      %s195 = smul.u32 28, %s18
      %p196 = scmp.lt.s32.totalorder %s195, 195
      %s197 = scalar_select %p196, %s195, 195
      %p198 = scmp.lt.s32.totalorder %s19, 0
      %s199 = scalar_select %p198, %s19, 0
      %s200 = sadd.s32 %s199, %s197
      %s201 = smul.addr %s200, 4
      %s202 = scalar_lea.vmem %s3, %s201
      %s203 = smul.u32 28, %s18
      %p204 = scmp.lt.s32.totalorder %s203, 195
      %s205 = scalar_select %p204, %s203, 195
      %s206 = smul.addr %s205, 4
      %s207 = scalar_lea.vmem %s0, %s206
      %s208 = smul.u32 28, %s18
      %p209 = scmp.lt.s32.totalorder %s19, 0
      %s210 = scalar_select %p209, %s19, 0
      %s211 = smul.addr %s210, 4
      %s212 = scalar_lea.vmem %s1, %s211
      %p213 = scmp.lt.s32.totalorder %s19, 0
      %s214 = scalar_select %p213, %s19, 0
      %s215 = scalar_lea.vmem %s2, %s214
      %s216 = smul.u32 28, %s18
      %p217 = scmp.lt.s32.totalorder %s216, 195
      %s218 = scalar_select %p217, %s216, 195
      %p219 = scmp.lt.s32.totalorder %s19, 0
      %s220 = scalar_select %p219, %s19, 0
      %s221 = sadd.s32 %s220, %s218
      %s222 = smul.addr %s221, 4
      %s223 = scalar_lea.vmem %s3, %s222
      %s224 = smul.u32 28, %s18
      %v225 = vld [vmem:[%s207] sm:$0xf]
      %v226 = vld [vmem:[%s207 + $0x4] sm:$0xf]
      %v227 = vld [vmem:[%s207 + $0x8] sm:$0xf]
      %v228 = vld [vmem:[%s207 + $0xc] sm:$0xf]
      %v229 = vld [vmem:[%s207 + $0x10] sm:$0xf]
      %v230 = vld [vmem:[%s207 + $0x14] sm:$0xf]
      %v231 = vld [vmem:[%s207 + $0x18] sm:$0xf]
      %v232 = vld [vmem:[%s207 + $0x1c] sm:$0xf]
      %v233 = vld [vmem:[%s207 + $0x20] sm:$0xf]
      %v234 = vld [vmem:[%s207 + $0x24] sm:$0xf]
      %v235 = vld [vmem:[%s207 + $0x28] sm:$0xf]
      %v236 = vld [vmem:[%s207 + $0x2c] sm:$0xf]
      %v237 = vld [vmem:[%s207 + $0x30] sm:$0xf]
      %v238 = vld [vmem:[%s207 + $0x34] sm:$0xf]
      %v239 = vld [vmem:[%s207 + $0x38] sm:$0xf]
      %v240 = vld [vmem:[%s207 + $0x3c] sm:$0xf]
      %v241 = vld [vmem:[%s207 + $0x40] sm:$0xf]
      %v242 = vld [vmem:[%s207 + $0x44] sm:$0xf]
      %v243 = vld [vmem:[%s207 + $0x48] sm:$0xf]
      %v244 = vld [vmem:[%s207 + $0x4c] sm:$0xf]
      %v245 = vld [vmem:[%s207 + $0x50] sm:$0xf]
      %v246 = vld [vmem:[%s207 + $0x54] sm:$0xf]
      %v247 = vld [vmem:[%s207 + $0x58] sm:$0xf]
      %v248 = vld [vmem:[%s207 + $0x5c] sm:$0xf]
      %v249 = vld [vmem:[%s207 + $0x60] sm:$0xf]
      %v250 = vld [vmem:[%s207 + $0x64] sm:$0xf]
      %v251 = vld [vmem:[%s207 + $0x68] sm:$0xf]
      %v252 = vld [vmem:[%s207 + $0x6c] sm:$0xf]
      %v253 = vld [vmem:[%s212] sm:$0xf]
      %v254 = vld [vmem:[%s212 + $0x4] sm:$0xf]
      %v255 = vld [vmem:[%s212 + $0x8] sm:$0xf]
      %v256 = vld [vmem:[%s212 + $0xc] sm:$0xf]
      %v257 = vld [vmem:[%s212 + $0x10] sm:$0xf]
      %v258 = vld [vmem:[%s212 + $0x14] sm:$0xf]
      %v259 = vld [vmem:[%s212 + $0x18] sm:$0xf]
      %v260 = vld [vmem:[%s212 + $0x1c] sm:$0xf]
      %v261 = vld [vmem:[%s212 + $0x20] sm:$0xf]
      %v262 = vld [vmem:[%s212 + $0x24] sm:$0xf]
      %v263 = vld [vmem:[%s212 + $0x28] sm:$0xf]
      %v264 = vld [vmem:[%s212 + $0x2c] sm:$0xf]
      %v265 = vld [vmem:[%s212 + $0x30] sm:$0xf]
      %v266 = vld [vmem:[%s212 + $0x34] sm:$0xf]
      %v267 = vld [vmem:[%s212 + $0x38] sm:$0xf]
      %v268 = vld [vmem:[%s212 + $0x3c] sm:$0xf]
      %v269 = vld [vmem:[%s215] sm:$0x1]
      %v271 = vperm.slane %v269, 0
      %v301 = vunpack.c.l.b16 %v225
      %v302 = vunpack.c.l.b16 %v226
      %v303 = vunpack.c.l.b16 %v227
      %v304 = vunpack.c.l.b16 %v228
      %v305 = vunpack.c.l.b16 %v229
      %v306 = vunpack.c.l.b16 %v230
      %v307 = vunpack.c.l.b16 %v231
      %v308 = vunpack.c.l.b16 %v232
      %v309 = vunpack.c.l.b16 %v233
      %v310 = vunpack.c.l.b16 %v234
      %v311 = vunpack.c.l.b16 %v235
      %v312 = vunpack.c.l.b16 %v236
      %v313 = vunpack.c.l.b16 %v237
      %v314 = vunpack.c.l.b16 %v238
      %v315 = vunpack.c.l.b16 %v239
      %v316 = vunpack.c.l.b16 %v240
      %v317 = vunpack.c.l.b16 %v241
      %v318 = vunpack.c.l.b16 %v242
      %v319 = vunpack.c.l.b16 %v243
      %v320 = vunpack.c.l.b16 %v244
      %v321 = vunpack.c.l.b16 %v245
      %v322 = vunpack.c.l.b16 %v246
      %v323 = vunpack.c.l.b16 %v247
      %v324 = vunpack.c.l.b16 %v248
      %v325 = vunpack.c.l.b16 %v249
      %v326 = vunpack.c.l.b16 %v250
      %v327 = vunpack.c.l.b16 %v251
      %v328 = vunpack.c.l.b16 %v252
      %v329 = vpack.c.b16 %v302, %v301
      %v330 = vpack.c.b16 %v304, %v303
      %v331 = vpack.c.b16 %v306, %v305
      %v332 = vpack.c.b16 %v308, %v307
      %v333 = vpack.c.b16 %v310, %v309
      %v334 = vpack.c.b16 %v312, %v311
      %v335 = vpack.c.b16 %v314, %v313
      %v336 = vpack.c.b16 %v316, %v315
      %v337 = vpack.c.b16 %v318, %v317
      %v338 = vpack.c.b16 %v320, %v319
      %v339 = vpack.c.b16 %v322, %v321
      %v340 = vpack.c.b16 %v324, %v323
      %v341 = vpack.c.b16 %v326, %v325
      %v342 = vpack.c.b16 %v328, %v327
      %v373 = vunpack.c.l.b16 %v253
      %v374 = vunpack.c.l.b16 %v254
      %v375 = vunpack.c.l.b16 %v255
      %v376 = vunpack.c.l.b16 %v256
      %v377 = vunpack.c.l.b16 %v257
      %v378 = vunpack.c.l.b16 %v258
      %v379 = vunpack.c.l.b16 %v259
      %v380 = vunpack.c.l.b16 %v260
      %v381 = vunpack.c.l.b16 %v261
      %v382 = vunpack.c.l.b16 %v262
      %v383 = vunpack.c.l.b16 %v263
      %v384 = vunpack.c.l.b16 %v264
      %v385 = vunpack.c.l.b16 %v265
      %v386 = vunpack.c.l.b16 %v266
      %v387 = vunpack.c.l.b16 %v267
      %v388 = vunpack.c.l.b16 %v268
      %v389 = vpack.c.b16 %v374, %v373
      %v390 = vpack.c.b16 %v376, %v375
      %v391 = vpack.c.b16 %v378, %v377
      %v392 = vpack.c.b16 %v380, %v379
      %v393 = vpack.c.b16 %v382, %v381
      %v394 = vpack.c.b16 %v384, %v383
      %v395 = vpack.c.b16 %v386, %v385
      %v396 = vpack.c.b16 %v388, %v387
      %405 = vmatpush.bf16.msra.mxu0 %v396
      %406 = vmatpush.bf16.msra.mxu0 %v395
      %407 = vmatpush.bf16.msra.mxu0 %v394
      %408 = vmatpush.bf16.msra.mxu0 %v393
      %409 = vmatpush.bf16.msra.mxu0 %v392
      %410 = vmatpush.bf16.msra.mxu0 %v391
      %411 = vmatpush.bf16.msra.mxu0 %v390
      %412 = vmatpush.bf16.msra.mxu0 %v389
      %413 = vmatmul.bf16.gmra.mxu0 %v329
      %v414 = vpop.f32.mrf.mxu0
      %v415 = vadd.f32 %v271, %v414
      %v416 = vpop.f32.mrf.mxu0
      %v417 = vadd.f32 %v271, %v416
      %418 = vmatmul.bf16.gmra.mxu0 %v330
      %v419 = vpop.f32.mrf.mxu0
      %v420 = vadd.f32 %v271, %v419
      %v421 = vpop.f32.mrf.mxu0
      %v422 = vadd.f32 %v271, %v421
      %423 = vmatmul.bf16.gmra.mxu0 %v331
      %v424 = vpop.f32.mrf.mxu0
      %v425 = vadd.f32 %v271, %v424
      %v426 = vpop.f32.mrf.mxu0
      %v427 = vadd.f32 %v271, %v426
      %428 = vmatmul.bf16.gmra.mxu0 %v332
      %v429 = vpop.f32.mrf.mxu0
      %v430 = vadd.f32 %v271, %v429
      %v431 = vpop.f32.mrf.mxu0
      %v432 = vadd.f32 %v271, %v431
      %433 = vmatmul.bf16.gmra.mxu0 %v333
      %v434 = vpop.f32.mrf.mxu0
      %v435 = vadd.f32 %v271, %v434
      %v436 = vpop.f32.mrf.mxu0
      %v437 = vadd.f32 %v271, %v436
      %438 = vmatmul.bf16.gmra.mxu0 %v334
      %v439 = vpop.f32.mrf.mxu0
      %v440 = vadd.f32 %v271, %v439
      %v441 = vpop.f32.mrf.mxu0
      %v442 = vadd.f32 %v271, %v441
      %443 = vmatmul.bf16.gmra.mxu0 %v335
      %v444 = vpop.f32.mrf.mxu0
      %v445 = vadd.f32 %v271, %v444
      %v446 = vpop.f32.mrf.mxu0
      %v447 = vadd.f32 %v271, %v446
      %448 = vmatmul.bf16.gmra.mxu0 %v336
      %v449 = vpop.f32.mrf.mxu0
      %v450 = vadd.f32 %v271, %v449
      %v451 = vpop.f32.mrf.mxu0
      %v452 = vadd.f32 %v271, %v451
      %453 = vmatmul.bf16.gmra.mxu0 %v337
      %v454 = vpop.f32.mrf.mxu0
      %v455 = vadd.f32 %v271, %v454
      %v456 = vpop.f32.mrf.mxu0
      %v457 = vadd.f32 %v271, %v456
      %458 = vmatmul.bf16.gmra.mxu0 %v338
      %v459 = vpop.f32.mrf.mxu0
      %v460 = vadd.f32 %v271, %v459
      %v461 = vpop.f32.mrf.mxu0
      %v462 = vadd.f32 %v271, %v461
      %463 = vmatmul.bf16.gmra.mxu0 %v339
      %v464 = vpop.f32.mrf.mxu0
      %v465 = vadd.f32 %v271, %v464
      %v466 = vpop.f32.mrf.mxu0
      %v467 = vadd.f32 %v271, %v466
      %468 = vmatmul.bf16.gmra.mxu0 %v340
      %v469 = vpop.f32.mrf.mxu0
      %v470 = vadd.f32 %v271, %v469
      %v471 = vpop.f32.mrf.mxu0
      %v472 = vadd.f32 %v271, %v471
      %473 = vmatmul.bf16.gmra.mxu0 %v341
      %v474 = vpop.f32.mrf.mxu0
      %v475 = vadd.f32 %v271, %v474
      %v476 = vpop.f32.mrf.mxu0
      %v477 = vadd.f32 %v271, %v476
      %478 = vmatmul.bf16.gmra.mxu0 %v342
      %v479 = vpop.f32.mrf.mxu0
      %v480 = vadd.f32 %v271, %v479
      %v481 = vpop.f32.mrf.mxu0
      %v482 = vadd.f32 %v271, %v481
      %483 = vdwg.mxu0
      %v484 = vmax.f32 %v415, 0.0
      %v485 = vmax.f32 %v417, 0.0
      %v486 = vmax.f32 %v420, 0.0
      %v487 = vmax.f32 %v422, 0.0
      %v488 = vmax.f32 %v425, 0.0
      %v489 = vmax.f32 %v427, 0.0
      %v490 = vmax.f32 %v430, 0.0
      %v491 = vmax.f32 %v432, 0.0
      %v492 = vmax.f32 %v435, 0.0
      %v493 = vmax.f32 %v437, 0.0
      %v494 = vmax.f32 %v440, 0.0
      %v495 = vmax.f32 %v442, 0.0
      %v496 = vmax.f32 %v445, 0.0
      %v497 = vmax.f32 %v447, 0.0
      %v498 = vmax.f32 %v450, 0.0
      %v499 = vmax.f32 %v452, 0.0
      %v500 = vmax.f32 %v455, 0.0
      %v501 = vmax.f32 %v457, 0.0
      %v502 = vmax.f32 %v460, 0.0
      %v503 = vmax.f32 %v462, 0.0
      %v504 = vmax.f32 %v465, 0.0
      %v505 = vmax.f32 %v467, 0.0
      %v506 = vmax.f32 %v470, 0.0
      %v507 = vmax.f32 %v472, 0.0
      %v508 = vmax.f32 %v475, 0.0
      %v509 = vmax.f32 %v477, 0.0
      %v510 = vmax.f32 %v480, 0.0
      %v511 = vmax.f32 %v482, 0.0
      %v512 = vpack.c.bf16 %v484, %v484
      %v513 = vpack.c.bf16 %v485, %v485
      %v514 = vpack.c.bf16 %v486, %v486
      %v515 = vpack.c.bf16 %v487, %v487
      %v516 = vpack.c.bf16 %v488, %v488
      %v517 = vpack.c.bf16 %v489, %v489
      %v518 = vpack.c.bf16 %v490, %v490
      %v519 = vpack.c.bf16 %v491, %v491
      %v520 = vpack.c.bf16 %v492, %v492
      %v521 = vpack.c.bf16 %v493, %v493
      %v522 = vpack.c.bf16 %v494, %v494
      %v523 = vpack.c.bf16 %v495, %v495
      %v524 = vpack.c.bf16 %v496, %v496
      %v525 = vpack.c.bf16 %v497, %v497
      %v526 = vpack.c.bf16 %v498, %v498
      %v527 = vpack.c.bf16 %v499, %v499
      %v528 = vpack.c.bf16 %v500, %v500
      %v529 = vpack.c.bf16 %v501, %v501
      %v530 = vpack.c.bf16 %v502, %v502
      %v531 = vpack.c.bf16 %v503, %v503
      %v532 = vpack.c.bf16 %v504, %v504
      %v533 = vpack.c.bf16 %v505, %v505
      %v534 = vpack.c.bf16 %v506, %v506
      %v535 = vpack.c.bf16 %v507, %v507
      %v536 = vpack.c.bf16 %v508, %v508
      %v537 = vpack.c.bf16 %v509, %v509
      %v538 = vpack.c.bf16 %v510, %v510
      %v539 = vpack.c.bf16 %v511, %v511
      %vm540 = vcmask 257024
      %541 = vst.msk [vmem:[%s223] sm:$0xf] %vm540, %v512
      %542 = vst.msk [vmem:[%s223 + $0x4] sm:$0xf] %vm540, %v513
      %543 = vst.msk [vmem:[%s223 + $0x8] sm:$0xf] %vm540, %v514
      %544 = vst.msk [vmem:[%s223 + $0xc] sm:$0xf] %vm540, %v515
      %545 = vst.msk [vmem:[%s223 + $0x10] sm:$0xf] %vm540, %v516
      %546 = vst.msk [vmem:[%s223 + $0x14] sm:$0xf] %vm540, %v517
      %547 = vst.msk [vmem:[%s223 + $0x18] sm:$0xf] %vm540, %v518
      %548 = vst.msk [vmem:[%s223 + $0x1c] sm:$0xf] %vm540, %v519
      %549 = vst.msk [vmem:[%s223 + $0x20] sm:$0xf] %vm540, %v520
      %550 = vst.msk [vmem:[%s223 + $0x24] sm:$0xf] %vm540, %v521
      %551 = vst.msk [vmem:[%s223 + $0x28] sm:$0xf] %vm540, %v522
      %552 = vst.msk [vmem:[%s223 + $0x2c] sm:$0xf] %vm540, %v523
      %553 = vst.msk [vmem:[%s223 + $0x30] sm:$0xf] %vm540, %v524
      %554 = vst.msk [vmem:[%s223 + $0x34] sm:$0xf] %vm540, %v525
      %555 = vst.msk [vmem:[%s223 + $0x38] sm:$0xf] %vm540, %v526
      %556 = vst.msk [vmem:[%s223 + $0x3c] sm:$0xf] %vm540, %v527
      %557 = vst.msk [vmem:[%s223 + $0x40] sm:$0xf] %vm540, %v528
      %558 = vst.msk [vmem:[%s223 + $0x44] sm:$0xf] %vm540, %v529
      %559 = vst.msk [vmem:[%s223 + $0x48] sm:$0xf] %vm540, %v530
      %560 = vst.msk [vmem:[%s223 + $0x4c] sm:$0xf] %vm540, %v531
      %561 = vst.msk [vmem:[%s223 + $0x50] sm:$0xf] %vm540, %v532
      %562 = vst.msk [vmem:[%s223 + $0x54] sm:$0xf] %vm540, %v533
      %563 = vst.msk [vmem:[%s223 + $0x58] sm:$0xf] %vm540, %v534
      %564 = vst.msk [vmem:[%s223 + $0x5c] sm:$0xf] %vm540, %v535
      %565 = vst.msk [vmem:[%s223 + $0x60] sm:$0xf] %vm540, %v536
      %566 = vst.msk [vmem:[%s223 + $0x64] sm:$0xf] %vm540, %v537
      %567 = vst.msk [vmem:[%s223 + $0x68] sm:$0xf] %vm540, %v538
      %568 = vst.msk [vmem:[%s223 + $0x6c] sm:$0xf] %vm540, %v539
      %s569 = smul.u32 28, %s18
      %p570 = scmp.lt.s32.totalorder %s569, 195
      %s571 = scalar_select %p570, %s569, 195
      %p572 = scmp.lt.s32.totalorder %s19, 0
      %s573 = scalar_select %p572, %s19, 0
      %s574 = sadd.s32 %s573, %s571
      %s575 = smul.addr %s574, 4
      %s576 = scalar_lea.vmem %s3, %s575
      // Predicated region
      $region33: #{forward.5} parent=31 // pred_check
        %p577 = pneg %p124
      $region34: #{forward.5} parent=31 // pred_check_branch
        %579 = sbr.rel (%p577) target = $region36
      $region35: #{forward.5} parent=31 // pred_region
        %s580 = smul.u32 28, %s18
      $region36: #{forward.5} parent=31 // pred_fallthru
        _
    $region32: #{forward.5} parent=5 // pred_fallthru
      _
    %p581 = scmp.le.s32.totalorder 2, %s9
    // Predicated region
    $region37: #{forward.5} parent=5 // pred_check
      %p582 = pneg %p581
    $region38: #{forward.5} parent=5 // pred_check_branch
      %584 = sbr.rel (%p582) target = $region40
    $region39: #{forward.5} parent=5 // pred_region
      %s585 = ssub.s32 %s9, 2
      // Predicated region
      $region41: #{forward.5} parent=39 // pred_check
        %p586 = pneg %p130
      $region42: #{forward.5} parent=39 // pred_check_branch
        %588 = sbr.rel (%p586) target = $region44
      $region43: #{forward.5} parent=39 // pred_region
        %s589 = smul.u32 28, %s20
        %p590 = scmp.lt.s32.totalorder %s589, 195
        %s591 = scalar_select %p590, %s589, 195
        %p592 = scmp.lt.s32.totalorder %s21, 0
        %s593 = scalar_select %p592, %s21, 0
        %s594 = sadd.s32 %s593, %s591
        %s595 = smul.addr %s594, 4
        %s596 = scalar_lea.vmem %s3, %s595
      $region44: #{forward.5} parent=39 // pred_fallthru
        _
    $region40: #{forward.5} parent=5 // pred_fallthru
      _
  $region6: #{forward.5} parent=0 // loop_footer
    %s13 = sadd.s32 1, %s9
  $region7: #{forward.5} parent=0 // loop_footer_branch
    %8 = sbr.rel target = $region3
  $region8: #{forward.5} parent=0 // loop_exit
    _

// kernel: forward.6
$region0: #{forward.6}
  #allocation0 [shape = 'u32[]', space=smem, size = 0x4, offset = 0x4, fixed_abs, tag = 'smem constant byte address 0x4 - core index']
  #allocation1 [shape = 'u32[72,128]{1,0:T(1,128)}', space=vmem, size = 0x9000, scoped, tag = 'internal scratch']
  %s0 = inlined_call_operand.vmem [shape: bf16[28,2,896], index: 0, kind: input, shape index: {}]
  %s1 = inlined_call_operand.vmem [shape: bf16[28,448], index: 1, kind: output, shape index: {}]
  %s2 = sld [smem:[#allocation0]]
  $region14: #{forward.6} parent=0
    _
  %s4 = ssub.s32 1, %s2
  %s5 = scalar_select 0, %s4, %s2
  // Predicated region
  $region2: #{forward.6} parent=0 // pred_check
    _
  $region3: #{forward.6} parent=0 // pred_check_branch
    %7 = sbr.rel (0) target = $region5
  $region4: #{forward.6} parent=0 // pred_region
    _
  $region5: #{forward.6} parent=0 // pred_fallthru
    _
  %v9 = vld [vmem:[%s0] sm:$0x7f]
  %v10 = vld [vmem:[%s0 + $0x7] sm:$0x7f]
  %v11 = vld [vmem:[%s0 + $0xe] sm:$0x7f]
  %v12 = vld [vmem:[%s0 + $0x15] sm:$0x7f]
  %v13 = vld [vmem:[%s0 + $0x1c] sm:$0x7f]
  %v14 = vld [vmem:[%s0 + $0x23] sm:$0x7f]
  %v15 = vld [vmem:[%s0 + $0x2a] sm:$0x7f]
  %v16 = vld [vmem:[%s0 + $0x31] sm:$0x7f]
  %v17 = vld [vmem:[%s0 + $0x38] sm:$0x7f]
  %v18 = vld [vmem:[%s0 + $0x3f] sm:$0x7f]
  %v19 = vld [vmem:[%s0 + $0x46] sm:$0x7f]
  %v20 = vld [vmem:[%s0 + $0x4d] sm:$0x7f]
  %v21 = vld [vmem:[%s0 + $0x54] sm:$0x7f]
  %v22 = vld [vmem:[%s0 + $0x5b] sm:$0x7f]
  %v23 = vld [vmem:[%s0 + $0x62] sm:$0x7f]
  %v24 = vld [vmem:[%s0 + $0x69] sm:$0x7f]
  %v25 = vld [vmem:[%s0 + $0x70] sm:$0x7f]
  %v26 = vld [vmem:[%s0 + $0x77] sm:$0x7f]
  %v27 = vld [vmem:[%s0 + $0x7e] sm:$0x7f]
  %v28 = vld [vmem:[%s0 + $0x85] sm:$0x7f]
  %v29 = vld [vmem:[%s0 + $0x8c] sm:$0x7f]
  %v30 = vld [vmem:[%s0 + $0x93] sm:$0x7f]
  %v31 = vld [vmem:[%s0 + $0x9a] sm:$0x7f]
  %v32 = vld [vmem:[%s0 + $0xa1] sm:$0x7f]
  %v33 = vld [vmem:[%s0 + $0xa8] sm:$0x7f]
  %v34 = vld [vmem:[%s0 + $0xaf] sm:$0x7f]
  %v35 = vld [vmem:[%s0 + $0xb6] sm:$0x7f]
  %v36 = vld [vmem:[%s0 + $0xbd] sm:$0x7f]
  %v37 = vunpack.c.l.bf16 %v9
  %v38 = vunpack.c.h.bf16 %v9
  %v39 = vunpack.c.l.bf16 %v10
  %v40 = vunpack.c.h.bf16 %v10
  %v41 = vunpack.c.l.bf16 %v11
  %v42 = vunpack.c.h.bf16 %v11
  %v43 = vunpack.c.l.bf16 %v12
  %v44 = vunpack.c.h.bf16 %v12
  %v45 = vunpack.c.l.bf16 %v13
  %v46 = vunpack.c.h.bf16 %v13
  %v47 = vunpack.c.l.bf16 %v14
  %v48 = vunpack.c.h.bf16 %v14
  %v49 = vunpack.c.l.bf16 %v15
  %v50 = vunpack.c.h.bf16 %v15
  %v51 = vunpack.c.l.bf16 %v16
  %v52 = vunpack.c.h.bf16 %v16
  %v53 = vunpack.c.l.bf16 %v17
  %v54 = vunpack.c.h.bf16 %v17
  %v55 = vunpack.c.l.bf16 %v18
  %v56 = vunpack.c.h.bf16 %v18
  %v57 = vunpack.c.l.bf16 %v19
  %v58 = vunpack.c.h.bf16 %v19
  %v59 = vunpack.c.l.bf16 %v20
  %v60 = vunpack.c.h.bf16 %v20
  %v61 = vunpack.c.l.bf16 %v21
  %v62 = vunpack.c.h.bf16 %v21
  %v63 = vunpack.c.l.bf16 %v22
  %v64 = vunpack.c.h.bf16 %v22
  %v65 = vunpack.c.l.bf16 %v23
  %v66 = vunpack.c.h.bf16 %v23
  %v67 = vunpack.c.l.bf16 %v24
  %v68 = vunpack.c.h.bf16 %v24
  %v69 = vunpack.c.l.bf16 %v25
  %v70 = vunpack.c.h.bf16 %v25
  %v71 = vunpack.c.l.bf16 %v26
  %v72 = vunpack.c.h.bf16 %v26
  %v73 = vunpack.c.l.bf16 %v27
  %v74 = vunpack.c.h.bf16 %v27
  %v75 = vunpack.c.l.bf16 %v28
  %v76 = vunpack.c.h.bf16 %v28
  %v77 = vunpack.c.l.bf16 %v29
  %v78 = vunpack.c.h.bf16 %v29
  %v79 = vunpack.c.l.bf16 %v30
  %v80 = vunpack.c.h.bf16 %v30
  %v81 = vunpack.c.l.bf16 %v31
  %v82 = vunpack.c.h.bf16 %v31
  %v83 = vunpack.c.l.bf16 %v32
  %v84 = vunpack.c.h.bf16 %v32
  %v85 = vunpack.c.l.bf16 %v33
  %v86 = vunpack.c.h.bf16 %v33
  %v87 = vunpack.c.l.bf16 %v34
  %v88 = vunpack.c.h.bf16 %v34
  %v89 = vunpack.c.l.bf16 %v35
  %v90 = vunpack.c.h.bf16 %v35
  %v91 = vunpack.c.l.bf16 %v36
  %v92 = vunpack.c.h.bf16 %v36
  %v149 = vrot.slane %v37, 7
  %v150 = vrot.slane %v149, 2
  %v151 = vrot.slane %v38, 7
  %v152 = vrot.slane %v151, 2
  %v153 = vrot.slane %v39, 7
  %v154 = vrot.slane %v153, 2
  %v155 = vrot.slane %v40, 7
  %v156 = vrot.slane %v155, 2
  %v157 = vrot.slane %v41, 7
  %v158 = vrot.slane %v157, 2
  %v159 = vrot.slane %v42, 7
  %v160 = vrot.slane %v159, 2
  %v161 = vrot.slane %v43, 7
  %v162 = vrot.slane %v161, 2
  %v163 = vrot.slane %v44, 7
  %v164 = vrot.slane %v163, 2
  %v165 = vrot.slane %v45, 7
  %v166 = vrot.slane %v165, 2
  %v167 = vrot.slane %v46, 7
  %v168 = vrot.slane %v167, 2
  %v169 = vrot.slane %v47, 7
  %v170 = vrot.slane %v169, 2
  %v171 = vrot.slane %v48, 7
  %v172 = vrot.slane %v171, 2
  %v173 = vrot.slane %v49, 7
  %v174 = vrot.slane %v173, 2
  %v175 = vrot.slane %v50, 7
  %v176 = vrot.slane %v175, 2
  %v177 = vrot.slane %v51, 7
  %v178 = vrot.slane %v177, 2
  %v179 = vrot.slane %v52, 7
  %v180 = vrot.slane %v179, 2
  %v181 = vrot.slane %v53, 7
  %v182 = vrot.slane %v181, 2
  %v183 = vrot.slane %v54, 7
  %v184 = vrot.slane %v183, 2
  %v185 = vrot.slane %v55, 7
  %v186 = vrot.slane %v185, 2
  %v187 = vrot.slane %v56, 7
  %v188 = vrot.slane %v187, 2
  %v189 = vrot.slane %v57, 7
  %v190 = vrot.slane %v189, 2
  %v191 = vrot.slane %v58, 7
  %v192 = vrot.slane %v191, 2
  %v193 = vrot.slane %v59, 7
  %v194 = vrot.slane %v193, 2
  %v195 = vrot.slane %v60, 7
  %v196 = vrot.slane %v195, 2
  %v197 = vrot.slane %v61, 7
  %v198 = vrot.slane %v197, 2
  %v199 = vrot.slane %v62, 7
  %v200 = vrot.slane %v199, 2
  %v201 = vrot.slane %v63, 7
  %v202 = vrot.slane %v201, 2
  %v203 = vrot.slane %v64, 7
  %v204 = vrot.slane %v203, 2
  %v205 = vrot.slane %v65, 7
  %v206 = vrot.slane %v205, 2
  %v207 = vrot.slane %v66, 7
  %v208 = vrot.slane %v207, 2
  %v209 = vrot.slane %v67, 7
  %v210 = vrot.slane %v209, 2
  %v211 = vrot.slane %v68, 7
  %v212 = vrot.slane %v211, 2
  %v213 = vrot.slane %v69, 7
  %v214 = vrot.slane %v213, 2
  %v215 = vrot.slane %v70, 7
  %v216 = vrot.slane %v215, 2
  %v217 = vrot.slane %v71, 7
  %v218 = vrot.slane %v217, 2
  %v219 = vrot.slane %v72, 7
  %v220 = vrot.slane %v219, 2
  %v221 = vrot.slane %v73, 7
  %v222 = vrot.slane %v221, 2
  %v223 = vrot.slane %v74, 7
  %v224 = vrot.slane %v223, 2
  %v225 = vrot.slane %v75, 7
  %v226 = vrot.slane %v225, 2
  %v227 = vrot.slane %v76, 7
  %v228 = vrot.slane %v227, 2
  %v229 = vrot.slane %v77, 7
  %v230 = vrot.slane %v229, 2
  %v231 = vrot.slane %v78, 7
  %v232 = vrot.slane %v231, 2
  %v233 = vrot.slane %v79, 7
  %v234 = vrot.slane %v233, 2
  %v235 = vrot.slane %v80, 7
  %v236 = vrot.slane %v235, 2
  %v237 = vrot.slane %v81, 7
  %v238 = vrot.slane %v237, 2
  %v239 = vrot.slane %v82, 7
  %v240 = vrot.slane %v239, 2
  %v241 = vrot.slane %v83, 7
  %v242 = vrot.slane %v241, 2
  %v243 = vrot.slane %v84, 7
  %v244 = vrot.slane %v243, 2
  %v245 = vrot.slane %v85, 7
  %v246 = vrot.slane %v245, 2
  %v247 = vrot.slane %v86, 7
  %v248 = vrot.slane %v247, 2
  %v249 = vrot.slane %v87, 7
  %v250 = vrot.slane %v249, 2
  %v251 = vrot.slane %v88, 7
  %v252 = vrot.slane %v251, 2
  %v253 = vrot.slane %v89, 7
  %v254 = vrot.slane %v253, 2
  %v255 = vrot.slane %v90, 7
  %v256 = vrot.slane %v255, 2
  %v257 = vrot.slane %v91, 7
  %v258 = vrot.slane %v257, 2
  %v259 = vrot.slane %v92, 7
  %v260 = vrot.slane %v259, 2
  %v317 = vmax.f32 %v37, %v150
  %v318 = vmax.f32 %v38, %v152
  %v319 = vmax.f32 %v39, %v154
  %v320 = vmax.f32 %v40, %v156
  %v321 = vmax.f32 %v41, %v158
  %v322 = vmax.f32 %v42, %v160
  %v323 = vmax.f32 %v43, %v162
  %v324 = vmax.f32 %v44, %v164
  %v325 = vmax.f32 %v45, %v166
  %v326 = vmax.f32 %v46, %v168
  %v327 = vmax.f32 %v47, %v170
  %v328 = vmax.f32 %v48, %v172
  %v329 = vmax.f32 %v49, %v174
  %v330 = vmax.f32 %v50, %v176
  %v331 = vmax.f32 %v51, %v178
  %v332 = vmax.f32 %v52, %v180
  %v333 = vmax.f32 %v53, %v182
  %v334 = vmax.f32 %v54, %v184
  %v335 = vmax.f32 %v55, %v186
  %v336 = vmax.f32 %v56, %v188
  %v337 = vmax.f32 %v57, %v190
  %v338 = vmax.f32 %v58, %v192
  %v339 = vmax.f32 %v59, %v194
  %v340 = vmax.f32 %v60, %v196
  %v341 = vmax.f32 %v61, %v198
  %v342 = vmax.f32 %v62, %v200
  %v343 = vmax.f32 %v63, %v202
  %v344 = vmax.f32 %v64, %v204
  %v345 = vmax.f32 %v65, %v206
  %v346 = vmax.f32 %v66, %v208
  %v347 = vmax.f32 %v67, %v210
  %v348 = vmax.f32 %v68, %v212
  %v349 = vmax.f32 %v69, %v214
  %v350 = vmax.f32 %v70, %v216
  %v351 = vmax.f32 %v71, %v218
  %v352 = vmax.f32 %v72, %v220
  %v353 = vmax.f32 %v73, %v222
  %v354 = vmax.f32 %v74, %v224
  %v355 = vmax.f32 %v75, %v226
  %v356 = vmax.f32 %v76, %v228
  %v357 = vmax.f32 %v77, %v230
  %v358 = vmax.f32 %v78, %v232
  %v359 = vmax.f32 %v79, %v234
  %v360 = vmax.f32 %v80, %v236
  %v361 = vmax.f32 %v81, %v238
  %v362 = vmax.f32 %v82, %v240
  %v363 = vmax.f32 %v83, %v242
  %v364 = vmax.f32 %v84, %v244
  %v365 = vmax.f32 %v85, %v246
  %v366 = vmax.f32 %v86, %v248
  %v367 = vmax.f32 %v87, %v250
  %v368 = vmax.f32 %v88, %v252
  %v369 = vmax.f32 %v89, %v254
  %v370 = vmax.f32 %v90, %v256
  %v371 = vmax.f32 %v91, %v258
  %v372 = vmax.f32 %v92, %v260
  %v429 = vperm.slane %v317, 0
  %v430 = vperm.slane %v317, 2
  %v431 = vperm.slane %v317, 4
  %v432 = vperm.slane %v317, 6
  %v433 = vperm.slane %v318, 0
  %v434 = vperm.slane %v318, 2
  %v435 = vperm.slane %v318, 4
  %v436 = vperm.slane %v319, 0
  %v437 = vperm.slane %v319, 2
  %v438 = vperm.slane %v319, 4
  %v439 = vperm.slane %v319, 6
  %v440 = vperm.slane %v320, 0
  %v441 = vperm.slane %v320, 2
  %v442 = vperm.slane %v320, 4
  %v443 = vperm.slane %v321, 0
  %v444 = vperm.slane %v321, 2
  %v445 = vperm.slane %v321, 4
  %v446 = vperm.slane %v321, 6
  %v447 = vperm.slane %v322, 0
  %v448 = vperm.slane %v322, 2
  %v449 = vperm.slane %v322, 4
  %v450 = vperm.slane %v323, 0
  %v451 = vperm.slane %v323, 2
  %v452 = vperm.slane %v323, 4
  %v453 = vperm.slane %v323, 6
  %v454 = vperm.slane %v324, 0
  %v455 = vperm.slane %v324, 2
  %v456 = vperm.slane %v324, 4
  %v457 = vperm.slane %v325, 0
  %v458 = vperm.slane %v325, 2
  %v459 = vperm.slane %v325, 4
  %v460 = vperm.slane %v325, 6
  %v461 = vperm.slane %v326, 0
  %v462 = vperm.slane %v326, 2
  %v463 = vperm.slane %v326, 4
  %v464 = vperm.slane %v327, 0
  %v465 = vperm.slane %v327, 2
  %v466 = vperm.slane %v327, 4
  %v467 = vperm.slane %v327, 6
  %v468 = vperm.slane %v328, 0
  %v469 = vperm.slane %v328, 2
  %v470 = vperm.slane %v328, 4
  %v471 = vperm.slane %v329, 0
  %v472 = vperm.slane %v329, 2
  %v473 = vperm.slane %v329, 4
  %v474 = vperm.slane %v329, 6
  %v475 = vperm.slane %v330, 0
  %v476 = vperm.slane %v330, 2
  %v477 = vperm.slane %v330, 4
  %v478 = vperm.slane %v331, 0
  %v479 = vperm.slane %v331, 2
  %v480 = vperm.slane %v331, 4
  %v481 = vperm.slane %v331, 6
  %v482 = vperm.slane %v332, 0
  %v483 = vperm.slane %v332, 2
  %v484 = vperm.slane %v332, 4
  %v485 = vperm.slane %v333, 0
  %v486 = vperm.slane %v333, 2
  %v487 = vperm.slane %v333, 4
  %v488 = vperm.slane %v333, 6
  %v489 = vperm.slane %v334, 0
  %v490 = vperm.slane %v334, 2
  %v491 = vperm.slane %v334, 4
  %v492 = vperm.slane %v335, 0
  %v493 = vperm.slane %v335, 2
  %v494 = vperm.slane %v335, 4
  %v495 = vperm.slane %v335, 6
  %v496 = vperm.slane %v336, 0
  %v497 = vperm.slane %v336, 2
  %v498 = vperm.slane %v336, 4
  %v499 = vperm.slane %v337, 0
  %v500 = vperm.slane %v337, 2
  %v501 = vperm.slane %v337, 4
  %v502 = vperm.slane %v337, 6
  %v503 = vperm.slane %v338, 0
  %v504 = vperm.slane %v338, 2
  %v505 = vperm.slane %v338, 4
  %v506 = vperm.slane %v339, 0
  %v507 = vperm.slane %v339, 2
  %v508 = vperm.slane %v339, 4
  %v509 = vperm.slane %v339, 6
  %v510 = vperm.slane %v340, 0
  %v511 = vperm.slane %v340, 2
  %v512 = vperm.slane %v340, 4
  %v513 = vperm.slane %v341, 0
  %v514 = vperm.slane %v341, 2
  %v515 = vperm.slane %v341, 4
  %v516 = vperm.slane %v341, 6
  %v517 = vperm.slane %v342, 0
  %v518 = vperm.slane %v342, 2
  %v519 = vperm.slane %v342, 4
  %v520 = vperm.slane %v343, 0
  %v521 = vperm.slane %v343, 2
  %v522 = vperm.slane %v343, 4
  %v523 = vperm.slane %v343, 6
  %v524 = vperm.slane %v344, 0
  %v525 = vperm.slane %v344, 2
  %v526 = vperm.slane %v344, 4
  %v527 = vperm.slane %v345, 0
  %v528 = vperm.slane %v345, 2
  %v529 = vperm.slane %v345, 4
  %v530 = vperm.slane %v345, 6
  %v531 = vperm.slane %v346, 0
  %v532 = vperm.slane %v346, 2
  %v533 = vperm.slane %v346, 4
  %v534 = vperm.slane %v347, 0
  %v535 = vperm.slane %v347, 2
  %v536 = vperm.slane %v347, 4
  %v537 = vperm.slane %v347, 6
  %v538 = vperm.slane %v348, 0
  %v539 = vperm.slane %v348, 2
  %v540 = vperm.slane %v348, 4
  %v541 = vperm.slane %v349, 0
  %v542 = vperm.slane %v349, 2
  %v543 = vperm.slane %v349, 4
  %v544 = vperm.slane %v349, 6
  %v545 = vperm.slane %v350, 0
  %v546 = vperm.slane %v350, 2
  %v547 = vperm.slane %v350, 4
  %v548 = vperm.slane %v351, 0
  %v549 = vperm.slane %v351, 2
  %v550 = vperm.slane %v351, 4
  %v551 = vperm.slane %v351, 6
  %v552 = vperm.slane %v352, 0
  %v553 = vperm.slane %v352, 2
  %v554 = vperm.slane %v352, 4
  %v555 = vperm.slane %v353, 0
  %v556 = vperm.slane %v353, 2
  %v557 = vperm.slane %v353, 4
  %v558 = vperm.slane %v353, 6
  %v559 = vperm.slane %v354, 0
  %v560 = vperm.slane %v354, 2
  %v561 = vperm.slane %v354, 4
  %v562 = vperm.slane %v355, 0
  %v563 = vperm.slane %v355, 2
  %v564 = vperm.slane %v355, 4
  %v565 = vperm.slane %v355, 6
  %v566 = vperm.slane %v356, 0
  %v567 = vperm.slane %v356, 2
  %v568 = vperm.slane %v356, 4
  %v569 = vperm.slane %v357, 0
  %v570 = vperm.slane %v357, 2
  %v571 = vperm.slane %v357, 4
  %v572 = vperm.slane %v357, 6
  %v573 = vperm.slane %v358, 0
  %v574 = vperm.slane %v358, 2
  %v575 = vperm.slane %v358, 4
  %v576 = vperm.slane %v359, 0
  %v577 = vperm.slane %v359, 2
  %v578 = vperm.slane %v359, 4
  %v579 = vperm.slane %v359, 6
  %v580 = vperm.slane %v360, 0
  %v581 = vperm.slane %v360, 2
  %v582 = vperm.slane %v360, 4
  %v583 = vperm.slane %v361, 0
  %v584 = vperm.slane %v361, 2
  %v585 = vperm.slane %v361, 4
  %v586 = vperm.slane %v361, 6
  %v587 = vperm.slane %v362, 0
  %v588 = vperm.slane %v362, 2
  %v589 = vperm.slane %v362, 4
  %v590 = vperm.slane %v363, 0
  %v591 = vperm.slane %v363, 2
  %v592 = vperm.slane %v363, 4
  %v593 = vperm.slane %v363, 6
  %v594 = vperm.slane %v364, 0
  %v595 = vperm.slane %v364, 2
  %v596 = vperm.slane %v364, 4
  %v597 = vperm.slane %v365, 0
  %v598 = vperm.slane %v365, 2
  %v599 = vperm.slane %v365, 4
  %v600 = vperm.slane %v365, 6
  %v601 = vperm.slane %v366, 0
  %v602 = vperm.slane %v366, 2
  %v603 = vperm.slane %v366, 4
  %v604 = vperm.slane %v367, 0
  %v605 = vperm.slane %v367, 2
  %v606 = vperm.slane %v367, 4
  %v607 = vperm.slane %v367, 6
  %v608 = vperm.slane %v368, 0
  %v609 = vperm.slane %v368, 2
  %v610 = vperm.slane %v368, 4
  %v611 = vperm.slane %v369, 0
  %v612 = vperm.slane %v369, 2
  %v613 = vperm.slane %v369, 4
  %v614 = vperm.slane %v369, 6
  %v615 = vperm.slane %v370, 0
  %v616 = vperm.slane %v370, 2
  %v617 = vperm.slane %v370, 4
  %v618 = vperm.slane %v371, 0
  %v619 = vperm.slane %v371, 2
  %v620 = vperm.slane %v371, 4
  %v621 = vperm.slane %v371, 6
  %v622 = vperm.slane %v372, 0
  %v623 = vperm.slane %v372, 2
  %v624 = vperm.slane %v372, 4
  %v821 = vpack.c.bf16 %v430, %v429
  %v822 = vpack.c.bf16 %v432, %v431
  %v823 = vpack.c.bf16 %v434, %v433
  %v824 = vpack.c.bf16 %v435, %v435
  %v825 = vpack.c.bf16 %v437, %v436
  %v826 = vpack.c.bf16 %v439, %v438
  %v827 = vpack.c.bf16 %v441, %v440
  %v828 = vpack.c.bf16 %v442, %v442
  %v829 = vpack.c.bf16 %v444, %v443
  %v830 = vpack.c.bf16 %v446, %v445
  %v831 = vpack.c.bf16 %v448, %v447
  %v832 = vpack.c.bf16 %v449, %v449
  %v833 = vpack.c.bf16 %v451, %v450
  %v834 = vpack.c.bf16 %v453, %v452
  %v835 = vpack.c.bf16 %v455, %v454
  %v836 = vpack.c.bf16 %v456, %v456
  %v837 = vpack.c.bf16 %v458, %v457
  %v838 = vpack.c.bf16 %v460, %v459
  %v839 = vpack.c.bf16 %v462, %v461
  %v840 = vpack.c.bf16 %v463, %v463
  %v841 = vpack.c.bf16 %v465, %v464
  %v842 = vpack.c.bf16 %v467, %v466
  %v843 = vpack.c.bf16 %v469, %v468
  %v844 = vpack.c.bf16 %v470, %v470
  %v845 = vpack.c.bf16 %v472, %v471
  %v846 = vpack.c.bf16 %v474, %v473
  %v847 = vpack.c.bf16 %v476, %v475
  %v848 = vpack.c.bf16 %v477, %v477
  %v849 = vpack.c.bf16 %v479, %v478
  %v850 = vpack.c.bf16 %v481, %v480
  %v851 = vpack.c.bf16 %v483, %v482
  %v852 = vpack.c.bf16 %v484, %v484
  %v853 = vpack.c.bf16 %v486, %v485
  %v854 = vpack.c.bf16 %v488, %v487
  %v855 = vpack.c.bf16 %v490, %v489
  %v856 = vpack.c.bf16 %v491, %v491
  %v857 = vpack.c.bf16 %v493, %v492
  %v858 = vpack.c.bf16 %v495, %v494
  %v859 = vpack.c.bf16 %v497, %v496
  %v860 = vpack.c.bf16 %v498, %v498
  %v861 = vpack.c.bf16 %v500, %v499
  %v862 = vpack.c.bf16 %v502, %v501
  %v863 = vpack.c.bf16 %v504, %v503
  %v864 = vpack.c.bf16 %v505, %v505
  %v865 = vpack.c.bf16 %v507, %v506
  %v866 = vpack.c.bf16 %v509, %v508
  %v867 = vpack.c.bf16 %v511, %v510
  %v868 = vpack.c.bf16 %v512, %v512
  %v869 = vpack.c.bf16 %v514, %v513
  %v870 = vpack.c.bf16 %v516, %v515
  %v871 = vpack.c.bf16 %v518, %v517
  %v872 = vpack.c.bf16 %v519, %v519
  %v873 = vpack.c.bf16 %v521, %v520
  %v874 = vpack.c.bf16 %v523, %v522
  %v875 = vpack.c.bf16 %v525, %v524
  %v876 = vpack.c.bf16 %v526, %v526
  %v877 = vpack.c.bf16 %v528, %v527
  %v878 = vpack.c.bf16 %v530, %v529
  %v879 = vpack.c.bf16 %v532, %v531
  %v880 = vpack.c.bf16 %v533, %v533
  %v881 = vpack.c.bf16 %v535, %v534
  %v882 = vpack.c.bf16 %v537, %v536
  %v883 = vpack.c.bf16 %v539, %v538
  %v884 = vpack.c.bf16 %v540, %v540
  %v885 = vpack.c.bf16 %v542, %v541
  %v886 = vpack.c.bf16 %v544, %v543
  %v887 = vpack.c.bf16 %v546, %v545
  %v888 = vpack.c.bf16 %v547, %v547
  %v889 = vpack.c.bf16 %v549, %v548
  %v890 = vpack.c.bf16 %v551, %v550
  %v891 = vpack.c.bf16 %v553, %v552
  %v892 = vpack.c.bf16 %v554, %v554
  %v893 = vpack.c.bf16 %v556, %v555
  %v894 = vpack.c.bf16 %v558, %v557
  %v895 = vpack.c.bf16 %v560, %v559
  %v896 = vpack.c.bf16 %v561, %v561
  %v897 = vpack.c.bf16 %v563, %v562
  %v898 = vpack.c.bf16 %v565, %v564
  %v899 = vpack.c.bf16 %v567, %v566
  %v900 = vpack.c.bf16 %v568, %v568
  %v901 = vpack.c.bf16 %v570, %v569
  %v902 = vpack.c.bf16 %v572, %v571
  %v903 = vpack.c.bf16 %v574, %v573
  %v904 = vpack.c.bf16 %v575, %v575
  %v905 = vpack.c.bf16 %v577, %v576
  %v906 = vpack.c.bf16 %v579, %v578
  %v907 = vpack.c.bf16 %v581, %v580
  %v908 = vpack.c.bf16 %v582, %v582
  %v909 = vpack.c.bf16 %v584, %v583
  %v910 = vpack.c.bf16 %v586, %v585
  %v911 = vpack.c.bf16 %v588, %v587
  %v912 = vpack.c.bf16 %v589, %v589
  %v913 = vpack.c.bf16 %v591, %v590
  %v914 = vpack.c.bf16 %v593, %v592
  %v915 = vpack.c.bf16 %v595, %v594
  %v916 = vpack.c.bf16 %v596, %v596
  %v917 = vpack.c.bf16 %v598, %v597
  %v918 = vpack.c.bf16 %v600, %v599
  %v919 = vpack.c.bf16 %v602, %v601
  %v920 = vpack.c.bf16 %v603, %v603
  %v921 = vpack.c.bf16 %v605, %v604
  %v922 = vpack.c.bf16 %v607, %v606
  %v923 = vpack.c.bf16 %v609, %v608
  %v924 = vpack.c.bf16 %v610, %v610
  %v925 = vpack.c.bf16 %v612, %v611
  %v926 = vpack.c.bf16 %v614, %v613
  %v927 = vpack.c.bf16 %v616, %v615
  %v928 = vpack.c.bf16 %v617, %v617
  %v929 = vpack.c.bf16 %v619, %v618
  %v930 = vpack.c.bf16 %v621, %v620
  %v931 = vpack.c.bf16 %v623, %v622
  %v932 = vpack.c.bf16 %v624, %v624
  %v961 = vrot.slane %v821, 4
  %v962 = vrot.slane %v825, 4
  %v963 = vrot.slane %v829, 4
  %v964 = vrot.slane %v833, 4
  %v965 = vrot.slane %v837, 4
  %v966 = vrot.slane %v841, 4
  %v967 = vrot.slane %v845, 4
  %v968 = vrot.slane %v849, 4
  %v969 = vrot.slane %v853, 4
  %v970 = vrot.slane %v857, 4
  %v971 = vrot.slane %v861, 4
  %v972 = vrot.slane %v865, 4
  %v973 = vrot.slane %v869, 4
  %v974 = vrot.slane %v873, 4
  %v975 = vrot.slane %v877, 4
  %v976 = vrot.slane %v881, 4
  %v977 = vrot.slane %v885, 4
  %v978 = vrot.slane %v889, 4
  %v979 = vrot.slane %v893, 4
  %v980 = vrot.slane %v897, 4
  %v981 = vrot.slane %v901, 4
  %v982 = vrot.slane %v905, 4
  %v983 = vrot.slane %v909, 4
  %v984 = vrot.slane %v913, 4
  %v985 = vrot.slane %v917, 4
  %v986 = vrot.slane %v921, 4
  %v987 = vrot.slane %v925, 4
  %v988 = vrot.slane %v929, 4
  %989 = vrot.lane.b32.xlu0 %v821, 64
  %v990 = vpop.permute.xlu0 %989
  %991 = vrot.lane.b32.xlu0 %v825, 64
  %v992 = vpop.permute.xlu0 %991
  %993 = vrot.lane.b32.xlu0 %v829, 64
  %v994 = vpop.permute.xlu0 %993
  %995 = vrot.lane.b32.xlu0 %v833, 64
  %v996 = vpop.permute.xlu0 %995
  %997 = vrot.lane.b32.xlu0 %v837, 64
  %v998 = vpop.permute.xlu0 %997
  %999 = vrot.lane.b32.xlu0 %v841, 64
  %v1000 = vpop.permute.xlu0 %999
  %1001 = vrot.lane.b32.xlu0 %v845, 64
  %v1002 = vpop.permute.xlu0 %1001
  %1003 = vrot.lane.b32.xlu0 %v849, 64
  %v1004 = vpop.permute.xlu0 %1003
  %1005 = vrot.lane.b32.xlu0 %v853, 64
  %v1006 = vpop.permute.xlu0 %1005
  %1007 = vrot.lane.b32.xlu0 %v857, 64
  %v1008 = vpop.permute.xlu0 %1007
  %1009 = vrot.lane.b32.xlu0 %v861, 64
  %v1010 = vpop.permute.xlu0 %1009
  %1011 = vrot.lane.b32.xlu0 %v865, 64
  %v1012 = vpop.permute.xlu0 %1011
  %1013 = vrot.lane.b32.xlu0 %v869, 64
  %v1014 = vpop.permute.xlu0 %1013
  %1015 = vrot.lane.b32.xlu0 %v873, 64
  %v1016 = vpop.permute.xlu0 %1015
  %1017 = vrot.lane.b32.xlu0 %v877, 64
  %v1018 = vpop.permute.xlu0 %1017
  %1019 = vrot.lane.b32.xlu0 %v881, 64
  %v1020 = vpop.permute.xlu0 %1019
  %1021 = vrot.lane.b32.xlu0 %v885, 64
  %v1022 = vpop.permute.xlu0 %1021
  %1023 = vrot.lane.b32.xlu0 %v889, 64
  %v1024 = vpop.permute.xlu0 %1023
  %1025 = vrot.lane.b32.xlu0 %v893, 64
  %v1026 = vpop.permute.xlu0 %1025
  %1027 = vrot.lane.b32.xlu0 %v897, 64
  %v1028 = vpop.permute.xlu0 %1027
  %1029 = vrot.lane.b32.xlu0 %v901, 64
  %v1030 = vpop.permute.xlu0 %1029
  %1031 = vrot.lane.b32.xlu0 %v905, 64
  %v1032 = vpop.permute.xlu0 %1031
  %1033 = vrot.lane.b32.xlu0 %v909, 64
  %v1034 = vpop.permute.xlu0 %1033
  %1035 = vrot.lane.b32.xlu0 %v913, 64
  %v1036 = vpop.permute.xlu0 %1035
  %1037 = vrot.lane.b32.xlu0 %v917, 64
  %v1038 = vpop.permute.xlu0 %1037
  %1039 = vrot.lane.b32.xlu0 %v921, 64
  %v1040 = vpop.permute.xlu0 %1039
  %1041 = vrot.lane.b32.xlu0 %v925, 64
  %v1042 = vpop.permute.xlu0 %1041
  %1043 = vrot.lane.b32.xlu0 %v929, 64
  %v1044 = vpop.permute.xlu0 %1043
  %v1045 = vrot.slane %v990, 4
  %v1046 = vrot.slane %v992, 4
  %v1047 = vrot.slane %v994, 4
  %v1048 = vrot.slane %v996, 4
  %v1049 = vrot.slane %v998, 4
  %v1050 = vrot.slane %v1000, 4
  %v1051 = vrot.slane %v1002, 4
  %v1052 = vrot.slane %v1004, 4
  %v1053 = vrot.slane %v1006, 4
  %v1054 = vrot.slane %v1008, 4
  %v1055 = vrot.slane %v1010, 4
  %v1056 = vrot.slane %v1012, 4
  %v1057 = vrot.slane %v1014, 4
  %v1058 = vrot.slane %v1016, 4
  %v1059 = vrot.slane %v1018, 4
  %v1060 = vrot.slane %v1020, 4
  %v1061 = vrot.slane %v1022, 4
  %v1062 = vrot.slane %v1024, 4
  %v1063 = vrot.slane %v1026, 4
  %v1064 = vrot.slane %v1028, 4
  %v1065 = vrot.slane %v1030, 4
  %v1066 = vrot.slane %v1032, 4
  %v1067 = vrot.slane %v1034, 4
  %v1068 = vrot.slane %v1036, 4
  %v1069 = vrot.slane %v1038, 4
  %v1070 = vrot.slane %v1040, 4
  %v1071 = vrot.slane %v1042, 4
  %v1072 = vrot.slane %v1044, 4
  %v1101 = vrot.slane %v822, 4
  %v1102 = vrot.slane %v826, 4
  %v1103 = vrot.slane %v830, 4
  %v1104 = vrot.slane %v834, 4
  %v1105 = vrot.slane %v838, 4
  %v1106 = vrot.slane %v842, 4
  %v1107 = vrot.slane %v846, 4
  %v1108 = vrot.slane %v850, 4
  %v1109 = vrot.slane %v854, 4
  %v1110 = vrot.slane %v858, 4
  %v1111 = vrot.slane %v862, 4
  %v1112 = vrot.slane %v866, 4
  %v1113 = vrot.slane %v870, 4
  %v1114 = vrot.slane %v874, 4
  %v1115 = vrot.slane %v878, 4
  %v1116 = vrot.slane %v882, 4
  %v1117 = vrot.slane %v886, 4
  %v1118 = vrot.slane %v890, 4
  %v1119 = vrot.slane %v894, 4
  %v1120 = vrot.slane %v898, 4
  %v1121 = vrot.slane %v902, 4
  %v1122 = vrot.slane %v906, 4
  %v1123 = vrot.slane %v910, 4
  %v1124 = vrot.slane %v914, 4
  %v1125 = vrot.slane %v918, 4
  %v1126 = vrot.slane %v922, 4
  %v1127 = vrot.slane %v926, 4
  %v1128 = vrot.slane %v930, 4
  %1129 = vrot.lane.b32.xlu0 %v822, 64
  %v1130 = vpop.permute.xlu0 %1129
  %1131 = vrot.lane.b32.xlu0 %v826, 64
  %v1132 = vpop.permute.xlu0 %1131
  %1133 = vrot.lane.b32.xlu0 %v830, 64
  %v1134 = vpop.permute.xlu0 %1133
  %1135 = vrot.lane.b32.xlu0 %v834, 64
  %v1136 = vpop.permute.xlu0 %1135
  %1137 = vrot.lane.b32.xlu0 %v838, 64
  %v1138 = vpop.permute.xlu0 %1137
  %1139 = vrot.lane.b32.xlu0 %v842, 64
  %v1140 = vpop.permute.xlu0 %1139
  %1141 = vrot.lane.b32.xlu0 %v846, 64
  %v1142 = vpop.permute.xlu0 %1141
  %1143 = vrot.lane.b32.xlu0 %v850, 64
  %v1144 = vpop.permute.xlu0 %1143
  %1145 = vrot.lane.b32.xlu0 %v854, 64
  %v1146 = vpop.permute.xlu0 %1145
  %1147 = vrot.lane.b32.xlu0 %v858, 64
  %v1148 = vpop.permute.xlu0 %1147
  %1149 = vrot.lane.b32.xlu0 %v862, 64
  %v1150 = vpop.permute.xlu0 %1149
  %1151 = vrot.lane.b32.xlu0 %v866, 64
  %v1152 = vpop.permute.xlu0 %1151
  %1153 = vrot.lane.b32.xlu0 %v870, 64
  %v1154 = vpop.permute.xlu0 %1153
  %1155 = vrot.lane.b32.xlu0 %v874, 64
  %v1156 = vpop.permute.xlu0 %1155
  %1157 = vrot.lane.b32.xlu0 %v878, 64
  %v1158 = vpop.permute.xlu0 %1157
  %1159 = vrot.lane.b32.xlu0 %v882, 64
  %v1160 = vpop.permute.xlu0 %1159
  %1161 = vrot.lane.b32.xlu0 %v886, 64
  %v1162 = vpop.permute.xlu0 %1161
  %1163 = vrot.lane.b32.xlu0 %v890, 64
  %v1164 = vpop.permute.xlu0 %1163
  %1165 = vrot.lane.b32.xlu0 %v894, 64
  %v1166 = vpop.permute.xlu0 %1165
  %1167 = vrot.lane.b32.xlu0 %v898, 64
  %v1168 = vpop.permute.xlu0 %1167
  %1169 = vrot.lane.b32.xlu0 %v902, 64
  %v1170 = vpop.permute.xlu0 %1169
  %1171 = vrot.lane.b32.xlu0 %v906, 64
  %v1172 = vpop.permute.xlu0 %1171
  %1173 = vrot.lane.b32.xlu0 %v910, 64
  %v1174 = vpop.permute.xlu0 %1173
  %1175 = vrot.lane.b32.xlu0 %v914, 64
  %v1176 = vpop.permute.xlu0 %1175
  %1177 = vrot.lane.b32.xlu0 %v918, 64
  %v1178 = vpop.permute.xlu0 %1177
  %1179 = vrot.lane.b32.xlu0 %v922, 64
  %v1180 = vpop.permute.xlu0 %1179
  %1181 = vrot.lane.b32.xlu0 %v926, 64
  %v1182 = vpop.permute.xlu0 %1181
  %1183 = vrot.lane.b32.xlu0 %v930, 64
  %v1184 = vpop.permute.xlu0 %1183
  %v1185 = vrot.slane %v1130, 4
  %v1186 = vrot.slane %v1132, 4
  %v1187 = vrot.slane %v1134, 4
  %v1188 = vrot.slane %v1136, 4
  %v1189 = vrot.slane %v1138, 4
  %v1190 = vrot.slane %v1140, 4
  %v1191 = vrot.slane %v1142, 4
  %v1192 = vrot.slane %v1144, 4
  %v1193 = vrot.slane %v1146, 4
  %v1194 = vrot.slane %v1148, 4
  %v1195 = vrot.slane %v1150, 4
  %v1196 = vrot.slane %v1152, 4
  %v1197 = vrot.slane %v1154, 4
  %v1198 = vrot.slane %v1156, 4
  %v1199 = vrot.slane %v1158, 4
  %v1200 = vrot.slane %v1160, 4
  %v1201 = vrot.slane %v1162, 4
  %v1202 = vrot.slane %v1164, 4
  %v1203 = vrot.slane %v1166, 4
  %v1204 = vrot.slane %v1168, 4
  %v1205 = vrot.slane %v1170, 4
  %v1206 = vrot.slane %v1172, 4
  %v1207 = vrot.slane %v1174, 4
  %v1208 = vrot.slane %v1176, 4
  %v1209 = vrot.slane %v1178, 4
  %v1210 = vrot.slane %v1180, 4
  %v1211 = vrot.slane %v1182, 4
  %v1212 = vrot.slane %v1184, 4
  %v1241 = vrot.slane %v823, 4
  %v1242 = vrot.slane %v827, 4
  %v1243 = vrot.slane %v831, 4
  %v1244 = vrot.slane %v835, 4
  %v1245 = vrot.slane %v839, 4
  %v1246 = vrot.slane %v843, 4
  %v1247 = vrot.slane %v847, 4
  %v1248 = vrot.slane %v851, 4
  %v1249 = vrot.slane %v855, 4
  %v1250 = vrot.slane %v859, 4
  %v1251 = vrot.slane %v863, 4
  %v1252 = vrot.slane %v867, 4
  %v1253 = vrot.slane %v871, 4
  %v1254 = vrot.slane %v875, 4
  %v1255 = vrot.slane %v879, 4
  %v1256 = vrot.slane %v883, 4
  %v1257 = vrot.slane %v887, 4
  %v1258 = vrot.slane %v891, 4
  %v1259 = vrot.slane %v895, 4
  %v1260 = vrot.slane %v899, 4
  %v1261 = vrot.slane %v903, 4
  %v1262 = vrot.slane %v907, 4
  %v1263 = vrot.slane %v911, 4
  %v1264 = vrot.slane %v915, 4
  %v1265 = vrot.slane %v919, 4
  %v1266 = vrot.slane %v923, 4
  %v1267 = vrot.slane %v927, 4
  %v1268 = vrot.slane %v931, 4
  %1269 = vrot.lane.b32.xlu0 %v823, 64
  %v1270 = vpop.permute.xlu0 %1269
  %1271 = vrot.lane.b32.xlu0 %v827, 64
  %v1272 = vpop.permute.xlu0 %1271
  %1273 = vrot.lane.b32.xlu0 %v831, 64
  %v1274 = vpop.permute.xlu0 %1273
  %1275 = vrot.lane.b32.xlu0 %v835, 64
  %v1276 = vpop.permute.xlu0 %1275
  %1277 = vrot.lane.b32.xlu0 %v839, 64
  %v1278 = vpop.permute.xlu0 %1277
  %1279 = vrot.lane.b32.xlu0 %v843, 64
  %v1280 = vpop.permute.xlu0 %1279
  %1281 = vrot.lane.b32.xlu0 %v847, 64
  %v1282 = vpop.permute.xlu0 %1281
  %1283 = vrot.lane.b32.xlu0 %v851, 64
  %v1284 = vpop.permute.xlu0 %1283
  %1285 = vrot.lane.b32.xlu0 %v855, 64
  %v1286 = vpop.permute.xlu0 %1285
  %1287 = vrot.lane.b32.xlu0 %v859, 64
  %v1288 = vpop.permute.xlu0 %1287
  %1289 = vrot.lane.b32.xlu0 %v863, 64
  %v1290 = vpop.permute.xlu0 %1289
  %1291 = vrot.lane.b32.xlu0 %v867, 64
  %v1292 = vpop.permute.xlu0 %1291
  %1293 = vrot.lane.b32.xlu0 %v871, 64
  %v1294 = vpop.permute.xlu0 %1293
  %1295 = vrot.lane.b32.xlu0 %v875, 64
  %v1296 = vpop.permute.xlu0 %1295
  %1297 = vrot.lane.b32.xlu0 %v879, 64
  %v1298 = vpop.permute.xlu0 %1297
  %1299 = vrot.lane.b32.xlu0 %v883, 64
  %v1300 = vpop.permute.xlu0 %1299
  %1301 = vrot.lane.b32.xlu0 %v887, 64
  %v1302 = vpop.permute.xlu0 %1301
  %1303 = vrot.lane.b32.xlu0 %v891, 64
  %v1304 = vpop.permute.xlu0 %1303
  %1305 = vrot.lane.b32.xlu0 %v895, 64
  %v1306 = vpop.permute.xlu0 %1305
  %1307 = vrot.lane.b32.xlu0 %v899, 64
  %v1308 = vpop.permute.xlu0 %1307
  %1309 = vrot.lane.b32.xlu0 %v903, 64
  %v1310 = vpop.permute.xlu0 %1309
  %1311 = vrot.lane.b32.xlu0 %v907, 64
  %v1312 = vpop.permute.xlu0 %1311
  %1313 = vrot.lane.b32.xlu0 %v911, 64
  %v1314 = vpop.permute.xlu0 %1313
  %1315 = vrot.lane.b32.xlu0 %v915, 64
  %v1316 = vpop.permute.xlu0 %1315
  %1317 = vrot.lane.b32.xlu0 %v919, 64
  %v1318 = vpop.permute.xlu0 %1317
  %1319 = vrot.lane.b32.xlu0 %v923, 64
  %v1320 = vpop.permute.xlu0 %1319
  %1321 = vrot.lane.b32.xlu0 %v927, 64
  %v1322 = vpop.permute.xlu0 %1321
  %1323 = vrot.lane.b32.xlu0 %v931, 64
  %v1324 = vpop.permute.xlu0 %1323
  %v1325 = vrot.slane %v1270, 4
  %v1326 = vrot.slane %v1272, 4
  %v1327 = vrot.slane %v1274, 4
  %v1328 = vrot.slane %v1276, 4
  %v1329 = vrot.slane %v1278, 4
  %v1330 = vrot.slane %v1280, 4
  %v1331 = vrot.slane %v1282, 4
  %v1332 = vrot.slane %v1284, 4
  %v1333 = vrot.slane %v1286, 4
  %v1334 = vrot.slane %v1288, 4
  %v1335 = vrot.slane %v1290, 4
  %v1336 = vrot.slane %v1292, 4
  %v1337 = vrot.slane %v1294, 4
  %v1338 = vrot.slane %v1296, 4
  %v1339 = vrot.slane %v1298, 4
  %v1340 = vrot.slane %v1300, 4
  %v1341 = vrot.slane %v1302, 4
  %v1342 = vrot.slane %v1304, 4
  %v1343 = vrot.slane %v1306, 4
  %v1344 = vrot.slane %v1308, 4
  %v1345 = vrot.slane %v1310, 4
  %v1346 = vrot.slane %v1312, 4
  %v1347 = vrot.slane %v1314, 4
  %v1348 = vrot.slane %v1316, 4
  %v1349 = vrot.slane %v1318, 4
  %v1350 = vrot.slane %v1320, 4
  %v1351 = vrot.slane %v1322, 4
  %v1352 = vrot.slane %v1324, 4
  %1381 = vrot.lane.b32.xlu0 %v824, 64
  %v1382 = vpop.permute.xlu0 %1381
  %1383 = vrot.lane.b32.xlu0 %v828, 64
  %v1384 = vpop.permute.xlu0 %1383
  %1385 = vrot.lane.b32.xlu0 %v832, 64
  %v1386 = vpop.permute.xlu0 %1385
  %1387 = vrot.lane.b32.xlu0 %v836, 64
  %v1388 = vpop.permute.xlu0 %1387
  %1389 = vrot.lane.b32.xlu0 %v840, 64
  %v1390 = vpop.permute.xlu0 %1389
  %1391 = vrot.lane.b32.xlu0 %v844, 64
  %v1392 = vpop.permute.xlu0 %1391
  %1393 = vrot.lane.b32.xlu0 %v848, 64
  %v1394 = vpop.permute.xlu0 %1393
  %1395 = vrot.lane.b32.xlu0 %v852, 64
  %v1396 = vpop.permute.xlu0 %1395
  %1397 = vrot.lane.b32.xlu0 %v856, 64
  %v1398 = vpop.permute.xlu0 %1397
  %1399 = vrot.lane.b32.xlu0 %v860, 64
  %v1400 = vpop.permute.xlu0 %1399
  %1401 = vrot.lane.b32.xlu0 %v864, 64
  %v1402 = vpop.permute.xlu0 %1401
  %1403 = vrot.lane.b32.xlu0 %v868, 64
  %v1404 = vpop.permute.xlu0 %1403
  %1405 = vrot.lane.b32.xlu0 %v872, 64
  %v1406 = vpop.permute.xlu0 %1405
  %1407 = vrot.lane.b32.xlu0 %v876, 64
  %v1408 = vpop.permute.xlu0 %1407
  %1409 = vrot.lane.b32.xlu0 %v880, 64
  %v1410 = vpop.permute.xlu0 %1409
  %1411 = vrot.lane.b32.xlu0 %v884, 64
  %v1412 = vpop.permute.xlu0 %1411
  %1413 = vrot.lane.b32.xlu0 %v888, 64
  %v1414 = vpop.permute.xlu0 %1413
  %1415 = vrot.lane.b32.xlu0 %v892, 64
  %v1416 = vpop.permute.xlu0 %1415
  %1417 = vrot.lane.b32.xlu0 %v896, 64
  %v1418 = vpop.permute.xlu0 %1417
  %1419 = vrot.lane.b32.xlu0 %v900, 64
  %v1420 = vpop.permute.xlu0 %1419
  %1421 = vrot.lane.b32.xlu0 %v904, 64
  %v1422 = vpop.permute.xlu0 %1421
  %1423 = vrot.lane.b32.xlu0 %v908, 64
  %v1424 = vpop.permute.xlu0 %1423
  %1425 = vrot.lane.b32.xlu0 %v912, 64
  %v1426 = vpop.permute.xlu0 %1425
  %1427 = vrot.lane.b32.xlu0 %v916, 64
  %v1428 = vpop.permute.xlu0 %1427
  %1429 = vrot.lane.b32.xlu0 %v920, 64
  %v1430 = vpop.permute.xlu0 %1429
  %1431 = vrot.lane.b32.xlu0 %v924, 64
  %v1432 = vpop.permute.xlu0 %1431
  %1433 = vrot.lane.b32.xlu0 %v928, 64
  %v1434 = vpop.permute.xlu0 %1433
  %1435 = vrot.lane.b32.xlu0 %v932, 64
  %v1436 = vpop.permute.xlu0 %1435
  %v1437 = vunpack.c.l.b16 %v821
  %v1438 = vunpack.c.l.b16 %v825
  %v1439 = vunpack.c.l.b16 %v829
  %v1440 = vunpack.c.l.b16 %v833
  %v1441 = vunpack.c.l.b16 %v837
  %v1442 = vunpack.c.l.b16 %v841
  %v1443 = vunpack.c.l.b16 %v845
  %v1444 = vunpack.c.l.b16 %v849
  %v1445 = vunpack.c.l.b16 %v853
  %v1446 = vunpack.c.l.b16 %v857
  %v1447 = vunpack.c.l.b16 %v861
  %v1448 = vunpack.c.l.b16 %v865
  %v1449 = vunpack.c.l.b16 %v869
  %v1450 = vunpack.c.l.b16 %v873
  %v1451 = vunpack.c.l.b16 %v877
  %v1452 = vunpack.c.l.b16 %v881
  %v1453 = vunpack.c.l.b16 %v885
  %v1454 = vunpack.c.l.b16 %v889
  %v1455 = vunpack.c.l.b16 %v893
  %v1456 = vunpack.c.l.b16 %v897
  %v1457 = vunpack.c.l.b16 %v901
  %v1458 = vunpack.c.l.b16 %v905
  %v1459 = vunpack.c.l.b16 %v909
  %v1460 = vunpack.c.l.b16 %v913
  %v1461 = vunpack.c.l.b16 %v917
  %v1462 = vunpack.c.l.b16 %v921
  %v1463 = vunpack.c.l.b16 %v925
  %v1464 = vunpack.c.l.b16 %v929
  %v1465 = vunpack.c.l.b16 %v990
  %v1466 = vunpack.c.l.b16 %v992
  %v1467 = vunpack.c.l.b16 %v994
  %v1468 = vunpack.c.l.b16 %v996
  %v1469 = vunpack.c.l.b16 %v998
  %v1470 = vunpack.c.l.b16 %v1000
  %v1471 = vunpack.c.l.b16 %v1002
  %v1472 = vunpack.c.l.b16 %v1004
  %v1473 = vunpack.c.l.b16 %v1006
  %v1474 = vunpack.c.l.b16 %v1008
  %v1475 = vunpack.c.l.b16 %v1010
  %v1476 = vunpack.c.l.b16 %v1012
  %v1477 = vunpack.c.l.b16 %v1014
  %v1478 = vunpack.c.l.b16 %v1016
  %v1479 = vunpack.c.l.b16 %v1018
  %v1480 = vunpack.c.l.b16 %v1020
  %v1481 = vunpack.c.l.b16 %v1022
  %v1482 = vunpack.c.l.b16 %v1024
  %v1483 = vunpack.c.l.b16 %v1026
  %v1484 = vunpack.c.l.b16 %v1028
  %v1485 = vunpack.c.l.b16 %v1030
  %v1486 = vunpack.c.l.b16 %v1032
  %v1487 = vunpack.c.l.b16 %v1034
  %v1488 = vunpack.c.l.b16 %v1036
  %v1489 = vunpack.c.l.b16 %v1038
  %v1490 = vunpack.c.l.b16 %v1040
  %v1491 = vunpack.c.l.b16 %v1042
  %v1492 = vunpack.c.l.b16 %v1044
  %v1493 = vunpack.c.l.b16 %v961
  %v1494 = vunpack.c.l.b16 %v962
  %v1495 = vunpack.c.l.b16 %v963
  %v1496 = vunpack.c.l.b16 %v964
  %v1497 = vunpack.c.l.b16 %v965
  %v1498 = vunpack.c.l.b16 %v966
  %v1499 = vunpack.c.l.b16 %v967
  %v1500 = vunpack.c.l.b16 %v968
  %v1501 = vunpack.c.l.b16 %v969
  %v1502 = vunpack.c.l.b16 %v970
  %v1503 = vunpack.c.l.b16 %v971
  %v1504 = vunpack.c.l.b16 %v972
  %v1505 = vunpack.c.l.b16 %v973
  %v1506 = vunpack.c.l.b16 %v974
  %v1507 = vunpack.c.l.b16 %v975
  %v1508 = vunpack.c.l.b16 %v976
  %v1509 = vunpack.c.l.b16 %v977
  %v1510 = vunpack.c.l.b16 %v978
  %v1511 = vunpack.c.l.b16 %v979
  %v1512 = vunpack.c.l.b16 %v980
  %v1513 = vunpack.c.l.b16 %v981
  %v1514 = vunpack.c.l.b16 %v982
  %v1515 = vunpack.c.l.b16 %v983
  %v1516 = vunpack.c.l.b16 %v984
  %v1517 = vunpack.c.l.b16 %v985
  %v1518 = vunpack.c.l.b16 %v986
  %v1519 = vunpack.c.l.b16 %v987
  %v1520 = vunpack.c.l.b16 %v988
  %v1521 = vunpack.c.l.b16 %v1045
  %v1522 = vunpack.c.l.b16 %v1046
  %v1523 = vunpack.c.l.b16 %v1047
  %v1524 = vunpack.c.l.b16 %v1048
  %v1525 = vunpack.c.l.b16 %v1049
  %v1526 = vunpack.c.l.b16 %v1050
  %v1527 = vunpack.c.l.b16 %v1051
  %v1528 = vunpack.c.l.b16 %v1052
  %v1529 = vunpack.c.l.b16 %v1053
  %v1530 = vunpack.c.l.b16 %v1054
  %v1531 = vunpack.c.l.b16 %v1055
  %v1532 = vunpack.c.l.b16 %v1056
  %v1533 = vunpack.c.l.b16 %v1057
  %v1534 = vunpack.c.l.b16 %v1058
  %v1535 = vunpack.c.l.b16 %v1059
  %v1536 = vunpack.c.l.b16 %v1060
  %v1537 = vunpack.c.l.b16 %v1061
  %v1538 = vunpack.c.l.b16 %v1062
  %v1539 = vunpack.c.l.b16 %v1063
  %v1540 = vunpack.c.l.b16 %v1064
  %v1541 = vunpack.c.l.b16 %v1065
  %v1542 = vunpack.c.l.b16 %v1066
  %v1543 = vunpack.c.l.b16 %v1067
  %v1544 = vunpack.c.l.b16 %v1068
  %v1545 = vunpack.c.l.b16 %v1069
  %v1546 = vunpack.c.l.b16 %v1070
  %v1547 = vunpack.c.l.b16 %v1071
  %v1548 = vunpack.c.l.b16 %v1072
  %v1549 = vunpack.c.l.b16 %v822
  %v1550 = vunpack.c.l.b16 %v826
  %v1551 = vunpack.c.l.b16 %v830
  %v1552 = vunpack.c.l.b16 %v834
  %v1553 = vunpack.c.l.b16 %v838
  %v1554 = vunpack.c.l.b16 %v842
  %v1555 = vunpack.c.l.b16 %v846
  %v1556 = vunpack.c.l.b16 %v850
  %v1557 = vunpack.c.l.b16 %v854
  %v1558 = vunpack.c.l.b16 %v858
  %v1559 = vunpack.c.l.b16 %v862
  %v1560 = vunpack.c.l.b16 %v866
  %v1561 = vunpack.c.l.b16 %v870
  %v1562 = vunpack.c.l.b16 %v874
  %v1563 = vunpack.c.l.b16 %v878
  %v1564 = vunpack.c.l.b16 %v882
  %v1565 = vunpack.c.l.b16 %v886
  %v1566 = vunpack.c.l.b16 %v890
  %v1567 = vunpack.c.l.b16 %v894
  %v1568 = vunpack.c.l.b16 %v898
  %v1569 = vunpack.c.l.b16 %v902
  %v1570 = vunpack.c.l.b16 %v906
  %v1571 = vunpack.c.l.b16 %v910
  %v1572 = vunpack.c.l.b16 %v914
  %v1573 = vunpack.c.l.b16 %v918
  %v1574 = vunpack.c.l.b16 %v922
  %v1575 = vunpack.c.l.b16 %v926
  %v1576 = vunpack.c.l.b16 %v930
  %v1577 = vunpack.c.l.b16 %v1130
  %v1578 = vunpack.c.l.b16 %v1132
  %v1579 = vunpack.c.l.b16 %v1134
  %v1580 = vunpack.c.l.b16 %v1136
  %v1581 = vunpack.c.l.b16 %v1138
  %v1582 = vunpack.c.l.b16 %v1140
  %v1583 = vunpack.c.l.b16 %v1142
  %v1584 = vunpack.c.l.b16 %v1144
  %v1585 = vunpack.c.l.b16 %v1146
  %v1586 = vunpack.c.l.b16 %v1148
  %v1587 = vunpack.c.l.b16 %v1150
  %v1588 = vunpack.c.l.b16 %v1152
  %v1589 = vunpack.c.l.b16 %v1154
  %v1590 = vunpack.c.l.b16 %v1156
  %v1591 = vunpack.c.l.b16 %v1158
  %v1592 = vunpack.c.l.b16 %v1160
  %v1593 = vunpack.c.l.b16 %v1162
  %v1594 = vunpack.c.l.b16 %v1164
  %v1595 = vunpack.c.l.b16 %v1166
  %v1596 = vunpack.c.l.b16 %v1168
  %v1597 = vunpack.c.l.b16 %v1170
  %v1598 = vunpack.c.l.b16 %v1172
  %v1599 = vunpack.c.l.b16 %v1174
  %v1600 = vunpack.c.l.b16 %v1176
  %v1601 = vunpack.c.l.b16 %v1178
  %v1602 = vunpack.c.l.b16 %v1180
  %v1603 = vunpack.c.l.b16 %v1182
  %v1604 = vunpack.c.l.b16 %v1184
  %v1605 = vunpack.c.l.b16 %v1101
  %v1606 = vunpack.c.l.b16 %v1102
  %v1607 = vunpack.c.l.b16 %v1103
  %v1608 = vunpack.c.l.b16 %v1104
  %v1609 = vunpack.c.l.b16 %v1105
  %v1610 = vunpack.c.l.b16 %v1106
  %v1611 = vunpack.c.l.b16 %v1107
  %v1612 = vunpack.c.l.b16 %v1108
  %v1613 = vunpack.c.l.b16 %v1109
  %v1614 = vunpack.c.l.b16 %v1110
  %v1615 = vunpack.c.l.b16 %v1111
  %v1616 = vunpack.c.l.b16 %v1112
  %v1617 = vunpack.c.l.b16 %v1113
  %v1618 = vunpack.c.l.b16 %v1114
  %v1619 = vunpack.c.l.b16 %v1115
  %v1620 = vunpack.c.l.b16 %v1116
  %v1621 = vunpack.c.l.b16 %v1117
  %v1622 = vunpack.c.l.b16 %v1118
  %v1623 = vunpack.c.l.b16 %v1119
  %v1624 = vunpack.c.l.b16 %v1120
  %v1625 = vunpack.c.l.b16 %v1121
  %v1626 = vunpack.c.l.b16 %v1122
  %v1627 = vunpack.c.l.b16 %v1123
  %v1628 = vunpack.c.l.b16 %v1124
  %v1629 = vunpack.c.l.b16 %v1125
  %v1630 = vunpack.c.l.b16 %v1126
  %v1631 = vunpack.c.l.b16 %v1127
  %v1632 = vunpack.c.l.b16 %v1128
  %v1633 = vunpack.c.l.b16 %v1185
  %v1634 = vunpack.c.l.b16 %v1186
  %v1635 = vunpack.c.l.b16 %v1187
  %v1636 = vunpack.c.l.b16 %v1188
  %v1637 = vunpack.c.l.b16 %v1189
  %v1638 = vunpack.c.l.b16 %v1190
  %v1639 = vunpack.c.l.b16 %v1191
  %v1640 = vunpack.c.l.b16 %v1192
  %v1641 = vunpack.c.l.b16 %v1193
  %v1642 = vunpack.c.l.b16 %v1194
  %v1643 = vunpack.c.l.b16 %v1195
  %v1644 = vunpack.c.l.b16 %v1196
  %v1645 = vunpack.c.l.b16 %v1197
  %v1646 = vunpack.c.l.b16 %v1198
  %v1647 = vunpack.c.l.b16 %v1199
  %v1648 = vunpack.c.l.b16 %v1200
  %v1649 = vunpack.c.l.b16 %v1201
  %v1650 = vunpack.c.l.b16 %v1202
  %v1651 = vunpack.c.l.b16 %v1203
  %v1652 = vunpack.c.l.b16 %v1204
  %v1653 = vunpack.c.l.b16 %v1205
  %v1654 = vunpack.c.l.b16 %v1206
  %v1655 = vunpack.c.l.b16 %v1207
  %v1656 = vunpack.c.l.b16 %v1208
  %v1657 = vunpack.c.l.b16 %v1209
  %v1658 = vunpack.c.l.b16 %v1210
  %v1659 = vunpack.c.l.b16 %v1211
  %v1660 = vunpack.c.l.b16 %v1212
  %v1661 = vunpack.c.l.b16 %v823
  %v1662 = vunpack.c.l.b16 %v827
  %v1663 = vunpack.c.l.b16 %v831
  %v1664 = vunpack.c.l.b16 %v835
  %v1665 = vunpack.c.l.b16 %v839
  %v1666 = vunpack.c.l.b16 %v843
  %v1667 = vunpack.c.l.b16 %v847
  %v1668 = vunpack.c.l.b16 %v851
  %v1669 = vunpack.c.l.b16 %v855
  %v1670 = vunpack.c.l.b16 %v859
  %v1671 = vunpack.c.l.b16 %v863
  %v1672 = vunpack.c.l.b16 %v867
  %v1673 = vunpack.c.l.b16 %v871
  %v1674 = vunpack.c.l.b16 %v875
  %v1675 = vunpack.c.l.b16 %v879
  %v1676 = vunpack.c.l.b16 %v883
  %v1677 = vunpack.c.l.b16 %v887
  %v1678 = vunpack.c.l.b16 %v891
  %v1679 = vunpack.c.l.b16 %v895
  %v1680 = vunpack.c.l.b16 %v899
  %v1681 = vunpack.c.l.b16 %v903
  %v1682 = vunpack.c.l.b16 %v907
  %v1683 = vunpack.c.l.b16 %v911
  %v1684 = vunpack.c.l.b16 %v915
  %v1685 = vunpack.c.l.b16 %v919
  %v1686 = vunpack.c.l.b16 %v923
  %v1687 = vunpack.c.l.b16 %v927
  %v1688 = vunpack.c.l.b16 %v931
  %v1689 = vunpack.c.l.b16 %v1270
  %v1690 = vunpack.c.l.b16 %v1272
  %v1691 = vunpack.c.l.b16 %v1274
  %v1692 = vunpack.c.l.b16 %v1276
  %v1693 = vunpack.c.l.b16 %v1278
  %v1694 = vunpack.c.l.b16 %v1280
  %v1695 = vunpack.c.l.b16 %v1282
  %v1696 = vunpack.c.l.b16 %v1284
  %v1697 = vunpack.c.l.b16 %v1286
  %v1698 = vunpack.c.l.b16 %v1288
  %v1699 = vunpack.c.l.b16 %v1290
  %v1700 = vunpack.c.l.b16 %v1292
  %v1701 = vunpack.c.l.b16 %v1294
  %v1702 = vunpack.c.l.b16 %v1296
  %v1703 = vunpack.c.l.b16 %v1298
  %v1704 = vunpack.c.l.b16 %v1300
  %v1705 = vunpack.c.l.b16 %v1302
  %v1706 = vunpack.c.l.b16 %v1304
  %v1707 = vunpack.c.l.b16 %v1306
  %v1708 = vunpack.c.l.b16 %v1308
  %v1709 = vunpack.c.l.b16 %v1310
  %v1710 = vunpack.c.l.b16 %v1312
  %v1711 = vunpack.c.l.b16 %v1314
  %v1712 = vunpack.c.l.b16 %v1316
  %v1713 = vunpack.c.l.b16 %v1318
  %v1714 = vunpack.c.l.b16 %v1320
  %v1715 = vunpack.c.l.b16 %v1322
  %v1716 = vunpack.c.l.b16 %v1324
  %v1717 = vunpack.c.l.b16 %v1241
  %v1718 = vunpack.c.l.b16 %v1242
  %v1719 = vunpack.c.l.b16 %v1243
  %v1720 = vunpack.c.l.b16 %v1244
  %v1721 = vunpack.c.l.b16 %v1245
  %v1722 = vunpack.c.l.b16 %v1246
  %v1723 = vunpack.c.l.b16 %v1247
  %v1724 = vunpack.c.l.b16 %v1248
  %v1725 = vunpack.c.l.b16 %v1249
  %v1726 = vunpack.c.l.b16 %v1250
  %v1727 = vunpack.c.l.b16 %v1251
  %v1728 = vunpack.c.l.b16 %v1252
  %v1729 = vunpack.c.l.b16 %v1253
  %v1730 = vunpack.c.l.b16 %v1254
  %v1731 = vunpack.c.l.b16 %v1255
  %v1732 = vunpack.c.l.b16 %v1256
  %v1733 = vunpack.c.l.b16 %v1257
  %v1734 = vunpack.c.l.b16 %v1258
  %v1735 = vunpack.c.l.b16 %v1259
  %v1736 = vunpack.c.l.b16 %v1260
  %v1737 = vunpack.c.l.b16 %v1261
  %v1738 = vunpack.c.l.b16 %v1262
  %v1739 = vunpack.c.l.b16 %v1263
  %v1740 = vunpack.c.l.b16 %v1264
  %v1741 = vunpack.c.l.b16 %v1265
  %v1742 = vunpack.c.l.b16 %v1266
  %v1743 = vunpack.c.l.b16 %v1267
  %v1744 = vunpack.c.l.b16 %v1268
  %v1745 = vunpack.c.l.b16 %v1325
  %v1746 = vunpack.c.l.b16 %v1326
  %v1747 = vunpack.c.l.b16 %v1327
  %v1748 = vunpack.c.l.b16 %v1328
  %v1749 = vunpack.c.l.b16 %v1329
  %v1750 = vunpack.c.l.b16 %v1330
  %v1751 = vunpack.c.l.b16 %v1331
  %v1752 = vunpack.c.l.b16 %v1332
  %v1753 = vunpack.c.l.b16 %v1333
  %v1754 = vunpack.c.l.b16 %v1334
  %v1755 = vunpack.c.l.b16 %v1335
  %v1756 = vunpack.c.l.b16 %v1336
  %v1757 = vunpack.c.l.b16 %v1337
  %v1758 = vunpack.c.l.b16 %v1338
  %v1759 = vunpack.c.l.b16 %v1339
  %v1760 = vunpack.c.l.b16 %v1340
  %v1761 = vunpack.c.l.b16 %v1341
  %v1762 = vunpack.c.l.b16 %v1342
  %v1763 = vunpack.c.l.b16 %v1343
  %v1764 = vunpack.c.l.b16 %v1344
  %v1765 = vunpack.c.l.b16 %v1345
  %v1766 = vunpack.c.l.b16 %v1346
  %v1767 = vunpack.c.l.b16 %v1347
  %v1768 = vunpack.c.l.b16 %v1348
  %v1769 = vunpack.c.l.b16 %v1349
  %v1770 = vunpack.c.l.b16 %v1350
  %v1771 = vunpack.c.l.b16 %v1351
  %v1772 = vunpack.c.l.b16 %v1352
  %v1773 = vunpack.c.l.b16 %v824
  %v1774 = vunpack.c.l.b16 %v828
  %v1775 = vunpack.c.l.b16 %v832
  %v1776 = vunpack.c.l.b16 %v836
  %v1777 = vunpack.c.l.b16 %v840
  %v1778 = vunpack.c.l.b16 %v844
  %v1779 = vunpack.c.l.b16 %v848
  %v1780 = vunpack.c.l.b16 %v852
  %v1781 = vunpack.c.l.b16 %v856
  %v1782 = vunpack.c.l.b16 %v860
  %v1783 = vunpack.c.l.b16 %v864
  %v1784 = vunpack.c.l.b16 %v868
  %v1785 = vunpack.c.l.b16 %v872
  %v1786 = vunpack.c.l.b16 %v876
  %v1787 = vunpack.c.l.b16 %v880
  %v1788 = vunpack.c.l.b16 %v884
  %v1789 = vunpack.c.l.b16 %v888
  %v1790 = vunpack.c.l.b16 %v892
  %v1791 = vunpack.c.l.b16 %v896
  %v1792 = vunpack.c.l.b16 %v900
  %v1793 = vunpack.c.l.b16 %v904
  %v1794 = vunpack.c.l.b16 %v908
  %v1795 = vunpack.c.l.b16 %v912
  %v1796 = vunpack.c.l.b16 %v916
  %v1797 = vunpack.c.l.b16 %v920
  %v1798 = vunpack.c.l.b16 %v924
  %v1799 = vunpack.c.l.b16 %v928
  %v1800 = vunpack.c.l.b16 %v932
  %v1801 = vunpack.c.l.b16 %v1382
  %v1802 = vunpack.c.l.b16 %v1384
  %v1803 = vunpack.c.l.b16 %v1386
  %v1804 = vunpack.c.l.b16 %v1388
  %v1805 = vunpack.c.l.b16 %v1390
  %v1806 = vunpack.c.l.b16 %v1392
  %v1807 = vunpack.c.l.b16 %v1394
  %v1808 = vunpack.c.l.b16 %v1396
  %v1809 = vunpack.c.l.b16 %v1398
  %v1810 = vunpack.c.l.b16 %v1400
  %v1811 = vunpack.c.l.b16 %v1402
  %v1812 = vunpack.c.l.b16 %v1404
  %v1813 = vunpack.c.l.b16 %v1406
  %v1814 = vunpack.c.l.b16 %v1408
  %v1815 = vunpack.c.l.b16 %v1410
  %v1816 = vunpack.c.l.b16 %v1412
  %v1817 = vunpack.c.l.b16 %v1414
  %v1818 = vunpack.c.l.b16 %v1416
  %v1819 = vunpack.c.l.b16 %v1418
  %v1820 = vunpack.c.l.b16 %v1420
  %v1821 = vunpack.c.l.b16 %v1422
  %v1822 = vunpack.c.l.b16 %v1424
  %v1823 = vunpack.c.l.b16 %v1426
  %v1824 = vunpack.c.l.b16 %v1428
  %v1825 = vunpack.c.l.b16 %v1430
  %v1826 = vunpack.c.l.b16 %v1432
  %v1827 = vunpack.c.l.b16 %v1434
  %v1828 = vunpack.c.l.b16 %v1436
  %v1829 = vrot.slane %v1438, 7
  %vm1830 = vcmask 1041409
  %v1831 = vsel %vm1830, %v1829, %v1437
  %v1832 = vrot.slane %v1439, 6
  %vm1833 = vcmask 1042434
  %v1834 = vsel %vm1833, %v1832, %v1831
  %v1835 = vrot.slane %v1440, 5
  %vm1836 = vcmask 1043459
  %v1837 = vsel %vm1836, %v1835, %v1834
  %v1838 = vrot.slane %v1441, 4
  %vm1839 = vcmask 1044484
  %v1840 = vsel %vm1839, %v1838, %v1837
  %v1841 = vrot.slane %v1442, 3
  %vm1842 = vcmask 1045509
  %v1843 = vsel %vm1842, %v1841, %v1840
  %v1844 = vrot.slane %v1443, 2
  %vm1845 = vcmask 1046534
  %v1846 = vsel %vm1845, %v1844, %v1843
  %v1847 = vrot.slane %v1444, 1
  %vm1848 = vcmask 1047559
  %v1849 = vsel %vm1848, %v1847, %v1846
  %v1850 = vrot.slane %v1446, 7
  %v1851 = vsel %vm1830, %v1850, %v1445
  %v1852 = vrot.slane %v1447, 6
  %v1853 = vsel %vm1833, %v1852, %v1851
  %v1854 = vrot.slane %v1448, 5
  %v1855 = vsel %vm1836, %v1854, %v1853
  %v1856 = vrot.slane %v1449, 4
  %v1857 = vsel %vm1839, %v1856, %v1855
  %v1858 = vrot.slane %v1450, 3
  %v1859 = vsel %vm1842, %v1858, %v1857
  %v1860 = vrot.slane %v1451, 2
  %v1861 = vsel %vm1845, %v1860, %v1859
  %v1862 = vrot.slane %v1452, 1
  %v1863 = vsel %vm1848, %v1862, %v1861
  %v1864 = vrot.slane %v1454, 7
  %v1865 = vsel %vm1830, %v1864, %v1453
  %v1866 = vrot.slane %v1455, 6
  %v1867 = vsel %vm1833, %v1866, %v1865
  %v1868 = vrot.slane %v1456, 5
  %v1869 = vsel %vm1836, %v1868, %v1867
  %v1870 = vrot.slane %v1457, 4
  %v1871 = vsel %vm1839, %v1870, %v1869
  %v1872 = vrot.slane %v1458, 3
  %v1873 = vsel %vm1842, %v1872, %v1871
  %v1874 = vrot.slane %v1459, 2
  %v1875 = vsel %vm1845, %v1874, %v1873
  %v1876 = vrot.slane %v1460, 1
  %v1877 = vsel %vm1848, %v1876, %v1875
  %v1878 = vrot.slane %v1462, 7
  %v1879 = vsel %vm1830, %v1878, %v1461
  %v1880 = vrot.slane %v1463, 6
  %v1881 = vsel %vm1833, %v1880, %v1879
  %v1882 = vrot.slane %v1464, 5
  %v1883 = vsel %vm1836, %v1882, %v1881
  %v1884 = vrot.slane %v1466, 7
  %v1885 = vsel %vm1830, %v1884, %v1465
  %v1886 = vrot.slane %v1467, 6
  %v1887 = vsel %vm1833, %v1886, %v1885
  %v1888 = vrot.slane %v1468, 5
  %v1889 = vsel %vm1836, %v1888, %v1887
  %v1890 = vrot.slane %v1469, 4
  %v1891 = vsel %vm1839, %v1890, %v1889
  %v1892 = vrot.slane %v1470, 3
  %v1893 = vsel %vm1842, %v1892, %v1891
  %v1894 = vrot.slane %v1471, 2
  %v1895 = vsel %vm1845, %v1894, %v1893
  %v1896 = vrot.slane %v1472, 1
  %v1897 = vsel %vm1848, %v1896, %v1895
  %v1898 = vrot.slane %v1474, 7
  %v1899 = vsel %vm1830, %v1898, %v1473
  %v1900 = vrot.slane %v1475, 6
  %v1901 = vsel %vm1833, %v1900, %v1899
  %v1902 = vrot.slane %v1476, 5
  %v1903 = vsel %vm1836, %v1902, %v1901
  %v1904 = vrot.slane %v1477, 4
  %v1905 = vsel %vm1839, %v1904, %v1903
  %v1906 = vrot.slane %v1478, 3
  %v1907 = vsel %vm1842, %v1906, %v1905
  %v1908 = vrot.slane %v1479, 2
  %v1909 = vsel %vm1845, %v1908, %v1907
  %v1910 = vrot.slane %v1480, 1
  %v1911 = vsel %vm1848, %v1910, %v1909
  %v1912 = vrot.slane %v1482, 7
  %v1913 = vsel %vm1830, %v1912, %v1481
  %v1914 = vrot.slane %v1483, 6
  %v1915 = vsel %vm1833, %v1914, %v1913
  %v1916 = vrot.slane %v1484, 5
  %v1917 = vsel %vm1836, %v1916, %v1915
  %v1918 = vrot.slane %v1485, 4
  %v1919 = vsel %vm1839, %v1918, %v1917
  %v1920 = vrot.slane %v1486, 3
  %v1921 = vsel %vm1842, %v1920, %v1919
  %v1922 = vrot.slane %v1487, 2
  %v1923 = vsel %vm1845, %v1922, %v1921
  %v1924 = vrot.slane %v1488, 1
  %v1925 = vsel %vm1848, %v1924, %v1923
  %v1926 = vrot.slane %v1490, 7
  %v1927 = vsel %vm1830, %v1926, %v1489
  %v1928 = vrot.slane %v1491, 6
  %v1929 = vsel %vm1833, %v1928, %v1927
  %v1930 = vrot.slane %v1492, 5
  %v1931 = vsel %vm1836, %v1930, %v1929
  %v1932 = vrot.slane %v1494, 7
  %v1933 = vsel %vm1830, %v1932, %v1493
  %v1934 = vrot.slane %v1495, 6
  %v1935 = vsel %vm1833, %v1934, %v1933
  %v1936 = vrot.slane %v1496, 5
  %v1937 = vsel %vm1836, %v1936, %v1935
  %v1938 = vrot.slane %v1497, 4
  %v1939 = vsel %vm1839, %v1938, %v1937
  %v1940 = vrot.slane %v1498, 3
  %v1941 = vsel %vm1842, %v1940, %v1939
  %v1942 = vrot.slane %v1499, 2
  %v1943 = vsel %vm1845, %v1942, %v1941
  %v1944 = vrot.slane %v1500, 1
  %v1945 = vsel %vm1848, %v1944, %v1943
  %v1946 = vrot.slane %v1502, 7
  %v1947 = vsel %vm1830, %v1946, %v1501
  %v1948 = vrot.slane %v1503, 6
  %v1949 = vsel %vm1833, %v1948, %v1947
  %v1950 = vrot.slane %v1504, 5
  %v1951 = vsel %vm1836, %v1950, %v1949
  %v1952 = vrot.slane %v1505, 4
  %v1953 = vsel %vm1839, %v1952, %v1951
  %v1954 = vrot.slane %v1506, 3
  %v1955 = vsel %vm1842, %v1954, %v1953
  %v1956 = vrot.slane %v1507, 2
  %v1957 = vsel %vm1845, %v1956, %v1955
  %v1958 = vrot.slane %v1508, 1
  %v1959 = vsel %vm1848, %v1958, %v1957
  %v1960 = vrot.slane %v1510, 7
  %v1961 = vsel %vm1830, %v1960, %v1509
  %v1962 = vrot.slane %v1511, 6
  %v1963 = vsel %vm1833, %v1962, %v1961
  %v1964 = vrot.slane %v1512, 5
  %v1965 = vsel %vm1836, %v1964, %v1963
  %v1966 = vrot.slane %v1513, 4
  %v1967 = vsel %vm1839, %v1966, %v1965
  %v1968 = vrot.slane %v1514, 3
  %v1969 = vsel %vm1842, %v1968, %v1967
  %v1970 = vrot.slane %v1515, 2
  %v1971 = vsel %vm1845, %v1970, %v1969
  %v1972 = vrot.slane %v1516, 1
  %v1973 = vsel %vm1848, %v1972, %v1971
  %v1974 = vrot.slane %v1518, 7
  %v1975 = vsel %vm1830, %v1974, %v1517
  %v1976 = vrot.slane %v1519, 6
  %v1977 = vsel %vm1833, %v1976, %v1975
  %v1978 = vrot.slane %v1520, 5
  %v1979 = vsel %vm1836, %v1978, %v1977
  %v1980 = vrot.slane %v1522, 7
  %v1981 = vsel %vm1830, %v1980, %v1521
  %v1982 = vrot.slane %v1523, 6
  %v1983 = vsel %vm1833, %v1982, %v1981
  %v1984 = vrot.slane %v1524, 5
  %v1985 = vsel %vm1836, %v1984, %v1983
  %v1986 = vrot.slane %v1525, 4
  %v1987 = vsel %vm1839, %v1986, %v1985
  %v1988 = vrot.slane %v1526, 3
  %v1989 = vsel %vm1842, %v1988, %v1987
  %v1990 = vrot.slane %v1527, 2
  %v1991 = vsel %vm1845, %v1990, %v1989
  %v1992 = vrot.slane %v1528, 1
  %v1993 = vsel %vm1848, %v1992, %v1991
  %v1994 = vrot.slane %v1530, 7
  %v1995 = vsel %vm1830, %v1994, %v1529
  %v1996 = vrot.slane %v1531, 6
  %v1997 = vsel %vm1833, %v1996, %v1995
  %v1998 = vrot.slane %v1532, 5
  %v1999 = vsel %vm1836, %v1998, %v1997
  %v2000 = vrot.slane %v1533, 4
  %v2001 = vsel %vm1839, %v2000, %v1999
  %v2002 = vrot.slane %v1534, 3
  %v2003 = vsel %vm1842, %v2002, %v2001
  %v2004 = vrot.slane %v1535, 2
  %v2005 = vsel %vm1845, %v2004, %v2003
  %v2006 = vrot.slane %v1536, 1
  %v2007 = vsel %vm1848, %v2006, %v2005
  %v2008 = vrot.slane %v1538, 7
  %v2009 = vsel %vm1830, %v2008, %v1537
  %v2010 = vrot.slane %v1539, 6
  %v2011 = vsel %vm1833, %v2010, %v2009
  %v2012 = vrot.slane %v1540, 5
  %v2013 = vsel %vm1836, %v2012, %v2011
  %v2014 = vrot.slane %v1541, 4
  %v2015 = vsel %vm1839, %v2014, %v2013
  %v2016 = vrot.slane %v1542, 3
  %v2017 = vsel %vm1842, %v2016, %v2015
  %v2018 = vrot.slane %v1543, 2
  %v2019 = vsel %vm1845, %v2018, %v2017
  %v2020 = vrot.slane %v1544, 1
  %v2021 = vsel %vm1848, %v2020, %v2019
  %v2022 = vrot.slane %v1546, 7
  %v2023 = vsel %vm1830, %v2022, %v1545
  %v2024 = vrot.slane %v1547, 6
  %v2025 = vsel %vm1833, %v2024, %v2023
  %v2026 = vrot.slane %v1548, 5
  %v2027 = vsel %vm1836, %v2026, %v2025
  %v2028 = vrot.slane %v1550, 7
  %v2029 = vsel %vm1830, %v2028, %v1549
  %v2030 = vrot.slane %v1551, 6
  %v2031 = vsel %vm1833, %v2030, %v2029
  %v2032 = vrot.slane %v1552, 5
  %v2033 = vsel %vm1836, %v2032, %v2031
  %v2034 = vrot.slane %v1553, 4
  %v2035 = vsel %vm1839, %v2034, %v2033
  %v2036 = vrot.slane %v1554, 3
  %v2037 = vsel %vm1842, %v2036, %v2035
  %v2038 = vrot.slane %v1555, 2
  %v2039 = vsel %vm1845, %v2038, %v2037
  %v2040 = vrot.slane %v1556, 1
  %v2041 = vsel %vm1848, %v2040, %v2039
  %v2042 = vrot.slane %v1558, 7
  %v2043 = vsel %vm1830, %v2042, %v1557
  %v2044 = vrot.slane %v1559, 6
  %v2045 = vsel %vm1833, %v2044, %v2043
  %v2046 = vrot.slane %v1560, 5
  %v2047 = vsel %vm1836, %v2046, %v2045
  %v2048 = vrot.slane %v1561, 4
  %v2049 = vsel %vm1839, %v2048, %v2047
  %v2050 = vrot.slane %v1562, 3
  %v2051 = vsel %vm1842, %v2050, %v2049
  %v2052 = vrot.slane %v1563, 2
  %v2053 = vsel %vm1845, %v2052, %v2051
  %v2054 = vrot.slane %v1564, 1
  %v2055 = vsel %vm1848, %v2054, %v2053
  %v2056 = vrot.slane %v1566, 7
  %v2057 = vsel %vm1830, %v2056, %v1565
  %v2058 = vrot.slane %v1567, 6
  %v2059 = vsel %vm1833, %v2058, %v2057
  %v2060 = vrot.slane %v1568, 5
  %v2061 = vsel %vm1836, %v2060, %v2059
  %v2062 = vrot.slane %v1569, 4
  %v2063 = vsel %vm1839, %v2062, %v2061
  %v2064 = vrot.slane %v1570, 3
  %v2065 = vsel %vm1842, %v2064, %v2063
  %v2066 = vrot.slane %v1571, 2
  %v2067 = vsel %vm1845, %v2066, %v2065
  %v2068 = vrot.slane %v1572, 1
  %v2069 = vsel %vm1848, %v2068, %v2067
  %v2070 = vrot.slane %v1574, 7
  %v2071 = vsel %vm1830, %v2070, %v1573
  %v2072 = vrot.slane %v1575, 6
  %v2073 = vsel %vm1833, %v2072, %v2071
  %v2074 = vrot.slane %v1576, 5
  %v2075 = vsel %vm1836, %v2074, %v2073
  %v2076 = vrot.slane %v1578, 7
  %v2077 = vsel %vm1830, %v2076, %v1577
  %v2078 = vrot.slane %v1579, 6
  %v2079 = vsel %vm1833, %v2078, %v2077
  %v2080 = vrot.slane %v1580, 5
  %v2081 = vsel %vm1836, %v2080, %v2079
  %v2082 = vrot.slane %v1581, 4
  %v2083 = vsel %vm1839, %v2082, %v2081
  %v2084 = vrot.slane %v1582, 3
  %v2085 = vsel %vm1842, %v2084, %v2083
  %v2086 = vrot.slane %v1583, 2
  %v2087 = vsel %vm1845, %v2086, %v2085
  %v2088 = vrot.slane %v1584, 1
  %v2089 = vsel %vm1848, %v2088, %v2087
  %v2090 = vrot.slane %v1586, 7
  %v2091 = vsel %vm1830, %v2090, %v1585
  %v2092 = vrot.slane %v1587, 6
  %v2093 = vsel %vm1833, %v2092, %v2091
  %v2094 = vrot.slane %v1588, 5
  %v2095 = vsel %vm1836, %v2094, %v2093
  %v2096 = vrot.slane %v1589, 4
  %v2097 = vsel %vm1839, %v2096, %v2095
  %v2098 = vrot.slane %v1590, 3
  %v2099 = vsel %vm1842, %v2098, %v2097
  %v2100 = vrot.slane %v1591, 2
  %v2101 = vsel %vm1845, %v2100, %v2099
  %v2102 = vrot.slane %v1592, 1
  %v2103 = vsel %vm1848, %v2102, %v2101
  %v2104 = vrot.slane %v1594, 7
  %v2105 = vsel %vm1830, %v2104, %v1593
  %v2106 = vrot.slane %v1595, 6
  %v2107 = vsel %vm1833, %v2106, %v2105
  %v2108 = vrot.slane %v1596, 5
  %v2109 = vsel %vm1836, %v2108, %v2107
  %v2110 = vrot.slane %v1597, 4
  %v2111 = vsel %vm1839, %v2110, %v2109
  %v2112 = vrot.slane %v1598, 3
  %v2113 = vsel %vm1842, %v2112, %v2111
  %v2114 = vrot.slane %v1599, 2
  %v2115 = vsel %vm1845, %v2114, %v2113
  %v2116 = vrot.slane %v1600, 1
  %v2117 = vsel %vm1848, %v2116, %v2115
  %v2118 = vrot.slane %v1602, 7
  %v2119 = vsel %vm1830, %v2118, %v1601
  %v2120 = vrot.slane %v1603, 6
  %v2121 = vsel %vm1833, %v2120, %v2119
  %v2122 = vrot.slane %v1604, 5
  %v2123 = vsel %vm1836, %v2122, %v2121
  %v2124 = vrot.slane %v1606, 7
  %v2125 = vsel %vm1830, %v2124, %v1605
  %v2126 = vrot.slane %v1607, 6
  %v2127 = vsel %vm1833, %v2126, %v2125
  %v2128 = vrot.slane %v1608, 5
  %v2129 = vsel %vm1836, %v2128, %v2127
  %v2130 = vrot.slane %v1609, 4
  %v2131 = vsel %vm1839, %v2130, %v2129
  %v2132 = vrot.slane %v1610, 3
  %v2133 = vsel %vm1842, %v2132, %v2131
  %v2134 = vrot.slane %v1611, 2
  %v2135 = vsel %vm1845, %v2134, %v2133
  %v2136 = vrot.slane %v1612, 1
  %v2137 = vsel %vm1848, %v2136, %v2135
  %v2138 = vrot.slane %v1614, 7
  %v2139 = vsel %vm1830, %v2138, %v1613
  %v2140 = vrot.slane %v1615, 6
  %v2141 = vsel %vm1833, %v2140, %v2139
  %v2142 = vrot.slane %v1616, 5
  %v2143 = vsel %vm1836, %v2142, %v2141
  %v2144 = vrot.slane %v1617, 4
  %v2145 = vsel %vm1839, %v2144, %v2143
  %v2146 = vrot.slane %v1618, 3
  %v2147 = vsel %vm1842, %v2146, %v2145
  %v2148 = vrot.slane %v1619, 2
  %v2149 = vsel %vm1845, %v2148, %v2147
  %v2150 = vrot.slane %v1620, 1
  %v2151 = vsel %vm1848, %v2150, %v2149
  %v2152 = vrot.slane %v1622, 7
  %v2153 = vsel %vm1830, %v2152, %v1621
  %v2154 = vrot.slane %v1623, 6
  %v2155 = vsel %vm1833, %v2154, %v2153
  %v2156 = vrot.slane %v1624, 5
  %v2157 = vsel %vm1836, %v2156, %v2155
  %v2158 = vrot.slane %v1625, 4
  %v2159 = vsel %vm1839, %v2158, %v2157
  %v2160 = vrot.slane %v1626, 3
  %v2161 = vsel %vm1842, %v2160, %v2159
  %v2162 = vrot.slane %v1627, 2
  %v2163 = vsel %vm1845, %v2162, %v2161
  %v2164 = vrot.slane %v1628, 1
  %v2165 = vsel %vm1848, %v2164, %v2163
  %v2166 = vrot.slane %v1630, 7
  %v2167 = vsel %vm1830, %v2166, %v1629
  %v2168 = vrot.slane %v1631, 6
  %v2169 = vsel %vm1833, %v2168, %v2167
  %v2170 = vrot.slane %v1632, 5
  %v2171 = vsel %vm1836, %v2170, %v2169
  %v2172 = vrot.slane %v1634, 7
  %v2173 = vsel %vm1830, %v2172, %v1633
  %v2174 = vrot.slane %v1635, 6
  %v2175 = vsel %vm1833, %v2174, %v2173
  %v2176 = vrot.slane %v1636, 5
  %v2177 = vsel %vm1836, %v2176, %v2175
  %v2178 = vrot.slane %v1637, 4
  %v2179 = vsel %vm1839, %v2178, %v2177
  %v2180 = vrot.slane %v1638, 3
  %v2181 = vsel %vm1842, %v2180, %v2179
  %v2182 = vrot.slane %v1639, 2
  %v2183 = vsel %vm1845, %v2182, %v2181
  %v2184 = vrot.slane %v1640, 1
  %v2185 = vsel %vm1848, %v2184, %v2183
  %v2186 = vrot.slane %v1642, 7
  %v2187 = vsel %vm1830, %v2186, %v1641
  %v2188 = vrot.slane %v1643, 6
  %v2189 = vsel %vm1833, %v2188, %v2187
  %v2190 = vrot.slane %v1644, 5
  %v2191 = vsel %vm1836, %v2190, %v2189
  %v2192 = vrot.slane %v1645, 4
  %v2193 = vsel %vm1839, %v2192, %v2191
  %v2194 = vrot.slane %v1646, 3
  %v2195 = vsel %vm1842, %v2194, %v2193
  %v2196 = vrot.slane %v1647, 2
  %v2197 = vsel %vm1845, %v2196, %v2195
  %v2198 = vrot.slane %v1648, 1
  %v2199 = vsel %vm1848, %v2198, %v2197
  %v2200 = vrot.slane %v1650, 7
  %v2201 = vsel %vm1830, %v2200, %v1649
  %v2202 = vrot.slane %v1651, 6
  %v2203 = vsel %vm1833, %v2202, %v2201
  %v2204 = vrot.slane %v1652, 5
  %v2205 = vsel %vm1836, %v2204, %v2203
  %v2206 = vrot.slane %v1653, 4
  %v2207 = vsel %vm1839, %v2206, %v2205
  %v2208 = vrot.slane %v1654, 3
  %v2209 = vsel %vm1842, %v2208, %v2207
  %v2210 = vrot.slane %v1655, 2
  %v2211 = vsel %vm1845, %v2210, %v2209
  %v2212 = vrot.slane %v1656, 1
  %v2213 = vsel %vm1848, %v2212, %v2211
  %v2214 = vrot.slane %v1658, 7
  %v2215 = vsel %vm1830, %v2214, %v1657
  %v2216 = vrot.slane %v1659, 6
  %v2217 = vsel %vm1833, %v2216, %v2215
  %v2218 = vrot.slane %v1660, 5
  %v2219 = vsel %vm1836, %v2218, %v2217
  %v2220 = vrot.slane %v1662, 7
  %v2221 = vsel %vm1830, %v2220, %v1661
  %v2222 = vrot.slane %v1663, 6
  %v2223 = vsel %vm1833, %v2222, %v2221
  %v2224 = vrot.slane %v1664, 5
  %v2225 = vsel %vm1836, %v2224, %v2223
  %v2226 = vrot.slane %v1665, 4
  %v2227 = vsel %vm1839, %v2226, %v2225
  %v2228 = vrot.slane %v1666, 3
  %v2229 = vsel %vm1842, %v2228, %v2227
  %v2230 = vrot.slane %v1667, 2
  %v2231 = vsel %vm1845, %v2230, %v2229
  %v2232 = vrot.slane %v1668, 1
  %v2233 = vsel %vm1848, %v2232, %v2231
  %v2234 = vrot.slane %v1670, 7
  %v2235 = vsel %vm1830, %v2234, %v1669
  %v2236 = vrot.slane %v1671, 6
  %v2237 = vsel %vm1833, %v2236, %v2235
  %v2238 = vrot.slane %v1672, 5
  %v2239 = vsel %vm1836, %v2238, %v2237
  %v2240 = vrot.slane %v1673, 4
  %v2241 = vsel %vm1839, %v2240, %v2239
  %v2242 = vrot.slane %v1674, 3
  %v2243 = vsel %vm1842, %v2242, %v2241
  %v2244 = vrot.slane %v1675, 2
  %v2245 = vsel %vm1845, %v2244, %v2243
  %v2246 = vrot.slane %v1676, 1
  %v2247 = vsel %vm1848, %v2246, %v2245
  %v2248 = vrot.slane %v1678, 7
  %v2249 = vsel %vm1830, %v2248, %v1677
  %v2250 = vrot.slane %v1679, 6
  %v2251 = vsel %vm1833, %v2250, %v2249
  %v2252 = vrot.slane %v1680, 5
  %v2253 = vsel %vm1836, %v2252, %v2251
  %v2254 = vrot.slane %v1681, 4
  %v2255 = vsel %vm1839, %v2254, %v2253
  %v2256 = vrot.slane %v1682, 3
  %v2257 = vsel %vm1842, %v2256, %v2255
  %v2258 = vrot.slane %v1683, 2
  %v2259 = vsel %vm1845, %v2258, %v2257
  %v2260 = vrot.slane %v1684, 1
  %v2261 = vsel %vm1848, %v2260, %v2259
  %v2262 = vrot.slane %v1686, 7
  %v2263 = vsel %vm1830, %v2262, %v1685
  %v2264 = vrot.slane %v1687, 6
  %v2265 = vsel %vm1833, %v2264, %v2263
  %v2266 = vrot.slane %v1688, 5
  %v2267 = vsel %vm1836, %v2266, %v2265
  %v2268 = vrot.slane %v1690, 7
  %v2269 = vsel %vm1830, %v2268, %v1689
  %v2270 = vrot.slane %v1691, 6
  %v2271 = vsel %vm1833, %v2270, %v2269
  %v2272 = vrot.slane %v1692, 5
  %v2273 = vsel %vm1836, %v2272, %v2271
  %v2274 = vrot.slane %v1693, 4
  %v2275 = vsel %vm1839, %v2274, %v2273
  %v2276 = vrot.slane %v1694, 3
  %v2277 = vsel %vm1842, %v2276, %v2275
  %v2278 = vrot.slane %v1695, 2
  %v2279 = vsel %vm1845, %v2278, %v2277
  %v2280 = vrot.slane %v1696, 1
  %v2281 = vsel %vm1848, %v2280, %v2279
  %v2282 = vrot.slane %v1698, 7
  %v2283 = vsel %vm1830, %v2282, %v1697
  %v2284 = vrot.slane %v1699, 6
  %v2285 = vsel %vm1833, %v2284, %v2283
  %v2286 = vrot.slane %v1700, 5
  %v2287 = vsel %vm1836, %v2286, %v2285
  %v2288 = vrot.slane %v1701, 4
  %v2289 = vsel %vm1839, %v2288, %v2287
  %v2290 = vrot.slane %v1702, 3
  %v2291 = vsel %vm1842, %v2290, %v2289
  %v2292 = vrot.slane %v1703, 2
  %v2293 = vsel %vm1845, %v2292, %v2291
  %v2294 = vrot.slane %v1704, 1
  %v2295 = vsel %vm1848, %v2294, %v2293
  %v2296 = vrot.slane %v1706, 7
  %v2297 = vsel %vm1830, %v2296, %v1705
  %v2298 = vrot.slane %v1707, 6
  %v2299 = vsel %vm1833, %v2298, %v2297
  %v2300 = vrot.slane %v1708, 5
  %v2301 = vsel %vm1836, %v2300, %v2299
  %v2302 = vrot.slane %v1709, 4
  %v2303 = vsel %vm1839, %v2302, %v2301
  %v2304 = vrot.slane %v1710, 3
  %v2305 = vsel %vm1842, %v2304, %v2303
  %v2306 = vrot.slane %v1711, 2
  %v2307 = vsel %vm1845, %v2306, %v2305
  %v2308 = vrot.slane %v1712, 1
  %v2309 = vsel %vm1848, %v2308, %v2307
  %v2310 = vrot.slane %v1714, 7
  %v2311 = vsel %vm1830, %v2310, %v1713
  %v2312 = vrot.slane %v1715, 6
  %v2313 = vsel %vm1833, %v2312, %v2311
  %v2314 = vrot.slane %v1716, 5
  %v2315 = vsel %vm1836, %v2314, %v2313
  %v2316 = vrot.slane %v1718, 7
  %v2317 = vsel %vm1830, %v2316, %v1717
  %v2318 = vrot.slane %v1719, 6
  %v2319 = vsel %vm1833, %v2318, %v2317
  %v2320 = vrot.slane %v1720, 5
  %v2321 = vsel %vm1836, %v2320, %v2319
  %v2322 = vrot.slane %v1721, 4
  %v2323 = vsel %vm1839, %v2322, %v2321
  %v2324 = vrot.slane %v1722, 3
  %v2325 = vsel %vm1842, %v2324, %v2323
  %v2326 = vrot.slane %v1723, 2
  %v2327 = vsel %vm1845, %v2326, %v2325
  %v2328 = vrot.slane %v1724, 1
  %v2329 = vsel %vm1848, %v2328, %v2327
  %v2330 = vrot.slane %v1726, 7
  %v2331 = vsel %vm1830, %v2330, %v1725
  %v2332 = vrot.slane %v1727, 6
  %v2333 = vsel %vm1833, %v2332, %v2331
  %v2334 = vrot.slane %v1728, 5
  %v2335 = vsel %vm1836, %v2334, %v2333
  %v2336 = vrot.slane %v1729, 4
  %v2337 = vsel %vm1839, %v2336, %v2335
  %v2338 = vrot.slane %v1730, 3
  %v2339 = vsel %vm1842, %v2338, %v2337
  %v2340 = vrot.slane %v1731, 2
  %v2341 = vsel %vm1845, %v2340, %v2339
  %v2342 = vrot.slane %v1732, 1
  %v2343 = vsel %vm1848, %v2342, %v2341
  %v2344 = vrot.slane %v1734, 7
  %v2345 = vsel %vm1830, %v2344, %v1733
  %v2346 = vrot.slane %v1735, 6
  %v2347 = vsel %vm1833, %v2346, %v2345
  %v2348 = vrot.slane %v1736, 5
  %v2349 = vsel %vm1836, %v2348, %v2347
  %v2350 = vrot.slane %v1737, 4
  %v2351 = vsel %vm1839, %v2350, %v2349
  %v2352 = vrot.slane %v1738, 3
  %v2353 = vsel %vm1842, %v2352, %v2351
  %v2354 = vrot.slane %v1739, 2
  %v2355 = vsel %vm1845, %v2354, %v2353
  %v2356 = vrot.slane %v1740, 1
  %v2357 = vsel %vm1848, %v2356, %v2355
  %v2358 = vrot.slane %v1742, 7
  %v2359 = vsel %vm1830, %v2358, %v1741
  %v2360 = vrot.slane %v1743, 6
  %v2361 = vsel %vm1833, %v2360, %v2359
  %v2362 = vrot.slane %v1744, 5
  %v2363 = vsel %vm1836, %v2362, %v2361
  %v2364 = vrot.slane %v1746, 7
  %v2365 = vsel %vm1830, %v2364, %v1745
  %v2366 = vrot.slane %v1747, 6
  %v2367 = vsel %vm1833, %v2366, %v2365
  %v2368 = vrot.slane %v1748, 5
  %v2369 = vsel %vm1836, %v2368, %v2367
  %v2370 = vrot.slane %v1749, 4
  %v2371 = vsel %vm1839, %v2370, %v2369
  %v2372 = vrot.slane %v1750, 3
  %v2373 = vsel %vm1842, %v2372, %v2371
  %v2374 = vrot.slane %v1751, 2
  %v2375 = vsel %vm1845, %v2374, %v2373
  %v2376 = vrot.slane %v1752, 1
  %v2377 = vsel %vm1848, %v2376, %v2375
  %v2378 = vrot.slane %v1754, 7
  %v2379 = vsel %vm1830, %v2378, %v1753
  %v2380 = vrot.slane %v1755, 6
  %v2381 = vsel %vm1833, %v2380, %v2379
  %v2382 = vrot.slane %v1756, 5
  %v2383 = vsel %vm1836, %v2382, %v2381
  %v2384 = vrot.slane %v1757, 4
  %v2385 = vsel %vm1839, %v2384, %v2383
  %v2386 = vrot.slane %v1758, 3
  %v2387 = vsel %vm1842, %v2386, %v2385
  %v2388 = vrot.slane %v1759, 2
  %v2389 = vsel %vm1845, %v2388, %v2387
  %v2390 = vrot.slane %v1760, 1
  %v2391 = vsel %vm1848, %v2390, %v2389
  %v2392 = vrot.slane %v1762, 7
  %v2393 = vsel %vm1830, %v2392, %v1761
  %v2394 = vrot.slane %v1763, 6
  %v2395 = vsel %vm1833, %v2394, %v2393
  %v2396 = vrot.slane %v1764, 5
  %v2397 = vsel %vm1836, %v2396, %v2395
  %v2398 = vrot.slane %v1765, 4
  %v2399 = vsel %vm1839, %v2398, %v2397
  %v2400 = vrot.slane %v1766, 3
  %v2401 = vsel %vm1842, %v2400, %v2399
  %v2402 = vrot.slane %v1767, 2
  %v2403 = vsel %vm1845, %v2402, %v2401
  %v2404 = vrot.slane %v1768, 1
  %v2405 = vsel %vm1848, %v2404, %v2403
  %v2406 = vrot.slane %v1770, 7
  %v2407 = vsel %vm1830, %v2406, %v1769
  %v2408 = vrot.slane %v1771, 6
  %v2409 = vsel %vm1833, %v2408, %v2407
  %v2410 = vrot.slane %v1772, 5
  %v2411 = vsel %vm1836, %v2410, %v2409
  %v2412 = vrot.slane %v1774, 7
  %v2413 = vsel %vm1830, %v2412, %v1773
  %v2414 = vrot.slane %v1775, 6
  %v2415 = vsel %vm1833, %v2414, %v2413
  %v2416 = vrot.slane %v1776, 5
  %v2417 = vsel %vm1836, %v2416, %v2415
  %v2418 = vrot.slane %v1777, 4
  %v2419 = vsel %vm1839, %v2418, %v2417
  %v2420 = vrot.slane %v1778, 3
  %v2421 = vsel %vm1842, %v2420, %v2419
  %v2422 = vrot.slane %v1779, 2
  %v2423 = vsel %vm1845, %v2422, %v2421
  %v2424 = vrot.slane %v1780, 1
  %v2425 = vsel %vm1848, %v2424, %v2423
  %v2426 = vrot.slane %v1782, 7
  %v2427 = vsel %vm1830, %v2426, %v1781
  %v2428 = vrot.slane %v1783, 6
  %v2429 = vsel %vm1833, %v2428, %v2427
  %v2430 = vrot.slane %v1784, 5
  %v2431 = vsel %vm1836, %v2430, %v2429
  %v2432 = vrot.slane %v1785, 4
  %v2433 = vsel %vm1839, %v2432, %v2431
  %v2434 = vrot.slane %v1786, 3
  %v2435 = vsel %vm1842, %v2434, %v2433
  %v2436 = vrot.slane %v1787, 2
  %v2437 = vsel %vm1845, %v2436, %v2435
  %v2438 = vrot.slane %v1788, 1
  %v2439 = vsel %vm1848, %v2438, %v2437
  %v2440 = vrot.slane %v1790, 7
  %v2441 = vsel %vm1830, %v2440, %v1789
  %v2442 = vrot.slane %v1791, 6
  %v2443 = vsel %vm1833, %v2442, %v2441
  %v2444 = vrot.slane %v1792, 5
  %v2445 = vsel %vm1836, %v2444, %v2443
  %v2446 = vrot.slane %v1793, 4
  %v2447 = vsel %vm1839, %v2446, %v2445
  %v2448 = vrot.slane %v1794, 3
  %v2449 = vsel %vm1842, %v2448, %v2447
  %v2450 = vrot.slane %v1795, 2
  %v2451 = vsel %vm1845, %v2450, %v2449
  %v2452 = vrot.slane %v1796, 1
  %v2453 = vsel %vm1848, %v2452, %v2451
  %v2454 = vrot.slane %v1798, 7
  %v2455 = vsel %vm1830, %v2454, %v1797
  %v2456 = vrot.slane %v1799, 6
  %v2457 = vsel %vm1833, %v2456, %v2455
  %v2458 = vrot.slane %v1800, 5
  %v2459 = vsel %vm1836, %v2458, %v2457
  %v2460 = vrot.slane %v1802, 7
  %v2461 = vsel %vm1830, %v2460, %v1801
  %v2462 = vrot.slane %v1803, 6
  %v2463 = vsel %vm1833, %v2462, %v2461
  %v2464 = vrot.slane %v1804, 5
  %v2465 = vsel %vm1836, %v2464, %v2463
  %v2466 = vrot.slane %v1805, 4
  %v2467 = vsel %vm1839, %v2466, %v2465
  %v2468 = vrot.slane %v1806, 3
  %v2469 = vsel %vm1842, %v2468, %v2467
  %v2470 = vrot.slane %v1807, 2
  %v2471 = vsel %vm1845, %v2470, %v2469
  %v2472 = vrot.slane %v1808, 1
  %v2473 = vsel %vm1848, %v2472, %v2471
  %v2474 = vrot.slane %v1810, 7
  %v2475 = vsel %vm1830, %v2474, %v1809
  %v2476 = vrot.slane %v1811, 6
  %v2477 = vsel %vm1833, %v2476, %v2475
  %v2478 = vrot.slane %v1812, 5
  %v2479 = vsel %vm1836, %v2478, %v2477
  %v2480 = vrot.slane %v1813, 4
  %v2481 = vsel %vm1839, %v2480, %v2479
  %v2482 = vrot.slane %v1814, 3
  %v2483 = vsel %vm1842, %v2482, %v2481
  %v2484 = vrot.slane %v1815, 2
  %v2485 = vsel %vm1845, %v2484, %v2483
  %v2486 = vrot.slane %v1816, 1
  %v2487 = vsel %vm1848, %v2486, %v2485
  %v2488 = vrot.slane %v1818, 7
  %v2489 = vsel %vm1830, %v2488, %v1817
  %v2490 = vrot.slane %v1819, 6
  %v2491 = vsel %vm1833, %v2490, %v2489
  %v2492 = vrot.slane %v1820, 5
  %v2493 = vsel %vm1836, %v2492, %v2491
  %v2494 = vrot.slane %v1821, 4
  %v2495 = vsel %vm1839, %v2494, %v2493
  %v2496 = vrot.slane %v1822, 3
  %v2497 = vsel %vm1842, %v2496, %v2495
  %v2498 = vrot.slane %v1823, 2
  %v2499 = vsel %vm1845, %v2498, %v2497
  %v2500 = vrot.slane %v1824, 1
  %v2501 = vsel %vm1848, %v2500, %v2499
  %v2502 = vrot.slane %v1826, 7
  %v2503 = vsel %vm1830, %v2502, %v1825
  %v2504 = vrot.slane %v1827, 6
  %v2505 = vsel %vm1833, %v2504, %v2503
  %v2506 = vrot.slane %v1828, 5
  %v2507 = vsel %vm1836, %v2506, %v2505
  %v2508 = vpack.c.b16 %v1849, %v1849
  %v2509 = vpack.c.b16 %v1863, %v1863
  %v2510 = vpack.c.b16 %v1877, %v1877
  %v2511 = vpack.c.b16 %v1883, %v1883
  %v2512 = vpack.c.b16 %v1897, %v1897
  %v2513 = vpack.c.b16 %v1911, %v1911
  %v2514 = vpack.c.b16 %v1925, %v1925
  %v2515 = vpack.c.b16 %v1931, %v1931
  %v2516 = vpack.c.b16 %v1945, %v1945
  %v2517 = vpack.c.b16 %v1959, %v1959
  %v2518 = vpack.c.b16 %v1973, %v1973
  %v2519 = vpack.c.b16 %v1979, %v1979
  %v2520 = vpack.c.b16 %v1993, %v1993
  %v2521 = vpack.c.b16 %v2007, %v2007
  %v2522 = vpack.c.b16 %v2021, %v2021
  %v2523 = vpack.c.b16 %v2027, %v2027
  %v2524 = vpack.c.b16 %v2041, %v2041
  %v2525 = vpack.c.b16 %v2055, %v2055
  %v2526 = vpack.c.b16 %v2069, %v2069
  %v2527 = vpack.c.b16 %v2075, %v2075
  %v2528 = vpack.c.b16 %v2089, %v2089
  %v2529 = vpack.c.b16 %v2103, %v2103
  %v2530 = vpack.c.b16 %v2117, %v2117
  %v2531 = vpack.c.b16 %v2123, %v2123
  %v2532 = vpack.c.b16 %v2137, %v2137
  %v2533 = vpack.c.b16 %v2151, %v2151
  %v2534 = vpack.c.b16 %v2165, %v2165
  %v2535 = vpack.c.b16 %v2171, %v2171
  %v2536 = vpack.c.b16 %v2185, %v2185
  %v2537 = vpack.c.b16 %v2199, %v2199
  %v2538 = vpack.c.b16 %v2213, %v2213
  %v2539 = vpack.c.b16 %v2219, %v2219
  %v2540 = vpack.c.b16 %v2233, %v2233
  %v2541 = vpack.c.b16 %v2247, %v2247
  %v2542 = vpack.c.b16 %v2261, %v2261
  %v2543 = vpack.c.b16 %v2267, %v2267
  %v2544 = vpack.c.b16 %v2281, %v2281
  %v2545 = vpack.c.b16 %v2295, %v2295
  %v2546 = vpack.c.b16 %v2309, %v2309
  %v2547 = vpack.c.b16 %v2315, %v2315
  %v2548 = vpack.c.b16 %v2329, %v2329
  %v2549 = vpack.c.b16 %v2343, %v2343
  %v2550 = vpack.c.b16 %v2357, %v2357
  %v2551 = vpack.c.b16 %v2363, %v2363
  %v2552 = vpack.c.b16 %v2377, %v2377
  %v2553 = vpack.c.b16 %v2391, %v2391
  %v2554 = vpack.c.b16 %v2405, %v2405
  %v2555 = vpack.c.b16 %v2411, %v2411
  %v2556 = vpack.c.b16 %v2425, %v2425
  %v2557 = vpack.c.b16 %v2439, %v2439
  %v2558 = vpack.c.b16 %v2453, %v2453
  %v2559 = vpack.c.b16 %v2459, %v2459
  %v2560 = vpack.c.b16 %v2473, %v2473
  %v2561 = vpack.c.b16 %v2487, %v2487
  %v2562 = vpack.c.b16 %v2501, %v2501
  %v2563 = vpack.c.b16 %v2507, %v2507
  %v2612 = vrot.slane %v2524, 4
  %vm2613 = vcmask 1047556
  %v2614 = vsel %vm2613, %v2612, %v2508
  %v2616 = vunpack.c.l.s4 1983009808
  %v2617 = vunpack.c.0.s8 %v2616
  %v2618 = vperm.slane %v2614, %v2617
  %v2619 = vrot.slane %v2532, 4
  %v2620 = vsel %vm2613, %v2619, %v2516
  %v2622 = vunpack.c.l.s4 1983009808
  %v2623 = vunpack.c.0.s8 %v2622
  %v2624 = vperm.slane %v2620, %v2623
  %v2625 = vrot.slane %v2624, 4
  %v2626 = vsel %vm2613, %v2625, %v2618
  %v2627 = vrot.slane %v2618, 4
  %v2628 = vsel %vm2613, %v2624, %v2627
  %v2630 = vunpack.c.l.s4 1934713408
  %v2631 = vunpack.c.0.s8 %v2630
  %v2632 = vperm.slane %v2626, %v2631
  %v2634 = vunpack.c.l.s4 1934713408
  %v2635 = vunpack.c.0.s8 %v2634
  %v2636 = vperm.slane %v2628, %v2635
  %v2637 = vrot.slane %v2632, 4
  %v2638 = vsel %vm2613, 0, %v2637
  %v2639 = vrot.slane %v2636, 4
  %v2640 = vsel %vm2613, 0, %v2639
  %v2641 = vrot.slane %v2528, 4
  %v2642 = vsel %vm2613, %v2641, %v2512
  %v2644 = vunpack.c.l.s4 1983009808
  %v2645 = vunpack.c.0.s8 %v2644
  %v2646 = vperm.slane %v2642, %v2645
  %v2647 = vrot.slane %v2536, 4
  %v2648 = vsel %vm2613, %v2647, %v2520
  %v2650 = vunpack.c.l.s4 1983009808
  %v2651 = vunpack.c.0.s8 %v2650
  %v2652 = vperm.slane %v2648, %v2651
  %v2653 = vrot.slane %v2652, 4
  %v2654 = vsel %vm2613, %v2653, %v2646
  %v2655 = vrot.slane %v2646, 4
  %v2656 = vsel %vm2613, %v2652, %v2655
  %v2658 = vunpack.c.l.s4 1934713408
  %v2659 = vunpack.c.0.s8 %v2658
  %v2660 = vperm.slane %v2654, %v2659
  %v2662 = vunpack.c.l.s4 1934713408
  %v2663 = vunpack.c.0.s8 %v2662
  %v2664 = vperm.slane %v2656, %v2663
  %v2665 = vrot.slane %v2660, 4
  %v2666 = vsel %vm2613, 0, %v2665
  %v2667 = vrot.slane %v2664, 4
  %v2668 = vsel %vm2613, 0, %v2667
  %v2669 = vrot.slane %v2556, 4
  %v2670 = vsel %vm2613, %v2669, %v2540
  %v2672 = vunpack.c.l.s4 1983009808
  %v2673 = vunpack.c.0.s8 %v2672
  %v2674 = vperm.slane %v2670, %v2673
  %v2677 = vunpack.c.l.s4 1983009808
  %v2678 = vunpack.c.0.s8 %v2677
  %v2679 = vperm.slane %v2548, %v2678
  %v2680 = vrot.slane %v2679, 4
  %v2681 = vsel %vm2613, %v2680, %v2674
  %v2682 = vrot.slane %v2674, 4
  %v2683 = vsel %vm2613, %v2679, %v2682
  %v2685 = vunpack.c.l.s4 1934713408
  %v2686 = vunpack.c.0.s8 %v2685
  %v2687 = vperm.slane %v2681, %v2686
  %v2689 = vunpack.c.l.s4 1934713408
  %v2690 = vunpack.c.0.s8 %v2689
  %v2691 = vperm.slane %v2683, %v2690
  %v2692 = vrot.slane %v2687, 4
  %v2693 = vsel %vm2613, 0, %v2692
  %v2694 = vrot.slane %v2691, 4
  %v2695 = vsel %vm2613, 0, %v2694
  %v2696 = vrot.slane %v2560, 4
  %v2697 = vsel %vm2613, %v2696, %v2544
  %v2699 = vunpack.c.l.s4 1983009808
  %v2700 = vunpack.c.0.s8 %v2699
  %v2701 = vperm.slane %v2697, %v2700
  %v2704 = vunpack.c.l.s4 1983009808
  %v2705 = vunpack.c.0.s8 %v2704
  %v2706 = vperm.slane %v2552, %v2705
  %v2707 = vrot.slane %v2706, 4
  %v2708 = vsel %vm2613, %v2707, %v2701
  %v2709 = vrot.slane %v2701, 4
  %v2710 = vsel %vm2613, %v2706, %v2709
  %v2712 = vunpack.c.l.s4 1934713408
  %v2713 = vunpack.c.0.s8 %v2712
  %v2714 = vperm.slane %v2708, %v2713
  %v2716 = vunpack.c.l.s4 1934713408
  %v2717 = vunpack.c.0.s8 %v2716
  %v2718 = vperm.slane %v2710, %v2717
  %v2719 = vrot.slane %v2714, 4
  %v2720 = vsel %vm2613, 0, %v2719
  %v2721 = vrot.slane %v2718, 4
  %v2722 = vsel %vm2613, 0, %v2721
  %v2723 = vrot.slane %v2525, 4
  %v2724 = vsel %vm2613, %v2723, %v2509
  %v2726 = vunpack.c.l.s4 1983009808
  %v2727 = vunpack.c.0.s8 %v2726
  %v2728 = vperm.slane %v2724, %v2727
  %v2729 = vrot.slane %v2533, 4
  %v2730 = vsel %vm2613, %v2729, %v2517
  %v2732 = vunpack.c.l.s4 1983009808
  %v2733 = vunpack.c.0.s8 %v2732
  %v2734 = vperm.slane %v2730, %v2733
  %v2735 = vrot.slane %v2734, 4
  %v2736 = vsel %vm2613, %v2735, %v2728
  %v2737 = vrot.slane %v2728, 4
  %v2738 = vsel %vm2613, %v2734, %v2737
  %v2740 = vunpack.c.l.s4 1934713408
  %v2741 = vunpack.c.0.s8 %v2740
  %v2742 = vperm.slane %v2736, %v2741
  %v2744 = vunpack.c.l.s4 1934713408
  %v2745 = vunpack.c.0.s8 %v2744
  %v2746 = vperm.slane %v2738, %v2745
  %v2747 = vrot.slane %v2742, 4
  %v2748 = vsel %vm2613, 0, %v2747
  %v2749 = vrot.slane %v2746, 4
  %v2750 = vsel %vm2613, 0, %v2749
  %v2751 = vrot.slane %v2529, 4
  %v2752 = vsel %vm2613, %v2751, %v2513
  %v2754 = vunpack.c.l.s4 1983009808
  %v2755 = vunpack.c.0.s8 %v2754
  %v2756 = vperm.slane %v2752, %v2755
  %v2757 = vrot.slane %v2537, 4
  %v2758 = vsel %vm2613, %v2757, %v2521
  %v2760 = vunpack.c.l.s4 1983009808
  %v2761 = vunpack.c.0.s8 %v2760
  %v2762 = vperm.slane %v2758, %v2761
  %v2763 = vrot.slane %v2762, 4
  %v2764 = vsel %vm2613, %v2763, %v2756
  %v2765 = vrot.slane %v2756, 4
  %v2766 = vsel %vm2613, %v2762, %v2765
  %v2768 = vunpack.c.l.s4 1934713408
  %v2769 = vunpack.c.0.s8 %v2768
  %v2770 = vperm.slane %v2764, %v2769
  %v2772 = vunpack.c.l.s4 1934713408
  %v2773 = vunpack.c.0.s8 %v2772
  %v2774 = vperm.slane %v2766, %v2773
  %v2775 = vrot.slane %v2770, 4
  %v2776 = vsel %vm2613, 0, %v2775
  %v2777 = vrot.slane %v2774, 4
  %v2778 = vsel %vm2613, 0, %v2777
  %v2779 = vrot.slane %v2557, 4
  %v2780 = vsel %vm2613, %v2779, %v2541
  %v2782 = vunpack.c.l.s4 1983009808
  %v2783 = vunpack.c.0.s8 %v2782
  %v2784 = vperm.slane %v2780, %v2783
  %v2787 = vunpack.c.l.s4 1983009808
  %v2788 = vunpack.c.0.s8 %v2787
  %v2789 = vperm.slane %v2549, %v2788
  %v2790 = vrot.slane %v2789, 4
  %v2791 = vsel %vm2613, %v2790, %v2784
  %v2792 = vrot.slane %v2784, 4
  %v2793 = vsel %vm2613, %v2789, %v2792
  %v2795 = vunpack.c.l.s4 1934713408
  %v2796 = vunpack.c.0.s8 %v2795
  %v2797 = vperm.slane %v2791, %v2796
  %v2799 = vunpack.c.l.s4 1934713408
  %v2800 = vunpack.c.0.s8 %v2799
  %v2801 = vperm.slane %v2793, %v2800
  %v2802 = vrot.slane %v2797, 4
  %v2803 = vsel %vm2613, 0, %v2802
  %v2804 = vrot.slane %v2801, 4
  %v2805 = vsel %vm2613, 0, %v2804
  %v2806 = vrot.slane %v2561, 4
  %v2807 = vsel %vm2613, %v2806, %v2545
  %v2809 = vunpack.c.l.s4 1983009808
  %v2810 = vunpack.c.0.s8 %v2809
  %v2811 = vperm.slane %v2807, %v2810
  %v2814 = vunpack.c.l.s4 1983009808
  %v2815 = vunpack.c.0.s8 %v2814
  %v2816 = vperm.slane %v2553, %v2815
  %v2817 = vrot.slane %v2816, 4
  %v2818 = vsel %vm2613, %v2817, %v2811
  %v2819 = vrot.slane %v2811, 4
  %v2820 = vsel %vm2613, %v2816, %v2819
  %v2822 = vunpack.c.l.s4 1934713408
  %v2823 = vunpack.c.0.s8 %v2822
  %v2824 = vperm.slane %v2818, %v2823
  %v2826 = vunpack.c.l.s4 1934713408
  %v2827 = vunpack.c.0.s8 %v2826
  %v2828 = vperm.slane %v2820, %v2827
  %v2829 = vrot.slane %v2824, 4
  %v2830 = vsel %vm2613, 0, %v2829
  %v2831 = vrot.slane %v2828, 4
  %v2832 = vsel %vm2613, 0, %v2831
  %v2833 = vrot.slane %v2526, 4
  %v2834 = vsel %vm2613, %v2833, %v2510
  %v2836 = vunpack.c.l.s4 1983009808
  %v2837 = vunpack.c.0.s8 %v2836
  %v2838 = vperm.slane %v2834, %v2837
  %v2839 = vrot.slane %v2534, 4
  %v2840 = vsel %vm2613, %v2839, %v2518
  %v2842 = vunpack.c.l.s4 1983009808
  %v2843 = vunpack.c.0.s8 %v2842
  %v2844 = vperm.slane %v2840, %v2843
  %v2845 = vrot.slane %v2844, 4
  %v2846 = vsel %vm2613, %v2845, %v2838
  %v2847 = vrot.slane %v2838, 4
  %v2848 = vsel %vm2613, %v2844, %v2847
  %v2850 = vunpack.c.l.s4 1934713408
  %v2851 = vunpack.c.0.s8 %v2850
  %v2852 = vperm.slane %v2846, %v2851
  %v2854 = vunpack.c.l.s4 1934713408
  %v2855 = vunpack.c.0.s8 %v2854
  %v2856 = vperm.slane %v2848, %v2855
  %v2857 = vrot.slane %v2852, 4
  %v2858 = vsel %vm2613, 0, %v2857
  %v2859 = vrot.slane %v2856, 4
  %v2860 = vsel %vm2613, 0, %v2859
  %v2861 = vrot.slane %v2530, 4
  %v2862 = vsel %vm2613, %v2861, %v2514
  %v2864 = vunpack.c.l.s4 1983009808
  %v2865 = vunpack.c.0.s8 %v2864
  %v2866 = vperm.slane %v2862, %v2865
  %v2867 = vrot.slane %v2538, 4
  %v2868 = vsel %vm2613, %v2867, %v2522
  %v2870 = vunpack.c.l.s4 1983009808
  %v2871 = vunpack.c.0.s8 %v2870
  %v2872 = vperm.slane %v2868, %v2871
  %v2873 = vrot.slane %v2872, 4
  %v2874 = vsel %vm2613, %v2873, %v2866
  %v2875 = vrot.slane %v2866, 4
  %v2876 = vsel %vm2613, %v2872, %v2875
  %v2878 = vunpack.c.l.s4 1934713408
  %v2879 = vunpack.c.0.s8 %v2878
  %v2880 = vperm.slane %v2874, %v2879
  %v2882 = vunpack.c.l.s4 1934713408
  %v2883 = vunpack.c.0.s8 %v2882
  %v2884 = vperm.slane %v2876, %v2883
  %v2885 = vrot.slane %v2880, 4
  %v2886 = vsel %vm2613, 0, %v2885
  %v2887 = vrot.slane %v2884, 4
  %v2888 = vsel %vm2613, 0, %v2887
  %v2889 = vrot.slane %v2558, 4
  %v2890 = vsel %vm2613, %v2889, %v2542
  %v2892 = vunpack.c.l.s4 1983009808
  %v2893 = vunpack.c.0.s8 %v2892
  %v2894 = vperm.slane %v2890, %v2893
  %v2897 = vunpack.c.l.s4 1983009808
  %v2898 = vunpack.c.0.s8 %v2897
  %v2899 = vperm.slane %v2550, %v2898
  %v2900 = vrot.slane %v2899, 4
  %v2901 = vsel %vm2613, %v2900, %v2894
  %v2902 = vrot.slane %v2894, 4
  %v2903 = vsel %vm2613, %v2899, %v2902
  %v2905 = vunpack.c.l.s4 1934713408
  %v2906 = vunpack.c.0.s8 %v2905
  %v2907 = vperm.slane %v2901, %v2906
  %v2909 = vunpack.c.l.s4 1934713408
  %v2910 = vunpack.c.0.s8 %v2909
  %v2911 = vperm.slane %v2903, %v2910
  %v2912 = vrot.slane %v2907, 4
  %v2913 = vsel %vm2613, 0, %v2912
  %v2914 = vrot.slane %v2911, 4
  %v2915 = vsel %vm2613, 0, %v2914
  %v2916 = vrot.slane %v2562, 4
  %v2917 = vsel %vm2613, %v2916, %v2546
  %v2919 = vunpack.c.l.s4 1983009808
  %v2920 = vunpack.c.0.s8 %v2919
  %v2921 = vperm.slane %v2917, %v2920
  %v2924 = vunpack.c.l.s4 1983009808
  %v2925 = vunpack.c.0.s8 %v2924
  %v2926 = vperm.slane %v2554, %v2925
  %v2927 = vrot.slane %v2926, 4
  %v2928 = vsel %vm2613, %v2927, %v2921
  %v2929 = vrot.slane %v2921, 4
  %v2930 = vsel %vm2613, %v2926, %v2929
  %v2932 = vunpack.c.l.s4 1934713408
  %v2933 = vunpack.c.0.s8 %v2932
  %v2934 = vperm.slane %v2928, %v2933
  %v2936 = vunpack.c.l.s4 1934713408
  %v2937 = vunpack.c.0.s8 %v2936
  %v2938 = vperm.slane %v2930, %v2937
  %v2939 = vrot.slane %v2934, 4
  %v2940 = vsel %vm2613, 0, %v2939
  %v2941 = vrot.slane %v2938, 4
  %v2942 = vsel %vm2613, 0, %v2941
  %v2943 = vrot.slane %v2527, 4
  %v2944 = vsel %vm2613, %v2943, %v2511
  %v2946 = vunpack.c.l.s4 1983009808
  %v2947 = vunpack.c.0.s8 %v2946
  %v2948 = vperm.slane %v2944, %v2947
  %v2949 = vrot.slane %v2535, 4
  %v2950 = vsel %vm2613, %v2949, %v2519
  %v2952 = vunpack.c.l.s4 1983009808
  %v2953 = vunpack.c.0.s8 %v2952
  %v2954 = vperm.slane %v2950, %v2953
  %v2955 = vrot.slane %v2954, 4
  %v2956 = vsel %vm2613, %v2955, %v2948
  %v2958 = vunpack.c.l.s4 1934713408
  %v2959 = vunpack.c.0.s8 %v2958
  %v2960 = vperm.slane %v2956, %v2959
  %v2961 = vrot.slane %v2960, 4
  %v2962 = vsel %vm2613, 0, %v2961
  %v2963 = vrot.slane %v2531, 4
  %v2964 = vsel %vm2613, %v2963, %v2515
  %v2966 = vunpack.c.l.s4 1983009808
  %v2967 = vunpack.c.0.s8 %v2966
  %v2968 = vperm.slane %v2964, %v2967
  %v2969 = vrot.slane %v2539, 4
  %v2970 = vsel %vm2613, %v2969, %v2523
  %v2972 = vunpack.c.l.s4 1983009808
  %v2973 = vunpack.c.0.s8 %v2972
  %v2974 = vperm.slane %v2970, %v2973
  %v2975 = vrot.slane %v2974, 4
  %v2976 = vsel %vm2613, %v2975, %v2968
  %v2978 = vunpack.c.l.s4 1934713408
  %v2979 = vunpack.c.0.s8 %v2978
  %v2980 = vperm.slane %v2976, %v2979
  %v2981 = vrot.slane %v2980, 4
  %v2982 = vsel %vm2613, 0, %v2981
  %v2983 = vrot.slane %v2559, 4
  %v2984 = vsel %vm2613, %v2983, %v2543
  %v2986 = vunpack.c.l.s4 1983009808
  %v2987 = vunpack.c.0.s8 %v2986
  %v2988 = vperm.slane %v2984, %v2987
  %v2990 = vrot.slane %v2551, 4
  %v2991 = vsel %vm2613, %v2990, %v2988
  %v2993 = vunpack.c.l.s4 1934713408
  %v2994 = vunpack.c.0.s8 %v2993
  %v2995 = vperm.slane %v2991, %v2994
  %v2996 = vrot.slane %v2995, 4
  %v2997 = vsel %vm2613, 0, %v2996
  %v2998 = vrot.slane %v2563, 4
  %v2999 = vsel %vm2613, %v2998, %v2547
  %v3001 = vunpack.c.l.s4 1983009808
  %v3002 = vunpack.c.0.s8 %v3001
  %v3003 = vperm.slane %v2999, %v3002
  %v3005 = vrot.slane %v2555, 4
  %v3006 = vsel %vm2613, %v3005, %v3003
  %v3008 = vunpack.c.l.s4 1934713408
  %v3009 = vunpack.c.0.s8 %v3008
  %v3010 = vperm.slane %v3006, %v3009
  %v3011 = vrot.slane %v3010, 4
  %v3012 = vsel %vm2613, 0, %v3011
  %v3015 = vpack.i.b16 %v2660, %v2632
  %v3017 = vshrl.u32 %v2632, 16
  %v3018 = vshrl.u32 %v2660, 16
  %v3019 = vpack.i.b16 %v3018, %v3017
  %v3023 = vpack.i.b16 %v2666, %v2638
  %v3025 = vshrl.u32 %v2638, 16
  %v3026 = vshrl.u32 %v2666, 16
  %v3027 = vpack.i.b16 %v3026, %v3025
  %v3031 = vpack.i.b16 %v2664, %v2636
  %v3033 = vshrl.u32 %v2636, 16
  %v3034 = vshrl.u32 %v2664, 16
  %v3035 = vpack.i.b16 %v3034, %v3033
  %v3039 = vpack.i.b16 %v2668, %v2640
  %v3041 = vshrl.u32 %v2640, 16
  %v3042 = vshrl.u32 %v2668, 16
  %v3043 = vpack.i.b16 %v3042, %v3041
  %v3047 = vpack.i.b16 %v2770, %v2742
  %v3049 = vshrl.u32 %v2742, 16
  %v3050 = vshrl.u32 %v2770, 16
  %v3051 = vpack.i.b16 %v3050, %v3049
  %v3055 = vpack.i.b16 %v2776, %v2748
  %v3057 = vshrl.u32 %v2748, 16
  %v3058 = vshrl.u32 %v2776, 16
  %v3059 = vpack.i.b16 %v3058, %v3057
  %v3063 = vpack.i.b16 %v2774, %v2746
  %v3065 = vshrl.u32 %v2746, 16
  %v3066 = vshrl.u32 %v2774, 16
  %v3067 = vpack.i.b16 %v3066, %v3065
  %v3071 = vpack.i.b16 %v2778, %v2750
  %v3073 = vshrl.u32 %v2750, 16
  %v3074 = vshrl.u32 %v2778, 16
  %v3075 = vpack.i.b16 %v3074, %v3073
  %v3079 = vpack.i.b16 %v2880, %v2852
  %v3081 = vshrl.u32 %v2852, 16
  %v3082 = vshrl.u32 %v2880, 16
  %v3083 = vpack.i.b16 %v3082, %v3081
  %v3087 = vpack.i.b16 %v2886, %v2858
  %v3089 = vshrl.u32 %v2858, 16
  %v3090 = vshrl.u32 %v2886, 16
  %v3091 = vpack.i.b16 %v3090, %v3089
  %v3095 = vpack.i.b16 %v2884, %v2856
  %v3097 = vshrl.u32 %v2856, 16
  %v3098 = vshrl.u32 %v2884, 16
  %v3099 = vpack.i.b16 %v3098, %v3097
  %v3103 = vpack.i.b16 %v2888, %v2860
  %v3105 = vshrl.u32 %v2860, 16
  %v3106 = vshrl.u32 %v2888, 16
  %v3107 = vpack.i.b16 %v3106, %v3105
  %v3111 = vpack.i.b16 %v2980, %v2960
  %v3113 = vshrl.u32 %v2960, 16
  %v3114 = vshrl.u32 %v2980, 16
  %v3115 = vpack.i.b16 %v3114, %v3113
  %v3119 = vpack.i.b16 %v2982, %v2962
  %v3121 = vshrl.u32 %v2962, 16
  %v3122 = vshrl.u32 %v2982, 16
  %v3123 = vpack.i.b16 %v3122, %v3121
  %v3127 = vpack.i.b16 %v2714, %v2687
  %v3129 = vshrl.u32 %v2687, 16
  %v3130 = vshrl.u32 %v2714, 16
  %v3131 = vpack.i.b16 %v3130, %v3129
  %v3135 = vpack.i.b16 %v2720, %v2693
  %v3137 = vshrl.u32 %v2693, 16
  %v3138 = vshrl.u32 %v2720, 16
  %v3139 = vpack.i.b16 %v3138, %v3137
  %v3143 = vpack.i.b16 %v2718, %v2691
  %v3145 = vshrl.u32 %v2691, 16
  %v3146 = vshrl.u32 %v2718, 16
  %v3147 = vpack.i.b16 %v3146, %v3145
  %v3151 = vpack.i.b16 %v2722, %v2695
  %v3153 = vshrl.u32 %v2695, 16
  %v3154 = vshrl.u32 %v2722, 16
  %v3155 = vpack.i.b16 %v3154, %v3153
  %v3159 = vpack.i.b16 %v2824, %v2797
  %v3161 = vshrl.u32 %v2797, 16
  %v3162 = vshrl.u32 %v2824, 16
  %v3163 = vpack.i.b16 %v3162, %v3161
  %v3167 = vpack.i.b16 %v2830, %v2803
  %v3169 = vshrl.u32 %v2803, 16
  %v3170 = vshrl.u32 %v2830, 16
  %v3171 = vpack.i.b16 %v3170, %v3169
  %v3175 = vpack.i.b16 %v2828, %v2801
  %v3177 = vshrl.u32 %v2801, 16
  %v3178 = vshrl.u32 %v2828, 16
  %v3179 = vpack.i.b16 %v3178, %v3177
  %v3183 = vpack.i.b16 %v2832, %v2805
  %v3185 = vshrl.u32 %v2805, 16
  %v3186 = vshrl.u32 %v2832, 16
  %v3187 = vpack.i.b16 %v3186, %v3185
  %v3191 = vpack.i.b16 %v2934, %v2907
  %v3193 = vshrl.u32 %v2907, 16
  %v3194 = vshrl.u32 %v2934, 16
  %v3195 = vpack.i.b16 %v3194, %v3193
  %v3199 = vpack.i.b16 %v2940, %v2913
  %v3201 = vshrl.u32 %v2913, 16
  %v3202 = vshrl.u32 %v2940, 16
  %v3203 = vpack.i.b16 %v3202, %v3201
  %v3207 = vpack.i.b16 %v2938, %v2911
  %v3209 = vshrl.u32 %v2911, 16
  %v3210 = vshrl.u32 %v2938, 16
  %v3211 = vpack.i.b16 %v3210, %v3209
  %v3215 = vpack.i.b16 %v2942, %v2915
  %v3217 = vshrl.u32 %v2915, 16
  %v3218 = vshrl.u32 %v2942, 16
  %v3219 = vpack.i.b16 %v3218, %v3217
  %v3223 = vpack.i.b16 %v3010, %v2995
  %v3225 = vshrl.u32 %v2995, 16
  %v3226 = vshrl.u32 %v3010, 16
  %v3227 = vpack.i.b16 %v3226, %v3225
  %v3231 = vpack.i.b16 %v3012, %v2997
  %v3233 = vshrl.u32 %v2997, 16
  %v3234 = vshrl.u32 %v3012, 16
  %v3235 = vpack.i.b16 %v3234, %v3233
  %v3237 = vunpack.c.l.bf16 %v3015
  %v3238 = vunpack.c.l.bf16 %v3127
  %v3239 = vunpack.c.l.bf16 %v3019
  %v3240 = vunpack.c.l.bf16 %v3131
  %v3241 = vunpack.c.l.bf16 %v3023
  %v3242 = vunpack.c.l.bf16 %v3135
  %v3243 = vunpack.c.l.bf16 %v3027
  %v3244 = vunpack.c.l.bf16 %v3139
  %v3245 = vunpack.c.l.bf16 %v3031
  %v3246 = vunpack.c.l.bf16 %v3143
  %v3247 = vunpack.c.l.bf16 %v3035
  %v3248 = vunpack.c.l.bf16 %v3147
  %v3249 = vunpack.c.l.bf16 %v3039
  %v3250 = vunpack.c.l.bf16 %v3151
  %v3251 = vunpack.c.l.bf16 %v3043
  %v3252 = vunpack.c.l.bf16 %v3155
  %v3253 = vunpack.c.l.bf16 %v3047
  %v3254 = vunpack.c.l.bf16 %v3159
  %v3255 = vunpack.c.l.bf16 %v3051
  %v3256 = vunpack.c.l.bf16 %v3163
  %v3257 = vunpack.c.l.bf16 %v3055
  %v3258 = vunpack.c.l.bf16 %v3167
  %v3259 = vunpack.c.l.bf16 %v3059
  %v3260 = vunpack.c.l.bf16 %v3171
  %v3261 = vunpack.c.l.bf16 %v3063
  %v3262 = vunpack.c.l.bf16 %v3175
  %v3263 = vunpack.c.l.bf16 %v3067
  %v3264 = vunpack.c.l.bf16 %v3179
  %v3265 = vunpack.c.l.bf16 %v3071
  %v3266 = vunpack.c.l.bf16 %v3183
  %v3267 = vunpack.c.l.bf16 %v3075
  %v3268 = vunpack.c.l.bf16 %v3187
  %v3269 = vunpack.c.l.bf16 %v3079
  %v3270 = vunpack.c.l.bf16 %v3191
  %v3271 = vunpack.c.l.bf16 %v3083
  %v3272 = vunpack.c.l.bf16 %v3195
  %v3273 = vunpack.c.l.bf16 %v3087
  %v3274 = vunpack.c.l.bf16 %v3199
  %v3275 = vunpack.c.l.bf16 %v3091
  %v3276 = vunpack.c.l.bf16 %v3203
  %v3277 = vunpack.c.l.bf16 %v3095
  %v3278 = vunpack.c.l.bf16 %v3207
  %v3279 = vunpack.c.l.bf16 %v3099
  %v3280 = vunpack.c.l.bf16 %v3211
  %v3281 = vunpack.c.l.bf16 %v3103
  %v3282 = vunpack.c.l.bf16 %v3215
  %v3283 = vunpack.c.l.bf16 %v3107
  %v3284 = vunpack.c.l.bf16 %v3219
  %v3285 = vunpack.c.l.bf16 %v3111
  %v3286 = vunpack.c.l.bf16 %v3223
  %v3287 = vunpack.c.l.bf16 %v3115
  %v3288 = vunpack.c.l.bf16 %v3227
  %v3289 = vunpack.c.l.bf16 %v3119
  %v3290 = vunpack.c.l.bf16 %v3231
  %v3291 = vunpack.c.l.bf16 %v3123
  %v3292 = vunpack.c.l.bf16 %v3235
  %3349 = vrot.lane.b32.xlu0 %v3237, 96
  %v3350 = vpop.permute.xlu0 %3349
  %3351 = vrot.lane.b32.xlu0 %v3238, 96
  %v3352 = vpop.permute.xlu0 %3351
  %3353 = vrot.lane.b32.xlu0 %v3239, 96
  %v3354 = vpop.permute.xlu0 %3353
  %3355 = vrot.lane.b32.xlu0 %v3240, 96
  %v3356 = vpop.permute.xlu0 %3355
  %3357 = vrot.lane.b32.xlu0 %v3241, 96
  %v3358 = vpop.permute.xlu0 %3357
  %3359 = vrot.lane.b32.xlu0 %v3242, 96
  %v3360 = vpop.permute.xlu0 %3359
  %3361 = vrot.lane.b32.xlu0 %v3243, 96
  %v3362 = vpop.permute.xlu0 %3361
  %3363 = vrot.lane.b32.xlu0 %v3244, 96
  %v3364 = vpop.permute.xlu0 %3363
  %3365 = vrot.lane.b32.xlu0 %v3245, 96
  %v3366 = vpop.permute.xlu0 %3365
  %3367 = vrot.lane.b32.xlu0 %v3246, 96
  %v3368 = vpop.permute.xlu0 %3367
  %3369 = vrot.lane.b32.xlu0 %v3247, 96
  %v3370 = vpop.permute.xlu0 %3369
  %3371 = vrot.lane.b32.xlu0 %v3248, 96
  %v3372 = vpop.permute.xlu0 %3371
  %3373 = vrot.lane.b32.xlu0 %v3249, 96
  %v3374 = vpop.permute.xlu0 %3373
  %3375 = vrot.lane.b32.xlu0 %v3250, 96
  %v3376 = vpop.permute.xlu0 %3375
  %3377 = vrot.lane.b32.xlu0 %v3251, 96
  %v3378 = vpop.permute.xlu0 %3377
  %3379 = vrot.lane.b32.xlu0 %v3252, 96
  %v3380 = vpop.permute.xlu0 %3379
  %3381 = vrot.lane.b32.xlu0 %v3253, 96
  %v3382 = vpop.permute.xlu0 %3381
  %3383 = vrot.lane.b32.xlu0 %v3254, 96
  %v3384 = vpop.permute.xlu0 %3383
  %3385 = vrot.lane.b32.xlu0 %v3255, 96
  %v3386 = vpop.permute.xlu0 %3385
  %3387 = vrot.lane.b32.xlu0 %v3256, 96
  %v3388 = vpop.permute.xlu0 %3387
  %3389 = vrot.lane.b32.xlu0 %v3257, 96
  %v3390 = vpop.permute.xlu0 %3389
  %3391 = vrot.lane.b32.xlu0 %v3258, 96
  %v3392 = vpop.permute.xlu0 %3391
  %3393 = vrot.lane.b32.xlu0 %v3259, 96
  %v3394 = vpop.permute.xlu0 %3393
  %3395 = vrot.lane.b32.xlu0 %v3260, 96
  %v3396 = vpop.permute.xlu0 %3395
  %3397 = vrot.lane.b32.xlu0 %v3261, 96
  %v3398 = vpop.permute.xlu0 %3397
  %3399 = vrot.lane.b32.xlu0 %v3262, 96
  %v3400 = vpop.permute.xlu0 %3399
  %3401 = vrot.lane.b32.xlu0 %v3263, 96
  %v3402 = vpop.permute.xlu0 %3401
  %3403 = vrot.lane.b32.xlu0 %v3264, 96
  %v3404 = vpop.permute.xlu0 %3403
  %3405 = vrot.lane.b32.xlu0 %v3265, 96
  %v3406 = vpop.permute.xlu0 %3405
  %3407 = vrot.lane.b32.xlu0 %v3266, 96
  %v3408 = vpop.permute.xlu0 %3407
  %3409 = vrot.lane.b32.xlu0 %v3267, 96
  %v3410 = vpop.permute.xlu0 %3409
  %3411 = vrot.lane.b32.xlu0 %v3268, 96
  %v3412 = vpop.permute.xlu0 %3411
  %3413 = vrot.lane.b32.xlu0 %v3269, 96
  %v3414 = vpop.permute.xlu0 %3413
  %3415 = vrot.lane.b32.xlu0 %v3270, 96
  %v3416 = vpop.permute.xlu0 %3415
  %3417 = vrot.lane.b32.xlu0 %v3271, 96
  %v3418 = vpop.permute.xlu0 %3417
  %3419 = vrot.lane.b32.xlu0 %v3272, 96
  %v3420 = vpop.permute.xlu0 %3419
  %3421 = vrot.lane.b32.xlu0 %v3273, 96
  %v3422 = vpop.permute.xlu0 %3421
  %3423 = vrot.lane.b32.xlu0 %v3274, 96
  %v3424 = vpop.permute.xlu0 %3423
  %3425 = vrot.lane.b32.xlu0 %v3275, 96
  %v3426 = vpop.permute.xlu0 %3425
  %3427 = vrot.lane.b32.xlu0 %v3276, 96
  %v3428 = vpop.permute.xlu0 %3427
  %3429 = vrot.lane.b32.xlu0 %v3277, 96
  %v3430 = vpop.permute.xlu0 %3429
  %3431 = vrot.lane.b32.xlu0 %v3278, 96
  %v3432 = vpop.permute.xlu0 %3431
  %3433 = vrot.lane.b32.xlu0 %v3279, 96
  %v3434 = vpop.permute.xlu0 %3433
  %3435 = vrot.lane.b32.xlu0 %v3280, 96
  %v3436 = vpop.permute.xlu0 %3435
  %3437 = vrot.lane.b32.xlu0 %v3281, 96
  %v3438 = vpop.permute.xlu0 %3437
  %3439 = vrot.lane.b32.xlu0 %v3282, 96
  %v3440 = vpop.permute.xlu0 %3439
  %3441 = vrot.lane.b32.xlu0 %v3283, 96
  %v3442 = vpop.permute.xlu0 %3441
  %3443 = vrot.lane.b32.xlu0 %v3284, 96
  %v3444 = vpop.permute.xlu0 %3443
  %3445 = vrot.lane.b32.xlu0 %v3285, 96
  %v3446 = vpop.permute.xlu0 %3445
  %3447 = vrot.lane.b32.xlu0 %v3286, 96
  %v3448 = vpop.permute.xlu0 %3447
  %3449 = vrot.lane.b32.xlu0 %v3287, 96
  %v3450 = vpop.permute.xlu0 %3449
  %3451 = vrot.lane.b32.xlu0 %v3288, 96
  %v3452 = vpop.permute.xlu0 %3451
  %3453 = vrot.lane.b32.xlu0 %v3289, 96
  %v3454 = vpop.permute.xlu0 %3453
  %3455 = vrot.lane.b32.xlu0 %v3290, 96
  %v3456 = vpop.permute.xlu0 %3455
  %3457 = vrot.lane.b32.xlu0 %v3291, 96
  %v3458 = vpop.permute.xlu0 %3457
  %3459 = vrot.lane.b32.xlu0 %v3292, 96
  %v3460 = vpop.permute.xlu0 %3459
  %v3517 = vmax.f32 %v3237, %v3350
  %v3518 = vmax.f32 %v3238, %v3352
  %v3519 = vmax.f32 %v3239, %v3354
  %v3520 = vmax.f32 %v3240, %v3356
  %v3521 = vmax.f32 %v3241, %v3358
  %v3522 = vmax.f32 %v3242, %v3360
  %v3523 = vmax.f32 %v3243, %v3362
  %v3524 = vmax.f32 %v3244, %v3364
  %v3525 = vmax.f32 %v3245, %v3366
  %v3526 = vmax.f32 %v3246, %v3368
  %v3527 = vmax.f32 %v3247, %v3370
  %v3528 = vmax.f32 %v3248, %v3372
  %v3529 = vmax.f32 %v3249, %v3374
  %v3530 = vmax.f32 %v3250, %v3376
  %v3531 = vmax.f32 %v3251, %v3378
  %v3532 = vmax.f32 %v3252, %v3380
  %v3533 = vmax.f32 %v3253, %v3382
  %v3534 = vmax.f32 %v3254, %v3384
  %v3535 = vmax.f32 %v3255, %v3386
  %v3536 = vmax.f32 %v3256, %v3388
  %v3537 = vmax.f32 %v3257, %v3390
  %v3538 = vmax.f32 %v3258, %v3392
  %v3539 = vmax.f32 %v3259, %v3394
  %v3540 = vmax.f32 %v3260, %v3396
  %v3541 = vmax.f32 %v3261, %v3398
  %v3542 = vmax.f32 %v3262, %v3400
  %v3543 = vmax.f32 %v3263, %v3402
  %v3544 = vmax.f32 %v3264, %v3404
  %v3545 = vmax.f32 %v3265, %v3406
  %v3546 = vmax.f32 %v3266, %v3408
  %v3547 = vmax.f32 %v3267, %v3410
  %v3548 = vmax.f32 %v3268, %v3412
  %v3549 = vmax.f32 %v3269, %v3414
  %v3550 = vmax.f32 %v3270, %v3416
  %v3551 = vmax.f32 %v3271, %v3418
  %v3552 = vmax.f32 %v3272, %v3420
  %v3553 = vmax.f32 %v3273, %v3422
  %v3554 = vmax.f32 %v3274, %v3424
  %v3555 = vmax.f32 %v3275, %v3426
  %v3556 = vmax.f32 %v3276, %v3428
  %v3557 = vmax.f32 %v3277, %v3430
  %v3558 = vmax.f32 %v3278, %v3432
  %v3559 = vmax.f32 %v3279, %v3434
  %v3560 = vmax.f32 %v3280, %v3436
  %v3561 = vmax.f32 %v3281, %v3438
  %v3562 = vmax.f32 %v3282, %v3440
  %v3563 = vmax.f32 %v3283, %v3442
  %v3564 = vmax.f32 %v3284, %v3444
  %v3565 = vmax.f32 %v3285, %v3446
  %v3566 = vmax.f32 %v3286, %v3448
  %v3567 = vmax.f32 %v3287, %v3450
  %v3568 = vmax.f32 %v3288, %v3452
  %v3569 = vmax.f32 %v3289, %v3454
  %v3570 = vmax.f32 %v3290, %v3456
  %v3571 = vmax.f32 %v3291, %v3458
  %v3572 = vmax.f32 %v3292, %v3460
  %v3573 = vpack.c.bf16 %v3517, %v3517
  %v3574 = vpack.c.bf16 %v3518, %v3518
  %v3575 = vpack.c.bf16 %v3519, %v3519
  %v3576 = vpack.c.bf16 %v3520, %v3520
  %v3577 = vpack.c.bf16 %v3521, %v3521
  %v3578 = vpack.c.bf16 %v3522, %v3522
  %v3579 = vpack.c.bf16 %v3523, %v3523
  %v3580 = vpack.c.bf16 %v3524, %v3524
  %v3581 = vpack.c.bf16 %v3525, %v3525
  %v3582 = vpack.c.bf16 %v3526, %v3526
  %v3583 = vpack.c.bf16 %v3527, %v3527
  %v3584 = vpack.c.bf16 %v3528, %v3528
  %v3585 = vpack.c.bf16 %v3529, %v3529
  %v3586 = vpack.c.bf16 %v3530, %v3530
  %v3587 = vpack.c.bf16 %v3531, %v3531
  %v3588 = vpack.c.bf16 %v3532, %v3532
  %v3589 = vpack.c.bf16 %v3533, %v3533
  %v3590 = vpack.c.bf16 %v3534, %v3534
  %v3591 = vpack.c.bf16 %v3535, %v3535
  %v3592 = vpack.c.bf16 %v3536, %v3536
  %v3593 = vpack.c.bf16 %v3537, %v3537
  %v3594 = vpack.c.bf16 %v3538, %v3538
  %v3595 = vpack.c.bf16 %v3539, %v3539
  %v3596 = vpack.c.bf16 %v3540, %v3540
  %v3597 = vpack.c.bf16 %v3541, %v3541
  %v3598 = vpack.c.bf16 %v3542, %v3542
  %v3599 = vpack.c.bf16 %v3543, %v3543
  %v3600 = vpack.c.bf16 %v3544, %v3544
  %v3601 = vpack.c.bf16 %v3545, %v3545
  %v3602 = vpack.c.bf16 %v3546, %v3546
  %v3603 = vpack.c.bf16 %v3547, %v3547
  %v3604 = vpack.c.bf16 %v3548, %v3548
  %v3605 = vpack.c.bf16 %v3549, %v3549
  %v3606 = vpack.c.bf16 %v3550, %v3550
  %v3607 = vpack.c.bf16 %v3551, %v3551
  %v3608 = vpack.c.bf16 %v3552, %v3552
  %v3609 = vpack.c.bf16 %v3553, %v3553
  %v3610 = vpack.c.bf16 %v3554, %v3554
  %v3611 = vpack.c.bf16 %v3555, %v3555
  %v3612 = vpack.c.bf16 %v3556, %v3556
  %v3613 = vpack.c.bf16 %v3557, %v3557
  %v3614 = vpack.c.bf16 %v3558, %v3558
  %v3615 = vpack.c.bf16 %v3559, %v3559
  %v3616 = vpack.c.bf16 %v3560, %v3560
  %v3617 = vpack.c.bf16 %v3561, %v3561
  %v3618 = vpack.c.bf16 %v3562, %v3562
  %v3619 = vpack.c.bf16 %v3563, %v3563
  %v3620 = vpack.c.bf16 %v3564, %v3564
  %v3621 = vrot.slane %v3581, 4
  %v3622 = vsel %vm2613, %v3621, %v3573
  %v3624 = vunpack.c.l.s4 1983009808
  %v3625 = vunpack.c.0.s8 %v3624
  %v3626 = vperm.slane %v3622, %v3625
  %v3627 = vrot.slane %v3585, 4
  %v3628 = vsel %vm2613, %v3627, %v3577
  %v3630 = vunpack.c.l.s4 1983009808
  %v3631 = vunpack.c.0.s8 %v3630
  %v3632 = vperm.slane %v3628, %v3631
  %v3633 = vrot.slane %v3632, 4
  %v3634 = vsel %vm2613, %v3633, %v3626
  %v3635 = vrot.slane %v3626, 4
  %v3636 = vsel %vm2613, %v3632, %v3635
  %v3638 = vunpack.c.l.s4 1934713408
  %v3639 = vunpack.c.0.s8 %v3638
  %v3640 = vperm.slane %v3634, %v3639
  %v3642 = vunpack.c.l.s4 1934713408
  %v3643 = vunpack.c.0.s8 %v3642
  %v3644 = vperm.slane %v3636, %v3643
  %v3645 = vrot.slane %v3640, 4
  %v3646 = vsel %vm2613, 0, %v3645
  %v3647 = vrot.slane %v3644, 4
  %v3648 = vsel %vm2613, 0, %v3647
  %v3649 = vrot.slane %v3583, 4
  %v3650 = vsel %vm2613, %v3649, %v3575
  %v3652 = vunpack.c.l.s4 1983009808
  %v3653 = vunpack.c.0.s8 %v3652
  %v3654 = vperm.slane %v3650, %v3653
  %v3655 = vrot.slane %v3587, 4
  %v3656 = vsel %vm2613, %v3655, %v3579
  %v3658 = vunpack.c.l.s4 1983009808
  %v3659 = vunpack.c.0.s8 %v3658
  %v3660 = vperm.slane %v3656, %v3659
  %v3661 = vrot.slane %v3660, 4
  %v3662 = vsel %vm2613, %v3661, %v3654
  %v3663 = vrot.slane %v3654, 4
  %v3664 = vsel %vm2613, %v3660, %v3663
  %v3666 = vunpack.c.l.s4 1934713408
  %v3667 = vunpack.c.0.s8 %v3666
  %v3668 = vperm.slane %v3662, %v3667
  %v3670 = vunpack.c.l.s4 1934713408
  %v3671 = vunpack.c.0.s8 %v3670
  %v3672 = vperm.slane %v3664, %v3671
  %v3673 = vrot.slane %v3668, 4
  %v3674 = vsel %vm2613, 0, %v3673
  %v3675 = vrot.slane %v3672, 4
  %v3676 = vsel %vm2613, 0, %v3675
  %v3677 = vrot.slane %v3597, 4
  %v3678 = vsel %vm2613, %v3677, %v3589
  %v3680 = vunpack.c.l.s4 1983009808
  %v3681 = vunpack.c.0.s8 %v3680
  %v3682 = vperm.slane %v3678, %v3681
  %v3683 = vrot.slane %v3601, 4
  %v3684 = vsel %vm2613, %v3683, %v3593
  %v3686 = vunpack.c.l.s4 1983009808
  %v3687 = vunpack.c.0.s8 %v3686
  %v3688 = vperm.slane %v3684, %v3687
  %v3689 = vrot.slane %v3688, 4
  %v3690 = vsel %vm2613, %v3689, %v3682
  %v3691 = vrot.slane %v3682, 4
  %v3692 = vsel %vm2613, %v3688, %v3691
  %v3694 = vunpack.c.l.s4 1934713408
  %v3695 = vunpack.c.0.s8 %v3694
  %v3696 = vperm.slane %v3690, %v3695
  %v3698 = vunpack.c.l.s4 1934713408
  %v3699 = vunpack.c.0.s8 %v3698
  %v3700 = vperm.slane %v3692, %v3699
  %v3701 = vrot.slane %v3696, 4
  %v3702 = vsel %vm2613, 0, %v3701
  %v3703 = vrot.slane %v3700, 4
  %v3704 = vsel %vm2613, 0, %v3703
  %v3705 = vrot.slane %v3599, 4
  %v3706 = vsel %vm2613, %v3705, %v3591
  %v3708 = vunpack.c.l.s4 1983009808
  %v3709 = vunpack.c.0.s8 %v3708
  %v3710 = vperm.slane %v3706, %v3709
  %v3711 = vrot.slane %v3603, 4
  %v3712 = vsel %vm2613, %v3711, %v3595
  %v3714 = vunpack.c.l.s4 1983009808
  %v3715 = vunpack.c.0.s8 %v3714
  %v3716 = vperm.slane %v3712, %v3715
  %v3717 = vrot.slane %v3716, 4
  %v3718 = vsel %vm2613, %v3717, %v3710
  %v3719 = vrot.slane %v3710, 4
  %v3720 = vsel %vm2613, %v3716, %v3719
  %v3722 = vunpack.c.l.s4 1934713408
  %v3723 = vunpack.c.0.s8 %v3722
  %v3724 = vperm.slane %v3718, %v3723
  %v3726 = vunpack.c.l.s4 1934713408
  %v3727 = vunpack.c.0.s8 %v3726
  %v3728 = vperm.slane %v3720, %v3727
  %v3729 = vrot.slane %v3724, 4
  %v3730 = vsel %vm2613, 0, %v3729
  %v3731 = vrot.slane %v3728, 4
  %v3732 = vsel %vm2613, 0, %v3731
  %v3733 = vrot.slane %v3613, 4
  %v3734 = vsel %vm2613, %v3733, %v3605
  %v3736 = vunpack.c.l.s4 1983009808
  %v3737 = vunpack.c.0.s8 %v3736
  %v3738 = vperm.slane %v3734, %v3737
  %v3739 = vrot.slane %v3617, 4
  %v3740 = vsel %vm2613, %v3739, %v3609
  %v3742 = vunpack.c.l.s4 1983009808
  %v3743 = vunpack.c.0.s8 %v3742
  %v3744 = vperm.slane %v3740, %v3743
  %v3745 = vrot.slane %v3744, 4
  %v3746 = vsel %vm2613, %v3745, %v3738
  %v3747 = vrot.slane %v3738, 4
  %v3748 = vsel %vm2613, %v3744, %v3747
  %v3750 = vunpack.c.l.s4 1934713408
  %v3751 = vunpack.c.0.s8 %v3750
  %v3752 = vperm.slane %v3746, %v3751
  %v3754 = vunpack.c.l.s4 1934713408
  %v3755 = vunpack.c.0.s8 %v3754
  %v3756 = vperm.slane %v3748, %v3755
  %v3757 = vrot.slane %v3752, 4
  %v3758 = vsel %vm2613, 0, %v3757
  %v3759 = vrot.slane %v3756, 4
  %v3760 = vsel %vm2613, 0, %v3759
  %v3761 = vrot.slane %v3615, 4
  %v3762 = vsel %vm2613, %v3761, %v3607
  %v3764 = vunpack.c.l.s4 1983009808
  %v3765 = vunpack.c.0.s8 %v3764
  %v3766 = vperm.slane %v3762, %v3765
  %v3767 = vrot.slane %v3619, 4
  %v3768 = vsel %vm2613, %v3767, %v3611
  %v3770 = vunpack.c.l.s4 1983009808
  %v3771 = vunpack.c.0.s8 %v3770
  %v3772 = vperm.slane %v3768, %v3771
  %v3773 = vrot.slane %v3772, 4
  %v3774 = vsel %vm2613, %v3773, %v3766
  %v3775 = vrot.slane %v3766, 4
  %v3776 = vsel %vm2613, %v3772, %v3775
  %v3778 = vunpack.c.l.s4 1934713408
  %v3779 = vunpack.c.0.s8 %v3778
  %v3780 = vperm.slane %v3774, %v3779
  %v3782 = vunpack.c.l.s4 1934713408
  %v3783 = vunpack.c.0.s8 %v3782
  %v3784 = vperm.slane %v3776, %v3783
  %v3785 = vrot.slane %v3780, 4
  %v3786 = vsel %vm2613, 0, %v3785
  %v3787 = vrot.slane %v3784, 4
  %v3788 = vsel %vm2613, 0, %v3787
  %v3789 = vpack.c.bf16 %v3565, %v3565
  %v3791 = vunpack.c.l.s4 1983009808
  %v3792 = vunpack.c.0.s8 %v3791
  %v3793 = vperm.slane %v3789, %v3792
  %v3794 = vpack.c.bf16 %v3569, %v3569
  %v3796 = vunpack.c.l.s4 1983009808
  %v3797 = vunpack.c.0.s8 %v3796
  %v3798 = vperm.slane %v3794, %v3797
  %v3799 = vrot.slane %v3798, 4
  %v3800 = vsel %vm2613, %v3799, %v3793
  %v3801 = vrot.slane %v3793, 4
  %v3802 = vsel %vm2613, %v3798, %v3801
  %v3804 = vunpack.c.l.s4 1934713408
  %v3805 = vunpack.c.0.s8 %v3804
  %v3806 = vperm.slane %v3800, %v3805
  %v3808 = vunpack.c.l.s4 1934713408
  %v3809 = vunpack.c.0.s8 %v3808
  %v3810 = vperm.slane %v3802, %v3809
  %v3811 = vrot.slane %v3806, 4
  %v3812 = vsel %vm2613, 0, %v3811
  %v3813 = vrot.slane %v3810, 4
  %v3814 = vsel %vm2613, 0, %v3813
  %v3815 = vpack.c.bf16 %v3567, %v3567
  %v3817 = vunpack.c.l.s4 1983009808
  %v3818 = vunpack.c.0.s8 %v3817
  %v3819 = vperm.slane %v3815, %v3818
  %v3820 = vpack.c.bf16 %v3571, %v3571
  %v3822 = vunpack.c.l.s4 1983009808
  %v3823 = vunpack.c.0.s8 %v3822
  %v3824 = vperm.slane %v3820, %v3823
  %v3825 = vrot.slane %v3824, 4
  %v3826 = vsel %vm2613, %v3825, %v3819
  %v3827 = vrot.slane %v3819, 4
  %v3828 = vsel %vm2613, %v3824, %v3827
  %v3830 = vunpack.c.l.s4 1934713408
  %v3831 = vunpack.c.0.s8 %v3830
  %v3832 = vperm.slane %v3826, %v3831
  %v3834 = vunpack.c.l.s4 1934713408
  %v3835 = vunpack.c.0.s8 %v3834
  %v3836 = vperm.slane %v3828, %v3835
  %v3837 = vrot.slane %v3832, 4
  %v3838 = vsel %vm2613, 0, %v3837
  %v3839 = vrot.slane %v3836, 4
  %v3840 = vsel %vm2613, 0, %v3839
  %v3841 = vrot.slane %v3582, 4
  %v3842 = vsel %vm2613, %v3841, %v3574
  %v3844 = vunpack.c.l.s4 1983009808
  %v3845 = vunpack.c.0.s8 %v3844
  %v3846 = vperm.slane %v3842, %v3845
  %v3847 = vrot.slane %v3586, 4
  %v3848 = vsel %vm2613, %v3847, %v3578
  %v3850 = vunpack.c.l.s4 1983009808
  %v3851 = vunpack.c.0.s8 %v3850
  %v3852 = vperm.slane %v3848, %v3851
  %v3853 = vrot.slane %v3852, 4
  %v3854 = vsel %vm2613, %v3853, %v3846
  %v3855 = vrot.slane %v3846, 4
  %v3856 = vsel %vm2613, %v3852, %v3855
  %v3858 = vunpack.c.l.s4 1934713408
  %v3859 = vunpack.c.0.s8 %v3858
  %v3860 = vperm.slane %v3854, %v3859
  %v3861 = vrot.slane %v3860, 4
  %v3862 = vsel %vm2613, 0, %v3861
  %v3864 = vunpack.c.l.s4 1934713408
  %v3865 = vunpack.c.0.s8 %v3864
  %v3866 = vperm.slane %v3856, %v3865
  %v3867 = vrot.slane %v3584, 4
  %v3868 = vsel %vm2613, %v3867, %v3576
  %v3870 = vunpack.c.l.s4 1983009808
  %v3871 = vunpack.c.0.s8 %v3870
  %v3872 = vperm.slane %v3868, %v3871
  %v3873 = vrot.slane %v3588, 4
  %v3874 = vsel %vm2613, %v3873, %v3580
  %v3876 = vunpack.c.l.s4 1983009808
  %v3877 = vunpack.c.0.s8 %v3876
  %v3878 = vperm.slane %v3874, %v3877
  %v3879 = vrot.slane %v3878, 4
  %v3880 = vsel %vm2613, %v3879, %v3872
  %v3881 = vrot.slane %v3872, 4
  %v3882 = vsel %vm2613, %v3878, %v3881
  %v3884 = vunpack.c.l.s4 1934713408
  %v3885 = vunpack.c.0.s8 %v3884
  %v3886 = vperm.slane %v3880, %v3885
  %v3887 = vrot.slane %v3886, 4
  %v3888 = vsel %vm2613, 0, %v3887
  %v3890 = vunpack.c.l.s4 1934713408
  %v3891 = vunpack.c.0.s8 %v3890
  %v3892 = vperm.slane %v3882, %v3891
  %v3893 = vrot.slane %v3598, 4
  %v3894 = vsel %vm2613, %v3893, %v3590
  %v3896 = vunpack.c.l.s4 1983009808
  %v3897 = vunpack.c.0.s8 %v3896
  %v3898 = vperm.slane %v3894, %v3897
  %v3899 = vrot.slane %v3602, 4
  %v3900 = vsel %vm2613, %v3899, %v3594
  %v3902 = vunpack.c.l.s4 1983009808
  %v3903 = vunpack.c.0.s8 %v3902
  %v3904 = vperm.slane %v3900, %v3903
  %v3905 = vrot.slane %v3904, 4
  %v3906 = vsel %vm2613, %v3905, %v3898
  %v3907 = vrot.slane %v3898, 4
  %v3908 = vsel %vm2613, %v3904, %v3907
  %v3910 = vunpack.c.l.s4 1934713408
  %v3911 = vunpack.c.0.s8 %v3910
  %v3912 = vperm.slane %v3906, %v3911
  %v3913 = vrot.slane %v3912, 4
  %v3914 = vsel %vm2613, 0, %v3913
  %v3916 = vunpack.c.l.s4 1934713408
  %v3917 = vunpack.c.0.s8 %v3916
  %v3918 = vperm.slane %v3908, %v3917
  %v3919 = vrot.slane %v3600, 4
  %v3920 = vsel %vm2613, %v3919, %v3592
  %v3922 = vunpack.c.l.s4 1983009808
  %v3923 = vunpack.c.0.s8 %v3922
  %v3924 = vperm.slane %v3920, %v3923
  %v3925 = vrot.slane %v3604, 4
  %v3926 = vsel %vm2613, %v3925, %v3596
  %v3928 = vunpack.c.l.s4 1983009808
  %v3929 = vunpack.c.0.s8 %v3928
  %v3930 = vperm.slane %v3926, %v3929
  %v3931 = vrot.slane %v3930, 4
  %v3932 = vsel %vm2613, %v3931, %v3924
  %v3933 = vrot.slane %v3924, 4
  %v3934 = vsel %vm2613, %v3930, %v3933
  %v3936 = vunpack.c.l.s4 1934713408
  %v3937 = vunpack.c.0.s8 %v3936
  %v3938 = vperm.slane %v3932, %v3937
  %v3939 = vrot.slane %v3938, 4
  %v3940 = vsel %vm2613, 0, %v3939
  %v3942 = vunpack.c.l.s4 1934713408
  %v3943 = vunpack.c.0.s8 %v3942
  %v3944 = vperm.slane %v3934, %v3943
  %v3945 = vrot.slane %v3614, 4
  %v3946 = vsel %vm2613, %v3945, %v3606
  %v3948 = vunpack.c.l.s4 1983009808
  %v3949 = vunpack.c.0.s8 %v3948
  %v3950 = vperm.slane %v3946, %v3949
  %v3951 = vrot.slane %v3618, 4
  %v3952 = vsel %vm2613, %v3951, %v3610
  %v3954 = vunpack.c.l.s4 1983009808
  %v3955 = vunpack.c.0.s8 %v3954
  %v3956 = vperm.slane %v3952, %v3955
  %v3957 = vrot.slane %v3956, 4
  %v3958 = vsel %vm2613, %v3957, %v3950
  %v3959 = vrot.slane %v3950, 4
  %v3960 = vsel %vm2613, %v3956, %v3959
  %v3962 = vunpack.c.l.s4 1934713408
  %v3963 = vunpack.c.0.s8 %v3962
  %v3964 = vperm.slane %v3958, %v3963
  %v3965 = vrot.slane %v3964, 4
  %v3966 = vsel %vm2613, 0, %v3965
  %v3968 = vunpack.c.l.s4 1934713408
  %v3969 = vunpack.c.0.s8 %v3968
  %v3970 = vperm.slane %v3960, %v3969
  %v3971 = vrot.slane %v3616, 4
  %v3972 = vsel %vm2613, %v3971, %v3608
  %v3974 = vunpack.c.l.s4 1983009808
  %v3975 = vunpack.c.0.s8 %v3974
  %v3976 = vperm.slane %v3972, %v3975
  %v3977 = vrot.slane %v3620, 4
  %v3978 = vsel %vm2613, %v3977, %v3612
  %v3980 = vunpack.c.l.s4 1983009808
  %v3981 = vunpack.c.0.s8 %v3980
  %v3982 = vperm.slane %v3978, %v3981
  %v3983 = vrot.slane %v3982, 4
  %v3984 = vsel %vm2613, %v3983, %v3976
  %v3985 = vrot.slane %v3976, 4
  %v3986 = vsel %vm2613, %v3982, %v3985
  %v3988 = vunpack.c.l.s4 1934713408
  %v3989 = vunpack.c.0.s8 %v3988
  %v3990 = vperm.slane %v3984, %v3989
  %v3991 = vrot.slane %v3990, 4
  %v3992 = vsel %vm2613, 0, %v3991
  %v3994 = vunpack.c.l.s4 1934713408
  %v3995 = vunpack.c.0.s8 %v3994
  %v3996 = vperm.slane %v3986, %v3995
  %v3997 = vpack.c.bf16 %v3566, %v3566
  %v3999 = vunpack.c.l.s4 1983009808
  %v4000 = vunpack.c.0.s8 %v3999
  %v4001 = vperm.slane %v3997, %v4000
  %v4002 = vpack.c.bf16 %v3570, %v3570
  %v4004 = vunpack.c.l.s4 1983009808
  %v4005 = vunpack.c.0.s8 %v4004
  %v4006 = vperm.slane %v4002, %v4005
  %v4007 = vrot.slane %v4006, 4
  %v4008 = vsel %vm2613, %v4007, %v4001
  %v4009 = vrot.slane %v4001, 4
  %v4010 = vsel %vm2613, %v4006, %v4009
  %v4012 = vunpack.c.l.s4 1934713408
  %v4013 = vunpack.c.0.s8 %v4012
  %v4014 = vperm.slane %v4008, %v4013
  %v4015 = vrot.slane %v4014, 4
  %v4016 = vsel %vm2613, 0, %v4015
  %v4018 = vunpack.c.l.s4 1934713408
  %v4019 = vunpack.c.0.s8 %v4018
  %v4020 = vperm.slane %v4010, %v4019
  %v4021 = vpack.c.bf16 %v3568, %v3568
  %v4023 = vunpack.c.l.s4 1983009808
  %v4024 = vunpack.c.0.s8 %v4023
  %v4025 = vperm.slane %v4021, %v4024
  %v4026 = vpack.c.bf16 %v3572, %v3572
  %v4028 = vunpack.c.l.s4 1983009808
  %v4029 = vunpack.c.0.s8 %v4028
  %v4030 = vperm.slane %v4026, %v4029
  %v4031 = vrot.slane %v4030, 4
  %v4032 = vsel %vm2613, %v4031, %v4025
  %v4033 = vrot.slane %v4025, 4
  %v4034 = vsel %vm2613, %v4030, %v4033
  %v4036 = vunpack.c.l.s4 1934713408
  %v4037 = vunpack.c.0.s8 %v4036
  %v4038 = vperm.slane %v4032, %v4037
  %v4039 = vrot.slane %v4038, 4
  %v4040 = vsel %vm2613, 0, %v4039
  %v4042 = vunpack.c.l.s4 1934713408
  %v4043 = vunpack.c.0.s8 %v4042
  %v4044 = vperm.slane %v4034, %v4043
  %v4047 = vpack.i.b16 %v3668, %v3640
  %v4048 = vshrl.u32 %v3640, 16
  %v4049 = vshrl.u32 %v3668, 16
  %v4050 = vpack.i.b16 %v4049, %v4048
  %v4053 = vpack.i.b16 %v3674, %v3646
  %v4054 = vshrl.u32 %v3646, 16
  %v4055 = vshrl.u32 %v3674, 16
  %v4056 = vpack.i.b16 %v4055, %v4054
  %v4059 = vpack.i.b16 %v3672, %v3644
  %v4060 = vshrl.u32 %v3644, 16
  %v4061 = vshrl.u32 %v3672, 16
  %v4062 = vpack.i.b16 %v4061, %v4060
  %v4065 = vpack.i.b16 %v3676, %v3648
  %v4066 = vshrl.u32 %v3648, 16
  %v4067 = vshrl.u32 %v3676, 16
  %v4068 = vpack.i.b16 %v4067, %v4066
  %v4071 = vpack.i.b16 %v3886, %v3860
  %v4072 = vshrl.u32 %v3860, 16
  %v4073 = vshrl.u32 %v3886, 16
  %v4074 = vpack.i.b16 %v4073, %v4072
  %v4077 = vpack.i.b16 %v3888, %v3862
  %v4078 = vshrl.u32 %v3862, 16
  %v4079 = vshrl.u32 %v3888, 16
  %v4080 = vpack.i.b16 %v4079, %v4078
  %v4083 = vpack.i.b16 %v3892, %v3866
  %v4084 = vshrl.u32 %v3866, 16
  %v4085 = vshrl.u32 %v3892, 16
  %v4086 = vpack.i.b16 %v4085, %v4084
  %v4089 = vpack.i.b16 %v3724, %v3696
  %v4090 = vshrl.u32 %v3696, 16
  %v4091 = vshrl.u32 %v3724, 16
  %v4092 = vpack.i.b16 %v4091, %v4090
  %v4095 = vpack.i.b16 %v3730, %v3702
  %v4096 = vshrl.u32 %v3702, 16
  %v4097 = vshrl.u32 %v3730, 16
  %v4098 = vpack.i.b16 %v4097, %v4096
  %v4101 = vpack.i.b16 %v3728, %v3700
  %v4102 = vshrl.u32 %v3700, 16
  %v4103 = vshrl.u32 %v3728, 16
  %v4104 = vpack.i.b16 %v4103, %v4102
  %v4107 = vpack.i.b16 %v3732, %v3704
  %v4108 = vshrl.u32 %v3704, 16
  %v4109 = vshrl.u32 %v3732, 16
  %v4110 = vpack.i.b16 %v4109, %v4108
  %v4113 = vpack.i.b16 %v3938, %v3912
  %v4114 = vshrl.u32 %v3912, 16
  %v4115 = vshrl.u32 %v3938, 16
  %v4116 = vpack.i.b16 %v4115, %v4114
  %v4119 = vpack.i.b16 %v3940, %v3914
  %v4120 = vshrl.u32 %v3914, 16
  %v4121 = vshrl.u32 %v3940, 16
  %v4122 = vpack.i.b16 %v4121, %v4120
  %v4125 = vpack.i.b16 %v3944, %v3918
  %v4126 = vshrl.u32 %v3918, 16
  %v4127 = vshrl.u32 %v3944, 16
  %v4128 = vpack.i.b16 %v4127, %v4126
  %v4131 = vpack.i.b16 %v3780, %v3752
  %v4132 = vshrl.u32 %v3752, 16
  %v4133 = vshrl.u32 %v3780, 16
  %v4134 = vpack.i.b16 %v4133, %v4132
  %v4137 = vpack.i.b16 %v3786, %v3758
  %v4138 = vshrl.u32 %v3758, 16
  %v4139 = vshrl.u32 %v3786, 16
  %v4140 = vpack.i.b16 %v4139, %v4138
  %v4143 = vpack.i.b16 %v3784, %v3756
  %v4144 = vshrl.u32 %v3756, 16
  %v4145 = vshrl.u32 %v3784, 16
  %v4146 = vpack.i.b16 %v4145, %v4144
  %v4149 = vpack.i.b16 %v3788, %v3760
  %v4150 = vshrl.u32 %v3760, 16
  %v4151 = vshrl.u32 %v3788, 16
  %v4152 = vpack.i.b16 %v4151, %v4150
  %v4155 = vpack.i.b16 %v3990, %v3964
  %v4156 = vshrl.u32 %v3964, 16
  %v4157 = vshrl.u32 %v3990, 16
  %v4158 = vpack.i.b16 %v4157, %v4156
  %v4161 = vpack.i.b16 %v3992, %v3966
  %v4162 = vshrl.u32 %v3966, 16
  %v4163 = vshrl.u32 %v3992, 16
  %v4164 = vpack.i.b16 %v4163, %v4162
  %v4167 = vpack.i.b16 %v3996, %v3970
  %v4168 = vshrl.u32 %v3970, 16
  %v4169 = vshrl.u32 %v3996, 16
  %v4170 = vpack.i.b16 %v4169, %v4168
  %v4173 = vpack.i.b16 %v3832, %v3806
  %v4174 = vshrl.u32 %v3806, 16
  %v4175 = vshrl.u32 %v3832, 16
  %v4176 = vpack.i.b16 %v4175, %v4174
  %v4179 = vpack.i.b16 %v3838, %v3812
  %v4180 = vshrl.u32 %v3812, 16
  %v4181 = vshrl.u32 %v3838, 16
  %v4182 = vpack.i.b16 %v4181, %v4180
  %v4185 = vpack.i.b16 %v3836, %v3810
  %v4186 = vshrl.u32 %v3810, 16
  %v4187 = vshrl.u32 %v3836, 16
  %v4188 = vpack.i.b16 %v4187, %v4186
  %v4191 = vpack.i.b16 %v3840, %v3814
  %v4192 = vshrl.u32 %v3814, 16
  %v4193 = vshrl.u32 %v3840, 16
  %v4194 = vpack.i.b16 %v4193, %v4192
  %v4197 = vpack.i.b16 %v4038, %v4014
  %v4198 = vshrl.u32 %v4014, 16
  %v4199 = vshrl.u32 %v4038, 16
  %v4200 = vpack.i.b16 %v4199, %v4198
  %v4203 = vpack.i.b16 %v4040, %v4016
  %v4204 = vshrl.u32 %v4016, 16
  %v4205 = vshrl.u32 %v4040, 16
  %v4206 = vpack.i.b16 %v4205, %v4204
  %v4209 = vpack.i.b16 %v4044, %v4020
  %v4210 = vshrl.u32 %v4020, 16
  %v4211 = vshrl.u32 %v4044, 16
  %v4212 = vpack.i.b16 %v4211, %v4210
  %v4213 = vunpack.c.l.b16 %v4047
  %v4214 = vunpack.c.l.b16 %v4089
  %v4215 = vunpack.c.l.b16 %v4131
  %v4216 = vunpack.c.l.b16 %v4173
  %v4217 = vpack.c.b16 %v4214, %v4213
  %v4218 = vpack.c.b16 %v4216, %v4215
  %v4219 = vunpack.c.l.b16 %v4050
  %v4220 = vunpack.c.l.b16 %v4092
  %v4221 = vunpack.c.l.b16 %v4134
  %v4222 = vunpack.c.l.b16 %v4176
  %v4223 = vpack.c.b16 %v4220, %v4219
  %v4224 = vpack.c.b16 %v4222, %v4221
  %4225 = vrot.lane.b32.xlu0 %v4223, 32
  %v4226 = vpop.permute.xlu0 %4225
  %4227 = vrot.lane.b32.xlu0 %v4224, 32
  %v4228 = vpop.permute.xlu0 %4227
  %v4229 = vunpack.c.l.b16 %v4053
  %v4230 = vunpack.c.l.b16 %v4095
  %v4231 = vunpack.c.l.b16 %v4137
  %v4232 = vunpack.c.l.b16 %v4179
  %v4233 = vpack.c.b16 %v4230, %v4229
  %v4234 = vpack.c.b16 %v4232, %v4231
  %4235 = vrot.lane.b32.xlu0 %v4233, 64
  %v4236 = vpop.permute.xlu0 %4235
  %4237 = vrot.lane.b32.xlu0 %v4234, 64
  %v4238 = vpop.permute.xlu0 %4237
  %v4239 = vunpack.c.l.b16 %v4056
  %v4240 = vunpack.c.l.b16 %v4098
  %v4241 = vunpack.c.l.b16 %v4140
  %v4242 = vunpack.c.l.b16 %v4182
  %v4243 = vpack.c.b16 %v4240, %v4239
  %v4244 = vpack.c.b16 %v4242, %v4241
  %4245 = vrot.lane.b32.xlu0 %v4243, 96
  %v4246 = vpop.permute.xlu0 %4245
  %4247 = vrot.lane.b32.xlu0 %v4244, 96
  %v4248 = vpop.permute.xlu0 %4247
  %v4249 = vunpack.c.l.b16 %v4059
  %v4250 = vunpack.c.l.b16 %v4101
  %v4251 = vunpack.c.l.b16 %v4143
  %v4252 = vunpack.c.l.b16 %v4185
  %v4253 = vpack.c.b16 %v4250, %v4249
  %v4254 = vpack.c.b16 %v4252, %v4251
  %v4255 = vunpack.c.l.b16 %v4062
  %v4256 = vunpack.c.l.b16 %v4104
  %v4257 = vunpack.c.l.b16 %v4146
  %v4258 = vunpack.c.l.b16 %v4188
  %v4259 = vpack.c.b16 %v4256, %v4255
  %v4260 = vpack.c.b16 %v4258, %v4257
  %4261 = vrot.lane.b32.xlu0 %v4259, 32
  %v4262 = vpop.permute.xlu0 %4261
  %4263 = vrot.lane.b32.xlu0 %v4260, 32
  %v4264 = vpop.permute.xlu0 %4263
  %v4265 = vunpack.c.l.b16 %v4065
  %v4266 = vunpack.c.l.b16 %v4107
  %v4267 = vunpack.c.l.b16 %v4149
  %v4268 = vunpack.c.l.b16 %v4191
  %v4269 = vpack.c.b16 %v4266, %v4265
  %v4270 = vpack.c.b16 %v4268, %v4267
  %4271 = vrot.lane.b32.xlu0 %v4269, 64
  %v4272 = vpop.permute.xlu0 %4271
  %4273 = vrot.lane.b32.xlu0 %v4270, 64
  %v4274 = vpop.permute.xlu0 %4273
  %v4275 = vunpack.c.l.b16 %v4068
  %v4276 = vunpack.c.l.b16 %v4110
  %v4277 = vunpack.c.l.b16 %v4152
  %v4278 = vunpack.c.l.b16 %v4194
  %v4279 = vpack.c.b16 %v4276, %v4275
  %v4280 = vpack.c.b16 %v4278, %v4277
  %4281 = vrot.lane.b32.xlu0 %v4279, 96
  %v4282 = vpop.permute.xlu0 %4281
  %4283 = vrot.lane.b32.xlu0 %v4280, 96
  %v4284 = vpop.permute.xlu0 %4283
  %v4285 = vunpack.c.l.b16 %v4071
  %v4286 = vunpack.c.l.b16 %v4113
  %v4287 = vunpack.c.l.b16 %v4155
  %v4288 = vunpack.c.l.b16 %v4197
  %v4289 = vpack.c.b16 %v4286, %v4285
  %v4290 = vpack.c.b16 %v4288, %v4287
  %v4291 = vunpack.c.l.b16 %v4074
  %v4292 = vunpack.c.l.b16 %v4116
  %v4293 = vunpack.c.l.b16 %v4158
  %v4294 = vunpack.c.l.b16 %v4200
  %v4295 = vpack.c.b16 %v4292, %v4291
  %v4296 = vpack.c.b16 %v4294, %v4293
  %4297 = vrot.lane.b32.xlu0 %v4295, 32
  %v4298 = vpop.permute.xlu0 %4297
  %4299 = vrot.lane.b32.xlu0 %v4296, 32
  %v4300 = vpop.permute.xlu0 %4299
  %v4301 = vunpack.c.l.b16 %v4077
  %v4302 = vunpack.c.l.b16 %v4119
  %v4303 = vunpack.c.l.b16 %v4161
  %v4304 = vunpack.c.l.b16 %v4203
  %v4305 = vpack.c.b16 %v4302, %v4301
  %v4306 = vpack.c.b16 %v4304, %v4303
  %4307 = vrot.lane.b32.xlu0 %v4305, 64
  %v4308 = vpop.permute.xlu0 %4307
  %4309 = vrot.lane.b32.xlu0 %v4306, 64
  %v4310 = vpop.permute.xlu0 %4309
  %v4311 = vunpack.c.l.b16 %v4080
  %v4312 = vunpack.c.l.b16 %v4122
  %v4313 = vunpack.c.l.b16 %v4164
  %v4314 = vunpack.c.l.b16 %v4206
  %v4315 = vpack.c.b16 %v4312, %v4311
  %v4316 = vpack.c.b16 %v4314, %v4313
  %4317 = vrot.lane.b32.xlu0 %v4315, 96
  %v4318 = vpop.permute.xlu0 %4317
  %4319 = vrot.lane.b32.xlu0 %v4316, 96
  %v4320 = vpop.permute.xlu0 %4319
  %v4321 = vunpack.c.l.b16 %v4083
  %v4322 = vunpack.c.l.b16 %v4125
  %v4323 = vunpack.c.l.b16 %v4167
  %v4324 = vunpack.c.l.b16 %v4209
  %v4325 = vpack.c.b16 %v4322, %v4321
  %v4326 = vpack.c.b16 %v4324, %v4323
  %v4327 = vunpack.c.l.b16 %v4086
  %v4328 = vunpack.c.l.b16 %v4128
  %v4329 = vunpack.c.l.b16 %v4170
  %v4330 = vunpack.c.l.b16 %v4212
  %v4331 = vpack.c.b16 %v4328, %v4327
  %v4332 = vpack.c.b16 %v4330, %v4329
  %4333 = vrot.lane.b32.xlu0 %v4331, 32
  %v4334 = vpop.permute.xlu0 %4333
  %4335 = vrot.lane.b32.xlu0 %v4332, 32
  %v4336 = vpop.permute.xlu0 %4335
  %vm4337 = vcmask 261120
  %v4340 = vsel %vm4337, %v4217, %v4226
  %v4343 = vsel %vm4337, %v4218, %v4228
  %vm4344 = vcmask 523264
  %v4346 = vsel %vm4344, %v4340, %v4236
  %v4348 = vsel %vm4344, %v4343, %v4238
  %vm4349 = vcmask 785408
  %v4351 = vsel %vm4349, %v4346, %v4246
  %v4353 = vsel %vm4349, %v4348, %v4248
  %v4356 = vsel %vm4337, %v4253, %v4262
  %v4359 = vsel %vm4337, %v4254, %v4264
  %v4361 = vsel %vm4344, %v4356, %v4272
  %v4363 = vsel %vm4344, %v4359, %v4274
  %v4365 = vsel %vm4349, %v4361, %v4282
  %v4367 = vsel %vm4349, %v4363, %v4284
  %v4370 = vsel %vm4337, %v4289, %v4298
  %v4373 = vsel %vm4337, %v4290, %v4300
  %v4375 = vsel %vm4344, %v4370, %v4308
  %v4377 = vsel %vm4344, %v4373, %v4310
  %v4379 = vsel %vm4349, %v4375, %v4318
  %v4381 = vsel %vm4349, %v4377, %v4320
  %v4384 = vsel %vm4337, %v4325, %v4334
  %v4387 = vsel %vm4337, %v4326, %v4336
  %v4396 = vunpack.c.l.b16 %v4351
  %v4397 = vunpack.c.l.b16 %v4365
  %v4398 = vunpack.c.l.b16 %v4379
  %v4399 = vunpack.c.l.b16 %v4384
  %v4400 = vunpack.c.h.b16 %v4351
  %v4401 = vunpack.c.h.b16 %v4365
  %v4402 = vunpack.c.h.b16 %v4379
  %v4403 = vunpack.c.h.b16 %v4384
  %v4404 = vunpack.c.l.b16 %v4353
  %v4405 = vunpack.c.l.b16 %v4367
  %v4406 = vunpack.c.l.b16 %v4381
  %v4407 = vunpack.c.l.b16 %v4387
  %v4408 = vunpack.c.h.b16 %v4353
  %v4409 = vunpack.c.h.b16 %v4367
  %v4410 = vunpack.c.h.b16 %v4381
  %v4411 = vunpack.c.h.b16 %v4387
  %v4412 = vpack.c.b16 %v4397, %v4396
  %v4413 = vpack.c.b16 %v4399, %v4398
  %v4414 = vpack.c.b16 %v4401, %v4400
  %v4415 = vpack.c.b16 %v4403, %v4402
  %v4416 = vpack.c.b16 %v4405, %v4404
  %v4417 = vpack.c.b16 %v4407, %v4406
  %v4418 = vpack.c.b16 %v4409, %v4408
  %v4419 = vpack.c.b16 %v4411, %v4410
  %4428 = vst [vmem:[%s1] sm:$0xff] %v4412
  %vm4429 = vcmask 1043456
  %vm4430 = vcmask 523268
  %vm4431 = vmor %vm4430, %vm4429
  %4432 = vst.msk [vmem:[%s1 + $0x8] sm:$0xff] %vm4431, %v4413
  %4433 = vst [vmem:[%s1 + $0x10] sm:$0xff] %v4414
  %4434 = vst.msk [vmem:[%s1 + $0x18] sm:$0xff] %vm4431, %v4415
  %4435 = vst [vmem:[%s1 + $0x20] sm:$0xff] %v4416
  %4436 = vst.msk [vmem:[%s1 + $0x28] sm:$0xff] %vm4431, %v4417
  %4437 = vst [vmem:[%s1 + $0x30] sm:$0x33] %v4418
  %vm4438 = vcmask 1041408
  %vm4439 = vcmask 521220
  %vm4440 = vmor %vm4439, %vm4438
  %4441 = vst.msk [vmem:[%s1 + $0x38] sm:$0x33] %vm4440, %v4419
  // Predicated region
  $region6: #{forward.6} parent=0 // pred_check
    _
  $region7: #{forward.6} parent=0 // pred_check_branch
    %4443 = sbr.rel (0) target = $region9
  $region8: #{forward.6} parent=0 // pred_region
    _
  $region9: #{forward.6} parent=0 // pred_fallthru
    _
  // Predicated region
  $region10: #{forward.6} parent=0 // pred_check
    _
  $region11: #{forward.6} parent=0 // pred_check_branch
    %4445 = sbr.rel (0) target = $region13
  $region12: #{forward.6} parent=0 // pred_region
    _
  $region13: #{forward.6} parent=0 // pred_fallthru
    _

// kernel: forward.7
$region0: #{forward.7}
  #allocation0 [shape = 'u32[]', space=smem, size = 0x4, offset = 0x4, fixed_abs, tag = 'smem constant byte address 0x4 - core index']
  #allocation1 [shape = 'u32[72,128]{1,0:T(1,128)}', space=vmem, size = 0x9000, scoped, tag = 'internal scratch']
  %s0 = inlined_call_operand.vmem [shape: bf16[200,800], index: 0, kind: input, shape index: {}]
  %s1 = inlined_call_operand.vmem [shape: bf16[800,64], index: 1, kind: input, shape index: {}]
  %s2 = inlined_call_operand.vmem [shape: f32[1,64], index: 2, kind: input, shape index: {}]
  %s3 = inlined_call_operand.vmem [shape: bf16[200,64], index: 3, kind: output, shape index: {}]
  %s4 = sld [smem:[#allocation0]]
  $region22: #{forward.7} parent=0
    _
  %s6 = ssub.s32 1, %s4
  %s7 = scalar_select 0, %s6, %s4
  // Predicated region
  $region2: #{forward.7} parent=0 // pred_check
    _
  $region3: #{forward.7} parent=0 // pred_check_branch
    %9 = sbr.rel (0) target = $region5
  $region4: #{forward.7} parent=0 // pred_region
    _
  $region5: #{forward.7} parent=0 // pred_fallthru
    _
  // Predicated region
  $region6: #{forward.7} parent=0 // pred_check
    _
  $region7: #{forward.7} parent=0 // pred_check_branch
    %11 = sbr.rel (0) target = $region9
  $region8: #{forward.7} parent=0 // pred_region
    _
  $region9: #{forward.7} parent=0 // pred_fallthru
    _
  // Predicated region
  $region10: #{forward.7} parent=0 // pred_check
    _
  $region11: #{forward.7} parent=0 // pred_check_branch
    %13 = sbr.rel (0) target = $region13
  $region12: #{forward.7} parent=0 // pred_region
    _
  $region13: #{forward.7} parent=0 // pred_fallthru
    _
  %v15 = vld [vmem:[%s0] sm:$0xff]
  %v16 = vld [vmem:[%s0 + $0x8] sm:$0xff]
  %v17 = vld [vmem:[%s0 + $0x10] sm:$0xff]
  %v18 = vld [vmem:[%s0 + $0x18] sm:$0xf]
  %v19 = vld [vmem:[%s0 + $0x1c] sm:$0xff]
  %v20 = vld [vmem:[%s0 + $0x24] sm:$0xff]
  %v21 = vld [vmem:[%s0 + $0x2c] sm:$0xff]
  %v22 = vld [vmem:[%s0 + $0x34] sm:$0xf]
  %v23 = vld [vmem:[%s0 + $0x38] sm:$0xff]
  %v24 = vld [vmem:[%s0 + $0x40] sm:$0xff]
  %v25 = vld [vmem:[%s0 + $0x48] sm:$0xff]
  %v26 = vld [vmem:[%s0 + $0x50] sm:$0xf]
  %v27 = vld [vmem:[%s0 + $0x54] sm:$0xff]
  %v28 = vld [vmem:[%s0 + $0x5c] sm:$0xff]
  %v29 = vld [vmem:[%s0 + $0x64] sm:$0xff]
  %v30 = vld [vmem:[%s0 + $0x6c] sm:$0xf]
  %v31 = vld [vmem:[%s0 + $0x70] sm:$0xff]
  %v32 = vld [vmem:[%s0 + $0x78] sm:$0xff]
  %v33 = vld [vmem:[%s0 + $0x80] sm:$0xff]
  %v34 = vld [vmem:[%s0 + $0x88] sm:$0xf]
  %v35 = vld [vmem:[%s0 + $0x8c] sm:$0xff]
  %v36 = vld [vmem:[%s0 + $0x94] sm:$0xff]
  %v37 = vld [vmem:[%s0 + $0x9c] sm:$0xff]
  %v38 = vld [vmem:[%s0 + $0xa4] sm:$0xf]
  %v39 = vld [vmem:[%s0 + $0xa8] sm:$0xff]
  %v40 = vld [vmem:[%s0 + $0xb0] sm:$0xff]
  %v41 = vld [vmem:[%s0 + $0xb8] sm:$0xff]
  %v42 = vld [vmem:[%s0 + $0xc0] sm:$0xf]
  %v43 = vld [vmem:[%s0 + $0xc4] sm:$0xff]
  %v44 = vld [vmem:[%s0 + $0xcc] sm:$0xff]
  %v45 = vld [vmem:[%s0 + $0xd4] sm:$0xff]
  %v46 = vld [vmem:[%s0 + $0xdc] sm:$0xf]
  %v47 = vld [vmem:[%s0 + $0xe0] sm:$0xff]
  %v48 = vld [vmem:[%s0 + $0xe8] sm:$0xff]
  %v49 = vld [vmem:[%s0 + $0xf0] sm:$0xff]
  %v50 = vld [vmem:[%s0 + $0xf8] sm:$0xf]
  %v51 = vld [vmem:[%s0 + $0xfc] sm:$0xff]
  %v52 = vld [vmem:[%s0 + $0x104] sm:$0xff]
  %v53 = vld [vmem:[%s0 + $0x10c] sm:$0xff]
  %v54 = vld [vmem:[%s0 + $0x114] sm:$0xf]
  %v55 = vld [vmem:[%s0 + $0x118] sm:$0xff]
  %v56 = vld [vmem:[%s0 + $0x120] sm:$0xff]
  %v57 = vld [vmem:[%s0 + $0x128] sm:$0xff]
  %v58 = vld [vmem:[%s0 + $0x130] sm:$0xf]
  %v59 = vld [vmem:[%s0 + $0x134] sm:$0xff]
  %v60 = vld [vmem:[%s0 + $0x13c] sm:$0xff]
  %v61 = vld [vmem:[%s0 + $0x144] sm:$0xff]
  %v62 = vld [vmem:[%s0 + $0x14c] sm:$0xf]
  %v63 = vld [vmem:[%s0 + $0x150] sm:$0xff]
  %v64 = vld [vmem:[%s0 + $0x158] sm:$0xff]
  %v65 = vld [vmem:[%s0 + $0x160] sm:$0xff]
  %v66 = vld [vmem:[%s0 + $0x168] sm:$0xf]
  %v67 = vld [vmem:[%s0 + $0x16c] sm:$0xff]
  %v68 = vld [vmem:[%s0 + $0x174] sm:$0xff]
  %v69 = vld [vmem:[%s0 + $0x17c] sm:$0xff]
  %v70 = vld [vmem:[%s0 + $0x184] sm:$0xf]
  %v71 = vld [vmem:[%s0 + $0x188] sm:$0xff]
  %v72 = vld [vmem:[%s0 + $0x190] sm:$0xff]
  %v73 = vld [vmem:[%s0 + $0x198] sm:$0xff]
  %v74 = vld [vmem:[%s0 + $0x1a0] sm:$0xf]
  %v75 = vld [vmem:[%s0 + $0x1a4] sm:$0xff]
  %v76 = vld [vmem:[%s0 + $0x1ac] sm:$0xff]
  %v77 = vld [vmem:[%s0 + $0x1b4] sm:$0xff]
  %v78 = vld [vmem:[%s0 + $0x1bc] sm:$0xf]
  %v79 = vld [vmem:[%s0 + $0x1c0] sm:$0xff]
  %v80 = vld [vmem:[%s0 + $0x1c8] sm:$0xff]
  %v81 = vld [vmem:[%s0 + $0x1d0] sm:$0xff]
  %v82 = vld [vmem:[%s0 + $0x1d8] sm:$0xf]
  %v83 = vld [vmem:[%s0 + $0x1dc] sm:$0xff]
  %v84 = vld [vmem:[%s0 + $0x1e4] sm:$0xff]
  %v85 = vld [vmem:[%s0 + $0x1ec] sm:$0xff]
  %v86 = vld [vmem:[%s0 + $0x1f4] sm:$0xf]
  %v87 = vld [vmem:[%s0 + $0x1f8] sm:$0xff]
  %v88 = vld [vmem:[%s0 + $0x200] sm:$0xff]
  %v89 = vld [vmem:[%s0 + $0x208] sm:$0xff]
  %v90 = vld [vmem:[%s0 + $0x210] sm:$0xf]
  %v91 = vld [vmem:[%s0 + $0x214] sm:$0xff]
  %v92 = vld [vmem:[%s0 + $0x21c] sm:$0xff]
  %v93 = vld [vmem:[%s0 + $0x224] sm:$0xff]
  %v94 = vld [vmem:[%s0 + $0x22c] sm:$0xf]
  %v95 = vld [vmem:[%s0 + $0x230] sm:$0xff]
  %v96 = vld [vmem:[%s0 + $0x238] sm:$0xff]
  %v97 = vld [vmem:[%s0 + $0x240] sm:$0xff]
  %v98 = vld [vmem:[%s0 + $0x248] sm:$0xf]
  %v99 = vld [vmem:[%s0 + $0x24c] sm:$0xff]
  %v100 = vld [vmem:[%s0 + $0x254] sm:$0xff]
  %v101 = vld [vmem:[%s0 + $0x25c] sm:$0xff]
  %v102 = vld [vmem:[%s0 + $0x264] sm:$0xf]
  %v103 = vld [vmem:[%s0 + $0x268] sm:$0xff]
  %v104 = vld [vmem:[%s0 + $0x270] sm:$0xff]
  %v105 = vld [vmem:[%s0 + $0x278] sm:$0xff]
  %v106 = vld [vmem:[%s0 + $0x280] sm:$0xf]
  %v107 = vld [vmem:[%s0 + $0x284] sm:$0xff]
  %v108 = vld [vmem:[%s0 + $0x28c] sm:$0xff]
  %v109 = vld [vmem:[%s0 + $0x294] sm:$0xff]
  %v110 = vld [vmem:[%s0 + $0x29c] sm:$0xf]
  %v111 = vld [vmem:[%s0 + $0x2a0] sm:$0xff]
  %v112 = vld [vmem:[%s0 + $0x2a8] sm:$0xff]
  %v113 = vld [vmem:[%s0 + $0x2b0] sm:$0xff]
  %v114 = vld [vmem:[%s0 + $0x2b8] sm:$0xf]
  %v115 = vld [vmem:[%s1] sm:$0xf]
  %v116 = vld [vmem:[%s1 + $0x4] sm:$0xf]
  %v117 = vld [vmem:[%s1 + $0x8] sm:$0xf]
  %v118 = vld [vmem:[%s1 + $0xc] sm:$0xf]
  %v119 = vld [vmem:[%s1 + $0x10] sm:$0xf]
  %v120 = vld [vmem:[%s1 + $0x14] sm:$0xf]
  %v121 = vld [vmem:[%s1 + $0x18] sm:$0xf]
  %v122 = vld [vmem:[%s1 + $0x1c] sm:$0xf]
  %v123 = vld [vmem:[%s1 + $0x20] sm:$0xf]
  %v124 = vld [vmem:[%s1 + $0x24] sm:$0xf]
  %v125 = vld [vmem:[%s1 + $0x28] sm:$0xf]
  %v126 = vld [vmem:[%s1 + $0x2c] sm:$0xf]
  %v127 = vld [vmem:[%s1 + $0x30] sm:$0xf]
  %v128 = vld [vmem:[%s1 + $0x34] sm:$0xf]
  %v129 = vld [vmem:[%s1 + $0x38] sm:$0xf]
  %v130 = vld [vmem:[%s1 + $0x3c] sm:$0xf]
  %v131 = vld [vmem:[%s1 + $0x40] sm:$0xf]
  %v132 = vld [vmem:[%s1 + $0x44] sm:$0xf]
  %v133 = vld [vmem:[%s1 + $0x48] sm:$0xf]
  %v134 = vld [vmem:[%s1 + $0x4c] sm:$0xf]
  %v135 = vld [vmem:[%s1 + $0x50] sm:$0xf]
  %v136 = vld [vmem:[%s1 + $0x54] sm:$0xf]
  %v137 = vld [vmem:[%s1 + $0x58] sm:$0xf]
  %v138 = vld [vmem:[%s1 + $0x5c] sm:$0xf]
  %v139 = vld [vmem:[%s1 + $0x60] sm:$0xf]
  %v140 = vld [vmem:[%s1 + $0x64] sm:$0xf]
  %v141 = vld [vmem:[%s1 + $0x68] sm:$0xf]
  %v142 = vld [vmem:[%s1 + $0x6c] sm:$0xf]
  %v143 = vld [vmem:[%s1 + $0x70] sm:$0xf]
  %v144 = vld [vmem:[%s1 + $0x74] sm:$0xf]
  %v145 = vld [vmem:[%s1 + $0x78] sm:$0xf]
  %v146 = vld [vmem:[%s1 + $0x7c] sm:$0xf]
  %v147 = vld [vmem:[%s1 + $0x80] sm:$0xf]
  %v148 = vld [vmem:[%s1 + $0x84] sm:$0xf]
  %v149 = vld [vmem:[%s1 + $0x88] sm:$0xf]
  %v150 = vld [vmem:[%s1 + $0x8c] sm:$0xf]
  %v151 = vld [vmem:[%s1 + $0x90] sm:$0xf]
  %v152 = vld [vmem:[%s1 + $0x94] sm:$0xf]
  %v153 = vld [vmem:[%s1 + $0x98] sm:$0xf]
  %v154 = vld [vmem:[%s1 + $0x9c] sm:$0xf]
  %v155 = vld [vmem:[%s1 + $0xa0] sm:$0xf]
  %v156 = vld [vmem:[%s1 + $0xa4] sm:$0xf]
  %v157 = vld [vmem:[%s1 + $0xa8] sm:$0xf]
  %v158 = vld [vmem:[%s1 + $0xac] sm:$0xf]
  %v159 = vld [vmem:[%s1 + $0xb0] sm:$0xf]
  %v160 = vld [vmem:[%s1 + $0xb4] sm:$0xf]
  %v161 = vld [vmem:[%s1 + $0xb8] sm:$0xf]
  %v162 = vld [vmem:[%s1 + $0xbc] sm:$0xf]
  %v163 = vld [vmem:[%s1 + $0xc0] sm:$0xf]
  %v164 = vld [vmem:[%s1 + $0xc4] sm:$0xf]
  %v165 = vld [vmem:[%s1 + $0xc8] sm:$0xf]
  %v166 = vld [vmem:[%s1 + $0xcc] sm:$0xf]
  %v167 = vld [vmem:[%s1 + $0xd0] sm:$0xf]
  %v168 = vld [vmem:[%s1 + $0xd4] sm:$0xf]
  %v169 = vld [vmem:[%s1 + $0xd8] sm:$0xf]
  %v170 = vld [vmem:[%s1 + $0xdc] sm:$0xf]
  %v171 = vld [vmem:[%s1 + $0xe0] sm:$0xf]
  %v172 = vld [vmem:[%s1 + $0xe4] sm:$0xf]
  %v173 = vld [vmem:[%s1 + $0xe8] sm:$0xf]
  %v174 = vld [vmem:[%s1 + $0xec] sm:$0xf]
  %v175 = vld [vmem:[%s1 + $0xf0] sm:$0xf]
  %v176 = vld [vmem:[%s1 + $0xf4] sm:$0xf]
  %v177 = vld [vmem:[%s1 + $0xf8] sm:$0xf]
  %v178 = vld [vmem:[%s1 + $0xfc] sm:$0xf]
  %v179 = vld [vmem:[%s1 + $0x100] sm:$0xf]
  %v180 = vld [vmem:[%s1 + $0x104] sm:$0xf]
  %v181 = vld [vmem:[%s1 + $0x108] sm:$0xf]
  %v182 = vld [vmem:[%s1 + $0x10c] sm:$0xf]
  %v183 = vld [vmem:[%s1 + $0x110] sm:$0xf]
  %v184 = vld [vmem:[%s1 + $0x114] sm:$0xf]
  %v185 = vld [vmem:[%s1 + $0x118] sm:$0xf]
  %v186 = vld [vmem:[%s1 + $0x11c] sm:$0xf]
  %v187 = vld [vmem:[%s1 + $0x120] sm:$0xf]
  %v188 = vld [vmem:[%s1 + $0x124] sm:$0xf]
  %v189 = vld [vmem:[%s1 + $0x128] sm:$0xf]
  %v190 = vld [vmem:[%s1 + $0x12c] sm:$0xf]
  %v191 = vld [vmem:[%s1 + $0x130] sm:$0xf]
  %v192 = vld [vmem:[%s1 + $0x134] sm:$0xf]
  %v193 = vld [vmem:[%s1 + $0x138] sm:$0xf]
  %v194 = vld [vmem:[%s1 + $0x13c] sm:$0xf]
  %v195 = vld [vmem:[%s1 + $0x140] sm:$0xf]
  %v196 = vld [vmem:[%s1 + $0x144] sm:$0xf]
  %v197 = vld [vmem:[%s1 + $0x148] sm:$0xf]
  %v198 = vld [vmem:[%s1 + $0x14c] sm:$0xf]
  %v199 = vld [vmem:[%s1 + $0x150] sm:$0xf]
  %v200 = vld [vmem:[%s1 + $0x154] sm:$0xf]
  %v201 = vld [vmem:[%s1 + $0x158] sm:$0xf]
  %v202 = vld [vmem:[%s1 + $0x15c] sm:$0xf]
  %v203 = vld [vmem:[%s1 + $0x160] sm:$0xf]
  %v204 = vld [vmem:[%s1 + $0x164] sm:$0xf]
  %v205 = vld [vmem:[%s1 + $0x168] sm:$0xf]
  %v206 = vld [vmem:[%s1 + $0x16c] sm:$0xf]
  %v207 = vld [vmem:[%s1 + $0x170] sm:$0xf]
  %v208 = vld [vmem:[%s1 + $0x174] sm:$0xf]
  %v209 = vld [vmem:[%s1 + $0x178] sm:$0xf]
  %v210 = vld [vmem:[%s1 + $0x17c] sm:$0xf]
  %v211 = vld [vmem:[%s1 + $0x180] sm:$0xf]
  %v212 = vld [vmem:[%s1 + $0x184] sm:$0xf]
  %v213 = vld [vmem:[%s1 + $0x188] sm:$0xf]
  %v214 = vld [vmem:[%s1 + $0x18c] sm:$0xf]
  %v215 = vld [vmem:[%s2] sm:$0x1]
  %v217 = vperm.slane %v215, 0
  %v319 = vunpack.c.l.b16 %v15
  %v320 = vunpack.c.h.b16 %v15
  %v321 = vunpack.c.l.b16 %v16
  %v322 = vunpack.c.h.b16 %v16
  %v323 = vunpack.c.l.b16 %v17
  %v324 = vunpack.c.h.b16 %v17
  %v325 = vunpack.c.l.b16 %v18
  %v326 = vunpack.c.l.b16 %v19
  %v327 = vunpack.c.h.b16 %v19
  %v328 = vunpack.c.l.b16 %v20
  %v329 = vunpack.c.h.b16 %v20
  %v330 = vunpack.c.l.b16 %v21
  %v331 = vunpack.c.h.b16 %v21
  %v332 = vunpack.c.l.b16 %v22
  %v333 = vunpack.c.l.b16 %v23
  %v334 = vunpack.c.h.b16 %v23
  %v335 = vunpack.c.l.b16 %v24
  %v336 = vunpack.c.h.b16 %v24
  %v337 = vunpack.c.l.b16 %v25
  %v338 = vunpack.c.h.b16 %v25
  %v339 = vunpack.c.l.b16 %v26
  %v340 = vunpack.c.l.b16 %v27
  %v341 = vunpack.c.h.b16 %v27
  %v342 = vunpack.c.l.b16 %v28
  %v343 = vunpack.c.h.b16 %v28
  %v344 = vunpack.c.l.b16 %v29
  %v345 = vunpack.c.h.b16 %v29
  %v346 = vunpack.c.l.b16 %v30
  %v347 = vunpack.c.l.b16 %v31
  %v348 = vunpack.c.h.b16 %v31
  %v349 = vunpack.c.l.b16 %v32
  %v350 = vunpack.c.h.b16 %v32
  %v351 = vunpack.c.l.b16 %v33
  %v352 = vunpack.c.h.b16 %v33
  %v353 = vunpack.c.l.b16 %v34
  %v354 = vunpack.c.l.b16 %v35
  %v355 = vunpack.c.h.b16 %v35
  %v356 = vunpack.c.l.b16 %v36
  %v357 = vunpack.c.h.b16 %v36
  %v358 = vunpack.c.l.b16 %v37
  %v359 = vunpack.c.h.b16 %v37
  %v360 = vunpack.c.l.b16 %v38
  %v361 = vunpack.c.l.b16 %v39
  %v362 = vunpack.c.h.b16 %v39
  %v363 = vunpack.c.l.b16 %v40
  %v364 = vunpack.c.h.b16 %v40
  %v365 = vunpack.c.l.b16 %v41
  %v366 = vunpack.c.h.b16 %v41
  %v367 = vunpack.c.l.b16 %v42
  %v368 = vunpack.c.l.b16 %v43
  %v369 = vunpack.c.h.b16 %v43
  %v370 = vunpack.c.l.b16 %v44
  %v371 = vunpack.c.h.b16 %v44
  %v372 = vunpack.c.l.b16 %v45
  %v373 = vunpack.c.h.b16 %v45
  %v374 = vunpack.c.l.b16 %v46
  %v375 = vunpack.c.l.b16 %v47
  %v376 = vunpack.c.h.b16 %v47
  %v377 = vunpack.c.l.b16 %v48
  %v378 = vunpack.c.h.b16 %v48
  %v379 = vunpack.c.l.b16 %v49
  %v380 = vunpack.c.h.b16 %v49
  %v381 = vunpack.c.l.b16 %v50
  %v382 = vunpack.c.l.b16 %v51
  %v383 = vunpack.c.h.b16 %v51
  %v384 = vunpack.c.l.b16 %v52
  %v385 = vunpack.c.h.b16 %v52
  %v386 = vunpack.c.l.b16 %v53
  %v387 = vunpack.c.h.b16 %v53
  %v388 = vunpack.c.l.b16 %v54
  %v389 = vunpack.c.l.b16 %v55
  %v390 = vunpack.c.h.b16 %v55
  %v391 = vunpack.c.l.b16 %v56
  %v392 = vunpack.c.h.b16 %v56
  %v393 = vunpack.c.l.b16 %v57
  %v394 = vunpack.c.h.b16 %v57
  %v395 = vunpack.c.l.b16 %v58
  %v396 = vunpack.c.l.b16 %v59
  %v397 = vunpack.c.h.b16 %v59
  %v398 = vunpack.c.l.b16 %v60
  %v399 = vunpack.c.h.b16 %v60
  %v400 = vunpack.c.l.b16 %v61
  %v401 = vunpack.c.h.b16 %v61
  %v402 = vunpack.c.l.b16 %v62
  %v403 = vunpack.c.l.b16 %v63
  %v404 = vunpack.c.h.b16 %v63
  %v405 = vunpack.c.l.b16 %v64
  %v406 = vunpack.c.h.b16 %v64
  %v407 = vunpack.c.l.b16 %v65
  %v408 = vunpack.c.h.b16 %v65
  %v409 = vunpack.c.l.b16 %v66
  %v410 = vunpack.c.l.b16 %v67
  %v411 = vunpack.c.h.b16 %v67
  %v412 = vunpack.c.l.b16 %v68
  %v413 = vunpack.c.h.b16 %v68
  %v414 = vunpack.c.l.b16 %v69
  %v415 = vunpack.c.h.b16 %v69
  %v416 = vunpack.c.l.b16 %v70
  %v417 = vunpack.c.l.b16 %v71
  %v418 = vunpack.c.h.b16 %v71
  %v419 = vunpack.c.l.b16 %v72
  %v420 = vunpack.c.h.b16 %v72
  %v421 = vunpack.c.l.b16 %v73
  %v422 = vunpack.c.h.b16 %v73
  %v423 = vunpack.c.l.b16 %v74
  %v424 = vunpack.c.l.b16 %v75
  %v425 = vunpack.c.h.b16 %v75
  %v426 = vunpack.c.l.b16 %v76
  %v427 = vunpack.c.h.b16 %v76
  %v428 = vunpack.c.l.b16 %v77
  %v429 = vunpack.c.h.b16 %v77
  %v430 = vunpack.c.l.b16 %v78
  %v431 = vunpack.c.l.b16 %v79
  %v432 = vunpack.c.h.b16 %v79
  %v433 = vunpack.c.l.b16 %v80
  %v434 = vunpack.c.h.b16 %v80
  %v435 = vunpack.c.l.b16 %v81
  %v436 = vunpack.c.h.b16 %v81
  %v437 = vunpack.c.l.b16 %v82
  %v438 = vunpack.c.l.b16 %v83
  %v439 = vunpack.c.h.b16 %v83
  %v440 = vunpack.c.l.b16 %v84
  %v441 = vunpack.c.h.b16 %v84
  %v442 = vunpack.c.l.b16 %v85
  %v443 = vunpack.c.h.b16 %v85
  %v444 = vunpack.c.l.b16 %v86
  %v445 = vunpack.c.l.b16 %v87
  %v446 = vunpack.c.h.b16 %v87
  %v447 = vunpack.c.l.b16 %v88
  %v448 = vunpack.c.h.b16 %v88
  %v449 = vunpack.c.l.b16 %v89
  %v450 = vunpack.c.h.b16 %v89
  %v451 = vunpack.c.l.b16 %v90
  %v452 = vunpack.c.l.b16 %v91
  %v453 = vunpack.c.h.b16 %v91
  %v454 = vunpack.c.l.b16 %v92
  %v455 = vunpack.c.h.b16 %v92
  %v456 = vunpack.c.l.b16 %v93
  %v457 = vunpack.c.h.b16 %v93
  %v458 = vunpack.c.l.b16 %v94
  %v459 = vunpack.c.l.b16 %v95
  %v460 = vunpack.c.h.b16 %v95
  %v461 = vunpack.c.l.b16 %v96
  %v462 = vunpack.c.h.b16 %v96
  %v463 = vunpack.c.l.b16 %v97
  %v464 = vunpack.c.h.b16 %v97
  %v465 = vunpack.c.l.b16 %v98
  %v466 = vunpack.c.l.b16 %v99
  %v467 = vunpack.c.h.b16 %v99
  %v468 = vunpack.c.l.b16 %v100
  %v469 = vunpack.c.h.b16 %v100
  %v470 = vunpack.c.l.b16 %v101
  %v471 = vunpack.c.h.b16 %v101
  %v472 = vunpack.c.l.b16 %v102
  %v473 = vunpack.c.l.b16 %v103
  %v474 = vunpack.c.h.b16 %v103
  %v475 = vunpack.c.l.b16 %v104
  %v476 = vunpack.c.h.b16 %v104
  %v477 = vunpack.c.l.b16 %v105
  %v478 = vunpack.c.h.b16 %v105
  %v479 = vunpack.c.l.b16 %v106
  %v480 = vunpack.c.l.b16 %v107
  %v481 = vunpack.c.h.b16 %v107
  %v482 = vunpack.c.l.b16 %v108
  %v483 = vunpack.c.h.b16 %v108
  %v484 = vunpack.c.l.b16 %v109
  %v485 = vunpack.c.h.b16 %v109
  %v486 = vunpack.c.l.b16 %v110
  %v487 = vunpack.c.l.b16 %v111
  %v488 = vunpack.c.h.b16 %v111
  %v489 = vunpack.c.l.b16 %v112
  %v490 = vunpack.c.h.b16 %v112
  %v491 = vunpack.c.l.b16 %v113
  %v492 = vunpack.c.h.b16 %v113
  %v493 = vunpack.c.l.b16 %v114
  %v494 = vpack.c.b16 %v326, %v319
  %v495 = vpack.c.b16 %v327, %v320
  %v496 = vpack.c.b16 %v328, %v321
  %v497 = vpack.c.b16 %v329, %v322
  %v498 = vpack.c.b16 %v330, %v323
  %v499 = vpack.c.b16 %v331, %v324
  %v500 = vpack.c.b16 %v332, %v325
  %v501 = vpack.c.b16 %v340, %v333
  %v502 = vpack.c.b16 %v341, %v334
  %v503 = vpack.c.b16 %v342, %v335
  %v504 = vpack.c.b16 %v343, %v336
  %v505 = vpack.c.b16 %v344, %v337
  %v506 = vpack.c.b16 %v345, %v338
  %v507 = vpack.c.b16 %v346, %v339
  %v508 = vpack.c.b16 %v354, %v347
  %v509 = vpack.c.b16 %v355, %v348
  %v510 = vpack.c.b16 %v356, %v349
  %v511 = vpack.c.b16 %v357, %v350
  %v512 = vpack.c.b16 %v358, %v351
  %v513 = vpack.c.b16 %v359, %v352
  %v514 = vpack.c.b16 %v360, %v353
  %v515 = vpack.c.b16 %v368, %v361
  %v516 = vpack.c.b16 %v369, %v362
  %v517 = vpack.c.b16 %v370, %v363
  %v518 = vpack.c.b16 %v371, %v364
  %v519 = vpack.c.b16 %v372, %v365
  %v520 = vpack.c.b16 %v373, %v366
  %v521 = vpack.c.b16 %v374, %v367
  %v522 = vpack.c.b16 %v382, %v375
  %v523 = vpack.c.b16 %v383, %v376
  %v524 = vpack.c.b16 %v384, %v377
  %v525 = vpack.c.b16 %v385, %v378
  %v526 = vpack.c.b16 %v386, %v379
  %v527 = vpack.c.b16 %v387, %v380
  %v528 = vpack.c.b16 %v388, %v381
  %v529 = vpack.c.b16 %v396, %v389
  %v530 = vpack.c.b16 %v397, %v390
  %v531 = vpack.c.b16 %v398, %v391
  %v532 = vpack.c.b16 %v399, %v392
  %v533 = vpack.c.b16 %v400, %v393
  %v534 = vpack.c.b16 %v401, %v394
  %v535 = vpack.c.b16 %v402, %v395
  %v536 = vpack.c.b16 %v410, %v403
  %v537 = vpack.c.b16 %v411, %v404
  %v538 = vpack.c.b16 %v412, %v405
  %v539 = vpack.c.b16 %v413, %v406
  %v540 = vpack.c.b16 %v414, %v407
  %v541 = vpack.c.b16 %v415, %v408
  %v542 = vpack.c.b16 %v416, %v409
  %v543 = vpack.c.b16 %v424, %v417
  %v544 = vpack.c.b16 %v425, %v418
  %v545 = vpack.c.b16 %v426, %v419
  %v546 = vpack.c.b16 %v427, %v420
  %v547 = vpack.c.b16 %v428, %v421
  %v548 = vpack.c.b16 %v429, %v422
  %v549 = vpack.c.b16 %v430, %v423
  %v550 = vpack.c.b16 %v438, %v431
  %v551 = vpack.c.b16 %v439, %v432
  %v552 = vpack.c.b16 %v440, %v433
  %v553 = vpack.c.b16 %v441, %v434
  %v554 = vpack.c.b16 %v442, %v435
  %v555 = vpack.c.b16 %v443, %v436
  %v556 = vpack.c.b16 %v444, %v437
  %v557 = vpack.c.b16 %v452, %v445
  %v558 = vpack.c.b16 %v453, %v446
  %v559 = vpack.c.b16 %v454, %v447
  %v560 = vpack.c.b16 %v455, %v448
  %v561 = vpack.c.b16 %v456, %v449
  %v562 = vpack.c.b16 %v457, %v450
  %v563 = vpack.c.b16 %v458, %v451
  %v564 = vpack.c.b16 %v466, %v459
  %v565 = vpack.c.b16 %v467, %v460
  %v566 = vpack.c.b16 %v468, %v461
  %v567 = vpack.c.b16 %v469, %v462
  %v568 = vpack.c.b16 %v470, %v463
  %v569 = vpack.c.b16 %v471, %v464
  %v570 = vpack.c.b16 %v472, %v465
  %v571 = vpack.c.b16 %v480, %v473
  %v572 = vpack.c.b16 %v481, %v474
  %v573 = vpack.c.b16 %v482, %v475
  %v574 = vpack.c.b16 %v483, %v476
  %v575 = vpack.c.b16 %v484, %v477
  %v576 = vpack.c.b16 %v485, %v478
  %v577 = vpack.c.b16 %v486, %v479
  %v578 = vpack.c.b16 %v487, %v487
  %v579 = vpack.c.b16 %v488, %v488
  %v580 = vpack.c.b16 %v489, %v489
  %v581 = vpack.c.b16 %v490, %v490
  %v582 = vpack.c.b16 %v491, %v491
  %v583 = vpack.c.b16 %v492, %v492
  %v584 = vpack.c.b16 %v493, %v493
  %v763 = vunpack.c.l.b16 %v115
  %v764 = vunpack.c.l.b16 %v116
  %v765 = vunpack.c.l.b16 %v117
  %v766 = vunpack.c.l.b16 %v118
  %v767 = vunpack.c.l.b16 %v119
  %v768 = vunpack.c.l.b16 %v120
  %v769 = vunpack.c.l.b16 %v121
  %v770 = vunpack.c.l.b16 %v122
  %v771 = vunpack.c.l.b16 %v123
  %v772 = vunpack.c.l.b16 %v124
  %v773 = vunpack.c.l.b16 %v125
  %v774 = vunpack.c.l.b16 %v126
  %v775 = vunpack.c.l.b16 %v127
  %v776 = vunpack.c.l.b16 %v128
  %v777 = vunpack.c.l.b16 %v129
  %v778 = vunpack.c.l.b16 %v130
  %v779 = vunpack.c.l.b16 %v131
  %v780 = vunpack.c.l.b16 %v132
  %v781 = vunpack.c.l.b16 %v133
  %v782 = vunpack.c.l.b16 %v134
  %v783 = vunpack.c.l.b16 %v135
  %v784 = vunpack.c.l.b16 %v136
  %v785 = vunpack.c.l.b16 %v137
  %v786 = vunpack.c.l.b16 %v138
  %v787 = vunpack.c.l.b16 %v139
  %v788 = vunpack.c.l.b16 %v140
  %v789 = vunpack.c.l.b16 %v141
  %v790 = vunpack.c.l.b16 %v142
  %v791 = vunpack.c.l.b16 %v143
  %v792 = vunpack.c.l.b16 %v144
  %v793 = vunpack.c.l.b16 %v145
  %v794 = vunpack.c.l.b16 %v146
  %v795 = vunpack.c.l.b16 %v147
  %v796 = vunpack.c.l.b16 %v148
  %v797 = vunpack.c.l.b16 %v149
  %v798 = vunpack.c.l.b16 %v150
  %v799 = vunpack.c.l.b16 %v151
  %v800 = vunpack.c.l.b16 %v152
  %v801 = vunpack.c.l.b16 %v153
  %v802 = vunpack.c.l.b16 %v154
  %v803 = vunpack.c.l.b16 %v155
  %v804 = vunpack.c.l.b16 %v156
  %v805 = vunpack.c.l.b16 %v157
  %v806 = vunpack.c.l.b16 %v158
  %v807 = vunpack.c.l.b16 %v159
  %v808 = vunpack.c.l.b16 %v160
  %v809 = vunpack.c.l.b16 %v161
  %v810 = vunpack.c.l.b16 %v162
  %v811 = vunpack.c.l.b16 %v163
  %v812 = vunpack.c.l.b16 %v164
  %v813 = vunpack.c.l.b16 %v165
  %v814 = vunpack.c.l.b16 %v166
  %v815 = vunpack.c.l.b16 %v167
  %v816 = vunpack.c.l.b16 %v168
  %v817 = vunpack.c.l.b16 %v169
  %v818 = vunpack.c.l.b16 %v170
  %v819 = vunpack.c.l.b16 %v171
  %v820 = vunpack.c.l.b16 %v172
  %v821 = vunpack.c.l.b16 %v173
  %v822 = vunpack.c.l.b16 %v174
  %v823 = vunpack.c.l.b16 %v175
  %v824 = vunpack.c.l.b16 %v176
  %v825 = vunpack.c.l.b16 %v177
  %v826 = vunpack.c.l.b16 %v178
  %v827 = vunpack.c.l.b16 %v179
  %v828 = vunpack.c.l.b16 %v180
  %v829 = vunpack.c.l.b16 %v181
  %v830 = vunpack.c.l.b16 %v182
  %v831 = vunpack.c.l.b16 %v183
  %v832 = vunpack.c.l.b16 %v184
  %v833 = vunpack.c.l.b16 %v185
  %v834 = vunpack.c.l.b16 %v186
  %v835 = vunpack.c.l.b16 %v187
  %v836 = vunpack.c.l.b16 %v188
  %v837 = vunpack.c.l.b16 %v189
  %v838 = vunpack.c.l.b16 %v190
  %v839 = vunpack.c.l.b16 %v191
  %v840 = vunpack.c.l.b16 %v192
  %v841 = vunpack.c.l.b16 %v193
  %v842 = vunpack.c.l.b16 %v194
  %v843 = vunpack.c.l.b16 %v195
  %v844 = vunpack.c.l.b16 %v196
  %v845 = vunpack.c.l.b16 %v197
  %v846 = vunpack.c.l.b16 %v198
  %v847 = vunpack.c.l.b16 %v199
  %v848 = vunpack.c.l.b16 %v200
  %v849 = vunpack.c.l.b16 %v201
  %v850 = vunpack.c.l.b16 %v202
  %v851 = vunpack.c.l.b16 %v203
  %v852 = vunpack.c.l.b16 %v204
  %v853 = vunpack.c.l.b16 %v205
  %v854 = vunpack.c.l.b16 %v206
  %v855 = vunpack.c.l.b16 %v207
  %v856 = vunpack.c.l.b16 %v208
  %v857 = vunpack.c.l.b16 %v209
  %v858 = vunpack.c.l.b16 %v210
  %v859 = vunpack.c.l.b16 %v211
  %v860 = vunpack.c.l.b16 %v212
  %v861 = vunpack.c.l.b16 %v213
  %v862 = vunpack.c.l.b16 %v214
  %v863 = vpack.c.b16 %v764, %v763
  %v864 = vpack.c.b16 %v766, %v765
  %v865 = vpack.c.b16 %v768, %v767
  %v866 = vpack.c.b16 %v770, %v769
  %v867 = vpack.c.b16 %v772, %v771
  %v868 = vpack.c.b16 %v774, %v773
  %v869 = vpack.c.b16 %v776, %v775
  %v870 = vpack.c.b16 %v778, %v777
  %v871 = vpack.c.b16 %v780, %v779
  %v872 = vpack.c.b16 %v782, %v781
  %v873 = vpack.c.b16 %v784, %v783
  %v874 = vpack.c.b16 %v786, %v785
  %v875 = vpack.c.b16 %v788, %v787
  %v876 = vpack.c.b16 %v790, %v789
  %v877 = vpack.c.b16 %v792, %v791
  %v878 = vpack.c.b16 %v794, %v793
  %v879 = vpack.c.b16 %v796, %v795
  %v880 = vpack.c.b16 %v798, %v797
  %v881 = vpack.c.b16 %v800, %v799
  %v882 = vpack.c.b16 %v802, %v801
  %v883 = vpack.c.b16 %v804, %v803
  %v884 = vpack.c.b16 %v806, %v805
  %v885 = vpack.c.b16 %v808, %v807
  %v886 = vpack.c.b16 %v810, %v809
  %v887 = vpack.c.b16 %v812, %v811
  %v888 = vpack.c.b16 %v814, %v813
  %v889 = vpack.c.b16 %v816, %v815
  %v890 = vpack.c.b16 %v818, %v817
  %v891 = vpack.c.b16 %v820, %v819
  %v892 = vpack.c.b16 %v822, %v821
  %v893 = vpack.c.b16 %v824, %v823
  %v894 = vpack.c.b16 %v826, %v825
  %v895 = vpack.c.b16 %v828, %v827
  %v896 = vpack.c.b16 %v830, %v829
  %v897 = vpack.c.b16 %v832, %v831
  %v898 = vpack.c.b16 %v834, %v833
  %v899 = vpack.c.b16 %v836, %v835
  %v900 = vpack.c.b16 %v838, %v837
  %v901 = vpack.c.b16 %v840, %v839
  %v902 = vpack.c.b16 %v842, %v841
  %v903 = vpack.c.b16 %v844, %v843
  %v904 = vpack.c.b16 %v846, %v845
  %v905 = vpack.c.b16 %v848, %v847
  %v906 = vpack.c.b16 %v850, %v849
  %v907 = vpack.c.b16 %v852, %v851
  %v908 = vpack.c.b16 %v854, %v853
  %v909 = vpack.c.b16 %v856, %v855
  %v910 = vpack.c.b16 %v858, %v857
  %v911 = vpack.c.b16 %v860, %v859
  %v912 = vpack.c.b16 %v862, %v861
  %vm963 = vcmask 261120
  %v965 = vsel %vm963, %v500, 0
  %v968 = vsel %vm963, %v507, 0
  %v971 = vsel %vm963, %v514, 0
  %v974 = vsel %vm963, %v521, 0
  %v977 = vsel %vm963, %v528, 0
  %v980 = vsel %vm963, %v535, 0
  %v983 = vsel %vm963, %v542, 0
  %v986 = vsel %vm963, %v549, 0
  %v989 = vsel %vm963, %v556, 0
  %v992 = vsel %vm963, %v563, 0
  %v995 = vsel %vm963, %v570, 0
  %v998 = vsel %vm963, %v577, 0
  %v1001 = vsel %vm963, %v584, 0
  %1003 = vmatpush.bf16.msra.mxu0 %v870
  %1004 = vmatpush.bf16.msra.mxu0 %v869
  %1005 = vmatpush.bf16.msra.mxu0 %v868
  %1006 = vmatpush.bf16.msra.mxu0 %v867
  %1007 = vmatpush.bf16.msra.mxu0 %v866
  %1008 = vmatpush.bf16.msra.mxu0 %v865
  %1009 = vmatpush.bf16.msra.mxu0 %v864
  %1010 = vmatpush.bf16.msra.mxu0 %v863
  %1011 = vmatmul.bf16.gmra.mxu0 %v494
  %v1012 = vpop.f32.mrf.mxu0
  %v1013 = vadd.f32 %v217, %v1012
  %v1014 = vpop.f32.mrf.mxu0
  %v1015 = vadd.f32 %v217, %v1014
  %1016 = vmatmul.bf16.gmra.mxu0 %v501
  %v1017 = vpop.f32.mrf.mxu0
  %v1018 = vadd.f32 %v217, %v1017
  %v1019 = vpop.f32.mrf.mxu0
  %v1020 = vadd.f32 %v217, %v1019
  %1021 = vmatmul.bf16.gmra.mxu0 %v508
  %v1022 = vpop.f32.mrf.mxu0
  %v1023 = vadd.f32 %v217, %v1022
  %v1024 = vpop.f32.mrf.mxu0
  %v1025 = vadd.f32 %v217, %v1024
  %1026 = vmatmul.bf16.gmra.mxu0 %v515
  %v1027 = vpop.f32.mrf.mxu0
  %v1028 = vadd.f32 %v217, %v1027
  %v1029 = vpop.f32.mrf.mxu0
  %v1030 = vadd.f32 %v217, %v1029
  %1031 = vmatmul.bf16.gmra.mxu0 %v522
  %v1032 = vpop.f32.mrf.mxu0
  %v1033 = vadd.f32 %v217, %v1032
  %v1034 = vpop.f32.mrf.mxu0
  %v1035 = vadd.f32 %v217, %v1034
  %1036 = vmatmul.bf16.gmra.mxu0 %v529
  %v1037 = vpop.f32.mrf.mxu0
  %v1038 = vadd.f32 %v217, %v1037
  %v1039 = vpop.f32.mrf.mxu0
  %v1040 = vadd.f32 %v217, %v1039
  %1041 = vmatmul.bf16.gmra.mxu0 %v536
  %v1042 = vpop.f32.mrf.mxu0
  %v1043 = vadd.f32 %v217, %v1042
  %v1044 = vpop.f32.mrf.mxu0
  %v1045 = vadd.f32 %v217, %v1044
  %1046 = vmatmul.bf16.gmra.mxu0 %v543
  %v1047 = vpop.f32.mrf.mxu0
  %v1048 = vadd.f32 %v217, %v1047
  %v1049 = vpop.f32.mrf.mxu0
  %v1050 = vadd.f32 %v217, %v1049
  %1051 = vmatmul.bf16.gmra.mxu0 %v550
  %v1052 = vpop.f32.mrf.mxu0
  %v1053 = vadd.f32 %v217, %v1052
  %v1054 = vpop.f32.mrf.mxu0
  %v1055 = vadd.f32 %v217, %v1054
  %1056 = vmatmul.bf16.gmra.mxu0 %v557
  %v1057 = vpop.f32.mrf.mxu0
  %v1058 = vadd.f32 %v217, %v1057
  %v1059 = vpop.f32.mrf.mxu0
  %v1060 = vadd.f32 %v217, %v1059
  %1061 = vmatmul.bf16.gmra.mxu0 %v564
  %v1062 = vpop.f32.mrf.mxu0
  %v1063 = vadd.f32 %v217, %v1062
  %v1064 = vpop.f32.mrf.mxu0
  %v1065 = vadd.f32 %v217, %v1064
  %1066 = vmatmul.bf16.gmra.mxu0 %v571
  %v1067 = vpop.f32.mrf.mxu0
  %v1068 = vadd.f32 %v217, %v1067
  %v1069 = vpop.f32.mrf.mxu0
  %v1070 = vadd.f32 %v217, %v1069
  %1071 = vmatmul.bf16.gmra.mxu0 %v578
  %v1072 = vpop.f32.mrf.mxu0
  %v1073 = vadd.f32 %v217, %v1072
  %v1074 = vpop.f32.mrf.mxu0
  %1075 = vdwg.mxu0
  %1076 = vmatpush.bf16.msra.mxu0 %v878
  %1077 = vmatpush.bf16.msra.mxu0 %v877
  %1078 = vmatpush.bf16.msra.mxu0 %v876
  %1079 = vmatpush.bf16.msra.mxu0 %v875
  %1080 = vmatpush.bf16.msra.mxu0 %v874
  %1081 = vmatpush.bf16.msra.mxu0 %v873
  %1082 = vmatpush.bf16.msra.mxu0 %v872
  %1083 = vmatpush.bf16.msra.mxu0 %v871
  %1084 = vmatmul.bf16.gmra.mxu0 %v495
  %v1085 = vpop.f32.mrf.mxu0
  %v1086 = vadd.f32 %v1013, %v1085
  %v1087 = vpop.f32.mrf.mxu0
  %v1088 = vadd.f32 %v1015, %v1087
  %1089 = vmatmul.bf16.gmra.mxu0 %v502
  %v1090 = vpop.f32.mrf.mxu0
  %v1091 = vadd.f32 %v1018, %v1090
  %v1092 = vpop.f32.mrf.mxu0
  %v1093 = vadd.f32 %v1020, %v1092
  %1094 = vmatmul.bf16.gmra.mxu0 %v509
  %v1095 = vpop.f32.mrf.mxu0
  %v1096 = vadd.f32 %v1023, %v1095
  %v1097 = vpop.f32.mrf.mxu0
  %v1098 = vadd.f32 %v1025, %v1097
  %1099 = vmatmul.bf16.gmra.mxu0 %v516
  %v1100 = vpop.f32.mrf.mxu0
  %v1101 = vadd.f32 %v1028, %v1100
  %v1102 = vpop.f32.mrf.mxu0
  %v1103 = vadd.f32 %v1030, %v1102
  %1104 = vmatmul.bf16.gmra.mxu0 %v523
  %v1105 = vpop.f32.mrf.mxu0
  %v1106 = vadd.f32 %v1033, %v1105
  %v1107 = vpop.f32.mrf.mxu0
  %v1108 = vadd.f32 %v1035, %v1107
  %1109 = vmatmul.bf16.gmra.mxu0 %v530
  %v1110 = vpop.f32.mrf.mxu0
  %v1111 = vadd.f32 %v1038, %v1110
  %v1112 = vpop.f32.mrf.mxu0
  %v1113 = vadd.f32 %v1040, %v1112
  %1114 = vmatmul.bf16.gmra.mxu0 %v537
  %v1115 = vpop.f32.mrf.mxu0
  %v1116 = vadd.f32 %v1043, %v1115
  %v1117 = vpop.f32.mrf.mxu0
  %v1118 = vadd.f32 %v1045, %v1117
  %1119 = vmatmul.bf16.gmra.mxu0 %v544
  %v1120 = vpop.f32.mrf.mxu0
  %v1121 = vadd.f32 %v1048, %v1120
  %v1122 = vpop.f32.mrf.mxu0
  %v1123 = vadd.f32 %v1050, %v1122
  %1124 = vmatmul.bf16.gmra.mxu0 %v551
  %v1125 = vpop.f32.mrf.mxu0
  %v1126 = vadd.f32 %v1053, %v1125
  %v1127 = vpop.f32.mrf.mxu0
  %v1128 = vadd.f32 %v1055, %v1127
  %1129 = vmatmul.bf16.gmra.mxu0 %v558
  %v1130 = vpop.f32.mrf.mxu0
  %v1131 = vadd.f32 %v1058, %v1130
  %v1132 = vpop.f32.mrf.mxu0
  %v1133 = vadd.f32 %v1060, %v1132
  %1134 = vmatmul.bf16.gmra.mxu0 %v565
  %v1135 = vpop.f32.mrf.mxu0
  %v1136 = vadd.f32 %v1063, %v1135
  %v1137 = vpop.f32.mrf.mxu0
  %v1138 = vadd.f32 %v1065, %v1137
  %1139 = vmatmul.bf16.gmra.mxu0 %v572
  %v1140 = vpop.f32.mrf.mxu0
  %v1141 = vadd.f32 %v1068, %v1140
  %v1142 = vpop.f32.mrf.mxu0
  %v1143 = vadd.f32 %v1070, %v1142
  %1144 = vmatmul.bf16.gmra.mxu0 %v579
  %v1145 = vpop.f32.mrf.mxu0
  %v1146 = vadd.f32 %v1073, %v1145
  %v1147 = vpop.f32.mrf.mxu0
  %1148 = vdwg.mxu0
  %1149 = vmatpush.bf16.msra.mxu0 %v886
  %1150 = vmatpush.bf16.msra.mxu0 %v885
  %1151 = vmatpush.bf16.msra.mxu0 %v884
  %1152 = vmatpush.bf16.msra.mxu0 %v883
  %1153 = vmatpush.bf16.msra.mxu0 %v882
  %1154 = vmatpush.bf16.msra.mxu0 %v881
  %1155 = vmatpush.bf16.msra.mxu0 %v880
  %1156 = vmatpush.bf16.msra.mxu0 %v879
  %1157 = vmatmul.bf16.gmra.mxu0 %v496
  %v1158 = vpop.f32.mrf.mxu0
  %v1159 = vadd.f32 %v1086, %v1158
  %v1160 = vpop.f32.mrf.mxu0
  %v1161 = vadd.f32 %v1088, %v1160
  %1162 = vmatmul.bf16.gmra.mxu0 %v503
  %v1163 = vpop.f32.mrf.mxu0
  %v1164 = vadd.f32 %v1091, %v1163
  %v1165 = vpop.f32.mrf.mxu0
  %v1166 = vadd.f32 %v1093, %v1165
  %1167 = vmatmul.bf16.gmra.mxu0 %v510
  %v1168 = vpop.f32.mrf.mxu0
  %v1169 = vadd.f32 %v1096, %v1168
  %v1170 = vpop.f32.mrf.mxu0
  %v1171 = vadd.f32 %v1098, %v1170
  %1172 = vmatmul.bf16.gmra.mxu0 %v517
  %v1173 = vpop.f32.mrf.mxu0
  %v1174 = vadd.f32 %v1101, %v1173
  %v1175 = vpop.f32.mrf.mxu0
  %v1176 = vadd.f32 %v1103, %v1175
  %1177 = vmatmul.bf16.gmra.mxu0 %v524
  %v1178 = vpop.f32.mrf.mxu0
  %v1179 = vadd.f32 %v1106, %v1178
  %v1180 = vpop.f32.mrf.mxu0
  %v1181 = vadd.f32 %v1108, %v1180
  %1182 = vmatmul.bf16.gmra.mxu0 %v531
  %v1183 = vpop.f32.mrf.mxu0
  %v1184 = vadd.f32 %v1111, %v1183
  %v1185 = vpop.f32.mrf.mxu0
  %v1186 = vadd.f32 %v1113, %v1185
  %1187 = vmatmul.bf16.gmra.mxu0 %v538
  %v1188 = vpop.f32.mrf.mxu0
  %v1189 = vadd.f32 %v1116, %v1188
  %v1190 = vpop.f32.mrf.mxu0
  %v1191 = vadd.f32 %v1118, %v1190
  %1192 = vmatmul.bf16.gmra.mxu0 %v545
  %v1193 = vpop.f32.mrf.mxu0
  %v1194 = vadd.f32 %v1121, %v1193
  %v1195 = vpop.f32.mrf.mxu0
  %v1196 = vadd.f32 %v1123, %v1195
  %1197 = vmatmul.bf16.gmra.mxu0 %v552
  %v1198 = vpop.f32.mrf.mxu0
  %v1199 = vadd.f32 %v1126, %v1198
  %v1200 = vpop.f32.mrf.mxu0
  %v1201 = vadd.f32 %v1128, %v1200
  %1202 = vmatmul.bf16.gmra.mxu0 %v559
  %v1203 = vpop.f32.mrf.mxu0
  %v1204 = vadd.f32 %v1131, %v1203
  %v1205 = vpop.f32.mrf.mxu0
  %v1206 = vadd.f32 %v1133, %v1205
  %1207 = vmatmul.bf16.gmra.mxu0 %v566
  %v1208 = vpop.f32.mrf.mxu0
  %v1209 = vadd.f32 %v1136, %v1208
  %v1210 = vpop.f32.mrf.mxu0
  %v1211 = vadd.f32 %v1138, %v1210
  %1212 = vmatmul.bf16.gmra.mxu0 %v573
  %v1213 = vpop.f32.mrf.mxu0
  %v1214 = vadd.f32 %v1141, %v1213
  %v1215 = vpop.f32.mrf.mxu0
  %v1216 = vadd.f32 %v1143, %v1215
  %1217 = vmatmul.bf16.gmra.mxu0 %v580
  %v1218 = vpop.f32.mrf.mxu0
  %v1219 = vadd.f32 %v1146, %v1218
  %v1220 = vpop.f32.mrf.mxu0
  %1221 = vdwg.mxu0
  %1222 = vmatpush.bf16.msra.mxu0 %v894
  %1223 = vmatpush.bf16.msra.mxu0 %v893
  %1224 = vmatpush.bf16.msra.mxu0 %v892
  %1225 = vmatpush.bf16.msra.mxu0 %v891
  %1226 = vmatpush.bf16.msra.mxu0 %v890
  %1227 = vmatpush.bf16.msra.mxu0 %v889
  %1228 = vmatpush.bf16.msra.mxu0 %v888
  %1229 = vmatpush.bf16.msra.mxu0 %v887
  %1230 = vmatmul.bf16.gmra.mxu0 %v497
  %v1231 = vpop.f32.mrf.mxu0
  %v1232 = vadd.f32 %v1159, %v1231
  %v1233 = vpop.f32.mrf.mxu0
  %v1234 = vadd.f32 %v1161, %v1233
  %1235 = vmatmul.bf16.gmra.mxu0 %v504
  %v1236 = vpop.f32.mrf.mxu0
  %v1237 = vadd.f32 %v1164, %v1236
  %v1238 = vpop.f32.mrf.mxu0
  %v1239 = vadd.f32 %v1166, %v1238
  %1240 = vmatmul.bf16.gmra.mxu0 %v511
  %v1241 = vpop.f32.mrf.mxu0
  %v1242 = vadd.f32 %v1169, %v1241
  %v1243 = vpop.f32.mrf.mxu0
  %v1244 = vadd.f32 %v1171, %v1243
  %1245 = vmatmul.bf16.gmra.mxu0 %v518
  %v1246 = vpop.f32.mrf.mxu0
  %v1247 = vadd.f32 %v1174, %v1246
  %v1248 = vpop.f32.mrf.mxu0
  %v1249 = vadd.f32 %v1176, %v1248
  %1250 = vmatmul.bf16.gmra.mxu0 %v525
  %v1251 = vpop.f32.mrf.mxu0
  %v1252 = vadd.f32 %v1179, %v1251
  %v1253 = vpop.f32.mrf.mxu0
  %v1254 = vadd.f32 %v1181, %v1253
  %1255 = vmatmul.bf16.gmra.mxu0 %v532
  %v1256 = vpop.f32.mrf.mxu0
  %v1257 = vadd.f32 %v1184, %v1256
  %v1258 = vpop.f32.mrf.mxu0
  %v1259 = vadd.f32 %v1186, %v1258
  %1260 = vmatmul.bf16.gmra.mxu0 %v539
  %v1261 = vpop.f32.mrf.mxu0
  %v1262 = vadd.f32 %v1189, %v1261
  %v1263 = vpop.f32.mrf.mxu0
  %v1264 = vadd.f32 %v1191, %v1263
  %1265 = vmatmul.bf16.gmra.mxu0 %v546
  %v1266 = vpop.f32.mrf.mxu0
  %v1267 = vadd.f32 %v1194, %v1266
  %v1268 = vpop.f32.mrf.mxu0
  %v1269 = vadd.f32 %v1196, %v1268
  %1270 = vmatmul.bf16.gmra.mxu0 %v553
  %v1271 = vpop.f32.mrf.mxu0
  %v1272 = vadd.f32 %v1199, %v1271
  %v1273 = vpop.f32.mrf.mxu0
  %v1274 = vadd.f32 %v1201, %v1273
  %1275 = vmatmul.bf16.gmra.mxu0 %v560
  %v1276 = vpop.f32.mrf.mxu0
  %v1277 = vadd.f32 %v1204, %v1276
  %v1278 = vpop.f32.mrf.mxu0
  %v1279 = vadd.f32 %v1206, %v1278
  %1280 = vmatmul.bf16.gmra.mxu0 %v567
  %v1281 = vpop.f32.mrf.mxu0
  %v1282 = vadd.f32 %v1209, %v1281
  %v1283 = vpop.f32.mrf.mxu0
  %v1284 = vadd.f32 %v1211, %v1283
  %1285 = vmatmul.bf16.gmra.mxu0 %v574
  %v1286 = vpop.f32.mrf.mxu0
  %v1287 = vadd.f32 %v1214, %v1286
  %v1288 = vpop.f32.mrf.mxu0
  %v1289 = vadd.f32 %v1216, %v1288
  %1290 = vmatmul.bf16.gmra.mxu0 %v581
  %v1291 = vpop.f32.mrf.mxu0
  %v1292 = vadd.f32 %v1219, %v1291
  %v1293 = vpop.f32.mrf.mxu0
  %1294 = vdwg.mxu0
  %1295 = vmatpush.bf16.msra.mxu0 %v902
  %1296 = vmatpush.bf16.msra.mxu0 %v901
  %1297 = vmatpush.bf16.msra.mxu0 %v900
  %1298 = vmatpush.bf16.msra.mxu0 %v899
  %1299 = vmatpush.bf16.msra.mxu0 %v898
  %1300 = vmatpush.bf16.msra.mxu0 %v897
  %1301 = vmatpush.bf16.msra.mxu0 %v896
  %1302 = vmatpush.bf16.msra.mxu0 %v895
  %1303 = vmatmul.bf16.gmra.mxu0 %v498
  %v1304 = vpop.f32.mrf.mxu0
  %v1305 = vadd.f32 %v1232, %v1304
  %v1306 = vpop.f32.mrf.mxu0
  %v1307 = vadd.f32 %v1234, %v1306
  %1308 = vmatmul.bf16.gmra.mxu0 %v505
  %v1309 = vpop.f32.mrf.mxu0
  %v1310 = vadd.f32 %v1237, %v1309
  %v1311 = vpop.f32.mrf.mxu0
  %v1312 = vadd.f32 %v1239, %v1311
  %1313 = vmatmul.bf16.gmra.mxu0 %v512
  %v1314 = vpop.f32.mrf.mxu0
  %v1315 = vadd.f32 %v1242, %v1314
  %v1316 = vpop.f32.mrf.mxu0
  %v1317 = vadd.f32 %v1244, %v1316
  %1318 = vmatmul.bf16.gmra.mxu0 %v519
  %v1319 = vpop.f32.mrf.mxu0
  %v1320 = vadd.f32 %v1247, %v1319
  %v1321 = vpop.f32.mrf.mxu0
  %v1322 = vadd.f32 %v1249, %v1321
  %1323 = vmatmul.bf16.gmra.mxu0 %v526
  %v1324 = vpop.f32.mrf.mxu0
  %v1325 = vadd.f32 %v1252, %v1324
  %v1326 = vpop.f32.mrf.mxu0
  %v1327 = vadd.f32 %v1254, %v1326
  %1328 = vmatmul.bf16.gmra.mxu0 %v533
  %v1329 = vpop.f32.mrf.mxu0
  %v1330 = vadd.f32 %v1257, %v1329
  %v1331 = vpop.f32.mrf.mxu0
  %v1332 = vadd.f32 %v1259, %v1331
  %1333 = vmatmul.bf16.gmra.mxu0 %v540
  %v1334 = vpop.f32.mrf.mxu0
  %v1335 = vadd.f32 %v1262, %v1334
  %v1336 = vpop.f32.mrf.mxu0
  %v1337 = vadd.f32 %v1264, %v1336
  %1338 = vmatmul.bf16.gmra.mxu0 %v547
  %v1339 = vpop.f32.mrf.mxu0
  %v1340 = vadd.f32 %v1267, %v1339
  %v1341 = vpop.f32.mrf.mxu0
  %v1342 = vadd.f32 %v1269, %v1341
  %1343 = vmatmul.bf16.gmra.mxu0 %v554
  %v1344 = vpop.f32.mrf.mxu0
  %v1345 = vadd.f32 %v1272, %v1344
  %v1346 = vpop.f32.mrf.mxu0
  %v1347 = vadd.f32 %v1274, %v1346
  %1348 = vmatmul.bf16.gmra.mxu0 %v561
  %v1349 = vpop.f32.mrf.mxu0
  %v1350 = vadd.f32 %v1277, %v1349
  %v1351 = vpop.f32.mrf.mxu0
  %v1352 = vadd.f32 %v1279, %v1351
  %1353 = vmatmul.bf16.gmra.mxu0 %v568
  %v1354 = vpop.f32.mrf.mxu0
  %v1355 = vadd.f32 %v1282, %v1354
  %v1356 = vpop.f32.mrf.mxu0
  %v1357 = vadd.f32 %v1284, %v1356
  %1358 = vmatmul.bf16.gmra.mxu0 %v575
  %v1359 = vpop.f32.mrf.mxu0
  %v1360 = vadd.f32 %v1287, %v1359
  %v1361 = vpop.f32.mrf.mxu0
  %v1362 = vadd.f32 %v1289, %v1361
  %1363 = vmatmul.bf16.gmra.mxu0 %v582
  %v1364 = vpop.f32.mrf.mxu0
  %v1365 = vadd.f32 %v1292, %v1364
  %v1366 = vpop.f32.mrf.mxu0
  %1367 = vdwg.mxu0
  %1368 = vmatpush.bf16.msra.mxu0 %v910
  %1369 = vmatpush.bf16.msra.mxu0 %v909
  %1370 = vmatpush.bf16.msra.mxu0 %v908
  %1371 = vmatpush.bf16.msra.mxu0 %v907
  %1372 = vmatpush.bf16.msra.mxu0 %v906
  %1373 = vmatpush.bf16.msra.mxu0 %v905
  %1374 = vmatpush.bf16.msra.mxu0 %v904
  %1375 = vmatpush.bf16.msra.mxu0 %v903
  %1376 = vmatmul.bf16.gmra.mxu0 %v499
  %v1377 = vpop.f32.mrf.mxu0
  %v1378 = vadd.f32 %v1305, %v1377
  %v1379 = vpop.f32.mrf.mxu0
  %v1380 = vadd.f32 %v1307, %v1379
  %1381 = vmatmul.bf16.gmra.mxu0 %v506
  %v1382 = vpop.f32.mrf.mxu0
  %v1383 = vadd.f32 %v1310, %v1382
  %v1384 = vpop.f32.mrf.mxu0
  %v1385 = vadd.f32 %v1312, %v1384
  %1386 = vmatmul.bf16.gmra.mxu0 %v513
  %v1387 = vpop.f32.mrf.mxu0
  %v1388 = vadd.f32 %v1315, %v1387
  %v1389 = vpop.f32.mrf.mxu0
  %v1390 = vadd.f32 %v1317, %v1389
  %1391 = vmatmul.bf16.gmra.mxu0 %v520
  %v1392 = vpop.f32.mrf.mxu0
  %v1393 = vadd.f32 %v1320, %v1392
  %v1394 = vpop.f32.mrf.mxu0
  %v1395 = vadd.f32 %v1322, %v1394
  %1396 = vmatmul.bf16.gmra.mxu0 %v527
  %v1397 = vpop.f32.mrf.mxu0
  %v1398 = vadd.f32 %v1325, %v1397
  %v1399 = vpop.f32.mrf.mxu0
  %v1400 = vadd.f32 %v1327, %v1399
  %1401 = vmatmul.bf16.gmra.mxu0 %v534
  %v1402 = vpop.f32.mrf.mxu0
  %v1403 = vadd.f32 %v1330, %v1402
  %v1404 = vpop.f32.mrf.mxu0
  %v1405 = vadd.f32 %v1332, %v1404
  %1406 = vmatmul.bf16.gmra.mxu0 %v541
  %v1407 = vpop.f32.mrf.mxu0
  %v1408 = vadd.f32 %v1335, %v1407
  %v1409 = vpop.f32.mrf.mxu0
  %v1410 = vadd.f32 %v1337, %v1409
  %1411 = vmatmul.bf16.gmra.mxu0 %v548
  %v1412 = vpop.f32.mrf.mxu0
  %v1413 = vadd.f32 %v1340, %v1412
  %v1414 = vpop.f32.mrf.mxu0
  %v1415 = vadd.f32 %v1342, %v1414
  %1416 = vmatmul.bf16.gmra.mxu0 %v555
  %v1417 = vpop.f32.mrf.mxu0
  %v1418 = vadd.f32 %v1345, %v1417
  %v1419 = vpop.f32.mrf.mxu0
  %v1420 = vadd.f32 %v1347, %v1419
  %1421 = vmatmul.bf16.gmra.mxu0 %v562
  %v1422 = vpop.f32.mrf.mxu0
  %v1423 = vadd.f32 %v1350, %v1422
  %v1424 = vpop.f32.mrf.mxu0
  %v1425 = vadd.f32 %v1352, %v1424
  %1426 = vmatmul.bf16.gmra.mxu0 %v569
  %v1427 = vpop.f32.mrf.mxu0
  %v1428 = vadd.f32 %v1355, %v1427
  %v1429 = vpop.f32.mrf.mxu0
  %v1430 = vadd.f32 %v1357, %v1429
  %1431 = vmatmul.bf16.gmra.mxu0 %v576
  %v1432 = vpop.f32.mrf.mxu0
  %v1433 = vadd.f32 %v1360, %v1432
  %v1434 = vpop.f32.mrf.mxu0
  %v1435 = vadd.f32 %v1362, %v1434
  %1436 = vmatmul.bf16.gmra.mxu0 %v583
  %v1437 = vpop.f32.mrf.mxu0
  %v1438 = vadd.f32 %v1365, %v1437
  %v1439 = vpop.f32.mrf.mxu0
  %1440 = vdwg.mxu0
  %1441 = vmatpush.bf16.msra.mxu0 0
  %1442 = vmatpush.bf16.msra.mxu0 0
  %1443 = vmatpush.bf16.msra.mxu0 0
  %1444 = vmatpush.bf16.msra.mxu0 0
  %1445 = vmatpush.bf16.msra.mxu0 0
  %1446 = vmatpush.bf16.msra.mxu0 0
  %1447 = vmatpush.bf16.msra.mxu0 %v912
  %1448 = vmatpush.bf16.msra.mxu0 %v911
  %1449 = vmatmul.bf16.gmra.mxu0 %v965
  %v1450 = vpop.f32.mrf.mxu0
  %v1451 = vadd.f32 %v1378, %v1450
  %v1452 = vpop.f32.mrf.mxu0
  %v1453 = vadd.f32 %v1380, %v1452
  %1454 = vmatmul.bf16.gmra.mxu0 %v968
  %v1455 = vpop.f32.mrf.mxu0
  %v1456 = vadd.f32 %v1383, %v1455
  %v1457 = vpop.f32.mrf.mxu0
  %v1458 = vadd.f32 %v1385, %v1457
  %1459 = vmatmul.bf16.gmra.mxu0 %v971
  %v1460 = vpop.f32.mrf.mxu0
  %v1461 = vadd.f32 %v1388, %v1460
  %v1462 = vpop.f32.mrf.mxu0
  %v1463 = vadd.f32 %v1390, %v1462
  %1464 = vmatmul.bf16.gmra.mxu0 %v974
  %v1465 = vpop.f32.mrf.mxu0
  %v1466 = vadd.f32 %v1393, %v1465
  %v1467 = vpop.f32.mrf.mxu0
  %v1468 = vadd.f32 %v1395, %v1467
  %1469 = vmatmul.bf16.gmra.mxu0 %v977
  %v1470 = vpop.f32.mrf.mxu0
  %v1471 = vadd.f32 %v1398, %v1470
  %v1472 = vpop.f32.mrf.mxu0
  %v1473 = vadd.f32 %v1400, %v1472
  %1474 = vmatmul.bf16.gmra.mxu0 %v980
  %v1475 = vpop.f32.mrf.mxu0
  %v1476 = vadd.f32 %v1403, %v1475
  %v1477 = vpop.f32.mrf.mxu0
  %v1478 = vadd.f32 %v1405, %v1477
  %1479 = vmatmul.bf16.gmra.mxu0 %v983
  %v1480 = vpop.f32.mrf.mxu0
  %v1481 = vadd.f32 %v1408, %v1480
  %v1482 = vpop.f32.mrf.mxu0
  %v1483 = vadd.f32 %v1410, %v1482
  %1484 = vmatmul.bf16.gmra.mxu0 %v986
  %v1485 = vpop.f32.mrf.mxu0
  %v1486 = vadd.f32 %v1413, %v1485
  %v1487 = vpop.f32.mrf.mxu0
  %v1488 = vadd.f32 %v1415, %v1487
  %1489 = vmatmul.bf16.gmra.mxu0 %v989
  %v1490 = vpop.f32.mrf.mxu0
  %v1491 = vadd.f32 %v1418, %v1490
  %v1492 = vpop.f32.mrf.mxu0
  %v1493 = vadd.f32 %v1420, %v1492
  %1494 = vmatmul.bf16.gmra.mxu0 %v992
  %v1495 = vpop.f32.mrf.mxu0
  %v1496 = vadd.f32 %v1423, %v1495
  %v1497 = vpop.f32.mrf.mxu0
  %v1498 = vadd.f32 %v1425, %v1497
  %1499 = vmatmul.bf16.gmra.mxu0 %v995
  %v1500 = vpop.f32.mrf.mxu0
  %v1501 = vadd.f32 %v1428, %v1500
  %v1502 = vpop.f32.mrf.mxu0
  %v1503 = vadd.f32 %v1430, %v1502
  %1504 = vmatmul.bf16.gmra.mxu0 %v998
  %v1505 = vpop.f32.mrf.mxu0
  %v1506 = vadd.f32 %v1433, %v1505
  %v1507 = vpop.f32.mrf.mxu0
  %v1508 = vadd.f32 %v1435, %v1507
  %1509 = vmatmul.bf16.gmra.mxu0 %v1001
  %v1510 = vpop.f32.mrf.mxu0
  %v1511 = vadd.f32 %v1438, %v1510
  %v1512 = vpop.f32.mrf.mxu0
  %1513 = vdwg.mxu0
  %v1514 = vmax.f32 %v1451, 0.0
  %v1515 = vmax.f32 %v1453, 0.0
  %v1516 = vmax.f32 %v1456, 0.0
  %v1517 = vmax.f32 %v1458, 0.0
  %v1518 = vmax.f32 %v1461, 0.0
  %v1519 = vmax.f32 %v1463, 0.0
  %v1520 = vmax.f32 %v1466, 0.0
  %v1521 = vmax.f32 %v1468, 0.0
  %v1522 = vmax.f32 %v1471, 0.0
  %v1523 = vmax.f32 %v1473, 0.0
  %v1524 = vmax.f32 %v1476, 0.0
  %v1525 = vmax.f32 %v1478, 0.0
  %v1526 = vmax.f32 %v1481, 0.0
  %v1527 = vmax.f32 %v1483, 0.0
  %v1528 = vmax.f32 %v1486, 0.0
  %v1529 = vmax.f32 %v1488, 0.0
  %v1530 = vmax.f32 %v1491, 0.0
  %v1531 = vmax.f32 %v1493, 0.0
  %v1532 = vmax.f32 %v1496, 0.0
  %v1533 = vmax.f32 %v1498, 0.0
  %v1534 = vmax.f32 %v1501, 0.0
  %v1535 = vmax.f32 %v1503, 0.0
  %v1536 = vmax.f32 %v1506, 0.0
  %v1537 = vmax.f32 %v1508, 0.0
  %v1538 = vmax.f32 %v1511, 0.0
  %v1539 = vpack.c.bf16 %v1514, %v1514
  %v1540 = vpack.c.bf16 %v1515, %v1515
  %v1541 = vpack.c.bf16 %v1516, %v1516
  %v1542 = vpack.c.bf16 %v1517, %v1517
  %v1543 = vpack.c.bf16 %v1518, %v1518
  %v1544 = vpack.c.bf16 %v1519, %v1519
  %v1545 = vpack.c.bf16 %v1520, %v1520
  %v1546 = vpack.c.bf16 %v1521, %v1521
  %v1547 = vpack.c.bf16 %v1522, %v1522
  %v1548 = vpack.c.bf16 %v1523, %v1523
  %v1549 = vpack.c.bf16 %v1524, %v1524
  %v1550 = vpack.c.bf16 %v1525, %v1525
  %v1551 = vpack.c.bf16 %v1526, %v1526
  %v1552 = vpack.c.bf16 %v1527, %v1527
  %v1553 = vpack.c.bf16 %v1528, %v1528
  %v1554 = vpack.c.bf16 %v1529, %v1529
  %v1555 = vpack.c.bf16 %v1530, %v1530
  %v1556 = vpack.c.bf16 %v1531, %v1531
  %v1557 = vpack.c.bf16 %v1532, %v1532
  %v1558 = vpack.c.bf16 %v1533, %v1533
  %v1559 = vpack.c.bf16 %v1534, %v1534
  %v1560 = vpack.c.bf16 %v1535, %v1535
  %v1561 = vpack.c.bf16 %v1536, %v1536
  %v1562 = vpack.c.bf16 %v1537, %v1537
  %v1563 = vpack.c.bf16 %v1538, %v1538
  %vm1564 = vcmask 519168
  %1565 = vst.msk [vmem:[%s3] sm:$0xf] %vm1564, %v1539
  %1566 = vst.msk [vmem:[%s3 + $0x4] sm:$0xf] %vm1564, %v1540
  %1567 = vst.msk [vmem:[%s3 + $0x8] sm:$0xf] %vm1564, %v1541
  %1568 = vst.msk [vmem:[%s3 + $0xc] sm:$0xf] %vm1564, %v1542
  %1569 = vst.msk [vmem:[%s3 + $0x10] sm:$0xf] %vm1564, %v1543
  %1570 = vst.msk [vmem:[%s3 + $0x14] sm:$0xf] %vm1564, %v1544
  %1571 = vst.msk [vmem:[%s3 + $0x18] sm:$0xf] %vm1564, %v1545
  %1572 = vst.msk [vmem:[%s3 + $0x1c] sm:$0xf] %vm1564, %v1546
  %1573 = vst.msk [vmem:[%s3 + $0x20] sm:$0xf] %vm1564, %v1547
  %1574 = vst.msk [vmem:[%s3 + $0x24] sm:$0xf] %vm1564, %v1548
  %1575 = vst.msk [vmem:[%s3 + $0x28] sm:$0xf] %vm1564, %v1549
  %1576 = vst.msk [vmem:[%s3 + $0x2c] sm:$0xf] %vm1564, %v1550
  %1577 = vst.msk [vmem:[%s3 + $0x30] sm:$0xf] %vm1564, %v1551
  %1578 = vst.msk [vmem:[%s3 + $0x34] sm:$0xf] %vm1564, %v1552
  %1579 = vst.msk [vmem:[%s3 + $0x38] sm:$0xf] %vm1564, %v1553
  %1580 = vst.msk [vmem:[%s3 + $0x3c] sm:$0xf] %vm1564, %v1554
  %1581 = vst.msk [vmem:[%s3 + $0x40] sm:$0xf] %vm1564, %v1555
  %1582 = vst.msk [vmem:[%s3 + $0x44] sm:$0xf] %vm1564, %v1556
  %1583 = vst.msk [vmem:[%s3 + $0x48] sm:$0xf] %vm1564, %v1557
  %1584 = vst.msk [vmem:[%s3 + $0x4c] sm:$0xf] %vm1564, %v1558
  %1585 = vst.msk [vmem:[%s3 + $0x50] sm:$0xf] %vm1564, %v1559
  %1586 = vst.msk [vmem:[%s3 + $0x54] sm:$0xf] %vm1564, %v1560
  %1587 = vst.msk [vmem:[%s3 + $0x58] sm:$0xf] %vm1564, %v1561
  %1588 = vst.msk [vmem:[%s3 + $0x5c] sm:$0xf] %vm1564, %v1562
  %1589 = vst.msk [vmem:[%s3 + $0x60] sm:$0xf] %vm1564, %v1563
  // Predicated region
  $region14: #{forward.7} parent=0 // pred_check
    _
  $region15: #{forward.7} parent=0 // pred_check_branch
    %1591 = sbr.rel (0) target = $region17
  $region16: #{forward.7} parent=0 // pred_region
    _
  $region17: #{forward.7} parent=0 // pred_fallthru
    _
  // Predicated region
  $region18: #{forward.7} parent=0 // pred_check
    _
  $region19: #{forward.7} parent=0 // pred_check_branch
    %1593 = sbr.rel (0) target = $region21
  $region20: #{forward.7} parent=0 // pred_region
    _
  $region21: #{forward.7} parent=0 // pred_fallthru
    _

// kernel: forward.8
$region0: #{forward.8}
  #allocation0 [shape = 'u32[]', space=smem, size = 0x4, offset = 0x4, fixed_abs, tag = 'smem constant byte address 0x4 - core index']
  #allocation1 [shape = 'u32[72,128]{1,0:T(1,128)}', space=vmem, size = 0x9000, scoped, tag = 'internal scratch']
  %s0 = inlined_call_operand.vmem [shape: bf16[10,2,640], index: 0, kind: input, shape index: {}]
  %s1 = inlined_call_operand.vmem [shape: bf16[10,320], index: 1, kind: output, shape index: {}]
  %s2 = sld [smem:[#allocation0]]
  $region14: #{forward.8} parent=0
    _
  %s4 = ssub.s32 1, %s2
  %s5 = scalar_select 0, %s4, %s2
  // Predicated region
  $region2: #{forward.8} parent=0 // pred_check
    _
  $region3: #{forward.8} parent=0 // pred_check_branch
    %7 = sbr.rel (0) target = $region5
  $region4: #{forward.8} parent=0 // pred_region
    _
  $region5: #{forward.8} parent=0 // pred_fallthru
    _
  %v9 = vld [vmem:[%s0] sm:$0x1f]
  %v10 = vld [vmem:[%s0 + $0x5] sm:$0x1f]
  %v11 = vld [vmem:[%s0 + $0xa] sm:$0x1f]
  %v12 = vld [vmem:[%s0 + $0xf] sm:$0x1f]
  %v13 = vld [vmem:[%s0 + $0x14] sm:$0x1f]
  %v14 = vld [vmem:[%s0 + $0x19] sm:$0x1f]
  %v15 = vld [vmem:[%s0 + $0x1e] sm:$0x1f]
  %v16 = vld [vmem:[%s0 + $0x23] sm:$0x1f]
  %v17 = vld [vmem:[%s0 + $0x28] sm:$0x1f]
  %v18 = vld [vmem:[%s0 + $0x2d] sm:$0x1f]
  %v19 = vunpack.c.l.bf16 %v9
  %v20 = vunpack.c.h.bf16 %v9
  %v21 = vunpack.c.l.bf16 %v10
  %v22 = vunpack.c.h.bf16 %v10
  %v23 = vunpack.c.l.bf16 %v11
  %v24 = vunpack.c.h.bf16 %v11
  %v25 = vunpack.c.l.bf16 %v12
  %v26 = vunpack.c.h.bf16 %v12
  %v27 = vunpack.c.l.bf16 %v13
  %v28 = vunpack.c.h.bf16 %v13
  %v29 = vunpack.c.l.bf16 %v14
  %v30 = vunpack.c.h.bf16 %v14
  %v31 = vunpack.c.l.bf16 %v15
  %v32 = vunpack.c.h.bf16 %v15
  %v33 = vunpack.c.l.bf16 %v16
  %v34 = vunpack.c.h.bf16 %v16
  %v35 = vunpack.c.l.bf16 %v17
  %v36 = vunpack.c.h.bf16 %v17
  %v37 = vunpack.c.l.bf16 %v18
  %v38 = vunpack.c.h.bf16 %v18
  %v59 = vrot.slane %v19, 7
  %v60 = vrot.slane %v59, 2
  %v61 = vrot.slane %v20, 7
  %v62 = vrot.slane %v61, 2
  %v63 = vrot.slane %v21, 7
  %v64 = vrot.slane %v63, 2
  %v65 = vrot.slane %v22, 7
  %v66 = vrot.slane %v65, 2
  %v67 = vrot.slane %v23, 7
  %v68 = vrot.slane %v67, 2
  %v69 = vrot.slane %v24, 7
  %v70 = vrot.slane %v69, 2
  %v71 = vrot.slane %v25, 7
  %v72 = vrot.slane %v71, 2
  %v73 = vrot.slane %v26, 7
  %v74 = vrot.slane %v73, 2
  %v75 = vrot.slane %v27, 7
  %v76 = vrot.slane %v75, 2
  %v77 = vrot.slane %v28, 7
  %v78 = vrot.slane %v77, 2
  %v79 = vrot.slane %v29, 7
  %v80 = vrot.slane %v79, 2
  %v81 = vrot.slane %v30, 7
  %v82 = vrot.slane %v81, 2
  %v83 = vrot.slane %v31, 7
  %v84 = vrot.slane %v83, 2
  %v85 = vrot.slane %v32, 7
  %v86 = vrot.slane %v85, 2
  %v87 = vrot.slane %v33, 7
  %v88 = vrot.slane %v87, 2
  %v89 = vrot.slane %v34, 7
  %v90 = vrot.slane %v89, 2
  %v91 = vrot.slane %v35, 7
  %v92 = vrot.slane %v91, 2
  %v93 = vrot.slane %v36, 7
  %v94 = vrot.slane %v93, 2
  %v95 = vrot.slane %v37, 7
  %v96 = vrot.slane %v95, 2
  %v97 = vrot.slane %v38, 7
  %v98 = vrot.slane %v97, 2
  %v119 = vmax.f32 %v19, %v60
  %v120 = vmax.f32 %v20, %v62
  %v121 = vmax.f32 %v21, %v64
  %v122 = vmax.f32 %v22, %v66
  %v123 = vmax.f32 %v23, %v68
  %v124 = vmax.f32 %v24, %v70
  %v125 = vmax.f32 %v25, %v72
  %v126 = vmax.f32 %v26, %v74
  %v127 = vmax.f32 %v27, %v76
  %v128 = vmax.f32 %v28, %v78
  %v129 = vmax.f32 %v29, %v80
  %v130 = vmax.f32 %v30, %v82
  %v131 = vmax.f32 %v31, %v84
  %v132 = vmax.f32 %v32, %v86
  %v133 = vmax.f32 %v33, %v88
  %v134 = vmax.f32 %v34, %v90
  %v135 = vmax.f32 %v35, %v92
  %v136 = vmax.f32 %v36, %v94
  %v137 = vmax.f32 %v37, %v96
  %v138 = vmax.f32 %v38, %v98
  %v159 = vperm.slane %v119, 0
  %v160 = vperm.slane %v119, 2
  %v161 = vperm.slane %v119, 4
  %v162 = vperm.slane %v119, 6
  %v163 = vperm.slane %v120, 0
  %v164 = vperm.slane %v121, 0
  %v165 = vperm.slane %v121, 2
  %v166 = vperm.slane %v121, 4
  %v167 = vperm.slane %v121, 6
  %v168 = vperm.slane %v122, 0
  %v169 = vperm.slane %v123, 0
  %v170 = vperm.slane %v123, 2
  %v171 = vperm.slane %v123, 4
  %v172 = vperm.slane %v123, 6
  %v173 = vperm.slane %v124, 0
  %v174 = vperm.slane %v125, 0
  %v175 = vperm.slane %v125, 2
  %v176 = vperm.slane %v125, 4
  %v177 = vperm.slane %v125, 6
  %v178 = vperm.slane %v126, 0
  %v179 = vperm.slane %v127, 0
  %v180 = vperm.slane %v127, 2
  %v181 = vperm.slane %v127, 4
  %v182 = vperm.slane %v127, 6
  %v183 = vperm.slane %v128, 0
  %v184 = vperm.slane %v129, 0
  %v185 = vperm.slane %v129, 2
  %v186 = vperm.slane %v129, 4
  %v187 = vperm.slane %v129, 6
  %v188 = vperm.slane %v130, 0
  %v189 = vperm.slane %v131, 0
  %v190 = vperm.slane %v131, 2
  %v191 = vperm.slane %v131, 4
  %v192 = vperm.slane %v131, 6
  %v193 = vperm.slane %v132, 0
  %v194 = vperm.slane %v133, 0
  %v195 = vperm.slane %v133, 2
  %v196 = vperm.slane %v133, 4
  %v197 = vperm.slane %v133, 6
  %v198 = vperm.slane %v134, 0
  %v199 = vperm.slane %v135, 0
  %v200 = vperm.slane %v135, 2
  %v201 = vperm.slane %v135, 4
  %v202 = vperm.slane %v135, 6
  %v203 = vperm.slane %v136, 0
  %v204 = vperm.slane %v137, 0
  %v205 = vperm.slane %v137, 2
  %v206 = vperm.slane %v137, 4
  %v207 = vperm.slane %v137, 6
  %v208 = vperm.slane %v138, 0
  %v259 = vpack.c.bf16 %v160, %v159
  %v260 = vpack.c.bf16 %v162, %v161
  %v261 = vpack.c.bf16 %v163, %v163
  %v262 = vpack.c.bf16 %v165, %v164
  %v263 = vpack.c.bf16 %v167, %v166
  %v264 = vpack.c.bf16 %v168, %v168
  %v265 = vpack.c.bf16 %v170, %v169
  %v266 = vpack.c.bf16 %v172, %v171
  %v267 = vpack.c.bf16 %v173, %v173
  %v268 = vpack.c.bf16 %v175, %v174
  %v269 = vpack.c.bf16 %v177, %v176
  %v270 = vpack.c.bf16 %v178, %v178
  %v271 = vpack.c.bf16 %v180, %v179
  %v272 = vpack.c.bf16 %v182, %v181
  %v273 = vpack.c.bf16 %v183, %v183
  %v274 = vpack.c.bf16 %v185, %v184
  %v275 = vpack.c.bf16 %v187, %v186
  %v276 = vpack.c.bf16 %v188, %v188
  %v277 = vpack.c.bf16 %v190, %v189
  %v278 = vpack.c.bf16 %v192, %v191
  %v279 = vpack.c.bf16 %v193, %v193
  %v280 = vpack.c.bf16 %v195, %v194
  %v281 = vpack.c.bf16 %v197, %v196
  %v282 = vpack.c.bf16 %v198, %v198
  %v283 = vpack.c.bf16 %v200, %v199
  %v284 = vpack.c.bf16 %v202, %v201
  %v285 = vpack.c.bf16 %v203, %v203
  %v286 = vpack.c.bf16 %v205, %v204
  %v287 = vpack.c.bf16 %v207, %v206
  %v288 = vpack.c.bf16 %v208, %v208
  %v299 = vrot.slane %v259, 4
  %v300 = vrot.slane %v262, 4
  %v301 = vrot.slane %v265, 4
  %v302 = vrot.slane %v268, 4
  %v303 = vrot.slane %v271, 4
  %v304 = vrot.slane %v274, 4
  %v305 = vrot.slane %v277, 4
  %v306 = vrot.slane %v280, 4
  %v307 = vrot.slane %v283, 4
  %v308 = vrot.slane %v286, 4
  %v319 = vrot.slane %v260, 4
  %v320 = vrot.slane %v263, 4
  %v321 = vrot.slane %v266, 4
  %v322 = vrot.slane %v269, 4
  %v323 = vrot.slane %v272, 4
  %v324 = vrot.slane %v275, 4
  %v325 = vrot.slane %v278, 4
  %v326 = vrot.slane %v281, 4
  %v327 = vrot.slane %v284, 4
  %v328 = vrot.slane %v287, 4
  %v339 = vunpack.c.l.b16 %v259
  %v340 = vunpack.c.l.b16 %v262
  %v341 = vunpack.c.l.b16 %v265
  %v342 = vunpack.c.l.b16 %v268
  %v343 = vunpack.c.l.b16 %v271
  %v344 = vunpack.c.l.b16 %v274
  %v345 = vunpack.c.l.b16 %v277
  %v346 = vunpack.c.l.b16 %v280
  %v347 = vunpack.c.l.b16 %v283
  %v348 = vunpack.c.l.b16 %v286
  %v349 = vunpack.c.l.b16 %v299
  %v350 = vunpack.c.l.b16 %v300
  %v351 = vunpack.c.l.b16 %v301
  %v352 = vunpack.c.l.b16 %v302
  %v353 = vunpack.c.l.b16 %v303
  %v354 = vunpack.c.l.b16 %v304
  %v355 = vunpack.c.l.b16 %v305
  %v356 = vunpack.c.l.b16 %v306
  %v357 = vunpack.c.l.b16 %v307
  %v358 = vunpack.c.l.b16 %v308
  %v359 = vunpack.c.l.b16 %v260
  %v360 = vunpack.c.l.b16 %v263
  %v361 = vunpack.c.l.b16 %v266
  %v362 = vunpack.c.l.b16 %v269
  %v363 = vunpack.c.l.b16 %v272
  %v364 = vunpack.c.l.b16 %v275
  %v365 = vunpack.c.l.b16 %v278
  %v366 = vunpack.c.l.b16 %v281
  %v367 = vunpack.c.l.b16 %v284
  %v368 = vunpack.c.l.b16 %v287
  %v369 = vunpack.c.l.b16 %v319
  %v370 = vunpack.c.l.b16 %v320
  %v371 = vunpack.c.l.b16 %v321
  %v372 = vunpack.c.l.b16 %v322
  %v373 = vunpack.c.l.b16 %v323
  %v374 = vunpack.c.l.b16 %v324
  %v375 = vunpack.c.l.b16 %v325
  %v376 = vunpack.c.l.b16 %v326
  %v377 = vunpack.c.l.b16 %v327
  %v378 = vunpack.c.l.b16 %v328
  %v379 = vunpack.c.l.b16 %v261
  %v380 = vunpack.c.l.b16 %v264
  %v381 = vunpack.c.l.b16 %v267
  %v382 = vunpack.c.l.b16 %v270
  %v383 = vunpack.c.l.b16 %v273
  %v384 = vunpack.c.l.b16 %v276
  %v385 = vunpack.c.l.b16 %v279
  %v386 = vunpack.c.l.b16 %v282
  %v387 = vunpack.c.l.b16 %v285
  %v388 = vunpack.c.l.b16 %v288
  %v389 = vrot.slane %v340, 7
  %vm390 = vcmask 1041409
  %v391 = vsel %vm390, %v389, %v339
  %v392 = vrot.slane %v341, 6
  %vm393 = vcmask 1042434
  %v394 = vsel %vm393, %v392, %v391
  %v395 = vrot.slane %v342, 5
  %vm396 = vcmask 1043459
  %v397 = vsel %vm396, %v395, %v394
  %v398 = vrot.slane %v343, 4
  %vm399 = vcmask 1044484
  %v400 = vsel %vm399, %v398, %v397
  %v401 = vrot.slane %v344, 3
  %vm402 = vcmask 1045509
  %v403 = vsel %vm402, %v401, %v400
  %v404 = vrot.slane %v345, 2
  %vm405 = vcmask 1046534
  %v406 = vsel %vm405, %v404, %v403
  %v407 = vrot.slane %v346, 1
  %vm408 = vcmask 1047559
  %v409 = vsel %vm408, %v407, %v406
  %v410 = vrot.slane %v348, 7
  %v411 = vsel %vm390, %v410, %v347
  %v412 = vrot.slane %v350, 7
  %v413 = vsel %vm390, %v412, %v349
  %v414 = vrot.slane %v351, 6
  %v415 = vsel %vm393, %v414, %v413
  %v416 = vrot.slane %v352, 5
  %v417 = vsel %vm396, %v416, %v415
  %v418 = vrot.slane %v353, 4
  %v419 = vsel %vm399, %v418, %v417
  %v420 = vrot.slane %v354, 3
  %v421 = vsel %vm402, %v420, %v419
  %v422 = vrot.slane %v355, 2
  %v423 = vsel %vm405, %v422, %v421
  %v424 = vrot.slane %v356, 1
  %v425 = vsel %vm408, %v424, %v423
  %v426 = vrot.slane %v358, 7
  %v427 = vsel %vm390, %v426, %v357
  %v428 = vrot.slane %v360, 7
  %v429 = vsel %vm390, %v428, %v359
  %v430 = vrot.slane %v361, 6
  %v431 = vsel %vm393, %v430, %v429
  %v432 = vrot.slane %v362, 5
  %v433 = vsel %vm396, %v432, %v431
  %v434 = vrot.slane %v363, 4
  %v435 = vsel %vm399, %v434, %v433
  %v436 = vrot.slane %v364, 3
  %v437 = vsel %vm402, %v436, %v435
  %v438 = vrot.slane %v365, 2
  %v439 = vsel %vm405, %v438, %v437
  %v440 = vrot.slane %v366, 1
  %v441 = vsel %vm408, %v440, %v439
  %v442 = vrot.slane %v368, 7
  %v443 = vsel %vm390, %v442, %v367
  %v444 = vrot.slane %v370, 7
  %v445 = vsel %vm390, %v444, %v369
  %v446 = vrot.slane %v371, 6
  %v447 = vsel %vm393, %v446, %v445
  %v448 = vrot.slane %v372, 5
  %v449 = vsel %vm396, %v448, %v447
  %v450 = vrot.slane %v373, 4
  %v451 = vsel %vm399, %v450, %v449
  %v452 = vrot.slane %v374, 3
  %v453 = vsel %vm402, %v452, %v451
  %v454 = vrot.slane %v375, 2
  %v455 = vsel %vm405, %v454, %v453
  %v456 = vrot.slane %v376, 1
  %v457 = vsel %vm408, %v456, %v455
  %v458 = vrot.slane %v378, 7
  %v459 = vsel %vm390, %v458, %v377
  %v460 = vrot.slane %v380, 7
  %v461 = vsel %vm390, %v460, %v379
  %v462 = vrot.slane %v381, 6
  %v463 = vsel %vm393, %v462, %v461
  %v464 = vrot.slane %v382, 5
  %v465 = vsel %vm396, %v464, %v463
  %v466 = vrot.slane %v383, 4
  %v467 = vsel %vm399, %v466, %v465
  %v468 = vrot.slane %v384, 3
  %v469 = vsel %vm402, %v468, %v467
  %v470 = vrot.slane %v385, 2
  %v471 = vsel %vm405, %v470, %v469
  %v472 = vrot.slane %v386, 1
  %v473 = vsel %vm408, %v472, %v471
  %v474 = vrot.slane %v388, 7
  %v475 = vsel %vm390, %v474, %v387
  %v476 = vpack.c.b16 %v409, %v409
  %v477 = vpack.c.b16 %v411, %v411
  %v478 = vpack.c.b16 %v425, %v425
  %v479 = vpack.c.b16 %v427, %v427
  %v480 = vpack.c.b16 %v441, %v441
  %v481 = vpack.c.b16 %v443, %v443
  %v482 = vpack.c.b16 %v457, %v457
  %v483 = vpack.c.b16 %v459, %v459
  %v484 = vpack.c.b16 %v473, %v473
  %v485 = vpack.c.b16 %v475, %v475
  %v490 = vrot.slane %v484, 4
  %vm491 = vcmask 1047556
  %v492 = vsel %vm491, %v490, %v476
  %v494 = vunpack.c.l.s4 1983009808
  %v495 = vunpack.c.0.s8 %v494
  %v496 = vperm.slane %v492, %v495
  %v499 = vunpack.c.l.s4 1983009808
  %v500 = vunpack.c.0.s8 %v499
  %v501 = vperm.slane %v480, %v500
  %v502 = vrot.slane %v501, 4
  %v503 = vsel %vm491, %v502, %v496
  %v504 = vrot.slane %v496, 4
  %v505 = vsel %vm491, %v501, %v504
  %v507 = vunpack.c.l.s4 1934713408
  %v508 = vunpack.c.0.s8 %v507
  %v509 = vperm.slane %v503, %v508
  %v511 = vunpack.c.l.s4 1934713408
  %v512 = vunpack.c.0.s8 %v511
  %v513 = vperm.slane %v505, %v512
  %v514 = vrot.slane %v509, 4
  %v515 = vsel %vm491, 0, %v514
  %v516 = vrot.slane %v513, 4
  %v517 = vsel %vm491, 0, %v516
  %v520 = vunpack.c.l.s4 1983009808
  %v521 = vunpack.c.0.s8 %v520
  %v522 = vperm.slane %v478, %v521
  %v525 = vunpack.c.l.s4 1983009808
  %v526 = vunpack.c.0.s8 %v525
  %v527 = vperm.slane %v482, %v526
  %v528 = vrot.slane %v527, 4
  %v529 = vsel %vm491, %v528, %v522
  %v530 = vrot.slane %v522, 4
  %v531 = vsel %vm491, %v527, %v530
  %v533 = vunpack.c.l.s4 1934713408
  %v534 = vunpack.c.0.s8 %v533
  %v535 = vperm.slane %v529, %v534
  %v537 = vunpack.c.l.s4 1934713408
  %v538 = vunpack.c.0.s8 %v537
  %v539 = vperm.slane %v531, %v538
  %v540 = vrot.slane %v535, 4
  %v541 = vsel %vm491, 0, %v540
  %v542 = vrot.slane %v539, 4
  %v543 = vsel %vm491, 0, %v542
  %v544 = vrot.slane %v485, 4
  %v545 = vsel %vm491, %v544, %v477
  %v547 = vunpack.c.l.s4 1983009808
  %v548 = vunpack.c.0.s8 %v547
  %v549 = vperm.slane %v545, %v548
  %v551 = vrot.slane %v481, 4
  %v552 = vsel %vm491, %v551, %v549
  %v554 = vunpack.c.l.s4 1934713408
  %v555 = vunpack.c.0.s8 %v554
  %v556 = vperm.slane %v552, %v555
  %v559 = vrot.slane %v483, 4
  %v560 = vsel %vm491, %v559, %v479
  %v562 = vunpack.c.l.s4 1934713408
  %v563 = vunpack.c.0.s8 %v562
  %v564 = vperm.slane %v560, %v563
  %v567 = vpack.i.b16 %v535, %v509
  %v569 = vshrl.u32 %v509, 16
  %v570 = vshrl.u32 %v535, 16
  %v571 = vpack.i.b16 %v570, %v569
  %v575 = vpack.i.b16 %v541, %v515
  %v577 = vshrl.u32 %v515, 16
  %v578 = vshrl.u32 %v541, 16
  %v579 = vpack.i.b16 %v578, %v577
  %v583 = vpack.i.b16 %v539, %v513
  %v585 = vshrl.u32 %v513, 16
  %v586 = vshrl.u32 %v539, 16
  %v587 = vpack.i.b16 %v586, %v585
  %v591 = vpack.i.b16 %v543, %v517
  %v593 = vshrl.u32 %v517, 16
  %v594 = vshrl.u32 %v543, 16
  %v595 = vpack.i.b16 %v594, %v593
  %v599 = vpack.i.b16 %v564, %v556
  %v601 = vshrl.u32 %v556, 16
  %v602 = vshrl.u32 %v564, 16
  %v603 = vpack.i.b16 %v602, %v601
  %v605 = vunpack.c.l.bf16 %v567
  %v606 = vunpack.c.l.bf16 %v571
  %v607 = vunpack.c.l.bf16 %v575
  %v608 = vunpack.c.l.bf16 %v579
  %v609 = vunpack.c.l.bf16 %v583
  %v610 = vunpack.c.l.bf16 %v587
  %v611 = vunpack.c.l.bf16 %v591
  %v612 = vunpack.c.l.bf16 %v595
  %v613 = vunpack.c.l.bf16 %v599
  %v614 = vunpack.c.l.bf16 %v603
  %625 = vrot.lane.b32.xlu0 %v605, 64
  %v626 = vpop.permute.xlu0 %625
  %627 = vrot.lane.b32.xlu0 %v606, 64
  %v628 = vpop.permute.xlu0 %627
  %629 = vrot.lane.b32.xlu0 %v607, 64
  %v630 = vpop.permute.xlu0 %629
  %631 = vrot.lane.b32.xlu0 %v608, 64
  %v632 = vpop.permute.xlu0 %631
  %633 = vrot.lane.b32.xlu0 %v609, 64
  %v634 = vpop.permute.xlu0 %633
  %635 = vrot.lane.b32.xlu0 %v610, 64
  %v636 = vpop.permute.xlu0 %635
  %637 = vrot.lane.b32.xlu0 %v611, 64
  %v638 = vpop.permute.xlu0 %637
  %639 = vrot.lane.b32.xlu0 %v612, 64
  %v640 = vpop.permute.xlu0 %639
  %641 = vrot.lane.b32.xlu0 %v613, 64
  %v642 = vpop.permute.xlu0 %641
  %643 = vrot.lane.b32.xlu0 %v614, 64
  %v644 = vpop.permute.xlu0 %643
  %v655 = vmax.f32 %v605, %v626
  %v656 = vmax.f32 %v606, %v628
  %v657 = vmax.f32 %v607, %v630
  %v658 = vmax.f32 %v608, %v632
  %v659 = vmax.f32 %v609, %v634
  %v660 = vmax.f32 %v610, %v636
  %v661 = vmax.f32 %v611, %v638
  %v662 = vmax.f32 %v612, %v640
  %v663 = vmax.f32 %v613, %v642
  %v664 = vmax.f32 %v614, %v644
  %v665 = vpack.c.bf16 %v655, %v655
  %v666 = vpack.c.bf16 %v656, %v656
  %v667 = vpack.c.bf16 %v657, %v657
  %v668 = vpack.c.bf16 %v658, %v658
  %v669 = vpack.c.bf16 %v659, %v659
  %v670 = vpack.c.bf16 %v660, %v660
  %v671 = vpack.c.bf16 %v661, %v661
  %v672 = vpack.c.bf16 %v662, %v662
  %v673 = vrot.slane %v669, 4
  %v674 = vsel %vm491, %v673, %v665
  %v676 = vunpack.c.l.s4 1983009808
  %v677 = vunpack.c.0.s8 %v676
  %v678 = vperm.slane %v674, %v677
  %v679 = vrot.slane %v671, 4
  %v680 = vsel %vm491, %v679, %v667
  %v682 = vunpack.c.l.s4 1983009808
  %v683 = vunpack.c.0.s8 %v682
  %v684 = vperm.slane %v680, %v683
  %v685 = vrot.slane %v684, 4
  %v686 = vsel %vm491, %v685, %v678
  %v687 = vrot.slane %v678, 4
  %v688 = vsel %vm491, %v684, %v687
  %v690 = vunpack.c.l.s4 1934713408
  %v691 = vunpack.c.0.s8 %v690
  %v692 = vperm.slane %v686, %v691
  %v693 = vrot.slane %v692, 4
  %v694 = vsel %vm491, 0, %v693
  %v696 = vunpack.c.l.s4 1934713408
  %v697 = vunpack.c.0.s8 %v696
  %v698 = vperm.slane %v688, %v697
  %v699 = vrot.slane %v670, 4
  %v700 = vsel %vm491, %v699, %v666
  %v702 = vunpack.c.l.s4 1983009808
  %v703 = vunpack.c.0.s8 %v702
  %v704 = vperm.slane %v700, %v703
  %v705 = vrot.slane %v672, 4
  %v706 = vsel %vm491, %v705, %v668
  %v708 = vunpack.c.l.s4 1983009808
  %v709 = vunpack.c.0.s8 %v708
  %v710 = vperm.slane %v706, %v709
  %v711 = vrot.slane %v710, 4
  %v712 = vsel %vm491, %v711, %v704
  %v713 = vrot.slane %v704, 4
  %v714 = vsel %vm491, %v710, %v713
  %v716 = vunpack.c.l.s4 1934713408
  %v717 = vunpack.c.0.s8 %v716
  %v718 = vperm.slane %v712, %v717
  %v719 = vrot.slane %v718, 4
  %v720 = vsel %vm491, 0, %v719
  %v722 = vunpack.c.l.s4 1934713408
  %v723 = vunpack.c.0.s8 %v722
  %v724 = vperm.slane %v714, %v723
  %v725 = vpack.c.bf16 %v663, %v663
  %v727 = vunpack.c.l.s4 1983009808
  %v728 = vunpack.c.0.s8 %v727
  %v729 = vperm.slane %v725, %v728
  %v731 = vunpack.c.l.s4 1934713408
  %v732 = vunpack.c.0.s8 %v731
  %v733 = vperm.slane %v729, %v732
  %v734 = vrot.slane %v733, 4
  %v735 = vsel %vm491, 0, %v734
  %v736 = vrot.slane %v729, 4
  %v737 = vsel %vm491, 0, %v736
  %v738 = vpack.c.bf16 %v664, %v664
  %v740 = vunpack.c.l.s4 1983009808
  %v741 = vunpack.c.0.s8 %v740
  %v742 = vperm.slane %v738, %v741
  %v744 = vunpack.c.l.s4 1934713408
  %v745 = vunpack.c.0.s8 %v744
  %v746 = vperm.slane %v742, %v745
  %v747 = vrot.slane %v746, 4
  %v748 = vsel %vm491, 0, %v747
  %v749 = vrot.slane %v742, 4
  %v750 = vsel %vm491, 0, %v749
  %v753 = vpack.i.b16 %v718, %v692
  %v754 = vshrl.u32 %v692, 16
  %v755 = vshrl.u32 %v718, 16
  %v756 = vpack.i.b16 %v755, %v754
  %v759 = vpack.i.b16 %v720, %v694
  %v760 = vshrl.u32 %v694, 16
  %v761 = vshrl.u32 %v720, 16
  %v762 = vpack.i.b16 %v761, %v760
  %v765 = vpack.i.b16 %v724, %v698
  %v768 = vpack.i.b16 %v746, %v733
  %v769 = vshrl.u32 %v733, 16
  %v770 = vshrl.u32 %v746, 16
  %v771 = vpack.i.b16 %v770, %v769
  %v774 = vpack.i.b16 %v748, %v735
  %v775 = vshrl.u32 %v735, 16
  %v776 = vshrl.u32 %v748, 16
  %v777 = vpack.i.b16 %v776, %v775
  %v780 = vpack.i.b16 %v750, %v737
  %v781 = vunpack.c.l.b16 %v753
  %v782 = vunpack.c.l.b16 %v768
  %v783 = vpack.c.b16 %v782, %v781
  %v784 = vunpack.c.l.b16 %v756
  %v785 = vunpack.c.l.b16 %v771
  %v786 = vpack.c.b16 %v785, %v784
  %787 = vrot.lane.b32.xlu0 %v786, 64
  %v788 = vpop.permute.xlu0 %787
  %v789 = vunpack.c.l.b16 %v759
  %v790 = vunpack.c.l.b16 %v774
  %v791 = vpack.c.b16 %v790, %v789
  %v792 = vunpack.c.l.b16 %v762
  %v793 = vunpack.c.l.b16 %v777
  %v794 = vpack.c.b16 %v793, %v792
  %795 = vrot.lane.b32.xlu0 %v794, 64
  %v796 = vpop.permute.xlu0 %795
  %v797 = vunpack.c.l.b16 %v765
  %v798 = vunpack.c.l.b16 %v780
  %vm799 = vcmask 523264
  %v802 = vsel %vm799, %v783, %v788
  %v805 = vsel %vm799, %v791, %v796
  %v808 = vunpack.c.l.b16 %v802
  %v809 = vunpack.c.l.b16 %v805
  %v810 = vunpack.c.h.b16 %v802
  %v811 = vunpack.c.h.b16 %v805
  %v812 = vpack.c.b16 %v809, %v808
  %v813 = vpack.c.b16 %v797, %v797
  %v814 = vpack.c.b16 %v811, %v810
  %v815 = vpack.c.b16 %v798, %v798
  %820 = vst [vmem:[%s1] sm:$0xff] %v812
  %vm821 = vcmask 519168
  %822 = vst.msk [vmem:[%s1 + $0x8] sm:$0xf] %vm821, %v813
  %823 = vst [vmem:[%s1 + $0xc] sm:$0x11] %v814
  %vm824 = vcmask 516096
  %825 = vst.msk [vmem:[%s1 + $0x14] sm:$0x1] %vm824, %v815
  // Predicated region
  $region6: #{forward.8} parent=0 // pred_check
    _
  $region7: #{forward.8} parent=0 // pred_check_branch
    %827 = sbr.rel (0) target = $region9
  $region8: #{forward.8} parent=0 // pred_region
    _
  $region9: #{forward.8} parent=0 // pred_fallthru
    _
  // Predicated region
  $region10: #{forward.8} parent=0 // pred_check
    _
  $region11: #{forward.8} parent=0 // pred_check_branch
    %829 = sbr.rel (0) target = $region13
  $region12: #{forward.8} parent=0 // pred_region
    _
  $region13: #{forward.8} parent=0 // pred_fallthru
    _

// kernel: forward.9
$region0: #{forward.9}
  #allocation0 [shape = 'u32[]', space=smem, size = 0x4, offset = 0x4, fixed_abs, tag = 'smem constant byte address 0x4 - core index']
  #allocation1 [shape = 'u32[72,128]{1,0:T(1,128)}', space=vmem, size = 0x9000, scoped, tag = 'internal scratch']
  #allocation2 [shape = 'f32[2,256]{1,0:T(2,128)}', space=vmem, size = 0x800, scoped, tag = 'scratch operand']
  %s0 = inlined_call_operand.vmem [shape: bf16[2,1600], index: 0, kind: input, shape index: {}]
  %s1 = inlined_call_operand.vmem [shape: bf16[1600,2048], index: 1, kind: input, shape index: {}]
  %s2 = inlined_call_operand.vmem [shape: f32[1,2048], index: 2, kind: input, shape index: {}]
  %s3 = inlined_call_operand.vmem [shape: bf16[2048,256], index: 3, kind: input, shape index: {}]
  %s4 = inlined_call_operand.vmem [shape: f32[1,256], index: 4, kind: input, shape index: {}]
  %s5 = inlined_call_operand.vmem [shape: bf16[256,128], index: 5, kind: input, shape index: {}]
  %s6 = inlined_call_operand.vmem [shape: f32[1,128], index: 6, kind: input, shape index: {}]
  %s7 = inlined_call_operand.hbm [shape: f32[2,128], index: 7, kind: output, shape index: {}]
  %s8 = sld [smem:[#allocation0]]
  $region92: #{forward.9} parent=0
    _
  %s10 = ssub.s32 1, %s8
  %s11 = scalar_select 0, %s10, %s8
  $region1: #{forward.9} parent=0
    #allocation3 [shape = 'u8[3276800]{0}', space=vmem, size = 0x320000, scoped, tag = 'input window, operand 1']
    #allocation4 [shape = 'u8[1024]{0}', space=vmem, size = 0x400, scoped, tag = 'output window, operand 0, single buffered']
    #allocation5 [shape = 's32[2]{0}', space=sflag, size = 0x8, scoped, tag = 'scoped memory for forward.9']
    %12 = vsyncpa [#allocation5], 0
    loop: start=0, step=1, limit=6
    $region2: #{forward.9} parent=1 // loop_pre_header
      _
    $region3: #{forward.9} parent=1 // loop_header
      %s14 = sphi 0, %s18
      %p15 = scmp.ge.s32.totalorder %s14, 6
      %s22 = sphi 0, %s22
      %s24 = sphi 0, %s22
      %s25 = sphi 0, %s24
      %s39 = sphi 0, %s25
      %s45 = sphi 0, %s47
      %s48 = sphi 0, %s45
      %s49 = sphi 0, %s48
      %s65 = sphi 0, %s49
      %s71 = sphi 0, %s73
      %s74 = sphi 0, %s71
      %s75 = sphi 0, %s74
      %s91 = sphi 0, %s75
      %s97 = sphi 0, %s99
      %s100 = sphi 0, %s97
      %s101 = sphi 0, %s100
      %s117 = sphi 0, %s101
      %s121 = sphi 0, %s121
      %s123 = sphi 0, %s121
      %s124 = sphi 0, %s123
      %s138 = sphi 0, %s124
      %s142 = sphi 0, %s142
      %s144 = sphi 0, %s142
      %s145 = sphi 0, %s144
      %s159 = sphi 0, %s145
      %s163 = sphi 0, %s163
      %s165 = sphi 0, %s163
      %s166 = sphi 0, %s165
      %s180 = sphi 0, %s166
      %s184 = sphi 0, %s184
      %s186 = sphi 0, %s184
      %s187 = sphi 0, %s186
      %s201 = sphi 0, %s187
    $region4: #{forward.9} parent=1 // loop_header_branch
      %17 = sbr.rel (%p15) target = $region8
    $region5: #{forward.9} parent=1 // loop_body
      %s19 = ssub.s32 %s14, 1
      %s20 = ssub.s32 %s14, 2
      %s21 = sadd.s32 %s14, 1
      %s23 = sadd.s32 %s22, 1
      %p26 = scmp.eq.s32.totalorder %s14, 3
      %p27 = scmp.ne.s32.totalorder %s22, %s24
      %p28 = scmp.eq.s32.totalorder %s14, 0
      %p29 = por %p27, %p28
      %p30 = scmp.ne.s32.totalorder %s22, %s24
      %p31 = scmp.eq.s32.totalorder %s19, 3
      %p32 = por %p30, %p31
      %p33 = scmp.ne.s32.totalorder %s24, %s25
      %p34 = scmp.eq.s32.totalorder %s19, 0
      %p35 = por %p33, %p34
      %p36 = scmp.ne.s32.totalorder %s24, %s25
      %p37 = scmp.eq.s32.totalorder %s20, 3
      %p38 = por %p36, %p37
      %p40 = scmp.ne.s32.totalorder %s25, %s39
      %p41 = scmp.eq.s32.totalorder %s20, 0
      %p42 = por %p40, %p41
      %s43 = ssub.s32 %s14, %s21
      %p44 = scmp.eq.s32.totalorder %s43, 0
      %s46 = sadd.s32 %s45, 1
      %s47 = scalar_select %p44, %s45, %s46
      %p50 = pneg %p44
      %p51 = scmp.eq.s32.totalorder %s14, 3
      %p52 = por %p50, %p51
      %p53 = scmp.ne.s32.totalorder %s45, %s48
      %p54 = scmp.eq.s32.totalorder %s14, 0
      %p55 = por %p53, %p54
      %p56 = scmp.ne.s32.totalorder %s45, %s48
      %p57 = scmp.eq.s32.totalorder %s19, 3
      %p58 = por %p56, %p57
      %p59 = scmp.ne.s32.totalorder %s48, %s49
      %p60 = scmp.eq.s32.totalorder %s19, 0
      %p61 = por %p59, %p60
      %p62 = scmp.ne.s32.totalorder %s48, %s49
      %p63 = scmp.eq.s32.totalorder %s20, 3
      %p64 = por %p62, %p63
      %p66 = scmp.ne.s32.totalorder %s49, %s65
      %p67 = scmp.eq.s32.totalorder %s20, 0
      %p68 = por %p66, %p67
      %s69 = ssub.s32 %s14, %s21
      %p70 = scmp.eq.s32.totalorder %s69, 0
      %s72 = sadd.s32 %s71, 1
      %s73 = scalar_select %p70, %s71, %s72
      %p76 = pneg %p70
      %p77 = scmp.eq.s32.totalorder %s14, 3
      %p78 = por %p76, %p77
      %p79 = scmp.ne.s32.totalorder %s71, %s74
      %p80 = scmp.eq.s32.totalorder %s14, 0
      %p81 = por %p79, %p80
      %p82 = scmp.ne.s32.totalorder %s71, %s74
      %p83 = scmp.eq.s32.totalorder %s19, 3
      %p84 = por %p82, %p83
      %p85 = scmp.ne.s32.totalorder %s74, %s75
      %p86 = scmp.eq.s32.totalorder %s19, 0
      %p87 = por %p85, %p86
      %p88 = scmp.ne.s32.totalorder %s74, %s75
      %p89 = scmp.eq.s32.totalorder %s20, 3
      %p90 = por %p88, %p89
      %p92 = scmp.ne.s32.totalorder %s75, %s91
      %p93 = scmp.eq.s32.totalorder %s20, 0
      %p94 = por %p92, %p93
      %s95 = ssub.s32 %s14, %s21
      %p96 = scmp.eq.s32.totalorder %s95, 0
      %s98 = sadd.s32 %s97, 1
      %s99 = scalar_select %p96, %s97, %s98
      %p102 = pneg %p96
      %p103 = scmp.eq.s32.totalorder %s14, 3
      %p104 = por %p102, %p103
      %p105 = scmp.ne.s32.totalorder %s97, %s100
      %p106 = scmp.eq.s32.totalorder %s14, 0
      %p107 = por %p105, %p106
      %p108 = scmp.ne.s32.totalorder %s97, %s100
      %p109 = scmp.eq.s32.totalorder %s19, 3
      %p110 = por %p108, %p109
      %p111 = scmp.ne.s32.totalorder %s100, %s101
      %p112 = scmp.eq.s32.totalorder %s19, 0
      %p113 = por %p111, %p112
      %p114 = scmp.ne.s32.totalorder %s100, %s101
      %p115 = scmp.eq.s32.totalorder %s20, 3
      %p116 = por %p114, %p115
      %p118 = scmp.ne.s32.totalorder %s101, %s117
      %p119 = scmp.eq.s32.totalorder %s20, 0
      %p120 = por %p118, %p119
      %s122 = sadd.s32 %s121, 1
      %p125 = scmp.eq.s32.totalorder %s14, 3
      %p126 = scmp.ne.s32.totalorder %s121, %s123
      %p127 = scmp.eq.s32.totalorder %s14, 0
      %p128 = por %p126, %p127
      %p129 = scmp.ne.s32.totalorder %s121, %s123
      %p130 = scmp.eq.s32.totalorder %s19, 3
      %p131 = por %p129, %p130
      %p132 = scmp.ne.s32.totalorder %s123, %s124
      %p133 = scmp.eq.s32.totalorder %s19, 0
      %p134 = por %p132, %p133
      %p135 = scmp.ne.s32.totalorder %s123, %s124
      %p136 = scmp.eq.s32.totalorder %s20, 3
      %p137 = por %p135, %p136
      %p139 = scmp.ne.s32.totalorder %s124, %s138
      %p140 = scmp.eq.s32.totalorder %s20, 0
      %p141 = por %p139, %p140
      %s143 = sadd.s32 %s142, 1
      %p146 = scmp.eq.s32.totalorder %s14, 3
      %p147 = scmp.ne.s32.totalorder %s142, %s144
      %p148 = scmp.eq.s32.totalorder %s14, 0
      %p149 = por %p147, %p148
      %p150 = scmp.ne.s32.totalorder %s142, %s144
      %p151 = scmp.eq.s32.totalorder %s19, 3
      %p152 = por %p150, %p151
      %p153 = scmp.ne.s32.totalorder %s144, %s145
      %p154 = scmp.eq.s32.totalorder %s19, 0
      %p155 = por %p153, %p154
      %p156 = scmp.ne.s32.totalorder %s144, %s145
      %p157 = scmp.eq.s32.totalorder %s20, 3
      %p158 = por %p156, %p157
      %p160 = scmp.ne.s32.totalorder %s145, %s159
      %p161 = scmp.eq.s32.totalorder %s20, 0
      %p162 = por %p160, %p161
      %s164 = sadd.s32 %s163, 1
      %p167 = scmp.eq.s32.totalorder %s14, 3
      %p168 = scmp.ne.s32.totalorder %s163, %s165
      %p169 = scmp.eq.s32.totalorder %s14, 0
      %p170 = por %p168, %p169
      %p171 = scmp.ne.s32.totalorder %s163, %s165
      %p172 = scmp.eq.s32.totalorder %s19, 3
      %p173 = por %p171, %p172
      %p174 = scmp.ne.s32.totalorder %s165, %s166
      %p175 = scmp.eq.s32.totalorder %s19, 0
      %p176 = por %p174, %p175
      %p177 = scmp.ne.s32.totalorder %s165, %s166
      %p178 = scmp.eq.s32.totalorder %s20, 3
      %p179 = por %p177, %p178
      %p181 = scmp.ne.s32.totalorder %s166, %s180
      %p182 = scmp.eq.s32.totalorder %s20, 0
      %p183 = por %p181, %p182
      %s185 = sadd.s32 %s184, 1
      %p188 = scmp.eq.s32.totalorder %s14, 3
      %p189 = scmp.ne.s32.totalorder %s184, %s186
      %p190 = scmp.eq.s32.totalorder %s14, 0
      %p191 = por %p189, %p190
      %p192 = scmp.ne.s32.totalorder %s184, %s186
      %p193 = scmp.eq.s32.totalorder %s19, 3
      %p194 = por %p192, %p193
      %p195 = scmp.ne.s32.totalorder %s186, %s187
      %p196 = scmp.eq.s32.totalorder %s19, 0
      %p197 = por %p195, %p196
      %p198 = scmp.ne.s32.totalorder %s186, %s187
      %p199 = scmp.eq.s32.totalorder %s20, 3
      %p200 = por %p198, %p199
      %p202 = scmp.ne.s32.totalorder %s187, %s201
      %p203 = scmp.eq.s32.totalorder %s20, 0
      %p204 = por %p202, %p203
      %p205 = scmp.le.s32.totalorder 1, %s14
      %p206 = scmp.lt.s32.totalorder %s14, 5
      %p207 = pnand %p205, %p206
      %p208 = pneg %p207
      // Predicated region
      $region9: #{forward.9} parent=5 // pred_check
        _
      $region10: #{forward.9} parent=5 // pred_check_branch
        %210 = sbr.rel (%p207) target = $region12
      $region11: #{forward.9} parent=5 // pred_region
        %s211 = ssub.s32 %s14, 1
        // Predicated region
        $region13: #{forward.9} parent=11 // pred_check
          %p212 = pneg %p35
        $region14: #{forward.9} parent=11 // pred_check_branch
          %214 = sbr.rel (%p212) target = $region16
        $region15: #{forward.9} parent=11 // pred_region
          _
        $region16: #{forward.9} parent=11 // pred_fallthru
          _
        // Predicated region
        $region17: #{forward.9} parent=11 // pred_check
          %p215 = pneg %p134
        $region18: #{forward.9} parent=11 // pred_check_branch
          %217 = sbr.rel (%p215) target = $region20
        $region19: #{forward.9} parent=11 // pred_region
          _
        $region20: #{forward.9} parent=11 // pred_fallthru
          _
        // Predicated region
        $region21: #{forward.9} parent=11 // pred_check
          %p218 = pneg %p155
        $region22: #{forward.9} parent=11 // pred_check_branch
          %220 = sbr.rel (%p218) target = $region24
        $region23: #{forward.9} parent=11 // pred_region
          _
        $region24: #{forward.9} parent=11 // pred_fallthru
          _
        // Predicated region
        $region25: #{forward.9} parent=11 // pred_check
          %p221 = pneg %p176
        $region26: #{forward.9} parent=11 // pred_check_branch
          %223 = sbr.rel (%p221) target = $region28
        $region27: #{forward.9} parent=11 // pred_region
          _
        $region28: #{forward.9} parent=11 // pred_fallthru
          _
      $region12: #{forward.9} parent=5 // pred_fallthru
        _
      %p224 = scmp.lt.s32.totalorder %s14, 4
      // Predicated region
      $region29: #{forward.9} parent=5 // pred_check
        %p225 = pneg %p224
      $region30: #{forward.9} parent=5 // pred_check_branch
        %227 = sbr.rel (%p225) target = $region32
      $region31: #{forward.9} parent=5 // pred_region
        // Predicated region
        $region33: #{forward.9} parent=31 // pred_check
          %p228 = pneg %p55
        $region34: #{forward.9} parent=31 // pred_check_branch
          %230 = sbr.rel (%p228) target = $region36
        $region35: #{forward.9} parent=31 // pred_region
          %s231 = sand.u32 %s45, 1
          %s232 = sand.u32 %s45, 1
          %s233 = smul.addr %s232, 3200
          %s234 = scalar_lea.vmem [#allocation3], %s233
          %s235 = smul.u32 4, %s14
          %s236 = smul.addr %s235, 4
          %s237 = scalar_lea.vmem %s1, %s236
          // Predicated region
          $region37: #{forward.9} parent=35 // pred_check
            _
          $region38: #{forward.9} parent=35 // pred_check_branch
            %239 = sbr.rel (0) target = $region40
          $region39: #{forward.9} parent=35 // pred_region
            // Predicated region
            $region41: #{forward.9} parent=39 // pred_check
              _
            $region42: #{forward.9} parent=39 // pred_check_branch
              %241 = sbr.rel (0) target = $region44
            $region43: #{forward.9} parent=39 // pred_region
              loop: start=0, step=1, limit=1
              $region45: #{forward.9} parent=43 // loop_pre_header
                _
              $region46: #{forward.9} parent=43 // loop_header
                %s243 = sphi 0, %s247
                %p244 = scmp.ge.s32.totalorder %s243, 1
                %s248 = sphi %s237, %s237
                %s249 = sphi %s234, %s234
              $region47: #{forward.9} parent=43 // loop_header_branch
                %246 = sbr.rel (%p244) target = $region51
              $region48: #{forward.9} parent=43 // loop_body
                %v250 = vld [vmem:[%s248] sm:$0xff]
                %251 = vst [vmem:[%s249] sm:$0xff] %v250
                %v252 = vld [vmem:[%s248 + $0x8] sm:$0xff]
                %253 = vst [vmem:[%s249 + $0x8] sm:$0xff] %v252
                %v254 = vld [vmem:[%s248 + $0x40] sm:$0xff]
                %255 = vst [vmem:[%s249 + $0x10] sm:$0xff] %v254
                %v256 = vld [vmem:[%s248 + $0x48] sm:$0xff]
                %257 = vst [vmem:[%s249 + $0x18] sm:$0xff] %v256
                %v258 = vld [vmem:[%s248 + $0x80] sm:$0xff]
                %259 = vst [vmem:[%s249 + $0x20] sm:$0xff] %v258
                %v260 = vld [vmem:[%s248 + $0x88] sm:$0xff]
                %261 = vst [vmem:[%s249 + $0x28] sm:$0xff] %v260
                %v262 = vld [vmem:[%s248 + $0xc0] sm:$0xff]
                %263 = vst [vmem:[%s249 + $0x30] sm:$0xff] %v262
                %v264 = vld [vmem:[%s248 + $0xc8] sm:$0xff]
                %265 = vst [vmem:[%s249 + $0x38] sm:$0xff] %v264
                %v266 = vld [vmem:[%s248 + $0x100] sm:$0xff]
                %267 = vst [vmem:[%s249 + $0x40] sm:$0xff] %v266
                %v268 = vld [vmem:[%s248 + $0x108] sm:$0xff]
                %269 = vst [vmem:[%s249 + $0x48] sm:$0xff] %v268
                %v270 = vld [vmem:[%s248 + $0x140] sm:$0xff]
                %271 = vst [vmem:[%s249 + $0x50] sm:$0xff] %v270
                %v272 = vld [vmem:[%s248 + $0x148] sm:$0xff]
                %273 = vst [vmem:[%s249 + $0x58] sm:$0xff] %v272
                %v274 = vld [vmem:[%s248 + $0x180] sm:$0xff]
                %275 = vst [vmem:[%s249 + $0x60] sm:$0xff] %v274
                %v276 = vld [vmem:[%s248 + $0x188] sm:$0xff]
                %277 = vst [vmem:[%s249 + $0x68] sm:$0xff] %v276
                %v278 = vld [vmem:[%s248 + $0x1c0] sm:$0xff]
                %279 = vst [vmem:[%s249 + $0x70] sm:$0xff] %v278
                %v280 = vld [vmem:[%s248 + $0x1c8] sm:$0xff]
                %281 = vst [vmem:[%s249 + $0x78] sm:$0xff] %v280
                %v282 = vld [vmem:[%s248 + $0x200] sm:$0xff]
                %283 = vst [vmem:[%s249 + $0x80] sm:$0xff] %v282
                %v284 = vld [vmem:[%s248 + $0x208] sm:$0xff]
                %285 = vst [vmem:[%s249 + $0x88] sm:$0xff] %v284
                %v286 = vld [vmem:[%s248 + $0x240] sm:$0xff]
                %287 = vst [vmem:[%s249 + $0x90] sm:$0xff] %v286
                %v288 = vld [vmem:[%s248 + $0x248] sm:$0xff]
                %289 = vst [vmem:[%s249 + $0x98] sm:$0xff] %v288
                %v290 = vld [vmem:[%s248 + $0x280] sm:$0xff]
                %291 = vst [vmem:[%s249 + $0xa0] sm:$0xff] %v290
                %v292 = vld [vmem:[%s248 + $0x288] sm:$0xff]
                %293 = vst [vmem:[%s249 + $0xa8] sm:$0xff] %v292
                %v294 = vld [vmem:[%s248 + $0x2c0] sm:$0xff]
                %295 = vst [vmem:[%s249 + $0xb0] sm:$0xff] %v294
                %v296 = vld [vmem:[%s248 + $0x2c8] sm:$0xff]
                %297 = vst [vmem:[%s249 + $0xb8] sm:$0xff] %v296
                %v298 = vld [vmem:[%s248 + $0x300] sm:$0xff]
                %299 = vst [vmem:[%s249 + $0xc0] sm:$0xff] %v298
                %v300 = vld [vmem:[%s248 + $0x308] sm:$0xff]
                %301 = vst [vmem:[%s249 + $0xc8] sm:$0xff] %v300
                %v302 = vld [vmem:[%s248 + $0x340] sm:$0xff]
                %303 = vst [vmem:[%s249 + $0xd0] sm:$0xff] %v302
                %v304 = vld [vmem:[%s248 + $0x348] sm:$0xff]
                %305 = vst [vmem:[%s249 + $0xd8] sm:$0xff] %v304
                %v306 = vld [vmem:[%s248 + $0x380] sm:$0xff]
                %307 = vst [vmem:[%s249 + $0xe0] sm:$0xff] %v306
                %v308 = vld [vmem:[%s248 + $0x388] sm:$0xff]
                %309 = vst [vmem:[%s249 + $0xe8] sm:$0xff] %v308
                %v310 = vld [vmem:[%s248 + $0x3c0] sm:$0xff]
                %311 = vst [vmem:[%s249 + $0xf0] sm:$0xff] %v310
                %v312 = vld [vmem:[%s248 + $0x3c8] sm:$0xff]
                %313 = vst [vmem:[%s249 + $0xf8] sm:$0xff] %v312
                %v314 = vld [vmem:[%s248 + $0x400] sm:$0xff]
                %315 = vst [vmem:[%s249 + $0x100] sm:$0xff] %v314
                %v316 = vld [vmem:[%s248 + $0x408] sm:$0xff]
                %317 = vst [vmem:[%s249 + $0x108] sm:$0xff] %v316
                %v318 = vld [vmem:[%s248 + $0x440] sm:$0xff]
                %319 = vst [vmem:[%s249 + $0x110] sm:$0xff] %v318
                %v320 = vld [vmem:[%s248 + $0x448] sm:$0xff]
                %321 = vst [vmem:[%s249 + $0x118] sm:$0xff] %v320
                %v322 = vld [vmem:[%s248 + $0x480] sm:$0xff]
                %323 = vst [vmem:[%s249 + $0x120] sm:$0xff] %v322
                %v324 = vld [vmem:[%s248 + $0x488] sm:$0xff]
                %325 = vst [vmem:[%s249 + $0x128] sm:$0xff] %v324
                %v326 = vld [vmem:[%s248 + $0x4c0] sm:$0xff]
                %327 = vst [vmem:[%s249 + $0x130] sm:$0xff] %v326
                %v328 = vld [vmem:[%s248 + $0x4c8] sm:$0xff]
                %329 = vst [vmem:[%s249 + $0x138] sm:$0xff] %v328
                %v330 = vld [vmem:[%s248 + $0x500] sm:$0xff]
                %331 = vst [vmem:[%s249 + $0x140] sm:$0xff] %v330
                %v332 = vld [vmem:[%s248 + $0x508] sm:$0xff]
                %333 = vst [vmem:[%s249 + $0x148] sm:$0xff] %v332
                %v334 = vld [vmem:[%s248 + $0x540] sm:$0xff]
                %335 = vst [vmem:[%s249 + $0x150] sm:$0xff] %v334
                %v336 = vld [vmem:[%s248 + $0x548] sm:$0xff]
                %337 = vst [vmem:[%s249 + $0x158] sm:$0xff] %v336
                %v338 = vld [vmem:[%s248 + $0x580] sm:$0xff]
                %339 = vst [vmem:[%s249 + $0x160] sm:$0xff] %v338
                %v340 = vld [vmem:[%s248 + $0x588] sm:$0xff]
                %341 = vst [vmem:[%s249 + $0x168] sm:$0xff] %v340
                %v342 = vld [vmem:[%s248 + $0x5c0] sm:$0xff]
                %343 = vst [vmem:[%s249 + $0x170] sm:$0xff] %v342
                %v344 = vld [vmem:[%s248 + $0x5c8] sm:$0xff]
                %345 = vst [vmem:[%s249 + $0x178] sm:$0xff] %v344
                %v346 = vld [vmem:[%s248 + $0x600] sm:$0xff]
                %347 = vst [vmem:[%s249 + $0x180] sm:$0xff] %v346
                %v348 = vld [vmem:[%s248 + $0x608] sm:$0xff]
                %349 = vst [vmem:[%s249 + $0x188] sm:$0xff] %v348
                %v350 = vld [vmem:[%s248 + $0x640] sm:$0xff]
                %351 = vst [vmem:[%s249 + $0x190] sm:$0xff] %v350
                %v352 = vld [vmem:[%s248 + $0x648] sm:$0xff]
                %353 = vst [vmem:[%s249 + $0x198] sm:$0xff] %v352
                %v354 = vld [vmem:[%s248 + $0x680] sm:$0xff]
                %355 = vst [vmem:[%s249 + $0x1a0] sm:$0xff] %v354
                %v356 = vld [vmem:[%s248 + $0x688] sm:$0xff]
                %357 = vst [vmem:[%s249 + $0x1a8] sm:$0xff] %v356
                %v358 = vld [vmem:[%s248 + $0x6c0] sm:$0xff]
                %359 = vst [vmem:[%s249 + $0x1b0] sm:$0xff] %v358
                %v360 = vld [vmem:[%s248 + $0x6c8] sm:$0xff]
                %361 = vst [vmem:[%s249 + $0x1b8] sm:$0xff] %v360
                %v362 = vld [vmem:[%s248 + $0x700] sm:$0xff]
                %363 = vst [vmem:[%s249 + $0x1c0] sm:$0xff] %v362
                %v364 = vld [vmem:[%s248 + $0x708] sm:$0xff]
                %365 = vst [vmem:[%s249 + $0x1c8] sm:$0xff] %v364
                %v366 = vld [vmem:[%s248 + $0x740] sm:$0xff]
                %367 = vst [vmem:[%s249 + $0x1d0] sm:$0xff] %v366
                %v368 = vld [vmem:[%s248 + $0x748] sm:$0xff]
                %369 = vst [vmem:[%s249 + $0x1d8] sm:$0xff] %v368
                %v370 = vld [vmem:[%s248 + $0x780] sm:$0xff]
                %371 = vst [vmem:[%s249 + $0x1e0] sm:$0xff] %v370
                %v372 = vld [vmem:[%s248 + $0x788] sm:$0xff]
                %373 = vst [vmem:[%s249 + $0x1e8] sm:$0xff] %v372
                %v374 = vld [vmem:[%s248 + $0x7c0] sm:$0xff]
                %375 = vst [vmem:[%s249 + $0x1f0] sm:$0xff] %v374
                %v376 = vld [vmem:[%s248 + $0x7c8] sm:$0xff]
                %377 = vst [vmem:[%s249 + $0x1f8] sm:$0xff] %v376
                %v378 = vld [vmem:[%s248 + $0x800] sm:$0xff]
                %379 = vst [vmem:[%s249 + $0x200] sm:$0xff] %v378
                %v380 = vld [vmem:[%s248 + $0x808] sm:$0xff]
                %381 = vst [vmem:[%s249 + $0x208] sm:$0xff] %v380
                %v382 = vld [vmem:[%s248 + $0x840] sm:$0xff]
                %383 = vst [vmem:[%s249 + $0x210] sm:$0xff] %v382
                %v384 = vld [vmem:[%s248 + $0x848] sm:$0xff]
                %385 = vst [vmem:[%s249 + $0x218] sm:$0xff] %v384
                %v386 = vld [vmem:[%s248 + $0x880] sm:$0xff]
                %387 = vst [vmem:[%s249 + $0x220] sm:$0xff] %v386
                %v388 = vld [vmem:[%s248 + $0x888] sm:$0xff]
                %389 = vst [vmem:[%s249 + $0x228] sm:$0xff] %v388
                %v390 = vld [vmem:[%s248 + $0x8c0] sm:$0xff]
                %391 = vst [vmem:[%s249 + $0x230] sm:$0xff] %v390
                %v392 = vld [vmem:[%s248 + $0x8c8] sm:$0xff]
                %393 = vst [vmem:[%s249 + $0x238] sm:$0xff] %v392
                %v394 = vld [vmem:[%s248 + $0x900] sm:$0xff]
                %395 = vst [vmem:[%s249 + $0x240] sm:$0xff] %v394
                %v396 = vld [vmem:[%s248 + $0x908] sm:$0xff]
                %397 = vst [vmem:[%s249 + $0x248] sm:$0xff] %v396
                %v398 = vld [vmem:[%s248 + $0x940] sm:$0xff]
                %399 = vst [vmem:[%s249 + $0x250] sm:$0xff] %v398
                %v400 = vld [vmem:[%s248 + $0x948] sm:$0xff]
                %401 = vst [vmem:[%s249 + $0x258] sm:$0xff] %v400
                %v402 = vld [vmem:[%s248 + $0x980] sm:$0xff]
                %403 = vst [vmem:[%s249 + $0x260] sm:$0xff] %v402
                %v404 = vld [vmem:[%s248 + $0x988] sm:$0xff]
                %405 = vst [vmem:[%s249 + $0x268] sm:$0xff] %v404
                %v406 = vld [vmem:[%s248 + $0x9c0] sm:$0xff]
                %407 = vst [vmem:[%s249 + $0x270] sm:$0xff] %v406
                %v408 = vld [vmem:[%s248 + $0x9c8] sm:$0xff]
                %409 = vst [vmem:[%s249 + $0x278] sm:$0xff] %v408
                %v410 = vld [vmem:[%s248 + $0xa00] sm:$0xff]
                %411 = vst [vmem:[%s249 + $0x280] sm:$0xff] %v410
                %v412 = vld [vmem:[%s248 + $0xa08] sm:$0xff]
                %413 = vst [vmem:[%s249 + $0x288] sm:$0xff] %v412
                %v414 = vld [vmem:[%s248 + $0xa40] sm:$0xff]
                %415 = vst [vmem:[%s249 + $0x290] sm:$0xff] %v414
                %v416 = vld [vmem:[%s248 + $0xa48] sm:$0xff]
                %417 = vst [vmem:[%s249 + $0x298] sm:$0xff] %v416
                %v418 = vld [vmem:[%s248 + $0xa80] sm:$0xff]
                %419 = vst [vmem:[%s249 + $0x2a0] sm:$0xff] %v418
                %v420 = vld [vmem:[%s248 + $0xa88] sm:$0xff]
                %421 = vst [vmem:[%s249 + $0x2a8] sm:$0xff] %v420
                %v422 = vld [vmem:[%s248 + $0xac0] sm:$0xff]
                %423 = vst [vmem:[%s249 + $0x2b0] sm:$0xff] %v422
                %v424 = vld [vmem:[%s248 + $0xac8] sm:$0xff]
                %425 = vst [vmem:[%s249 + $0x2b8] sm:$0xff] %v424
                %v426 = vld [vmem:[%s248 + $0xb00] sm:$0xff]
                %427 = vst [vmem:[%s249 + $0x2c0] sm:$0xff] %v426
                %v428 = vld [vmem:[%s248 + $0xb08] sm:$0xff]
                %429 = vst [vmem:[%s249 + $0x2c8] sm:$0xff] %v428
                %v430 = vld [vmem:[%s248 + $0xb40] sm:$0xff]
                %431 = vst [vmem:[%s249 + $0x2d0] sm:$0xff] %v430
                %v432 = vld [vmem:[%s248 + $0xb48] sm:$0xff]
                %433 = vst [vmem:[%s249 + $0x2d8] sm:$0xff] %v432
                %v434 = vld [vmem:[%s248 + $0xb80] sm:$0xff]
                %435 = vst [vmem:[%s249 + $0x2e0] sm:$0xff] %v434
                %v436 = vld [vmem:[%s248 + $0xb88] sm:$0xff]
                %437 = vst [vmem:[%s249 + $0x2e8] sm:$0xff] %v436
                %v438 = vld [vmem:[%s248 + $0xbc0] sm:$0xff]
                %439 = vst [vmem:[%s249 + $0x2f0] sm:$0xff] %v438
                %v440 = vld [vmem:[%s248 + $0xbc8] sm:$0xff]
                %441 = vst [vmem:[%s249 + $0x2f8] sm:$0xff] %v440
                %v442 = vld [vmem:[%s248 + $0xc00] sm:$0xff]
                %443 = vst [vmem:[%s249 + $0x300] sm:$0xff] %v442
                %v444 = vld [vmem:[%s248 + $0xc08] sm:$0xff]
                %445 = vst [vmem:[%s249 + $0x308] sm:$0xff] %v444
                %v446 = vld [vmem:[%s248 + $0xc40] sm:$0xff]
                %447 = vst [vmem:[%s249 + $0x310] sm:$0xff] %v446
                %v448 = vld [vmem:[%s248 + $0xc48] sm:$0xff]
                %449 = vst [vmem:[%s249 + $0x318] sm:$0xff] %v448
                %v450 = vld [vmem:[%s248 + $0xc80] sm:$0xff]
                %451 = vst [vmem:[%s249 + $0x320] sm:$0xff] %v450
                %v452 = vld [vmem:[%s248 + $0xc88] sm:$0xff]
                %453 = vst [vmem:[%s249 + $0x328] sm:$0xff] %v452
                %v454 = vld [vmem:[%s248 + $0xcc0] sm:$0xff]
                %455 = vst [vmem:[%s249 + $0x330] sm:$0xff] %v454
                %v456 = vld [vmem:[%s248 + $0xcc8] sm:$0xff]
                %457 = vst [vmem:[%s249 + $0x338] sm:$0xff] %v456
                %v458 = vld [vmem:[%s248 + $0xd00] sm:$0xff]
                %459 = vst [vmem:[%s249 + $0x340] sm:$0xff] %v458
                %v460 = vld [vmem:[%s248 + $0xd08] sm:$0xff]
                %461 = vst [vmem:[%s249 + $0x348] sm:$0xff] %v460
                %v462 = vld [vmem:[%s248 + $0xd40] sm:$0xff]
                %463 = vst [vmem:[%s249 + $0x350] sm:$0xff] %v462
                %v464 = vld [vmem:[%s248 + $0xd48] sm:$0xff]
                %465 = vst [vmem:[%s249 + $0x358] sm:$0xff] %v464
                %v466 = vld [vmem:[%s248 + $0xd80] sm:$0xff]
                %467 = vst [vmem:[%s249 + $0x360] sm:$0xff] %v466
                %v468 = vld [vmem:[%s248 + $0xd88] sm:$0xff]
                %469 = vst [vmem:[%s249 + $0x368] sm:$0xff] %v468
                %v470 = vld [vmem:[%s248 + $0xdc0] sm:$0xff]
                %471 = vst [vmem:[%s249 + $0x370] sm:$0xff] %v470
                %v472 = vld [vmem:[%s248 + $0xdc8] sm:$0xff]
                %473 = vst [vmem:[%s249 + $0x378] sm:$0xff] %v472
                %v474 = vld [vmem:[%s248 + $0xe00] sm:$0xff]
                %475 = vst [vmem:[%s249 + $0x380] sm:$0xff] %v474
                %v476 = vld [vmem:[%s248 + $0xe08] sm:$0xff]
                %477 = vst [vmem:[%s249 + $0x388] sm:$0xff] %v476
                %v478 = vld [vmem:[%s248 + $0xe40] sm:$0xff]
                %479 = vst [vmem:[%s249 + $0x390] sm:$0xff] %v478
                %v480 = vld [vmem:[%s248 + $0xe48] sm:$0xff]
                %481 = vst [vmem:[%s249 + $0x398] sm:$0xff] %v480
                %v482 = vld [vmem:[%s248 + $0xe80] sm:$0xff]
                %483 = vst [vmem:[%s249 + $0x3a0] sm:$0xff] %v482
                %v484 = vld [vmem:[%s248 + $0xe88] sm:$0xff]
                %485 = vst [vmem:[%s249 + $0x3a8] sm:$0xff] %v484
                %v486 = vld [vmem:[%s248 + $0xec0] sm:$0xff]
                %487 = vst [vmem:[%s249 + $0x3b0] sm:$0xff] %v486
                %v488 = vld [vmem:[%s248 + $0xec8] sm:$0xff]
                %489 = vst [vmem:[%s249 + $0x3b8] sm:$0xff] %v488
                %v490 = vld [vmem:[%s248 + $0xf00] sm:$0xff]
                %491 = vst [vmem:[%s249 + $0x3c0] sm:$0xff] %v490
                %v492 = vld [vmem:[%s248 + $0xf08] sm:$0xff]
                %493 = vst [vmem:[%s249 + $0x3c8] sm:$0xff] %v492
                %v494 = vld [vmem:[%s248 + $0xf40] sm:$0xff]
                %495 = vst [vmem:[%s249 + $0x3d0] sm:$0xff] %v494
                %v496 = vld [vmem:[%s248 + $0xf48] sm:$0xff]
                %497 = vst [vmem:[%s249 + $0x3d8] sm:$0xff] %v496
                %v498 = vld [vmem:[%s248 + $0xf80] sm:$0xff]
                %499 = vst [vmem:[%s249 + $0x3e0] sm:$0xff] %v498
                %v500 = vld [vmem:[%s248 + $0xf88] sm:$0xff]
                %501 = vst [vmem:[%s249 + $0x3e8] sm:$0xff] %v500
                %v502 = vld [vmem:[%s248 + $0xfc0] sm:$0xff]
                %503 = vst [vmem:[%s249 + $0x3f0] sm:$0xff] %v502
                %v504 = vld [vmem:[%s248 + $0xfc8] sm:$0xff]
                %505 = vst [vmem:[%s249 + $0x3f8] sm:$0xff] %v504
                %v506 = vld [vmem:[%s248 + $0x1000] sm:$0xff]
                %507 = vst [vmem:[%s249 + $0x400] sm:$0xff] %v506
                %v508 = vld [vmem:[%s248 + $0x1008] sm:$0xff]
                %509 = vst [vmem:[%s249 + $0x408] sm:$0xff] %v508
                %v510 = vld [vmem:[%s248 + $0x1040] sm:$0xff]
                %511 = vst [vmem:[%s249 + $0x410] sm:$0xff] %v510
                %v512 = vld [vmem:[%s248 + $0x1048] sm:$0xff]
                %513 = vst [vmem:[%s249 + $0x418] sm:$0xff] %v512
                %v514 = vld [vmem:[%s248 + $0x1080] sm:$0xff]
                %515 = vst [vmem:[%s249 + $0x420] sm:$0xff] %v514
                %v516 = vld [vmem:[%s248 + $0x1088] sm:$0xff]
                %517 = vst [vmem:[%s249 + $0x428] sm:$0xff] %v516
                %v518 = vld [vmem:[%s248 + $0x10c0] sm:$0xff]
                %519 = vst [vmem:[%s249 + $0x430] sm:$0xff] %v518
                %v520 = vld [vmem:[%s248 + $0x10c8] sm:$0xff]
                %521 = vst [vmem:[%s249 + $0x438] sm:$0xff] %v520
                %v522 = vld [vmem:[%s248 + $0x1100] sm:$0xff]
                %523 = vst [vmem:[%s249 + $0x440] sm:$0xff] %v522
                %v524 = vld [vmem:[%s248 + $0x1108] sm:$0xff]
                %525 = vst [vmem:[%s249 + $0x448] sm:$0xff] %v524
                %v526 = vld [vmem:[%s248 + $0x1140] sm:$0xff]
                %527 = vst [vmem:[%s249 + $0x450] sm:$0xff] %v526
                %v528 = vld [vmem:[%s248 + $0x1148] sm:$0xff]
                %529 = vst [vmem:[%s249 + $0x458] sm:$0xff] %v528
                %v530 = vld [vmem:[%s248 + $0x1180] sm:$0xff]
                %531 = vst [vmem:[%s249 + $0x460] sm:$0xff] %v530
                %v532 = vld [vmem:[%s248 + $0x1188] sm:$0xff]
                %533 = vst [vmem:[%s249 + $0x468] sm:$0xff] %v532
                %v534 = vld [vmem:[%s248 + $0x11c0] sm:$0xff]
                %535 = vst [vmem:[%s249 + $0x470] sm:$0xff] %v534
                %v536 = vld [vmem:[%s248 + $0x11c8] sm:$0xff]
                %537 = vst [vmem:[%s249 + $0x478] sm:$0xff] %v536
                %v538 = vld [vmem:[%s248 + $0x1200] sm:$0xff]
                %539 = vst [vmem:[%s249 + $0x480] sm:$0xff] %v538
                %v540 = vld [vmem:[%s248 + $0x1208] sm:$0xff]
                %541 = vst [vmem:[%s249 + $0x488] sm:$0xff] %v540
                %v542 = vld [vmem:[%s248 + $0x1240] sm:$0xff]
                %543 = vst [vmem:[%s249 + $0x490] sm:$0xff] %v542
                %v544 = vld [vmem:[%s248 + $0x1248] sm:$0xff]
                %545 = vst [vmem:[%s249 + $0x498] sm:$0xff] %v544
                %v546 = vld [vmem:[%s248 + $0x1280] sm:$0xff]
                %547 = vst [vmem:[%s249 + $0x4a0] sm:$0xff] %v546
                %v548 = vld [vmem:[%s248 + $0x1288] sm:$0xff]
                %549 = vst [vmem:[%s249 + $0x4a8] sm:$0xff] %v548
                %v550 = vld [vmem:[%s248 + $0x12c0] sm:$0xff]
                %551 = vst [vmem:[%s249 + $0x4b0] sm:$0xff] %v550
                %v552 = vld [vmem:[%s248 + $0x12c8] sm:$0xff]
                %553 = vst [vmem:[%s249 + $0x4b8] sm:$0xff] %v552
                %v554 = vld [vmem:[%s248 + $0x1300] sm:$0xff]
                %555 = vst [vmem:[%s249 + $0x4c0] sm:$0xff] %v554
                %v556 = vld [vmem:[%s248 + $0x1308] sm:$0xff]
                %557 = vst [vmem:[%s249 + $0x4c8] sm:$0xff] %v556
                %v558 = vld [vmem:[%s248 + $0x1340] sm:$0xff]
                %559 = vst [vmem:[%s249 + $0x4d0] sm:$0xff] %v558
                %v560 = vld [vmem:[%s248 + $0x1348] sm:$0xff]
                %561 = vst [vmem:[%s249 + $0x4d8] sm:$0xff] %v560
                %v562 = vld [vmem:[%s248 + $0x1380] sm:$0xff]
                %563 = vst [vmem:[%s249 + $0x4e0] sm:$0xff] %v562
                %v564 = vld [vmem:[%s248 + $0x1388] sm:$0xff]
                %565 = vst [vmem:[%s249 + $0x4e8] sm:$0xff] %v564
                %v566 = vld [vmem:[%s248 + $0x13c0] sm:$0xff]
                %567 = vst [vmem:[%s249 + $0x4f0] sm:$0xff] %v566
                %v568 = vld [vmem:[%s248 + $0x13c8] sm:$0xff]
                %569 = vst [vmem:[%s249 + $0x4f8] sm:$0xff] %v568
                %v570 = vld [vmem:[%s248 + $0x1400] sm:$0xff]
                %571 = vst [vmem:[%s249 + $0x500] sm:$0xff] %v570
                %v572 = vld [vmem:[%s248 + $0x1408] sm:$0xff]
                %573 = vst [vmem:[%s249 + $0x508] sm:$0xff] %v572
                %v574 = vld [vmem:[%s248 + $0x1440] sm:$0xff]
                %575 = vst [vmem:[%s249 + $0x510] sm:$0xff] %v574
                %v576 = vld [vmem:[%s248 + $0x1448] sm:$0xff]
                %577 = vst [vmem:[%s249 + $0x518] sm:$0xff] %v576
                %v578 = vld [vmem:[%s248 + $0x1480] sm:$0xff]
                %579 = vst [vmem:[%s249 + $0x520] sm:$0xff] %v578
                %v580 = vld [vmem:[%s248 + $0x1488] sm:$0xff]
                %581 = vst [vmem:[%s249 + $0x528] sm:$0xff] %v580
                %v582 = vld [vmem:[%s248 + $0x14c0] sm:$0xff]
                %583 = vst [vmem:[%s249 + $0x530] sm:$0xff] %v582
                %v584 = vld [vmem:[%s248 + $0x14c8] sm:$0xff]
                %585 = vst [vmem:[%s249 + $0x538] sm:$0xff] %v584
                %v586 = vld [vmem:[%s248 + $0x1500] sm:$0xff]
                %587 = vst [vmem:[%s249 + $0x540] sm:$0xff] %v586
                %v588 = vld [vmem:[%s248 + $0x1508] sm:$0xff]
                %589 = vst [vmem:[%s249 + $0x548] sm:$0xff] %v588
                %v590 = vld [vmem:[%s248 + $0x1540] sm:$0xff]
                %591 = vst [vmem:[%s249 + $0x550] sm:$0xff] %v590
                %v592 = vld [vmem:[%s248 + $0x1548] sm:$0xff]
                %593 = vst [vmem:[%s249 + $0x558] sm:$0xff] %v592
                %v594 = vld [vmem:[%s248 + $0x1580] sm:$0xff]
                %595 = vst [vmem:[%s249 + $0x560] sm:$0xff] %v594
                %v596 = vld [vmem:[%s248 + $0x1588] sm:$0xff]
                %597 = vst [vmem:[%s249 + $0x568] sm:$0xff] %v596
                %v598 = vld [vmem:[%s248 + $0x15c0] sm:$0xff]
                %599 = vst [vmem:[%s249 + $0x570] sm:$0xff] %v598
                %v600 = vld [vmem:[%s248 + $0x15c8] sm:$0xff]
                %601 = vst [vmem:[%s249 + $0x578] sm:$0xff] %v600
                %v602 = vld [vmem:[%s248 + $0x1600] sm:$0xff]
                %603 = vst [vmem:[%s249 + $0x580] sm:$0xff] %v602
                %v604 = vld [vmem:[%s248 + $0x1608] sm:$0xff]
                %605 = vst [vmem:[%s249 + $0x588] sm:$0xff] %v604
                %v606 = vld [vmem:[%s248 + $0x1640] sm:$0xff]
                %607 = vst [vmem:[%s249 + $0x590] sm:$0xff] %v606
                %v608 = vld [vmem:[%s248 + $0x1648] sm:$0xff]
                %609 = vst [vmem:[%s249 + $0x598] sm:$0xff] %v608
                %v610 = vld [vmem:[%s248 + $0x1680] sm:$0xff]
                %611 = vst [vmem:[%s249 + $0x5a0] sm:$0xff] %v610
                %v612 = vld [vmem:[%s248 + $0x1688] sm:$0xff]
                %613 = vst [vmem:[%s249 + $0x5a8] sm:$0xff] %v612
                %v614 = vld [vmem:[%s248 + $0x16c0] sm:$0xff]
                %615 = vst [vmem:[%s249 + $0x5b0] sm:$0xff] %v614
                %v616 = vld [vmem:[%s248 + $0x16c8] sm:$0xff]
                %617 = vst [vmem:[%s249 + $0x5b8] sm:$0xff] %v616
                %v618 = vld [vmem:[%s248 + $0x1700] sm:$0xff]
                %619 = vst [vmem:[%s249 + $0x5c0] sm:$0xff] %v618
                %v620 = vld [vmem:[%s248 + $0x1708] sm:$0xff]
                %621 = vst [vmem:[%s249 + $0x5c8] sm:$0xff] %v620
                %v622 = vld [vmem:[%s248 + $0x1740] sm:$0xff]
                %623 = vst [vmem:[%s249 + $0x5d0] sm:$0xff] %v622
                %v624 = vld [vmem:[%s248 + $0x1748] sm:$0xff]
                %625 = vst [vmem:[%s249 + $0x5d8] sm:$0xff] %v624
                %v626 = vld [vmem:[%s248 + $0x1780] sm:$0xff]
                %627 = vst [vmem:[%s249 + $0x5e0] sm:$0xff] %v626
                %v628 = vld [vmem:[%s248 + $0x1788] sm:$0xff]
                %629 = vst [vmem:[%s249 + $0x5e8] sm:$0xff] %v628
                %v630 = vld [vmem:[%s248 + $0x17c0] sm:$0xff]
                %631 = vst [vmem:[%s249 + $0x5f0] sm:$0xff] %v630
                %v632 = vld [vmem:[%s248 + $0x17c8] sm:$0xff]
                %633 = vst [vmem:[%s249 + $0x5f8] sm:$0xff] %v632
                %v634 = vld [vmem:[%s248 + $0x1800] sm:$0xff]
                %635 = vst [vmem:[%s249 + $0x600] sm:$0xff] %v634
                %v636 = vld [vmem:[%s248 + $0x1808] sm:$0xff]
                %637 = vst [vmem:[%s249 + $0x608] sm:$0xff] %v636
                %v638 = vld [vmem:[%s248 + $0x1840] sm:$0xff]
                %639 = vst [vmem:[%s249 + $0x610] sm:$0xff] %v638
                %v640 = vld [vmem:[%s248 + $0x1848] sm:$0xff]
                %641 = vst [vmem:[%s249 + $0x618] sm:$0xff] %v640
                %v642 = vld [vmem:[%s248 + $0x1880] sm:$0xff]
                %643 = vst [vmem:[%s249 + $0x620] sm:$0xff] %v642
                %v644 = vld [vmem:[%s248 + $0x1888] sm:$0xff]
                %645 = vst [vmem:[%s249 + $0x628] sm:$0xff] %v644
                %v646 = vld [vmem:[%s248 + $0x18c0] sm:$0xff]
                %647 = vst [vmem:[%s249 + $0x630] sm:$0xff] %v646
                %v648 = vld [vmem:[%s248 + $0x18c8] sm:$0xff]
                %649 = vst [vmem:[%s249 + $0x638] sm:$0xff] %v648
                %v650 = vld [vmem:[%s248 + $0x1900] sm:$0xff]
                %651 = vst [vmem:[%s249 + $0x640] sm:$0xff] %v650
                %v652 = vld [vmem:[%s248 + $0x1908] sm:$0xff]
                %653 = vst [vmem:[%s249 + $0x648] sm:$0xff] %v652
                %v654 = vld [vmem:[%s248 + $0x1940] sm:$0xff]
                %655 = vst [vmem:[%s249 + $0x650] sm:$0xff] %v654
                %v656 = vld [vmem:[%s248 + $0x1948] sm:$0xff]
                %657 = vst [vmem:[%s249 + $0x658] sm:$0xff] %v656
                %v658 = vld [vmem:[%s248 + $0x1980] sm:$0xff]
                %659 = vst [vmem:[%s249 + $0x660] sm:$0xff] %v658
                %v660 = vld [vmem:[%s248 + $0x1988] sm:$0xff]
                %661 = vst [vmem:[%s249 + $0x668] sm:$0xff] %v660
                %v662 = vld [vmem:[%s248 + $0x19c0] sm:$0xff]
                %663 = vst [vmem:[%s249 + $0x670] sm:$0xff] %v662
                %v664 = vld [vmem:[%s248 + $0x19c8] sm:$0xff]
                %665 = vst [vmem:[%s249 + $0x678] sm:$0xff] %v664
                %v666 = vld [vmem:[%s248 + $0x1a00] sm:$0xff]
                %667 = vst [vmem:[%s249 + $0x680] sm:$0xff] %v666
                %v668 = vld [vmem:[%s248 + $0x1a08] sm:$0xff]
                %669 = vst [vmem:[%s249 + $0x688] sm:$0xff] %v668
                %v670 = vld [vmem:[%s248 + $0x1a40] sm:$0xff]
                %671 = vst [vmem:[%s249 + $0x690] sm:$0xff] %v670
                %v672 = vld [vmem:[%s248 + $0x1a48] sm:$0xff]
                %673 = vst [vmem:[%s249 + $0x698] sm:$0xff] %v672
                %v674 = vld [vmem:[%s248 + $0x1a80] sm:$0xff]
                %675 = vst [vmem:[%s249 + $0x6a0] sm:$0xff] %v674
                %v676 = vld [vmem:[%s248 + $0x1a88] sm:$0xff]
                %677 = vst [vmem:[%s249 + $0x6a8] sm:$0xff] %v676
                %v678 = vld [vmem:[%s248 + $0x1ac0] sm:$0xff]
                %679 = vst [vmem:[%s249 + $0x6b0] sm:$0xff] %v678
                %v680 = vld [vmem:[%s248 + $0x1ac8] sm:$0xff]
                %681 = vst [vmem:[%s249 + $0x6b8] sm:$0xff] %v680
                %v682 = vld [vmem:[%s248 + $0x1b00] sm:$0xff]
                %683 = vst [vmem:[%s249 + $0x6c0] sm:$0xff] %v682
                %v684 = vld [vmem:[%s248 + $0x1b08] sm:$0xff]
                %685 = vst [vmem:[%s249 + $0x6c8] sm:$0xff] %v684
                %v686 = vld [vmem:[%s248 + $0x1b40] sm:$0xff]
                %687 = vst [vmem:[%s249 + $0x6d0] sm:$0xff] %v686
                %v688 = vld [vmem:[%s248 + $0x1b48] sm:$0xff]
                %689 = vst [vmem:[%s249 + $0x6d8] sm:$0xff] %v688
                %v690 = vld [vmem:[%s248 + $0x1b80] sm:$0xff]
                %691 = vst [vmem:[%s249 + $0x6e0] sm:$0xff] %v690
                %v692 = vld [vmem:[%s248 + $0x1b88] sm:$0xff]
                %693 = vst [vmem:[%s249 + $0x6e8] sm:$0xff] %v692
                %v694 = vld [vmem:[%s248 + $0x1bc0] sm:$0xff]
                %695 = vst [vmem:[%s249 + $0x6f0] sm:$0xff] %v694
                %v696 = vld [vmem:[%s248 + $0x1bc8] sm:$0xff]
                %697 = vst [vmem:[%s249 + $0x6f8] sm:$0xff] %v696
                %v698 = vld [vmem:[%s248 + $0x1c00] sm:$0xff]
                %699 = vst [vmem:[%s249 + $0x700] sm:$0xff] %v698
                %v700 = vld [vmem:[%s248 + $0x1c08] sm:$0xff]
                %701 = vst [vmem:[%s249 + $0x708] sm:$0xff] %v700
                %v702 = vld [vmem:[%s248 + $0x1c40] sm:$0xff]
                %703 = vst [vmem:[%s249 + $0x710] sm:$0xff] %v702
                %v704 = vld [vmem:[%s248 + $0x1c48] sm:$0xff]
                %705 = vst [vmem:[%s249 + $0x718] sm:$0xff] %v704
                %v706 = vld [vmem:[%s248 + $0x1c80] sm:$0xff]
                %707 = vst [vmem:[%s249 + $0x720] sm:$0xff] %v706
                %v708 = vld [vmem:[%s248 + $0x1c88] sm:$0xff]
                %709 = vst [vmem:[%s249 + $0x728] sm:$0xff] %v708
                %v710 = vld [vmem:[%s248 + $0x1cc0] sm:$0xff]
                %711 = vst [vmem:[%s249 + $0x730] sm:$0xff] %v710
                %v712 = vld [vmem:[%s248 + $0x1cc8] sm:$0xff]
                %713 = vst [vmem:[%s249 + $0x738] sm:$0xff] %v712
                %v714 = vld [vmem:[%s248 + $0x1d00] sm:$0xff]
                %715 = vst [vmem:[%s249 + $0x740] sm:$0xff] %v714
                %v716 = vld [vmem:[%s248 + $0x1d08] sm:$0xff]
                %717 = vst [vmem:[%s249 + $0x748] sm:$0xff] %v716
                %v718 = vld [vmem:[%s248 + $0x1d40] sm:$0xff]
                %719 = vst [vmem:[%s249 + $0x750] sm:$0xff] %v718
                %v720 = vld [vmem:[%s248 + $0x1d48] sm:$0xff]
                %721 = vst [vmem:[%s249 + $0x758] sm:$0xff] %v720
                %v722 = vld [vmem:[%s248 + $0x1d80] sm:$0xff]
                %723 = vst [vmem:[%s249 + $0x760] sm:$0xff] %v722
                %v724 = vld [vmem:[%s248 + $0x1d88] sm:$0xff]
                %725 = vst [vmem:[%s249 + $0x768] sm:$0xff] %v724
                %v726 = vld [vmem:[%s248 + $0x1dc0] sm:$0xff]
                %727 = vst [vmem:[%s249 + $0x770] sm:$0xff] %v726
                %v728 = vld [vmem:[%s248 + $0x1dc8] sm:$0xff]
                %729 = vst [vmem:[%s249 + $0x778] sm:$0xff] %v728
                %v730 = vld [vmem:[%s248 + $0x1e00] sm:$0xff]
                %731 = vst [vmem:[%s249 + $0x780] sm:$0xff] %v730
                %v732 = vld [vmem:[%s248 + $0x1e08] sm:$0xff]
                %733 = vst [vmem:[%s249 + $0x788] sm:$0xff] %v732
                %v734 = vld [vmem:[%s248 + $0x1e40] sm:$0xff]
                %735 = vst [vmem:[%s249 + $0x790] sm:$0xff] %v734
                %v736 = vld [vmem:[%s248 + $0x1e48] sm:$0xff]
                %737 = vst [vmem:[%s249 + $0x798] sm:$0xff] %v736
                %v738 = vld [vmem:[%s248 + $0x1e80] sm:$0xff]
                %739 = vst [vmem:[%s249 + $0x7a0] sm:$0xff] %v738
                %v740 = vld [vmem:[%s248 + $0x1e88] sm:$0xff]
                %741 = vst [vmem:[%s249 + $0x7a8] sm:$0xff] %v740
                %v742 = vld [vmem:[%s248 + $0x1ec0] sm:$0xff]
                %743 = vst [vmem:[%s249 + $0x7b0] sm:$0xff] %v742
                %v744 = vld [vmem:[%s248 + $0x1ec8] sm:$0xff]
                %745 = vst [vmem:[%s249 + $0x7b8] sm:$0xff] %v744
                %v746 = vld [vmem:[%s248 + $0x1f00] sm:$0xff]
                %747 = vst [vmem:[%s249 + $0x7c0] sm:$0xff] %v746
                %v748 = vld [vmem:[%s248 + $0x1f08] sm:$0xff]
                %749 = vst [vmem:[%s249 + $0x7c8] sm:$0xff] %v748
                %v750 = vld [vmem:[%s248 + $0x1f40] sm:$0xff]
                %751 = vst [vmem:[%s249 + $0x7d0] sm:$0xff] %v750
                %v752 = vld [vmem:[%s248 + $0x1f48] sm:$0xff]
                %753 = vst [vmem:[%s249 + $0x7d8] sm:$0xff] %v752
                %v754 = vld [vmem:[%s248 + $0x1f80] sm:$0xff]
                %755 = vst [vmem:[%s249 + $0x7e0] sm:$0xff] %v754
                %v756 = vld [vmem:[%s248 + $0x1f88] sm:$0xff]
                %757 = vst [vmem:[%s249 + $0x7e8] sm:$0xff] %v756
                %v758 = vld [vmem:[%s248 + $0x1fc0] sm:$0xff]
                %759 = vst [vmem:[%s249 + $0x7f0] sm:$0xff] %v758
                %v760 = vld [vmem:[%s248 + $0x1fc8] sm:$0xff]
                %761 = vst [vmem:[%s249 + $0x7f8] sm:$0xff] %v760
                %v762 = vld [vmem:[%s248 + $0x2000] sm:$0xff]
                %763 = vst [vmem:[%s249 + $0x800] sm:$0xff] %v762
                %v764 = vld [vmem:[%s248 + $0x2008] sm:$0xff]
                %765 = vst [vmem:[%s249 + $0x808] sm:$0xff] %v764
                %v766 = vld [vmem:[%s248 + $0x2040] sm:$0xff]
                %767 = vst [vmem:[%s249 + $0x810] sm:$0xff] %v766
                %v768 = vld [vmem:[%s248 + $0x2048] sm:$0xff]
                %769 = vst [vmem:[%s249 + $0x818] sm:$0xff] %v768
                %v770 = vld [vmem:[%s248 + $0x2080] sm:$0xff]
                %771 = vst [vmem:[%s249 + $0x820] sm:$0xff] %v770
                %v772 = vld [vmem:[%s248 + $0x2088] sm:$0xff]
                %773 = vst [vmem:[%s249 + $0x828] sm:$0xff] %v772
                %v774 = vld [vmem:[%s248 + $0x20c0] sm:$0xff]
                %775 = vst [vmem:[%s249 + $0x830] sm:$0xff] %v774
                %v776 = vld [vmem:[%s248 + $0x20c8] sm:$0xff]
                %777 = vst [vmem:[%s249 + $0x838] sm:$0xff] %v776
                %v778 = vld [vmem:[%s248 + $0x2100] sm:$0xff]
                %779 = vst [vmem:[%s249 + $0x840] sm:$0xff] %v778
                %v780 = vld [vmem:[%s248 + $0x2108] sm:$0xff]
                %781 = vst [vmem:[%s249 + $0x848] sm:$0xff] %v780
                %v782 = vld [vmem:[%s248 + $0x2140] sm:$0xff]
                %783 = vst [vmem:[%s249 + $0x850] sm:$0xff] %v782
                %v784 = vld [vmem:[%s248 + $0x2148] sm:$0xff]
                %785 = vst [vmem:[%s249 + $0x858] sm:$0xff] %v784
                %v786 = vld [vmem:[%s248 + $0x2180] sm:$0xff]
                %787 = vst [vmem:[%s249 + $0x860] sm:$0xff] %v786
                %v788 = vld [vmem:[%s248 + $0x2188] sm:$0xff]
                %789 = vst [vmem:[%s249 + $0x868] sm:$0xff] %v788
                %v790 = vld [vmem:[%s248 + $0x21c0] sm:$0xff]
                %791 = vst [vmem:[%s249 + $0x870] sm:$0xff] %v790
                %v792 = vld [vmem:[%s248 + $0x21c8] sm:$0xff]
                %793 = vst [vmem:[%s249 + $0x878] sm:$0xff] %v792
                %v794 = vld [vmem:[%s248 + $0x2200] sm:$0xff]
                %795 = vst [vmem:[%s249 + $0x880] sm:$0xff] %v794
                %v796 = vld [vmem:[%s248 + $0x2208] sm:$0xff]
                %797 = vst [vmem:[%s249 + $0x888] sm:$0xff] %v796
                %v798 = vld [vmem:[%s248 + $0x2240] sm:$0xff]
                %799 = vst [vmem:[%s249 + $0x890] sm:$0xff] %v798
                %v800 = vld [vmem:[%s248 + $0x2248] sm:$0xff]
                %801 = vst [vmem:[%s249 + $0x898] sm:$0xff] %v800
                %v802 = vld [vmem:[%s248 + $0x2280] sm:$0xff]
                %803 = vst [vmem:[%s249 + $0x8a0] sm:$0xff] %v802
                %v804 = vld [vmem:[%s248 + $0x2288] sm:$0xff]
                %805 = vst [vmem:[%s249 + $0x8a8] sm:$0xff] %v804
                %v806 = vld [vmem:[%s248 + $0x22c0] sm:$0xff]
                %807 = vst [vmem:[%s249 + $0x8b0] sm:$0xff] %v806
                %v808 = vld [vmem:[%s248 + $0x22c8] sm:$0xff]
                %809 = vst [vmem:[%s249 + $0x8b8] sm:$0xff] %v808
                %v810 = vld [vmem:[%s248 + $0x2300] sm:$0xff]
                %811 = vst [vmem:[%s249 + $0x8c0] sm:$0xff] %v810
                %v812 = vld [vmem:[%s248 + $0x2308] sm:$0xff]
                %813 = vst [vmem:[%s249 + $0x8c8] sm:$0xff] %v812
                %v814 = vld [vmem:[%s248 + $0x2340] sm:$0xff]
                %815 = vst [vmem:[%s249 + $0x8d0] sm:$0xff] %v814
                %v816 = vld [vmem:[%s248 + $0x2348] sm:$0xff]
                %817 = vst [vmem:[%s249 + $0x8d8] sm:$0xff] %v816
                %v818 = vld [vmem:[%s248 + $0x2380] sm:$0xff]
                %819 = vst [vmem:[%s249 + $0x8e0] sm:$0xff] %v818
                %v820 = vld [vmem:[%s248 + $0x2388] sm:$0xff]
                %821 = vst [vmem:[%s249 + $0x8e8] sm:$0xff] %v820
                %v822 = vld [vmem:[%s248 + $0x23c0] sm:$0xff]
                %823 = vst [vmem:[%s249 + $0x8f0] sm:$0xff] %v822
                %v824 = vld [vmem:[%s248 + $0x23c8] sm:$0xff]
                %825 = vst [vmem:[%s249 + $0x8f8] sm:$0xff] %v824
                %v826 = vld [vmem:[%s248 + $0x2400] sm:$0xff]
                %827 = vst [vmem:[%s249 + $0x900] sm:$0xff] %v826
                %v828 = vld [vmem:[%s248 + $0x2408] sm:$0xff]
                %829 = vst [vmem:[%s249 + $0x908] sm:$0xff] %v828
                %v830 = vld [vmem:[%s248 + $0x2440] sm:$0xff]
                %831 = vst [vmem:[%s249 + $0x910] sm:$0xff] %v830
                %v832 = vld [vmem:[%s248 + $0x2448] sm:$0xff]
                %833 = vst [vmem:[%s249 + $0x918] sm:$0xff] %v832
                %v834 = vld [vmem:[%s248 + $0x2480] sm:$0xff]
                %835 = vst [vmem:[%s249 + $0x920] sm:$0xff] %v834
                %v836 = vld [vmem:[%s248 + $0x2488] sm:$0xff]
                %837 = vst [vmem:[%s249 + $0x928] sm:$0xff] %v836
                %v838 = vld [vmem:[%s248 + $0x24c0] sm:$0xff]
                %839 = vst [vmem:[%s249 + $0x930] sm:$0xff] %v838
                %v840 = vld [vmem:[%s248 + $0x24c8] sm:$0xff]
                %841 = vst [vmem:[%s249 + $0x938] sm:$0xff] %v840
                %v842 = vld [vmem:[%s248 + $0x2500] sm:$0xff]
                %843 = vst [vmem:[%s249 + $0x940] sm:$0xff] %v842
                %v844 = vld [vmem:[%s248 + $0x2508] sm:$0xff]
                %845 = vst [vmem:[%s249 + $0x948] sm:$0xff] %v844
                %v846 = vld [vmem:[%s248 + $0x2540] sm:$0xff]
                %847 = vst [vmem:[%s249 + $0x950] sm:$0xff] %v846
                %v848 = vld [vmem:[%s248 + $0x2548] sm:$0xff]
                %849 = vst [vmem:[%s249 + $0x958] sm:$0xff] %v848
                %v850 = vld [vmem:[%s248 + $0x2580] sm:$0xff]
                %851 = vst [vmem:[%s249 + $0x960] sm:$0xff] %v850
                %v852 = vld [vmem:[%s248 + $0x2588] sm:$0xff]
                %853 = vst [vmem:[%s249 + $0x968] sm:$0xff] %v852
                %v854 = vld [vmem:[%s248 + $0x25c0] sm:$0xff]
                %855 = vst [vmem:[%s249 + $0x970] sm:$0xff] %v854
                %v856 = vld [vmem:[%s248 + $0x25c8] sm:$0xff]
                %857 = vst [vmem:[%s249 + $0x978] sm:$0xff] %v856
                %v858 = vld [vmem:[%s248 + $0x2600] sm:$0xff]
                %859 = vst [vmem:[%s249 + $0x980] sm:$0xff] %v858
                %v860 = vld [vmem:[%s248 + $0x2608] sm:$0xff]
                %861 = vst [vmem:[%s249 + $0x988] sm:$0xff] %v860
                %v862 = vld [vmem:[%s248 + $0x2640] sm:$0xff]
                %863 = vst [vmem:[%s249 + $0x990] sm:$0xff] %v862
                %v864 = vld [vmem:[%s248 + $0x2648] sm:$0xff]
                %865 = vst [vmem:[%s249 + $0x998] sm:$0xff] %v864
                %v866 = vld [vmem:[%s248 + $0x2680] sm:$0xff]
                %867 = vst [vmem:[%s249 + $0x9a0] sm:$0xff] %v866
                %v868 = vld [vmem:[%s248 + $0x2688] sm:$0xff]
                %869 = vst [vmem:[%s249 + $0x9a8] sm:$0xff] %v868
                %v870 = vld [vmem:[%s248 + $0x26c0] sm:$0xff]
                %871 = vst [vmem:[%s249 + $0x9b0] sm:$0xff] %v870
                %v872 = vld [vmem:[%s248 + $0x26c8] sm:$0xff]
                %873 = vst [vmem:[%s249 + $0x9b8] sm:$0xff] %v872
                %v874 = vld [vmem:[%s248 + $0x2700] sm:$0xff]
                %875 = vst [vmem:[%s249 + $0x9c0] sm:$0xff] %v874
                %v876 = vld [vmem:[%s248 + $0x2708] sm:$0xff]
                %877 = vst [vmem:[%s249 + $0x9c8] sm:$0xff] %v876
                %v878 = vld [vmem:[%s248 + $0x2740] sm:$0xff]
                %879 = vst [vmem:[%s249 + $0x9d0] sm:$0xff] %v878
                %v880 = vld [vmem:[%s248 + $0x2748] sm:$0xff]
                %881 = vst [vmem:[%s249 + $0x9d8] sm:$0xff] %v880
                %v882 = vld [vmem:[%s248 + $0x2780] sm:$0xff]
                %883 = vst [vmem:[%s249 + $0x9e0] sm:$0xff] %v882
                %v884 = vld [vmem:[%s248 + $0x2788] sm:$0xff]
                %885 = vst [vmem:[%s249 + $0x9e8] sm:$0xff] %v884
                %v886 = vld [vmem:[%s248 + $0x27c0] sm:$0xff]
                %887 = vst [vmem:[%s249 + $0x9f0] sm:$0xff] %v886
                %v888 = vld [vmem:[%s248 + $0x27c8] sm:$0xff]
                %889 = vst [vmem:[%s249 + $0x9f8] sm:$0xff] %v888
                %v890 = vld [vmem:[%s248 + $0x2800] sm:$0xff]
                %891 = vst [vmem:[%s249 + $0xa00] sm:$0xff] %v890
                %v892 = vld [vmem:[%s248 + $0x2808] sm:$0xff]
                %893 = vst [vmem:[%s249 + $0xa08] sm:$0xff] %v892
                %v894 = vld [vmem:[%s248 + $0x2840] sm:$0xff]
                %895 = vst [vmem:[%s249 + $0xa10] sm:$0xff] %v894
                %v896 = vld [vmem:[%s248 + $0x2848] sm:$0xff]
                %897 = vst [vmem:[%s249 + $0xa18] sm:$0xff] %v896
                %v898 = vld [vmem:[%s248 + $0x2880] sm:$0xff]
                %899 = vst [vmem:[%s249 + $0xa20] sm:$0xff] %v898
                %v900 = vld [vmem:[%s248 + $0x2888] sm:$0xff]
                %901 = vst [vmem:[%s249 + $0xa28] sm:$0xff] %v900
                %v902 = vld [vmem:[%s248 + $0x28c0] sm:$0xff]
                %903 = vst [vmem:[%s249 + $0xa30] sm:$0xff] %v902
                %v904 = vld [vmem:[%s248 + $0x28c8] sm:$0xff]
                %905 = vst [vmem:[%s249 + $0xa38] sm:$0xff] %v904
                %v906 = vld [vmem:[%s248 + $0x2900] sm:$0xff]
                %907 = vst [vmem:[%s249 + $0xa40] sm:$0xff] %v906
                %v908 = vld [vmem:[%s248 + $0x2908] sm:$0xff]
                %909 = vst [vmem:[%s249 + $0xa48] sm:$0xff] %v908
                %v910 = vld [vmem:[%s248 + $0x2940] sm:$0xff]
                %911 = vst [vmem:[%s249 + $0xa50] sm:$0xff] %v910
                %v912 = vld [vmem:[%s248 + $0x2948] sm:$0xff]
                %913 = vst [vmem:[%s249 + $0xa58] sm:$0xff] %v912
                %v914 = vld [vmem:[%s248 + $0x2980] sm:$0xff]
                %915 = vst [vmem:[%s249 + $0xa60] sm:$0xff] %v914
                %v916 = vld [vmem:[%s248 + $0x2988] sm:$0xff]
                %917 = vst [vmem:[%s249 + $0xa68] sm:$0xff] %v916
                %v918 = vld [vmem:[%s248 + $0x29c0] sm:$0xff]
                %919 = vst [vmem:[%s249 + $0xa70] sm:$0xff] %v918
                %v920 = vld [vmem:[%s248 + $0x29c8] sm:$0xff]
                %921 = vst [vmem:[%s249 + $0xa78] sm:$0xff] %v920
                %v922 = vld [vmem:[%s248 + $0x2a00] sm:$0xff]
                %923 = vst [vmem:[%s249 + $0xa80] sm:$0xff] %v922
                %v924 = vld [vmem:[%s248 + $0x2a08] sm:$0xff]
                %925 = vst [vmem:[%s249 + $0xa88] sm:$0xff] %v924
                %v926 = vld [vmem:[%s248 + $0x2a40] sm:$0xff]
                %927 = vst [vmem:[%s249 + $0xa90] sm:$0xff] %v926
                %v928 = vld [vmem:[%s248 + $0x2a48] sm:$0xff]
                %929 = vst [vmem:[%s249 + $0xa98] sm:$0xff] %v928
                %v930 = vld [vmem:[%s248 + $0x2a80] sm:$0xff]
                %931 = vst [vmem:[%s249 + $0xaa0] sm:$0xff] %v930
                %v932 = vld [vmem:[%s248 + $0x2a88] sm:$0xff]
                %933 = vst [vmem:[%s249 + $0xaa8] sm:$0xff] %v932
                %v934 = vld [vmem:[%s248 + $0x2ac0] sm:$0xff]
                %935 = vst [vmem:[%s249 + $0xab0] sm:$0xff] %v934
                %v936 = vld [vmem:[%s248 + $0x2ac8] sm:$0xff]
                %937 = vst [vmem:[%s249 + $0xab8] sm:$0xff] %v936
                %v938 = vld [vmem:[%s248 + $0x2b00] sm:$0xff]
                %939 = vst [vmem:[%s249 + $0xac0] sm:$0xff] %v938
                %v940 = vld [vmem:[%s248 + $0x2b08] sm:$0xff]
                %941 = vst [vmem:[%s249 + $0xac8] sm:$0xff] %v940
                %v942 = vld [vmem:[%s248 + $0x2b40] sm:$0xff]
                %943 = vst [vmem:[%s249 + $0xad0] sm:$0xff] %v942
                %v944 = vld [vmem:[%s248 + $0x2b48] sm:$0xff]
                %945 = vst [vmem:[%s249 + $0xad8] sm:$0xff] %v944
                %v946 = vld [vmem:[%s248 + $0x2b80] sm:$0xff]
                %947 = vst [vmem:[%s249 + $0xae0] sm:$0xff] %v946
                %v948 = vld [vmem:[%s248 + $0x2b88] sm:$0xff]
                %949 = vst [vmem:[%s249 + $0xae8] sm:$0xff] %v948
                %v950 = vld [vmem:[%s248 + $0x2bc0] sm:$0xff]
                %951 = vst [vmem:[%s249 + $0xaf0] sm:$0xff] %v950
                %v952 = vld [vmem:[%s248 + $0x2bc8] sm:$0xff]
                %953 = vst [vmem:[%s249 + $0xaf8] sm:$0xff] %v952
                %v954 = vld [vmem:[%s248 + $0x2c00] sm:$0xff]
                %955 = vst [vmem:[%s249 + $0xb00] sm:$0xff] %v954
                %v956 = vld [vmem:[%s248 + $0x2c08] sm:$0xff]
                %957 = vst [vmem:[%s249 + $0xb08] sm:$0xff] %v956
                %v958 = vld [vmem:[%s248 + $0x2c40] sm:$0xff]
                %959 = vst [vmem:[%s249 + $0xb10] sm:$0xff] %v958
                %v960 = vld [vmem:[%s248 + $0x2c48] sm:$0xff]
                %961 = vst [vmem:[%s249 + $0xb18] sm:$0xff] %v960
                %v962 = vld [vmem:[%s248 + $0x2c80] sm:$0xff]
                %963 = vst [vmem:[%s249 + $0xb20] sm:$0xff] %v962
                %v964 = vld [vmem:[%s248 + $0x2c88] sm:$0xff]
                %965 = vst [vmem:[%s249 + $0xb28] sm:$0xff] %v964
                %v966 = vld [vmem:[%s248 + $0x2cc0] sm:$0xff]
                %967 = vst [vmem:[%s249 + $0xb30] sm:$0xff] %v966
                %v968 = vld [vmem:[%s248 + $0x2cc8] sm:$0xff]
                %969 = vst [vmem:[%s249 + $0xb38] sm:$0xff] %v968
                %v970 = vld [vmem:[%s248 + $0x2d00] sm:$0xff]
                %971 = vst [vmem:[%s249 + $0xb40] sm:$0xff] %v970
                %v972 = vld [vmem:[%s248 + $0x2d08] sm:$0xff]
                %973 = vst [vmem:[%s249 + $0xb48] sm:$0xff] %v972
                %v974 = vld [vmem:[%s248 + $0x2d40] sm:$0xff]
                %975 = vst [vmem:[%s249 + $0xb50] sm:$0xff] %v974
                %v976 = vld [vmem:[%s248 + $0x2d48] sm:$0xff]
                %977 = vst [vmem:[%s249 + $0xb58] sm:$0xff] %v976
                %v978 = vld [vmem:[%s248 + $0x2d80] sm:$0xff]
                %979 = vst [vmem:[%s249 + $0xb60] sm:$0xff] %v978
                %v980 = vld [vmem:[%s248 + $0x2d88] sm:$0xff]
                %981 = vst [vmem:[%s249 + $0xb68] sm:$0xff] %v980
                %v982 = vld [vmem:[%s248 + $0x2dc0] sm:$0xff]
                %983 = vst [vmem:[%s249 + $0xb70] sm:$0xff] %v982
                %v984 = vld [vmem:[%s248 + $0x2dc8] sm:$0xff]
                %985 = vst [vmem:[%s249 + $0xb78] sm:$0xff] %v984
                %v986 = vld [vmem:[%s248 + $0x2e00] sm:$0xff]
                %987 = vst [vmem:[%s249 + $0xb80] sm:$0xff] %v986
                %v988 = vld [vmem:[%s248 + $0x2e08] sm:$0xff]
                %989 = vst [vmem:[%s249 + $0xb88] sm:$0xff] %v988
                %v990 = vld [vmem:[%s248 + $0x2e40] sm:$0xff]
                %991 = vst [vmem:[%s249 + $0xb90] sm:$0xff] %v990
                %v992 = vld [vmem:[%s248 + $0x2e48] sm:$0xff]
                %993 = vst [vmem:[%s249 + $0xb98] sm:$0xff] %v992
                %v994 = vld [vmem:[%s248 + $0x2e80] sm:$0xff]
                %995 = vst [vmem:[%s249 + $0xba0] sm:$0xff] %v994
                %v996 = vld [vmem:[%s248 + $0x2e88] sm:$0xff]
                %997 = vst [vmem:[%s249 + $0xba8] sm:$0xff] %v996
                %v998 = vld [vmem:[%s248 + $0x2ec0] sm:$0xff]
                %999 = vst [vmem:[%s249 + $0xbb0] sm:$0xff] %v998
                %v1000 = vld [vmem:[%s248 + $0x2ec8] sm:$0xff]
                %1001 = vst [vmem:[%s249 + $0xbb8] sm:$0xff] %v1000
                %v1002 = vld [vmem:[%s248 + $0x2f00] sm:$0xff]
                %1003 = vst [vmem:[%s249 + $0xbc0] sm:$0xff] %v1002
                %v1004 = vld [vmem:[%s248 + $0x2f08] sm:$0xff]
                %1005 = vst [vmem:[%s249 + $0xbc8] sm:$0xff] %v1004
                %v1006 = vld [vmem:[%s248 + $0x2f40] sm:$0xff]
                %1007 = vst [vmem:[%s249 + $0xbd0] sm:$0xff] %v1006
                %v1008 = vld [vmem:[%s248 + $0x2f48] sm:$0xff]
                %1009 = vst [vmem:[%s249 + $0xbd8] sm:$0xff] %v1008
                %v1010 = vld [vmem:[%s248 + $0x2f80] sm:$0xff]
                %1011 = vst [vmem:[%s249 + $0xbe0] sm:$0xff] %v1010
                %v1012 = vld [vmem:[%s248 + $0x2f88] sm:$0xff]
                %1013 = vst [vmem:[%s249 + $0xbe8] sm:$0xff] %v1012
                %v1014 = vld [vmem:[%s248 + $0x2fc0] sm:$0xff]
                %1015 = vst [vmem:[%s249 + $0xbf0] sm:$0xff] %v1014
                %v1016 = vld [vmem:[%s248 + $0x2fc8] sm:$0xff]
                %1017 = vst [vmem:[%s249 + $0xbf8] sm:$0xff] %v1016
                %v1018 = vld [vmem:[%s248 + $0x3000] sm:$0xff]
                %1019 = vst [vmem:[%s249 + $0xc00] sm:$0xff] %v1018
                %v1020 = vld [vmem:[%s248 + $0x3008] sm:$0xff]
                %1021 = vst [vmem:[%s249 + $0xc08] sm:$0xff] %v1020
                %v1022 = vld [vmem:[%s248 + $0x3040] sm:$0xff]
                %1023 = vst [vmem:[%s249 + $0xc10] sm:$0xff] %v1022
                %v1024 = vld [vmem:[%s248 + $0x3048] sm:$0xff]
                %1025 = vst [vmem:[%s249 + $0xc18] sm:$0xff] %v1024
                %v1026 = vld [vmem:[%s248 + $0x3080] sm:$0xff]
                %1027 = vst [vmem:[%s249 + $0xc20] sm:$0xff] %v1026
                %v1028 = vld [vmem:[%s248 + $0x3088] sm:$0xff]
                %1029 = vst [vmem:[%s249 + $0xc28] sm:$0xff] %v1028
                %v1030 = vld [vmem:[%s248 + $0x30c0] sm:$0xff]
                %1031 = vst [vmem:[%s249 + $0xc30] sm:$0xff] %v1030
                %v1032 = vld [vmem:[%s248 + $0x30c8] sm:$0xff]
                %1033 = vst [vmem:[%s249 + $0xc38] sm:$0xff] %v1032
                %v1034 = vld [vmem:[%s248 + $0x3100] sm:$0xff]
                %1035 = vst [vmem:[%s249 + $0xc40] sm:$0xff] %v1034
                %v1036 = vld [vmem:[%s248 + $0x3108] sm:$0xff]
                %1037 = vst [vmem:[%s249 + $0xc48] sm:$0xff] %v1036
                %v1038 = vld [vmem:[%s248 + $0x3140] sm:$0xff]
                %1039 = vst [vmem:[%s249 + $0xc50] sm:$0xff] %v1038
                %v1040 = vld [vmem:[%s248 + $0x3148] sm:$0xff]
                %1041 = vst [vmem:[%s249 + $0xc58] sm:$0xff] %v1040
                %v1042 = vld [vmem:[%s248 + $0x3180] sm:$0xff]
                %1043 = vst [vmem:[%s249 + $0xc60] sm:$0xff] %v1042
                %v1044 = vld [vmem:[%s248 + $0x3188] sm:$0xff]
                %1045 = vst [vmem:[%s249 + $0xc68] sm:$0xff] %v1044
                %v1046 = vld [vmem:[%s248 + $0x31c0] sm:$0xff]
                %1047 = vst [vmem:[%s249 + $0xc70] sm:$0xff] %v1046
                %v1048 = vld [vmem:[%s248 + $0x31c8] sm:$0xff]
                %1049 = vst [vmem:[%s249 + $0xc78] sm:$0xff] %v1048
              $region49: #{forward.9} parent=43 // loop_footer
                %s247 = sadd.s32 1, %s243
              $region50: #{forward.9} parent=43 // loop_footer_branch
                %242 = sbr.rel target = $region46
              $region51: #{forward.9} parent=43 // loop_exit
                _
            $region44: #{forward.9} parent=39 // pred_fallthru
              _
            // Predicated region
            $region52: #{forward.9} parent=39 // pred_check
              _
            $region53: #{forward.9} parent=39 // pred_check_branch
              %1051 = sbr.rel target = $region55
            $region54: #{forward.9} parent=39 // pred_region
              _
            $region55: #{forward.9} parent=39 // pred_fallthru
              _
          $region40: #{forward.9} parent=35 // pred_fallthru
            _
          %1052 = vnop
        $region36: #{forward.9} parent=31 // pred_fallthru
          _
        // Predicated region
        $region56: #{forward.9} parent=31 // pred_check
          %p1053 = pneg %p81
        $region57: #{forward.9} parent=31 // pred_check_branch
          %1055 = sbr.rel (%p1053) target = $region59
        $region58: #{forward.9} parent=31 // pred_region
          %s1056 = smul.u32 4, %s14
          %p1057 = scmp.lt.s32.totalorder %s1056, 15
          %s1058 = scalar_select %p1057, %s1056, 15
          %s1059 = scalar_lea.vmem %s2, %s1058
          %s1060 = smul.u32 4, %s14
        $region59: #{forward.9} parent=31 // pred_fallthru
          _
        // Predicated region
        $region60: #{forward.9} parent=31 // pred_check
          %p1061 = pneg %p107
        $region61: #{forward.9} parent=31 // pred_check_branch
          %1063 = sbr.rel (%p1061) target = $region63
        $region62: #{forward.9} parent=31 // pred_region
          %s1064 = smul.u32 64, %s14
          %p1065 = scmp.lt.s32.totalorder %s1064, 255
          %s1066 = scalar_select %p1065, %s1064, 255
          %s1067 = smul.addr %s1066, 2
          %s1068 = smul.addr %s1067, 4
          %s1069 = scalar_lea.vmem %s3, %s1068
          %s1070 = smul.u32 64, %s14
        $region63: #{forward.9} parent=31 // pred_fallthru
          _
      $region32: #{forward.9} parent=5 // pred_fallthru
        _
      %p1071 = scmp.le.s32.totalorder 1, %s14
      %p1072 = scmp.lt.s32.totalorder %s14, 5
      %p1073 = pnand %p1071, %p1072
      %p1074 = pneg %p1073
      // Predicated region
      $region64: #{forward.9} parent=5 // pred_check
        _
      $region65: #{forward.9} parent=5 // pred_check_branch
        %1076 = sbr.rel (%p1073) target = $region67
      $region66: #{forward.9} parent=5 // pred_region
        %s1077 = ssub.s32 %s14, 1
        %s1078 = sand.u32 %s48, 1
        %s1079 = sand.u32 %s48, 1
        %s1080 = smul.addr %s1079, 3200
        %s1081 = scalar_lea.vmem [#allocation3], %s1080
        // Predicated region
        $region68: #{forward.9} parent=66 // pred_check
          %p1082 = pneg %p61
        $region69: #{forward.9} parent=66 // pred_check_branch
          %1084 = sbr.rel (%p1082) target = $region71
        $region70: #{forward.9} parent=66 // pred_region
          _
        $region71: #{forward.9} parent=66 // pred_fallthru
          _
        %p1085 = pneg %p35
        %p1086 = pneg %p32
        %s1087 = sand.u32 %s48, 1
        %s1088 = sand.u32 %s48, 1
        %s1089 = smul.addr %s1088, 3200
        %s1090 = scalar_lea.vmem [#allocation3], %s1089
        %p1091 = pneg %p61
        %p1092 = pneg %p58
        %s1093 = smul.u32 4, %s19
        %p1094 = scmp.lt.s32.totalorder %s1093, 15
        %s1095 = scalar_select %p1094, %s1093, 15
        %s1096 = scalar_lea.vmem %s2, %s1095
        %p1097 = pneg %p87
        %p1098 = pneg %p84
        %s1099 = smul.u32 64, %s19
        %p1100 = scmp.lt.s32.totalorder %s1099, 255
        %s1101 = scalar_select %p1100, %s1099, 255
        %s1102 = smul.addr %s1101, 2
        %s1103 = smul.addr %s1102, 4
        %s1104 = scalar_lea.vmem %s3, %s1103
        %p1105 = pneg %p113
        %p1106 = pneg %p110
        %p1107 = pneg %p134
        %p1108 = pneg %p131
        %p1109 = pneg %p155
        %p1110 = pneg %p152
        %p1111 = pneg %p176
        %p1112 = pneg %p173
        %p1113 = pneg %p197
        %p1114 = pneg %p194
        %s1115 = smul.u32 4, %s19
        %s1116 = smul.u32 4, %s19
        %p1117 = scmp.lt.s32.totalorder %s1116, 15
        %s1118 = scalar_select %p1117, %s1116, 15
        %s1119 = scalar_lea.vmem %s2, %s1118
        %s1120 = smul.u32 4, %s19
        %s1121 = smul.u32 64, %s19
        %p1122 = scmp.lt.s32.totalorder %s1121, 255
        %s1123 = scalar_select %p1122, %s1121, 255
        %s1124 = smul.addr %s1123, 2
        %s1125 = smul.addr %s1124, 4
        %s1126 = scalar_lea.vmem %s3, %s1125
        %s1127 = smul.u32 64, %s19
        %p1129 = scmp.eq.s32.totalorder %s19, 0
        // Predicated region
        $region72: #{forward.9} parent=66 // pred_check
          %p1130 = pneg %p1129
        $region73: #{forward.9} parent=66 // pred_check_branch
          %1132 = sbr.rel (%p1130) target = $region75
        $region74: #{forward.9} parent=66 // pred_region
          %1133 = vst [vmem:[#allocation2] sm:$0xf] 0.0
        $region75: #{forward.9} parent=66 // pred_fallthru
          _
        %v1134 = vld [vmem:[%s0] sm:$0xff]
        %v1135 = vld [vmem:[%s0 + $0x8] sm:$0x1f]
        %v1136 = vld [vmem:[%s1081] sm:$0xff]
        %v1137 = vld [vmem:[%s1081 + $0x8] sm:$0xff]
        %v1138 = vld [vmem:[%s1081 + $0x10] sm:$0xff]
        %v1139 = vld [vmem:[%s1081 + $0x18] sm:$0xff]
        %v1140 = vld [vmem:[%s1081 + $0x20] sm:$0xff]
        %v1141 = vld [vmem:[%s1081 + $0x28] sm:$0xff]
        %v1142 = vld [vmem:[%s1081 + $0x30] sm:$0xff]
        %v1143 = vld [vmem:[%s1081 + $0x38] sm:$0xff]
        %v1144 = vld [vmem:[%s1081 + $0x40] sm:$0xff]
        %v1145 = vld [vmem:[%s1081 + $0x48] sm:$0xff]
        %v1146 = vld [vmem:[%s1081 + $0x50] sm:$0xff]
        %v1147 = vld [vmem:[%s1081 + $0x58] sm:$0xff]
        %v1148 = vld [vmem:[%s1081 + $0x60] sm:$0xff]
        %v1149 = vld [vmem:[%s1081 + $0x68] sm:$0xff]
        %v1150 = vld [vmem:[%s1081 + $0x70] sm:$0xff]
        %v1151 = vld [vmem:[%s1081 + $0x78] sm:$0xff]
        %v1152 = vld [vmem:[%s1081 + $0x80] sm:$0xff]
        %v1153 = vld [vmem:[%s1081 + $0x88] sm:$0xff]
        %v1154 = vld [vmem:[%s1081 + $0x90] sm:$0xff]
        %v1155 = vld [vmem:[%s1081 + $0x98] sm:$0xff]
        %v1156 = vld [vmem:[%s1081 + $0xa0] sm:$0xff]
        %v1157 = vld [vmem:[%s1081 + $0xa8] sm:$0xff]
        %v1158 = vld [vmem:[%s1081 + $0xb0] sm:$0xff]
        %v1159 = vld [vmem:[%s1081 + $0xb8] sm:$0xff]
        %v1160 = vld [vmem:[%s1081 + $0xc0] sm:$0xff]
        %v1161 = vld [vmem:[%s1081 + $0xc8] sm:$0xff]
        %v1162 = vld [vmem:[%s1081 + $0xd0] sm:$0xff]
        %v1163 = vld [vmem:[%s1081 + $0xd8] sm:$0xff]
        %v1164 = vld [vmem:[%s1081 + $0xe0] sm:$0xff]
        %v1165 = vld [vmem:[%s1081 + $0xe8] sm:$0xff]
        %v1166 = vld [vmem:[%s1081 + $0xf0] sm:$0xff]
        %v1167 = vld [vmem:[%s1081 + $0xf8] sm:$0xff]
        %v1168 = vld [vmem:[%s1081 + $0x100] sm:$0xff]
        %v1169 = vld [vmem:[%s1081 + $0x108] sm:$0xff]
        %v1170 = vld [vmem:[%s1081 + $0x110] sm:$0xff]
        %v1171 = vld [vmem:[%s1081 + $0x118] sm:$0xff]
        %v1172 = vld [vmem:[%s1081 + $0x120] sm:$0xff]
        %v1173 = vld [vmem:[%s1081 + $0x128] sm:$0xff]
        %v1174 = vld [vmem:[%s1081 + $0x130] sm:$0xff]
        %v1175 = vld [vmem:[%s1081 + $0x138] sm:$0xff]
        %v1176 = vld [vmem:[%s1081 + $0x140] sm:$0xff]
        %v1177 = vld [vmem:[%s1081 + $0x148] sm:$0xff]
        %v1178 = vld [vmem:[%s1081 + $0x150] sm:$0xff]
        %v1179 = vld [vmem:[%s1081 + $0x158] sm:$0xff]
        %v1180 = vld [vmem:[%s1081 + $0x160] sm:$0xff]
        %v1181 = vld [vmem:[%s1081 + $0x168] sm:$0xff]
        %v1182 = vld [vmem:[%s1081 + $0x170] sm:$0xff]
        %v1183 = vld [vmem:[%s1081 + $0x178] sm:$0xff]
        %v1184 = vld [vmem:[%s1081 + $0x180] sm:$0xff]
        %v1185 = vld [vmem:[%s1081 + $0x188] sm:$0xff]
        %v1186 = vld [vmem:[%s1081 + $0x190] sm:$0xff]
        %v1187 = vld [vmem:[%s1081 + $0x198] sm:$0xff]
        %v1188 = vld [vmem:[%s1081 + $0x1a0] sm:$0xff]
        %v1189 = vld [vmem:[%s1081 + $0x1a8] sm:$0xff]
        %v1190 = vld [vmem:[%s1081 + $0x1b0] sm:$0xff]
        %v1191 = vld [vmem:[%s1081 + $0x1b8] sm:$0xff]
        %v1192 = vld [vmem:[%s1081 + $0x1c0] sm:$0xff]
        %v1193 = vld [vmem:[%s1081 + $0x1c8] sm:$0xff]
        %v1194 = vld [vmem:[%s1081 + $0x1d0] sm:$0xff]
        %v1195 = vld [vmem:[%s1081 + $0x1d8] sm:$0xff]
        %v1196 = vld [vmem:[%s1081 + $0x1e0] sm:$0xff]
        %v1197 = vld [vmem:[%s1081 + $0x1e8] sm:$0xff]
        %v1198 = vld [vmem:[%s1081 + $0x1f0] sm:$0xff]
        %v1199 = vld [vmem:[%s1081 + $0x1f8] sm:$0xff]
        %v1200 = vld [vmem:[%s1081 + $0x200] sm:$0xff]
        %v1201 = vld [vmem:[%s1081 + $0x208] sm:$0xff]
        %v1202 = vld [vmem:[%s1081 + $0x210] sm:$0xff]
        %v1203 = vld [vmem:[%s1081 + $0x218] sm:$0xff]
        %v1204 = vld [vmem:[%s1081 + $0x220] sm:$0xff]
        %v1205 = vld [vmem:[%s1081 + $0x228] sm:$0xff]
        %v1206 = vld [vmem:[%s1081 + $0x230] sm:$0xff]
        %v1207 = vld [vmem:[%s1081 + $0x238] sm:$0xff]
        %v1208 = vld [vmem:[%s1081 + $0x240] sm:$0xff]
        %v1209 = vld [vmem:[%s1081 + $0x248] sm:$0xff]
        %v1210 = vld [vmem:[%s1081 + $0x250] sm:$0xff]
        %v1211 = vld [vmem:[%s1081 + $0x258] sm:$0xff]
        %v1212 = vld [vmem:[%s1081 + $0x260] sm:$0xff]
        %v1213 = vld [vmem:[%s1081 + $0x268] sm:$0xff]
        %v1214 = vld [vmem:[%s1081 + $0x270] sm:$0xff]
        %v1215 = vld [vmem:[%s1081 + $0x278] sm:$0xff]
        %v1216 = vld [vmem:[%s1081 + $0x280] sm:$0xff]
        %v1217 = vld [vmem:[%s1081 + $0x288] sm:$0xff]
        %v1218 = vld [vmem:[%s1081 + $0x290] sm:$0xff]
        %v1219 = vld [vmem:[%s1081 + $0x298] sm:$0xff]
        %v1220 = vld [vmem:[%s1081 + $0x2a0] sm:$0xff]
        %v1221 = vld [vmem:[%s1081 + $0x2a8] sm:$0xff]
        %v1222 = vld [vmem:[%s1081 + $0x2b0] sm:$0xff]
        %v1223 = vld [vmem:[%s1081 + $0x2b8] sm:$0xff]
        %v1224 = vld [vmem:[%s1081 + $0x2c0] sm:$0xff]
        %v1225 = vld [vmem:[%s1081 + $0x2c8] sm:$0xff]
        %v1226 = vld [vmem:[%s1081 + $0x2d0] sm:$0xff]
        %v1227 = vld [vmem:[%s1081 + $0x2d8] sm:$0xff]
        %v1228 = vld [vmem:[%s1081 + $0x2e0] sm:$0xff]
        %v1229 = vld [vmem:[%s1081 + $0x2e8] sm:$0xff]
        %v1230 = vld [vmem:[%s1081 + $0x2f0] sm:$0xff]
        %v1231 = vld [vmem:[%s1081 + $0x2f8] sm:$0xff]
        %v1232 = vld [vmem:[%s1081 + $0x300] sm:$0xff]
        %v1233 = vld [vmem:[%s1081 + $0x308] sm:$0xff]
        %v1234 = vld [vmem:[%s1081 + $0x310] sm:$0xff]
        %v1235 = vld [vmem:[%s1081 + $0x318] sm:$0xff]
        %v1236 = vld [vmem:[%s1081 + $0x320] sm:$0xff]
        %v1237 = vld [vmem:[%s1081 + $0x328] sm:$0xff]
        %v1238 = vld [vmem:[%s1081 + $0x330] sm:$0xff]
        %v1239 = vld [vmem:[%s1081 + $0x338] sm:$0xff]
        %v1240 = vld [vmem:[%s1081 + $0x340] sm:$0xff]
        %v1241 = vld [vmem:[%s1081 + $0x348] sm:$0xff]
        %v1242 = vld [vmem:[%s1081 + $0x350] sm:$0xff]
        %v1243 = vld [vmem:[%s1081 + $0x358] sm:$0xff]
        %v1244 = vld [vmem:[%s1081 + $0x360] sm:$0xff]
        %v1245 = vld [vmem:[%s1081 + $0x368] sm:$0xff]
        %v1246 = vld [vmem:[%s1081 + $0x370] sm:$0xff]
        %v1247 = vld [vmem:[%s1081 + $0x378] sm:$0xff]
        %v1248 = vld [vmem:[%s1081 + $0x380] sm:$0xff]
        %v1249 = vld [vmem:[%s1081 + $0x388] sm:$0xff]
        %v1250 = vld [vmem:[%s1081 + $0x390] sm:$0xff]
        %v1251 = vld [vmem:[%s1081 + $0x398] sm:$0xff]
        %v1252 = vld [vmem:[%s1081 + $0x3a0] sm:$0xff]
        %v1253 = vld [vmem:[%s1081 + $0x3a8] sm:$0xff]
        %v1254 = vld [vmem:[%s1081 + $0x3b0] sm:$0xff]
        %v1255 = vld [vmem:[%s1081 + $0x3b8] sm:$0xff]
        %v1256 = vld [vmem:[%s1081 + $0x3c0] sm:$0xff]
        %v1257 = vld [vmem:[%s1081 + $0x3c8] sm:$0xff]
        %v1258 = vld [vmem:[%s1081 + $0x3d0] sm:$0xff]
        %v1259 = vld [vmem:[%s1081 + $0x3d8] sm:$0xff]
        %v1260 = vld [vmem:[%s1081 + $0x3e0] sm:$0xff]
        %v1261 = vld [vmem:[%s1081 + $0x3e8] sm:$0xff]
        %v1262 = vld [vmem:[%s1081 + $0x3f0] sm:$0xff]
        %v1263 = vld [vmem:[%s1081 + $0x3f8] sm:$0xff]
        %v1264 = vld [vmem:[%s1081 + $0x400] sm:$0xff]
        %v1265 = vld [vmem:[%s1081 + $0x408] sm:$0xff]
        %v1266 = vld [vmem:[%s1081 + $0x410] sm:$0xff]
        %v1267 = vld [vmem:[%s1081 + $0x418] sm:$0xff]
        %v1268 = vld [vmem:[%s1081 + $0x420] sm:$0xff]
        %v1269 = vld [vmem:[%s1081 + $0x428] sm:$0xff]
        %v1270 = vld [vmem:[%s1081 + $0x430] sm:$0xff]
        %v1271 = vld [vmem:[%s1081 + $0x438] sm:$0xff]
        %v1272 = vld [vmem:[%s1081 + $0x440] sm:$0xff]
        %v1273 = vld [vmem:[%s1081 + $0x448] sm:$0xff]
        %v1274 = vld [vmem:[%s1081 + $0x450] sm:$0xff]
        %v1275 = vld [vmem:[%s1081 + $0x458] sm:$0xff]
        %v1276 = vld [vmem:[%s1081 + $0x460] sm:$0xff]
        %v1277 = vld [vmem:[%s1081 + $0x468] sm:$0xff]
        %v1278 = vld [vmem:[%s1081 + $0x470] sm:$0xff]
        %v1279 = vld [vmem:[%s1081 + $0x478] sm:$0xff]
        %v1280 = vld [vmem:[%s1081 + $0x480] sm:$0xff]
        %v1281 = vld [vmem:[%s1081 + $0x488] sm:$0xff]
        %v1282 = vld [vmem:[%s1081 + $0x490] sm:$0xff]
        %v1283 = vld [vmem:[%s1081 + $0x498] sm:$0xff]
        %v1284 = vld [vmem:[%s1081 + $0x4a0] sm:$0xff]
        %v1285 = vld [vmem:[%s1081 + $0x4a8] sm:$0xff]
        %v1286 = vld [vmem:[%s1081 + $0x4b0] sm:$0xff]
        %v1287 = vld [vmem:[%s1081 + $0x4b8] sm:$0xff]
        %v1288 = vld [vmem:[%s1081 + $0x4c0] sm:$0xff]
        %v1289 = vld [vmem:[%s1081 + $0x4c8] sm:$0xff]
        %v1290 = vld [vmem:[%s1081 + $0x4d0] sm:$0xff]
        %v1291 = vld [vmem:[%s1081 + $0x4d8] sm:$0xff]
        %v1292 = vld [vmem:[%s1081 + $0x4e0] sm:$0xff]
        %v1293 = vld [vmem:[%s1081 + $0x4e8] sm:$0xff]
        %v1294 = vld [vmem:[%s1081 + $0x4f0] sm:$0xff]
        %v1295 = vld [vmem:[%s1081 + $0x4f8] sm:$0xff]
        %v1296 = vld [vmem:[%s1081 + $0x500] sm:$0xff]
        %v1297 = vld [vmem:[%s1081 + $0x508] sm:$0xff]
        %v1298 = vld [vmem:[%s1081 + $0x510] sm:$0xff]
        %v1299 = vld [vmem:[%s1081 + $0x518] sm:$0xff]
        %v1300 = vld [vmem:[%s1081 + $0x520] sm:$0xff]
        %v1301 = vld [vmem:[%s1081 + $0x528] sm:$0xff]
        %v1302 = vld [vmem:[%s1081 + $0x530] sm:$0xff]
        %v1303 = vld [vmem:[%s1081 + $0x538] sm:$0xff]
        %v1304 = vld [vmem:[%s1081 + $0x540] sm:$0xff]
        %v1305 = vld [vmem:[%s1081 + $0x548] sm:$0xff]
        %v1306 = vld [vmem:[%s1081 + $0x550] sm:$0xff]
        %v1307 = vld [vmem:[%s1081 + $0x558] sm:$0xff]
        %v1308 = vld [vmem:[%s1081 + $0x560] sm:$0xff]
        %v1309 = vld [vmem:[%s1081 + $0x568] sm:$0xff]
        %v1310 = vld [vmem:[%s1081 + $0x570] sm:$0xff]
        %v1311 = vld [vmem:[%s1081 + $0x578] sm:$0xff]
        %v1312 = vld [vmem:[%s1081 + $0x580] sm:$0xff]
        %v1313 = vld [vmem:[%s1081 + $0x588] sm:$0xff]
        %v1314 = vld [vmem:[%s1081 + $0x590] sm:$0xff]
        %v1315 = vld [vmem:[%s1081 + $0x598] sm:$0xff]
        %v1316 = vld [vmem:[%s1081 + $0x5a0] sm:$0xff]
        %v1317 = vld [vmem:[%s1081 + $0x5a8] sm:$0xff]
        %v1318 = vld [vmem:[%s1081 + $0x5b0] sm:$0xff]
        %v1319 = vld [vmem:[%s1081 + $0x5b8] sm:$0xff]
        %v1320 = vld [vmem:[%s1081 + $0x5c0] sm:$0xff]
        %v1321 = vld [vmem:[%s1081 + $0x5c8] sm:$0xff]
        %v1322 = vld [vmem:[%s1081 + $0x5d0] sm:$0xff]
        %v1323 = vld [vmem:[%s1081 + $0x5d8] sm:$0xff]
        %v1324 = vld [vmem:[%s1081 + $0x5e0] sm:$0xff]
        %v1325 = vld [vmem:[%s1081 + $0x5e8] sm:$0xff]
        %v1326 = vld [vmem:[%s1081 + $0x5f0] sm:$0xff]
        %v1327 = vld [vmem:[%s1081 + $0x5f8] sm:$0xff]
        %v1328 = vld [vmem:[%s1081 + $0x600] sm:$0xff]
        %v1329 = vld [vmem:[%s1081 + $0x608] sm:$0xff]
        %v1330 = vld [vmem:[%s1081 + $0x610] sm:$0xff]
        %v1331 = vld [vmem:[%s1081 + $0x618] sm:$0xff]
        %v1332 = vld [vmem:[%s1081 + $0x620] sm:$0xff]
        %v1333 = vld [vmem:[%s1081 + $0x628] sm:$0xff]
        %v1334 = vld [vmem:[%s1081 + $0x630] sm:$0xff]
        %v1335 = vld [vmem:[%s1081 + $0x638] sm:$0xff]
        %v1336 = vld [vmem:[%s1081 + $0x640] sm:$0xff]
        %v1337 = vld [vmem:[%s1081 + $0x648] sm:$0xff]
        %v1338 = vld [vmem:[%s1081 + $0x650] sm:$0xff]
        %v1339 = vld [vmem:[%s1081 + $0x658] sm:$0xff]
        %v1340 = vld [vmem:[%s1081 + $0x660] sm:$0xff]
        %v1341 = vld [vmem:[%s1081 + $0x668] sm:$0xff]
        %v1342 = vld [vmem:[%s1081 + $0x670] sm:$0xff]
        %v1343 = vld [vmem:[%s1081 + $0x678] sm:$0xff]
        %v1344 = vld [vmem:[%s1081 + $0x680] sm:$0xff]
        %v1345 = vld [vmem:[%s1081 + $0x688] sm:$0xff]
        %v1346 = vld [vmem:[%s1081 + $0x690] sm:$0xff]
        %v1347 = vld [vmem:[%s1081 + $0x698] sm:$0xff]
        %v1348 = vld [vmem:[%s1081 + $0x6a0] sm:$0xff]
        %v1349 = vld [vmem:[%s1081 + $0x6a8] sm:$0xff]
        %v1350 = vld [vmem:[%s1081 + $0x6b0] sm:$0xff]
        %v1351 = vld [vmem:[%s1081 + $0x6b8] sm:$0xff]
        %v1352 = vld [vmem:[%s1081 + $0x6c0] sm:$0xff]
        %v1353 = vld [vmem:[%s1081 + $0x6c8] sm:$0xff]
        %v1354 = vld [vmem:[%s1081 + $0x6d0] sm:$0xff]
        %v1355 = vld [vmem:[%s1081 + $0x6d8] sm:$0xff]
        %v1356 = vld [vmem:[%s1081 + $0x6e0] sm:$0xff]
        %v1357 = vld [vmem:[%s1081 + $0x6e8] sm:$0xff]
        %v1358 = vld [vmem:[%s1081 + $0x6f0] sm:$0xff]
        %v1359 = vld [vmem:[%s1081 + $0x6f8] sm:$0xff]
        %v1360 = vld [vmem:[%s1081 + $0x700] sm:$0xff]
        %v1361 = vld [vmem:[%s1081 + $0x708] sm:$0xff]
        %v1362 = vld [vmem:[%s1081 + $0x710] sm:$0xff]
        %v1363 = vld [vmem:[%s1081 + $0x718] sm:$0xff]
        %v1364 = vld [vmem:[%s1081 + $0x720] sm:$0xff]
        %v1365 = vld [vmem:[%s1081 + $0x728] sm:$0xff]
        %v1366 = vld [vmem:[%s1081 + $0x730] sm:$0xff]
        %v1367 = vld [vmem:[%s1081 + $0x738] sm:$0xff]
        %v1368 = vld [vmem:[%s1081 + $0x740] sm:$0xff]
        %v1369 = vld [vmem:[%s1081 + $0x748] sm:$0xff]
        %v1370 = vld [vmem:[%s1081 + $0x750] sm:$0xff]
        %v1371 = vld [vmem:[%s1081 + $0x758] sm:$0xff]
        %v1372 = vld [vmem:[%s1081 + $0x760] sm:$0xff]
        %v1373 = vld [vmem:[%s1081 + $0x768] sm:$0xff]
        %v1374 = vld [vmem:[%s1081 + $0x770] sm:$0xff]
        %v1375 = vld [vmem:[%s1081 + $0x778] sm:$0xff]
        %v1376 = vld [vmem:[%s1081 + $0x780] sm:$0xff]
        %v1377 = vld [vmem:[%s1081 + $0x788] sm:$0xff]
        %v1378 = vld [vmem:[%s1081 + $0x790] sm:$0xff]
        %v1379 = vld [vmem:[%s1081 + $0x798] sm:$0xff]
        %v1380 = vld [vmem:[%s1081 + $0x7a0] sm:$0xff]
        %v1381 = vld [vmem:[%s1081 + $0x7a8] sm:$0xff]
        %v1382 = vld [vmem:[%s1081 + $0x7b0] sm:$0xff]
        %v1383 = vld [vmem:[%s1081 + $0x7b8] sm:$0xff]
        %v1384 = vld [vmem:[%s1081 + $0x7c0] sm:$0xff]
        %v1385 = vld [vmem:[%s1081 + $0x7c8] sm:$0xff]
        %v1386 = vld [vmem:[%s1081 + $0x7d0] sm:$0xff]
        %v1387 = vld [vmem:[%s1081 + $0x7d8] sm:$0xff]
        %v1388 = vld [vmem:[%s1081 + $0x7e0] sm:$0xff]
        %v1389 = vld [vmem:[%s1081 + $0x7e8] sm:$0xff]
        %v1390 = vld [vmem:[%s1081 + $0x7f0] sm:$0xff]
        %v1391 = vld [vmem:[%s1081 + $0x7f8] sm:$0xff]
        %v1392 = vld [vmem:[%s1081 + $0x800] sm:$0xff]
        %v1393 = vld [vmem:[%s1081 + $0x808] sm:$0xff]
        %v1394 = vld [vmem:[%s1081 + $0x810] sm:$0xff]
        %v1395 = vld [vmem:[%s1081 + $0x818] sm:$0xff]
        %v1396 = vld [vmem:[%s1081 + $0x820] sm:$0xff]
        %v1397 = vld [vmem:[%s1081 + $0x828] sm:$0xff]
        %v1398 = vld [vmem:[%s1081 + $0x830] sm:$0xff]
        %v1399 = vld [vmem:[%s1081 + $0x838] sm:$0xff]
        %v1400 = vld [vmem:[%s1081 + $0x840] sm:$0xff]
        %v1401 = vld [vmem:[%s1081 + $0x848] sm:$0xff]
        %v1402 = vld [vmem:[%s1081 + $0x850] sm:$0xff]
        %v1403 = vld [vmem:[%s1081 + $0x858] sm:$0xff]
        %v1404 = vld [vmem:[%s1081 + $0x860] sm:$0xff]
        %v1405 = vld [vmem:[%s1081 + $0x868] sm:$0xff]
        %v1406 = vld [vmem:[%s1081 + $0x870] sm:$0xff]
        %v1407 = vld [vmem:[%s1081 + $0x878] sm:$0xff]
        %v1408 = vld [vmem:[%s1081 + $0x880] sm:$0xff]
        %v1409 = vld [vmem:[%s1081 + $0x888] sm:$0xff]
        %v1410 = vld [vmem:[%s1081 + $0x890] sm:$0xff]
        %v1411 = vld [vmem:[%s1081 + $0x898] sm:$0xff]
        %v1412 = vld [vmem:[%s1081 + $0x8a0] sm:$0xff]
        %v1413 = vld [vmem:[%s1081 + $0x8a8] sm:$0xff]
        %v1414 = vld [vmem:[%s1081 + $0x8b0] sm:$0xff]
        %v1415 = vld [vmem:[%s1081 + $0x8b8] sm:$0xff]
        %v1416 = vld [vmem:[%s1081 + $0x8c0] sm:$0xff]
        %v1417 = vld [vmem:[%s1081 + $0x8c8] sm:$0xff]
        %v1418 = vld [vmem:[%s1081 + $0x8d0] sm:$0xff]
        %v1419 = vld [vmem:[%s1081 + $0x8d8] sm:$0xff]
        %v1420 = vld [vmem:[%s1081 + $0x8e0] sm:$0xff]
        %v1421 = vld [vmem:[%s1081 + $0x8e8] sm:$0xff]
        %v1422 = vld [vmem:[%s1081 + $0x8f0] sm:$0xff]
        %v1423 = vld [vmem:[%s1081 + $0x8f8] sm:$0xff]
        %v1424 = vld [vmem:[%s1081 + $0x900] sm:$0xff]
        %v1425 = vld [vmem:[%s1081 + $0x908] sm:$0xff]
        %v1426 = vld [vmem:[%s1081 + $0x910] sm:$0xff]
        %v1427 = vld [vmem:[%s1081 + $0x918] sm:$0xff]
        %v1428 = vld [vmem:[%s1081 + $0x920] sm:$0xff]
        %v1429 = vld [vmem:[%s1081 + $0x928] sm:$0xff]
        %v1430 = vld [vmem:[%s1081 + $0x930] sm:$0xff]
        %v1431 = vld [vmem:[%s1081 + $0x938] sm:$0xff]
        %v1432 = vld [vmem:[%s1081 + $0x940] sm:$0xff]
        %v1433 = vld [vmem:[%s1081 + $0x948] sm:$0xff]
        %v1434 = vld [vmem:[%s1081 + $0x950] sm:$0xff]
        %v1435 = vld [vmem:[%s1081 + $0x958] sm:$0xff]
        %v1436 = vld [vmem:[%s1081 + $0x960] sm:$0xff]
        %v1437 = vld [vmem:[%s1081 + $0x968] sm:$0xff]
        %v1438 = vld [vmem:[%s1081 + $0x970] sm:$0xff]
        %v1439 = vld [vmem:[%s1081 + $0x978] sm:$0xff]
        %v1440 = vld [vmem:[%s1081 + $0x980] sm:$0xff]
        %v1441 = vld [vmem:[%s1081 + $0x988] sm:$0xff]
        %v1442 = vld [vmem:[%s1081 + $0x990] sm:$0xff]
        %v1443 = vld [vmem:[%s1081 + $0x998] sm:$0xff]
        %v1444 = vld [vmem:[%s1081 + $0x9a0] sm:$0xff]
        %v1445 = vld [vmem:[%s1081 + $0x9a8] sm:$0xff]
        %v1446 = vld [vmem:[%s1081 + $0x9b0] sm:$0xff]
        %v1447 = vld [vmem:[%s1081 + $0x9b8] sm:$0xff]
        %v1448 = vld [vmem:[%s1081 + $0x9c0] sm:$0xff]
        %v1449 = vld [vmem:[%s1081 + $0x9c8] sm:$0xff]
        %v1450 = vld [vmem:[%s1081 + $0x9d0] sm:$0xff]
        %v1451 = vld [vmem:[%s1081 + $0x9d8] sm:$0xff]
        %v1452 = vld [vmem:[%s1081 + $0x9e0] sm:$0xff]
        %v1453 = vld [vmem:[%s1081 + $0x9e8] sm:$0xff]
        %v1454 = vld [vmem:[%s1081 + $0x9f0] sm:$0xff]
        %v1455 = vld [vmem:[%s1081 + $0x9f8] sm:$0xff]
        %v1456 = vld [vmem:[%s1081 + $0xa00] sm:$0xff]
        %v1457 = vld [vmem:[%s1081 + $0xa08] sm:$0xff]
        %v1458 = vld [vmem:[%s1081 + $0xa10] sm:$0xff]
        %v1459 = vld [vmem:[%s1081 + $0xa18] sm:$0xff]
        %v1460 = vld [vmem:[%s1081 + $0xa20] sm:$0xff]
        %v1461 = vld [vmem:[%s1081 + $0xa28] sm:$0xff]
        %v1462 = vld [vmem:[%s1081 + $0xa30] sm:$0xff]
        %v1463 = vld [vmem:[%s1081 + $0xa38] sm:$0xff]
        %v1464 = vld [vmem:[%s1081 + $0xa40] sm:$0xff]
        %v1465 = vld [vmem:[%s1081 + $0xa48] sm:$0xff]
        %v1466 = vld [vmem:[%s1081 + $0xa50] sm:$0xff]
        %v1467 = vld [vmem:[%s1081 + $0xa58] sm:$0xff]
        %v1468 = vld [vmem:[%s1081 + $0xa60] sm:$0xff]
        %v1469 = vld [vmem:[%s1081 + $0xa68] sm:$0xff]
        %v1470 = vld [vmem:[%s1081 + $0xa70] sm:$0xff]
        %v1471 = vld [vmem:[%s1081 + $0xa78] sm:$0xff]
        %v1472 = vld [vmem:[%s1081 + $0xa80] sm:$0xff]
        %v1473 = vld [vmem:[%s1081 + $0xa88] sm:$0xff]
        %v1474 = vld [vmem:[%s1081 + $0xa90] sm:$0xff]
        %v1475 = vld [vmem:[%s1081 + $0xa98] sm:$0xff]
        %v1476 = vld [vmem:[%s1081 + $0xaa0] sm:$0xff]
        %v1477 = vld [vmem:[%s1081 + $0xaa8] sm:$0xff]
        %v1478 = vld [vmem:[%s1081 + $0xab0] sm:$0xff]
        %v1479 = vld [vmem:[%s1081 + $0xab8] sm:$0xff]
        %v1480 = vld [vmem:[%s1081 + $0xac0] sm:$0xff]
        %v1481 = vld [vmem:[%s1081 + $0xac8] sm:$0xff]
        %v1482 = vld [vmem:[%s1081 + $0xad0] sm:$0xff]
        %v1483 = vld [vmem:[%s1081 + $0xad8] sm:$0xff]
        %v1484 = vld [vmem:[%s1081 + $0xae0] sm:$0xff]
        %v1485 = vld [vmem:[%s1081 + $0xae8] sm:$0xff]
        %v1486 = vld [vmem:[%s1081 + $0xaf0] sm:$0xff]
        %v1487 = vld [vmem:[%s1081 + $0xaf8] sm:$0xff]
        %v1488 = vld [vmem:[%s1081 + $0xb00] sm:$0xff]
        %v1489 = vld [vmem:[%s1081 + $0xb08] sm:$0xff]
        %v1490 = vld [vmem:[%s1081 + $0xb10] sm:$0xff]
        %v1491 = vld [vmem:[%s1081 + $0xb18] sm:$0xff]
        %v1492 = vld [vmem:[%s1081 + $0xb20] sm:$0xff]
        %v1493 = vld [vmem:[%s1081 + $0xb28] sm:$0xff]
        %v1494 = vld [vmem:[%s1081 + $0xb30] sm:$0xff]
        %v1495 = vld [vmem:[%s1081 + $0xb38] sm:$0xff]
        %v1496 = vld [vmem:[%s1081 + $0xb40] sm:$0xff]
        %v1497 = vld [vmem:[%s1081 + $0xb48] sm:$0xff]
        %v1498 = vld [vmem:[%s1081 + $0xb50] sm:$0xff]
        %v1499 = vld [vmem:[%s1081 + $0xb58] sm:$0xff]
        %v1500 = vld [vmem:[%s1081 + $0xb60] sm:$0xff]
        %v1501 = vld [vmem:[%s1081 + $0xb68] sm:$0xff]
        %v1502 = vld [vmem:[%s1081 + $0xb70] sm:$0xff]
        %v1503 = vld [vmem:[%s1081 + $0xb78] sm:$0xff]
        %v1504 = vld [vmem:[%s1081 + $0xb80] sm:$0xff]
        %v1505 = vld [vmem:[%s1081 + $0xb88] sm:$0xff]
        %v1506 = vld [vmem:[%s1081 + $0xb90] sm:$0xff]
        %v1507 = vld [vmem:[%s1081 + $0xb98] sm:$0xff]
        %v1508 = vld [vmem:[%s1081 + $0xba0] sm:$0xff]
        %v1509 = vld [vmem:[%s1081 + $0xba8] sm:$0xff]
        %v1510 = vld [vmem:[%s1081 + $0xbb0] sm:$0xff]
        %v1511 = vld [vmem:[%s1081 + $0xbb8] sm:$0xff]
        %v1512 = vld [vmem:[%s1081 + $0xbc0] sm:$0xff]
        %v1513 = vld [vmem:[%s1081 + $0xbc8] sm:$0xff]
        %v1514 = vld [vmem:[%s1081 + $0xbd0] sm:$0xff]
        %v1515 = vld [vmem:[%s1081 + $0xbd8] sm:$0xff]
        %v1516 = vld [vmem:[%s1081 + $0xbe0] sm:$0xff]
        %v1517 = vld [vmem:[%s1081 + $0xbe8] sm:$0xff]
        %v1518 = vld [vmem:[%s1081 + $0xbf0] sm:$0xff]
        %v1519 = vld [vmem:[%s1081 + $0xbf8] sm:$0xff]
        %v1520 = vld [vmem:[%s1081 + $0xc00] sm:$0xff]
        %v1521 = vld [vmem:[%s1081 + $0xc08] sm:$0xff]
        %v1522 = vld [vmem:[%s1081 + $0xc10] sm:$0xff]
        %v1523 = vld [vmem:[%s1081 + $0xc18] sm:$0xff]
        %v1524 = vld [vmem:[%s1081 + $0xc20] sm:$0xff]
        %v1525 = vld [vmem:[%s1081 + $0xc28] sm:$0xff]
        %v1526 = vld [vmem:[%s1081 + $0xc30] sm:$0xff]
        %v1527 = vld [vmem:[%s1081 + $0xc38] sm:$0xff]
        %v1528 = vld [vmem:[%s1081 + $0xc40] sm:$0xff]
        %v1529 = vld [vmem:[%s1081 + $0xc48] sm:$0xff]
        %v1530 = vld [vmem:[%s1081 + $0xc50] sm:$0xff]
        %v1531 = vld [vmem:[%s1081 + $0xc58] sm:$0xff]
        %v1532 = vld [vmem:[%s1081 + $0xc60] sm:$0xff]
        %v1533 = vld [vmem:[%s1081 + $0xc68] sm:$0xff]
        %v1534 = vld [vmem:[%s1081 + $0xc70] sm:$0xff]
        %v1535 = vld [vmem:[%s1081 + $0xc78] sm:$0xff]
        %v1536 = vld [vmem:[%s1119] sm:$0xf]
        %v1538 = vperm.slane %v1536, 0
        %v1539 = vperm.slane %v1536, 1
        %v1540 = vperm.slane %v1536, 2
        %v1541 = vperm.slane %v1536, 3
        %1547 = vst [vmem:[#allocation1] ss:$9 sm:$0xff] %v1134
        %v1548 = vld [vmem:[#allocation1] sm:$0xff]
        %v1549 = vld [vmem:[#allocation1 + $0x9] sm:$0xff]
        %v1550 = vld [vmem:[#allocation1 + $0x12] sm:$0xff]
        %v1551 = vld [vmem:[#allocation1 + $0x1b] sm:$0xff]
        %v1552 = vld [vmem:[#allocation1 + $0x24] sm:$0xff]
        %v1553 = vld [vmem:[#allocation1 + $0x2d] sm:$0xff]
        %v1554 = vld [vmem:[#allocation1 + $0x36] sm:$0xff]
        %v1555 = vld [vmem:[#allocation1 + $0x3f] sm:$0xff]
        %1557 = vst [vmem:[#allocation1] ss:$9 sm:$0xff] %v1135
        %v1558 = vld [vmem:[#allocation1] sm:$0xff]
        %v1559 = vld [vmem:[#allocation1 + $0x9] sm:$0xff]
        %v1560 = vld [vmem:[#allocation1 + $0x12] sm:$0xff]
        %v1561 = vld [vmem:[#allocation1 + $0x1b] sm:$0xff]
        %v1562 = vld [vmem:[#allocation1 + $0x24] sm:$0xff]
        %v1975 = vunpack.c.l.b16 %v1136
        %v1976 = vunpack.c.h.b16 %v1136
        %v1977 = vunpack.c.l.b16 %v1137
        %v1978 = vunpack.c.h.b16 %v1137
        %v1979 = vunpack.c.l.b16 %v1138
        %v1980 = vunpack.c.h.b16 %v1138
        %v1981 = vunpack.c.l.b16 %v1139
        %v1982 = vunpack.c.h.b16 %v1139
        %v1983 = vunpack.c.l.b16 %v1140
        %v1984 = vunpack.c.h.b16 %v1140
        %v1985 = vunpack.c.l.b16 %v1141
        %v1986 = vunpack.c.h.b16 %v1141
        %v1987 = vunpack.c.l.b16 %v1142
        %v1988 = vunpack.c.h.b16 %v1142
        %v1989 = vunpack.c.l.b16 %v1143
        %v1990 = vunpack.c.h.b16 %v1143
        %v1991 = vunpack.c.l.b16 %v1144
        %v1992 = vunpack.c.h.b16 %v1144
        %v1993 = vunpack.c.l.b16 %v1145
        %v1994 = vunpack.c.h.b16 %v1145
        %v1995 = vunpack.c.l.b16 %v1146
        %v1996 = vunpack.c.h.b16 %v1146
        %v1997 = vunpack.c.l.b16 %v1147
        %v1998 = vunpack.c.h.b16 %v1147
        %v1999 = vunpack.c.l.b16 %v1148
        %v2000 = vunpack.c.h.b16 %v1148
        %v2001 = vunpack.c.l.b16 %v1149
        %v2002 = vunpack.c.h.b16 %v1149
        %v2003 = vunpack.c.l.b16 %v1150
        %v2004 = vunpack.c.h.b16 %v1150
        %v2005 = vunpack.c.l.b16 %v1151
        %v2006 = vunpack.c.h.b16 %v1151
        %v2007 = vunpack.c.l.b16 %v1152
        %v2008 = vunpack.c.h.b16 %v1152
        %v2009 = vunpack.c.l.b16 %v1153
        %v2010 = vunpack.c.h.b16 %v1153
        %v2011 = vunpack.c.l.b16 %v1154
        %v2012 = vunpack.c.h.b16 %v1154
        %v2013 = vunpack.c.l.b16 %v1155
        %v2014 = vunpack.c.h.b16 %v1155
        %v2015 = vunpack.c.l.b16 %v1156
        %v2016 = vunpack.c.h.b16 %v1156
        %v2017 = vunpack.c.l.b16 %v1157
        %v2018 = vunpack.c.h.b16 %v1157
        %v2019 = vunpack.c.l.b16 %v1158
        %v2020 = vunpack.c.h.b16 %v1158
        %v2021 = vunpack.c.l.b16 %v1159
        %v2022 = vunpack.c.h.b16 %v1159
        %v2023 = vunpack.c.l.b16 %v1160
        %v2024 = vunpack.c.h.b16 %v1160
        %v2025 = vunpack.c.l.b16 %v1161
        %v2026 = vunpack.c.h.b16 %v1161
        %v2027 = vunpack.c.l.b16 %v1162
        %v2028 = vunpack.c.h.b16 %v1162
        %v2029 = vunpack.c.l.b16 %v1163
        %v2030 = vunpack.c.h.b16 %v1163
        %v2031 = vunpack.c.l.b16 %v1164
        %v2032 = vunpack.c.h.b16 %v1164
        %v2033 = vunpack.c.l.b16 %v1165
        %v2034 = vunpack.c.h.b16 %v1165
        %v2035 = vunpack.c.l.b16 %v1166
        %v2036 = vunpack.c.h.b16 %v1166
        %v2037 = vunpack.c.l.b16 %v1167
        %v2038 = vunpack.c.h.b16 %v1167
        %v2039 = vunpack.c.l.b16 %v1168
        %v2040 = vunpack.c.h.b16 %v1168
        %v2041 = vunpack.c.l.b16 %v1169
        %v2042 = vunpack.c.h.b16 %v1169
        %v2043 = vunpack.c.l.b16 %v1170
        %v2044 = vunpack.c.h.b16 %v1170
        %v2045 = vunpack.c.l.b16 %v1171
        %v2046 = vunpack.c.h.b16 %v1171
        %v2047 = vunpack.c.l.b16 %v1172
        %v2048 = vunpack.c.h.b16 %v1172
        %v2049 = vunpack.c.l.b16 %v1173
        %v2050 = vunpack.c.h.b16 %v1173
        %v2051 = vunpack.c.l.b16 %v1174
        %v2052 = vunpack.c.h.b16 %v1174
        %v2053 = vunpack.c.l.b16 %v1175
        %v2054 = vunpack.c.h.b16 %v1175
        %v2055 = vunpack.c.l.b16 %v1176
        %v2056 = vunpack.c.h.b16 %v1176
        %v2057 = vunpack.c.l.b16 %v1177
        %v2058 = vunpack.c.h.b16 %v1177
        %v2059 = vunpack.c.l.b16 %v1178
        %v2060 = vunpack.c.h.b16 %v1178
        %v2061 = vunpack.c.l.b16 %v1179
        %v2062 = vunpack.c.h.b16 %v1179
        %v2063 = vunpack.c.l.b16 %v1180
        %v2064 = vunpack.c.h.b16 %v1180
        %v2065 = vunpack.c.l.b16 %v1181
        %v2066 = vunpack.c.h.b16 %v1181
        %v2067 = vunpack.c.l.b16 %v1182
        %v2068 = vunpack.c.h.b16 %v1182
        %v2069 = vunpack.c.l.b16 %v1183
        %v2070 = vunpack.c.h.b16 %v1183
        %v2071 = vunpack.c.l.b16 %v1184
        %v2072 = vunpack.c.h.b16 %v1184
        %v2073 = vunpack.c.l.b16 %v1185
        %v2074 = vunpack.c.h.b16 %v1185
        %v2075 = vunpack.c.l.b16 %v1186
        %v2076 = vunpack.c.h.b16 %v1186
        %v2077 = vunpack.c.l.b16 %v1187
        %v2078 = vunpack.c.h.b16 %v1187
        %v2079 = vunpack.c.l.b16 %v1188
        %v2080 = vunpack.c.h.b16 %v1188
        %v2081 = vunpack.c.l.b16 %v1189
        %v2082 = vunpack.c.h.b16 %v1189
        %v2083 = vunpack.c.l.b16 %v1190
        %v2084 = vunpack.c.h.b16 %v1190
        %v2085 = vunpack.c.l.b16 %v1191
        %v2086 = vunpack.c.h.b16 %v1191
        %v2087 = vunpack.c.l.b16 %v1192
        %v2088 = vunpack.c.h.b16 %v1192
        %v2089 = vunpack.c.l.b16 %v1193
        %v2090 = vunpack.c.h.b16 %v1193
        %v2091 = vunpack.c.l.b16 %v1194
        %v2092 = vunpack.c.h.b16 %v1194
        %v2093 = vunpack.c.l.b16 %v1195
        %v2094 = vunpack.c.h.b16 %v1195
        %v2095 = vunpack.c.l.b16 %v1196
        %v2096 = vunpack.c.h.b16 %v1196
        %v2097 = vunpack.c.l.b16 %v1197
        %v2098 = vunpack.c.h.b16 %v1197
        %v2099 = vunpack.c.l.b16 %v1198
        %v2100 = vunpack.c.h.b16 %v1198
        %v2101 = vunpack.c.l.b16 %v1199
        %v2102 = vunpack.c.h.b16 %v1199
        %v2103 = vunpack.c.l.b16 %v1200
        %v2104 = vunpack.c.h.b16 %v1200
        %v2105 = vunpack.c.l.b16 %v1201
        %v2106 = vunpack.c.h.b16 %v1201
        %v2107 = vunpack.c.l.b16 %v1202
        %v2108 = vunpack.c.h.b16 %v1202
        %v2109 = vunpack.c.l.b16 %v1203
        %v2110 = vunpack.c.h.b16 %v1203
        %v2111 = vunpack.c.l.b16 %v1204
        %v2112 = vunpack.c.h.b16 %v1204
        %v2113 = vunpack.c.l.b16 %v1205
        %v2114 = vunpack.c.h.b16 %v1205
        %v2115 = vunpack.c.l.b16 %v1206
        %v2116 = vunpack.c.h.b16 %v1206
        %v2117 = vunpack.c.l.b16 %v1207
        %v2118 = vunpack.c.h.b16 %v1207
        %v2119 = vunpack.c.l.b16 %v1208
        %v2120 = vunpack.c.h.b16 %v1208
        %v2121 = vunpack.c.l.b16 %v1209
        %v2122 = vunpack.c.h.b16 %v1209
        %v2123 = vunpack.c.l.b16 %v1210
        %v2124 = vunpack.c.h.b16 %v1210
        %v2125 = vunpack.c.l.b16 %v1211
        %v2126 = vunpack.c.h.b16 %v1211
        %v2127 = vunpack.c.l.b16 %v1212
        %v2128 = vunpack.c.h.b16 %v1212
        %v2129 = vunpack.c.l.b16 %v1213
        %v2130 = vunpack.c.h.b16 %v1213
        %v2131 = vunpack.c.l.b16 %v1214
        %v2132 = vunpack.c.h.b16 %v1214
        %v2133 = vunpack.c.l.b16 %v1215
        %v2134 = vunpack.c.h.b16 %v1215
        %v2135 = vunpack.c.l.b16 %v1216
        %v2136 = vunpack.c.h.b16 %v1216
        %v2137 = vunpack.c.l.b16 %v1217
        %v2138 = vunpack.c.h.b16 %v1217
        %v2139 = vunpack.c.l.b16 %v1218
        %v2140 = vunpack.c.h.b16 %v1218
        %v2141 = vunpack.c.l.b16 %v1219
        %v2142 = vunpack.c.h.b16 %v1219
        %v2143 = vunpack.c.l.b16 %v1220
        %v2144 = vunpack.c.h.b16 %v1220
        %v2145 = vunpack.c.l.b16 %v1221
        %v2146 = vunpack.c.h.b16 %v1221
        %v2147 = vunpack.c.l.b16 %v1222
        %v2148 = vunpack.c.h.b16 %v1222
        %v2149 = vunpack.c.l.b16 %v1223
        %v2150 = vunpack.c.h.b16 %v1223
        %v2151 = vunpack.c.l.b16 %v1224
        %v2152 = vunpack.c.h.b16 %v1224
        %v2153 = vunpack.c.l.b16 %v1225
        %v2154 = vunpack.c.h.b16 %v1225
        %v2155 = vunpack.c.l.b16 %v1226
        %v2156 = vunpack.c.h.b16 %v1226
        %v2157 = vunpack.c.l.b16 %v1227
        %v2158 = vunpack.c.h.b16 %v1227
        %v2159 = vunpack.c.l.b16 %v1228
        %v2160 = vunpack.c.h.b16 %v1228
        %v2161 = vunpack.c.l.b16 %v1229
        %v2162 = vunpack.c.h.b16 %v1229
        %v2163 = vunpack.c.l.b16 %v1230
        %v2164 = vunpack.c.h.b16 %v1230
        %v2165 = vunpack.c.l.b16 %v1231
        %v2166 = vunpack.c.h.b16 %v1231
        %v2167 = vunpack.c.l.b16 %v1232
        %v2168 = vunpack.c.h.b16 %v1232
        %v2169 = vunpack.c.l.b16 %v1233
        %v2170 = vunpack.c.h.b16 %v1233
        %v2171 = vunpack.c.l.b16 %v1234
        %v2172 = vunpack.c.h.b16 %v1234
        %v2173 = vunpack.c.l.b16 %v1235
        %v2174 = vunpack.c.h.b16 %v1235
        %v2175 = vunpack.c.l.b16 %v1236
        %v2176 = vunpack.c.h.b16 %v1236
        %v2177 = vunpack.c.l.b16 %v1237
        %v2178 = vunpack.c.h.b16 %v1237
        %v2179 = vunpack.c.l.b16 %v1238
        %v2180 = vunpack.c.h.b16 %v1238
        %v2181 = vunpack.c.l.b16 %v1239
        %v2182 = vunpack.c.h.b16 %v1239
        %v2183 = vunpack.c.l.b16 %v1240
        %v2184 = vunpack.c.h.b16 %v1240
        %v2185 = vunpack.c.l.b16 %v1241
        %v2186 = vunpack.c.h.b16 %v1241
        %v2187 = vunpack.c.l.b16 %v1242
        %v2188 = vunpack.c.h.b16 %v1242
        %v2189 = vunpack.c.l.b16 %v1243
        %v2190 = vunpack.c.h.b16 %v1243
        %v2191 = vunpack.c.l.b16 %v1244
        %v2192 = vunpack.c.h.b16 %v1244
        %v2193 = vunpack.c.l.b16 %v1245
        %v2194 = vunpack.c.h.b16 %v1245
        %v2195 = vunpack.c.l.b16 %v1246
        %v2196 = vunpack.c.h.b16 %v1246
        %v2197 = vunpack.c.l.b16 %v1247
        %v2198 = vunpack.c.h.b16 %v1247
        %v2199 = vunpack.c.l.b16 %v1248
        %v2200 = vunpack.c.h.b16 %v1248
        %v2201 = vunpack.c.l.b16 %v1249
        %v2202 = vunpack.c.h.b16 %v1249
        %v2203 = vunpack.c.l.b16 %v1250
        %v2204 = vunpack.c.h.b16 %v1250
        %v2205 = vunpack.c.l.b16 %v1251
        %v2206 = vunpack.c.h.b16 %v1251
        %v2207 = vunpack.c.l.b16 %v1252
        %v2208 = vunpack.c.h.b16 %v1252
        %v2209 = vunpack.c.l.b16 %v1253
        %v2210 = vunpack.c.h.b16 %v1253
        %v2211 = vunpack.c.l.b16 %v1254
        %v2212 = vunpack.c.h.b16 %v1254
        %v2213 = vunpack.c.l.b16 %v1255
        %v2214 = vunpack.c.h.b16 %v1255
        %v2215 = vunpack.c.l.b16 %v1256
        %v2216 = vunpack.c.h.b16 %v1256
        %v2217 = vunpack.c.l.b16 %v1257
        %v2218 = vunpack.c.h.b16 %v1257
        %v2219 = vunpack.c.l.b16 %v1258
        %v2220 = vunpack.c.h.b16 %v1258
        %v2221 = vunpack.c.l.b16 %v1259
        %v2222 = vunpack.c.h.b16 %v1259
        %v2223 = vunpack.c.l.b16 %v1260
        %v2224 = vunpack.c.h.b16 %v1260
        %v2225 = vunpack.c.l.b16 %v1261
        %v2226 = vunpack.c.h.b16 %v1261
        %v2227 = vunpack.c.l.b16 %v1262
        %v2228 = vunpack.c.h.b16 %v1262
        %v2229 = vunpack.c.l.b16 %v1263
        %v2230 = vunpack.c.h.b16 %v1263
        %v2231 = vunpack.c.l.b16 %v1264
        %v2232 = vunpack.c.h.b16 %v1264
        %v2233 = vunpack.c.l.b16 %v1265
        %v2234 = vunpack.c.h.b16 %v1265
        %v2235 = vunpack.c.l.b16 %v1266
        %v2236 = vunpack.c.h.b16 %v1266
        %v2237 = vunpack.c.l.b16 %v1267
        %v2238 = vunpack.c.h.b16 %v1267
        %v2239 = vunpack.c.l.b16 %v1268
        %v2240 = vunpack.c.h.b16 %v1268
        %v2241 = vunpack.c.l.b16 %v1269
        %v2242 = vunpack.c.h.b16 %v1269
        %v2243 = vunpack.c.l.b16 %v1270
        %v2244 = vunpack.c.h.b16 %v1270
        %v2245 = vunpack.c.l.b16 %v1271
        %v2246 = vunpack.c.h.b16 %v1271
        %v2247 = vunpack.c.l.b16 %v1272
        %v2248 = vunpack.c.h.b16 %v1272
        %v2249 = vunpack.c.l.b16 %v1273
        %v2250 = vunpack.c.h.b16 %v1273
        %v2251 = vunpack.c.l.b16 %v1274
        %v2252 = vunpack.c.h.b16 %v1274
        %v2253 = vunpack.c.l.b16 %v1275
        %v2254 = vunpack.c.h.b16 %v1275
        %v2255 = vunpack.c.l.b16 %v1276
        %v2256 = vunpack.c.h.b16 %v1276
        %v2257 = vunpack.c.l.b16 %v1277
        %v2258 = vunpack.c.h.b16 %v1277
        %v2259 = vunpack.c.l.b16 %v1278
        %v2260 = vunpack.c.h.b16 %v1278
        %v2261 = vunpack.c.l.b16 %v1279
        %v2262 = vunpack.c.h.b16 %v1279
        %v2263 = vunpack.c.l.b16 %v1280
        %v2264 = vunpack.c.h.b16 %v1280
        %v2265 = vunpack.c.l.b16 %v1281
        %v2266 = vunpack.c.h.b16 %v1281
        %v2267 = vunpack.c.l.b16 %v1282
        %v2268 = vunpack.c.h.b16 %v1282
        %v2269 = vunpack.c.l.b16 %v1283
        %v2270 = vunpack.c.h.b16 %v1283
        %v2271 = vunpack.c.l.b16 %v1284
        %v2272 = vunpack.c.h.b16 %v1284
        %v2273 = vunpack.c.l.b16 %v1285
        %v2274 = vunpack.c.h.b16 %v1285
        %v2275 = vunpack.c.l.b16 %v1286
        %v2276 = vunpack.c.h.b16 %v1286
        %v2277 = vunpack.c.l.b16 %v1287
        %v2278 = vunpack.c.h.b16 %v1287
        %v2279 = vunpack.c.l.b16 %v1288
        %v2280 = vunpack.c.h.b16 %v1288
        %v2281 = vunpack.c.l.b16 %v1289
        %v2282 = vunpack.c.h.b16 %v1289
        %v2283 = vunpack.c.l.b16 %v1290
        %v2284 = vunpack.c.h.b16 %v1290
        %v2285 = vunpack.c.l.b16 %v1291
        %v2286 = vunpack.c.h.b16 %v1291
        %v2287 = vunpack.c.l.b16 %v1292
        %v2288 = vunpack.c.h.b16 %v1292
        %v2289 = vunpack.c.l.b16 %v1293
        %v2290 = vunpack.c.h.b16 %v1293
        %v2291 = vunpack.c.l.b16 %v1294
        %v2292 = vunpack.c.h.b16 %v1294
        %v2293 = vunpack.c.l.b16 %v1295
        %v2294 = vunpack.c.h.b16 %v1295
        %v2295 = vunpack.c.l.b16 %v1296
        %v2296 = vunpack.c.h.b16 %v1296
        %v2297 = vunpack.c.l.b16 %v1297
        %v2298 = vunpack.c.h.b16 %v1297
        %v2299 = vunpack.c.l.b16 %v1298
        %v2300 = vunpack.c.h.b16 %v1298
        %v2301 = vunpack.c.l.b16 %v1299
        %v2302 = vunpack.c.h.b16 %v1299
        %v2303 = vunpack.c.l.b16 %v1300
        %v2304 = vunpack.c.h.b16 %v1300
        %v2305 = vunpack.c.l.b16 %v1301
        %v2306 = vunpack.c.h.b16 %v1301
        %v2307 = vunpack.c.l.b16 %v1302
        %v2308 = vunpack.c.h.b16 %v1302
        %v2309 = vunpack.c.l.b16 %v1303
        %v2310 = vunpack.c.h.b16 %v1303
        %v2311 = vunpack.c.l.b16 %v1304
        %v2312 = vunpack.c.h.b16 %v1304
        %v2313 = vunpack.c.l.b16 %v1305
        %v2314 = vunpack.c.h.b16 %v1305
        %v2315 = vunpack.c.l.b16 %v1306
        %v2316 = vunpack.c.h.b16 %v1306
        %v2317 = vunpack.c.l.b16 %v1307
        %v2318 = vunpack.c.h.b16 %v1307
        %v2319 = vunpack.c.l.b16 %v1308
        %v2320 = vunpack.c.h.b16 %v1308
        %v2321 = vunpack.c.l.b16 %v1309
        %v2322 = vunpack.c.h.b16 %v1309
        %v2323 = vunpack.c.l.b16 %v1310
        %v2324 = vunpack.c.h.b16 %v1310
        %v2325 = vunpack.c.l.b16 %v1311
        %v2326 = vunpack.c.h.b16 %v1311
        %v2327 = vunpack.c.l.b16 %v1312
        %v2328 = vunpack.c.h.b16 %v1312
        %v2329 = vunpack.c.l.b16 %v1313
        %v2330 = vunpack.c.h.b16 %v1313
        %v2331 = vunpack.c.l.b16 %v1314
        %v2332 = vunpack.c.h.b16 %v1314
        %v2333 = vunpack.c.l.b16 %v1315
        %v2334 = vunpack.c.h.b16 %v1315
        %v2335 = vunpack.c.l.b16 %v1316
        %v2336 = vunpack.c.h.b16 %v1316
        %v2337 = vunpack.c.l.b16 %v1317
        %v2338 = vunpack.c.h.b16 %v1317
        %v2339 = vunpack.c.l.b16 %v1318
        %v2340 = vunpack.c.h.b16 %v1318
        %v2341 = vunpack.c.l.b16 %v1319
        %v2342 = vunpack.c.h.b16 %v1319
        %v2343 = vunpack.c.l.b16 %v1320
        %v2344 = vunpack.c.h.b16 %v1320
        %v2345 = vunpack.c.l.b16 %v1321
        %v2346 = vunpack.c.h.b16 %v1321
        %v2347 = vunpack.c.l.b16 %v1322
        %v2348 = vunpack.c.h.b16 %v1322
        %v2349 = vunpack.c.l.b16 %v1323
        %v2350 = vunpack.c.h.b16 %v1323
        %v2351 = vunpack.c.l.b16 %v1324
        %v2352 = vunpack.c.h.b16 %v1324
        %v2353 = vunpack.c.l.b16 %v1325
        %v2354 = vunpack.c.h.b16 %v1325
        %v2355 = vunpack.c.l.b16 %v1326
        %v2356 = vunpack.c.h.b16 %v1326
        %v2357 = vunpack.c.l.b16 %v1327
        %v2358 = vunpack.c.h.b16 %v1327
        %v2359 = vunpack.c.l.b16 %v1328
        %v2360 = vunpack.c.h.b16 %v1328
        %v2361 = vunpack.c.l.b16 %v1329
        %v2362 = vunpack.c.h.b16 %v1329
        %v2363 = vunpack.c.l.b16 %v1330
        %v2364 = vunpack.c.h.b16 %v1330
        %v2365 = vunpack.c.l.b16 %v1331
        %v2366 = vunpack.c.h.b16 %v1331
        %v2367 = vunpack.c.l.b16 %v1332
        %v2368 = vunpack.c.h.b16 %v1332
        %v2369 = vunpack.c.l.b16 %v1333
        %v2370 = vunpack.c.h.b16 %v1333
        %v2371 = vunpack.c.l.b16 %v1334
        %v2372 = vunpack.c.h.b16 %v1334
        %v2373 = vunpack.c.l.b16 %v1335
        %v2374 = vunpack.c.h.b16 %v1335
        %v2375 = vunpack.c.l.b16 %v1336
        %v2376 = vunpack.c.h.b16 %v1336
        %v2377 = vunpack.c.l.b16 %v1337
        %v2378 = vunpack.c.h.b16 %v1337
        %v2379 = vunpack.c.l.b16 %v1338
        %v2380 = vunpack.c.h.b16 %v1338
        %v2381 = vunpack.c.l.b16 %v1339
        %v2382 = vunpack.c.h.b16 %v1339
        %v2383 = vunpack.c.l.b16 %v1340
        %v2384 = vunpack.c.h.b16 %v1340
        %v2385 = vunpack.c.l.b16 %v1341
        %v2386 = vunpack.c.h.b16 %v1341
        %v2387 = vunpack.c.l.b16 %v1342
        %v2388 = vunpack.c.h.b16 %v1342
        %v2389 = vunpack.c.l.b16 %v1343
        %v2390 = vunpack.c.h.b16 %v1343
        %v2391 = vunpack.c.l.b16 %v1344
        %v2392 = vunpack.c.h.b16 %v1344
        %v2393 = vunpack.c.l.b16 %v1345
        %v2394 = vunpack.c.h.b16 %v1345
        %v2395 = vunpack.c.l.b16 %v1346
        %v2396 = vunpack.c.h.b16 %v1346
        %v2397 = vunpack.c.l.b16 %v1347
        %v2398 = vunpack.c.h.b16 %v1347
        %v2399 = vunpack.c.l.b16 %v1348
        %v2400 = vunpack.c.h.b16 %v1348
        %v2401 = vunpack.c.l.b16 %v1349
        %v2402 = vunpack.c.h.b16 %v1349
        %v2403 = vunpack.c.l.b16 %v1350
        %v2404 = vunpack.c.h.b16 %v1350
        %v2405 = vunpack.c.l.b16 %v1351
        %v2406 = vunpack.c.h.b16 %v1351
        %v2407 = vunpack.c.l.b16 %v1352
        %v2408 = vunpack.c.h.b16 %v1352
        %v2409 = vunpack.c.l.b16 %v1353
        %v2410 = vunpack.c.h.b16 %v1353
        %v2411 = vunpack.c.l.b16 %v1354
        %v2412 = vunpack.c.h.b16 %v1354
        %v2413 = vunpack.c.l.b16 %v1355
        %v2414 = vunpack.c.h.b16 %v1355
        %v2415 = vunpack.c.l.b16 %v1356
        %v2416 = vunpack.c.h.b16 %v1356
        %v2417 = vunpack.c.l.b16 %v1357
        %v2418 = vunpack.c.h.b16 %v1357
        %v2419 = vunpack.c.l.b16 %v1358
        %v2420 = vunpack.c.h.b16 %v1358
        %v2421 = vunpack.c.l.b16 %v1359
        %v2422 = vunpack.c.h.b16 %v1359
        %v2423 = vunpack.c.l.b16 %v1360
        %v2424 = vunpack.c.h.b16 %v1360
        %v2425 = vunpack.c.l.b16 %v1361
        %v2426 = vunpack.c.h.b16 %v1361
        %v2427 = vunpack.c.l.b16 %v1362
        %v2428 = vunpack.c.h.b16 %v1362
        %v2429 = vunpack.c.l.b16 %v1363
        %v2430 = vunpack.c.h.b16 %v1363
        %v2431 = vunpack.c.l.b16 %v1364
        %v2432 = vunpack.c.h.b16 %v1364
        %v2433 = vunpack.c.l.b16 %v1365
        %v2434 = vunpack.c.h.b16 %v1365
        %v2435 = vunpack.c.l.b16 %v1366
        %v2436 = vunpack.c.h.b16 %v1366
        %v2437 = vunpack.c.l.b16 %v1367
        %v2438 = vunpack.c.h.b16 %v1367
        %v2439 = vunpack.c.l.b16 %v1368
        %v2440 = vunpack.c.h.b16 %v1368
        %v2441 = vunpack.c.l.b16 %v1369
        %v2442 = vunpack.c.h.b16 %v1369
        %v2443 = vunpack.c.l.b16 %v1370
        %v2444 = vunpack.c.h.b16 %v1370
        %v2445 = vunpack.c.l.b16 %v1371
        %v2446 = vunpack.c.h.b16 %v1371
        %v2447 = vunpack.c.l.b16 %v1372
        %v2448 = vunpack.c.h.b16 %v1372
        %v2449 = vunpack.c.l.b16 %v1373
        %v2450 = vunpack.c.h.b16 %v1373
        %v2451 = vunpack.c.l.b16 %v1374
        %v2452 = vunpack.c.h.b16 %v1374
        %v2453 = vunpack.c.l.b16 %v1375
        %v2454 = vunpack.c.h.b16 %v1375
        %v2455 = vunpack.c.l.b16 %v1376
        %v2456 = vunpack.c.h.b16 %v1376
        %v2457 = vunpack.c.l.b16 %v1377
        %v2458 = vunpack.c.h.b16 %v1377
        %v2459 = vunpack.c.l.b16 %v1378
        %v2460 = vunpack.c.h.b16 %v1378
        %v2461 = vunpack.c.l.b16 %v1379
        %v2462 = vunpack.c.h.b16 %v1379
        %v2463 = vunpack.c.l.b16 %v1380
        %v2464 = vunpack.c.h.b16 %v1380
        %v2465 = vunpack.c.l.b16 %v1381
        %v2466 = vunpack.c.h.b16 %v1381
        %v2467 = vunpack.c.l.b16 %v1382
        %v2468 = vunpack.c.h.b16 %v1382
        %v2469 = vunpack.c.l.b16 %v1383
        %v2470 = vunpack.c.h.b16 %v1383
        %v2471 = vunpack.c.l.b16 %v1384
        %v2472 = vunpack.c.h.b16 %v1384
        %v2473 = vunpack.c.l.b16 %v1385
        %v2474 = vunpack.c.h.b16 %v1385
        %v2475 = vunpack.c.l.b16 %v1386
        %v2476 = vunpack.c.h.b16 %v1386
        %v2477 = vunpack.c.l.b16 %v1387
        %v2478 = vunpack.c.h.b16 %v1387
        %v2479 = vunpack.c.l.b16 %v1388
        %v2480 = vunpack.c.h.b16 %v1388
        %v2481 = vunpack.c.l.b16 %v1389
        %v2482 = vunpack.c.h.b16 %v1389
        %v2483 = vunpack.c.l.b16 %v1390
        %v2484 = vunpack.c.h.b16 %v1390
        %v2485 = vunpack.c.l.b16 %v1391
        %v2486 = vunpack.c.h.b16 %v1391
        %v2487 = vunpack.c.l.b16 %v1392
        %v2488 = vunpack.c.h.b16 %v1392
        %v2489 = vunpack.c.l.b16 %v1393
        %v2490 = vunpack.c.h.b16 %v1393
        %v2491 = vunpack.c.l.b16 %v1394
        %v2492 = vunpack.c.h.b16 %v1394
        %v2493 = vunpack.c.l.b16 %v1395
        %v2494 = vunpack.c.h.b16 %v1395
        %v2495 = vunpack.c.l.b16 %v1396
        %v2496 = vunpack.c.h.b16 %v1396
        %v2497 = vunpack.c.l.b16 %v1397
        %v2498 = vunpack.c.h.b16 %v1397
        %v2499 = vunpack.c.l.b16 %v1398
        %v2500 = vunpack.c.h.b16 %v1398
        %v2501 = vunpack.c.l.b16 %v1399
        %v2502 = vunpack.c.h.b16 %v1399
        %v2503 = vunpack.c.l.b16 %v1400
        %v2504 = vunpack.c.h.b16 %v1400
        %v2505 = vunpack.c.l.b16 %v1401
        %v2506 = vunpack.c.h.b16 %v1401
        %v2507 = vunpack.c.l.b16 %v1402
        %v2508 = vunpack.c.h.b16 %v1402
        %v2509 = vunpack.c.l.b16 %v1403
        %v2510 = vunpack.c.h.b16 %v1403
        %v2511 = vunpack.c.l.b16 %v1404
        %v2512 = vunpack.c.h.b16 %v1404
        %v2513 = vunpack.c.l.b16 %v1405
        %v2514 = vunpack.c.h.b16 %v1405
        %v2515 = vunpack.c.l.b16 %v1406
        %v2516 = vunpack.c.h.b16 %v1406
        %v2517 = vunpack.c.l.b16 %v1407
        %v2518 = vunpack.c.h.b16 %v1407
        %v2519 = vunpack.c.l.b16 %v1408
        %v2520 = vunpack.c.h.b16 %v1408
        %v2521 = vunpack.c.l.b16 %v1409
        %v2522 = vunpack.c.h.b16 %v1409
        %v2523 = vunpack.c.l.b16 %v1410
        %v2524 = vunpack.c.h.b16 %v1410
        %v2525 = vunpack.c.l.b16 %v1411
        %v2526 = vunpack.c.h.b16 %v1411
        %v2527 = vunpack.c.l.b16 %v1412
        %v2528 = vunpack.c.h.b16 %v1412
        %v2529 = vunpack.c.l.b16 %v1413
        %v2530 = vunpack.c.h.b16 %v1413
        %v2531 = vunpack.c.l.b16 %v1414
        %v2532 = vunpack.c.h.b16 %v1414
        %v2533 = vunpack.c.l.b16 %v1415
        %v2534 = vunpack.c.h.b16 %v1415
        %v2535 = vunpack.c.l.b16 %v1416
        %v2536 = vunpack.c.h.b16 %v1416
        %v2537 = vunpack.c.l.b16 %v1417
        %v2538 = vunpack.c.h.b16 %v1417
        %v2539 = vunpack.c.l.b16 %v1418
        %v2540 = vunpack.c.h.b16 %v1418
        %v2541 = vunpack.c.l.b16 %v1419
        %v2542 = vunpack.c.h.b16 %v1419
        %v2543 = vunpack.c.l.b16 %v1420
        %v2544 = vunpack.c.h.b16 %v1420
        %v2545 = vunpack.c.l.b16 %v1421
        %v2546 = vunpack.c.h.b16 %v1421
        %v2547 = vunpack.c.l.b16 %v1422
        %v2548 = vunpack.c.h.b16 %v1422
        %v2549 = vunpack.c.l.b16 %v1423
        %v2550 = vunpack.c.h.b16 %v1423
        %v2551 = vunpack.c.l.b16 %v1424
        %v2552 = vunpack.c.h.b16 %v1424
        %v2553 = vunpack.c.l.b16 %v1425
        %v2554 = vunpack.c.h.b16 %v1425
        %v2555 = vunpack.c.l.b16 %v1426
        %v2556 = vunpack.c.h.b16 %v1426
        %v2557 = vunpack.c.l.b16 %v1427
        %v2558 = vunpack.c.h.b16 %v1427
        %v2559 = vunpack.c.l.b16 %v1428
        %v2560 = vunpack.c.h.b16 %v1428
        %v2561 = vunpack.c.l.b16 %v1429
        %v2562 = vunpack.c.h.b16 %v1429
        %v2563 = vunpack.c.l.b16 %v1430
        %v2564 = vunpack.c.h.b16 %v1430
        %v2565 = vunpack.c.l.b16 %v1431
        %v2566 = vunpack.c.h.b16 %v1431
        %v2567 = vunpack.c.l.b16 %v1432
        %v2568 = vunpack.c.h.b16 %v1432
        %v2569 = vunpack.c.l.b16 %v1433
        %v2570 = vunpack.c.h.b16 %v1433
        %v2571 = vunpack.c.l.b16 %v1434
        %v2572 = vunpack.c.h.b16 %v1434
        %v2573 = vunpack.c.l.b16 %v1435
        %v2574 = vunpack.c.h.b16 %v1435
        %v2575 = vunpack.c.l.b16 %v1436
        %v2576 = vunpack.c.h.b16 %v1436
        %v2577 = vunpack.c.l.b16 %v1437
        %v2578 = vunpack.c.h.b16 %v1437
        %v2579 = vunpack.c.l.b16 %v1438
        %v2580 = vunpack.c.h.b16 %v1438
        %v2581 = vunpack.c.l.b16 %v1439
        %v2582 = vunpack.c.h.b16 %v1439
        %v2583 = vunpack.c.l.b16 %v1440
        %v2584 = vunpack.c.h.b16 %v1440
        %v2585 = vunpack.c.l.b16 %v1441
        %v2586 = vunpack.c.h.b16 %v1441
        %v2587 = vunpack.c.l.b16 %v1442
        %v2588 = vunpack.c.h.b16 %v1442
        %v2589 = vunpack.c.l.b16 %v1443
        %v2590 = vunpack.c.h.b16 %v1443
        %v2591 = vunpack.c.l.b16 %v1444
        %v2592 = vunpack.c.h.b16 %v1444
        %v2593 = vunpack.c.l.b16 %v1445
        %v2594 = vunpack.c.h.b16 %v1445
        %v2595 = vunpack.c.l.b16 %v1446
        %v2596 = vunpack.c.h.b16 %v1446
        %v2597 = vunpack.c.l.b16 %v1447
        %v2598 = vunpack.c.h.b16 %v1447
        %v2599 = vunpack.c.l.b16 %v1448
        %v2600 = vunpack.c.h.b16 %v1448
        %v2601 = vunpack.c.l.b16 %v1449
        %v2602 = vunpack.c.h.b16 %v1449
        %v2603 = vunpack.c.l.b16 %v1450
        %v2604 = vunpack.c.h.b16 %v1450
        %v2605 = vunpack.c.l.b16 %v1451
        %v2606 = vunpack.c.h.b16 %v1451
        %v2607 = vunpack.c.l.b16 %v1452
        %v2608 = vunpack.c.h.b16 %v1452
        %v2609 = vunpack.c.l.b16 %v1453
        %v2610 = vunpack.c.h.b16 %v1453
        %v2611 = vunpack.c.l.b16 %v1454
        %v2612 = vunpack.c.h.b16 %v1454
        %v2613 = vunpack.c.l.b16 %v1455
        %v2614 = vunpack.c.h.b16 %v1455
        %v2615 = vunpack.c.l.b16 %v1456
        %v2616 = vunpack.c.h.b16 %v1456
        %v2617 = vunpack.c.l.b16 %v1457
        %v2618 = vunpack.c.h.b16 %v1457
        %v2619 = vunpack.c.l.b16 %v1458
        %v2620 = vunpack.c.h.b16 %v1458
        %v2621 = vunpack.c.l.b16 %v1459
        %v2622 = vunpack.c.h.b16 %v1459
        %v2623 = vunpack.c.l.b16 %v1460
        %v2624 = vunpack.c.h.b16 %v1460
        %v2625 = vunpack.c.l.b16 %v1461
        %v2626 = vunpack.c.h.b16 %v1461
        %v2627 = vunpack.c.l.b16 %v1462
        %v2628 = vunpack.c.h.b16 %v1462
        %v2629 = vunpack.c.l.b16 %v1463
        %v2630 = vunpack.c.h.b16 %v1463
        %v2631 = vunpack.c.l.b16 %v1464
        %v2632 = vunpack.c.h.b16 %v1464
        %v2633 = vunpack.c.l.b16 %v1465
        %v2634 = vunpack.c.h.b16 %v1465
        %v2635 = vunpack.c.l.b16 %v1466
        %v2636 = vunpack.c.h.b16 %v1466
        %v2637 = vunpack.c.l.b16 %v1467
        %v2638 = vunpack.c.h.b16 %v1467
        %v2639 = vunpack.c.l.b16 %v1468
        %v2640 = vunpack.c.h.b16 %v1468
        %v2641 = vunpack.c.l.b16 %v1469
        %v2642 = vunpack.c.h.b16 %v1469
        %v2643 = vunpack.c.l.b16 %v1470
        %v2644 = vunpack.c.h.b16 %v1470
        %v2645 = vunpack.c.l.b16 %v1471
        %v2646 = vunpack.c.h.b16 %v1471
        %v2647 = vunpack.c.l.b16 %v1472
        %v2648 = vunpack.c.h.b16 %v1472
        %v2649 = vunpack.c.l.b16 %v1473
        %v2650 = vunpack.c.h.b16 %v1473
        %v2651 = vunpack.c.l.b16 %v1474
        %v2652 = vunpack.c.h.b16 %v1474
        %v2653 = vunpack.c.l.b16 %v1475
        %v2654 = vunpack.c.h.b16 %v1475
        %v2655 = vunpack.c.l.b16 %v1476
        %v2656 = vunpack.c.h.b16 %v1476
        %v2657 = vunpack.c.l.b16 %v1477
        %v2658 = vunpack.c.h.b16 %v1477
        %v2659 = vunpack.c.l.b16 %v1478
        %v2660 = vunpack.c.h.b16 %v1478
        %v2661 = vunpack.c.l.b16 %v1479
        %v2662 = vunpack.c.h.b16 %v1479
        %v2663 = vunpack.c.l.b16 %v1480
        %v2664 = vunpack.c.h.b16 %v1480
        %v2665 = vunpack.c.l.b16 %v1481
        %v2666 = vunpack.c.h.b16 %v1481
        %v2667 = vunpack.c.l.b16 %v1482
        %v2668 = vunpack.c.h.b16 %v1482
        %v2669 = vunpack.c.l.b16 %v1483
        %v2670 = vunpack.c.h.b16 %v1483
        %v2671 = vunpack.c.l.b16 %v1484
        %v2672 = vunpack.c.h.b16 %v1484
        %v2673 = vunpack.c.l.b16 %v1485
        %v2674 = vunpack.c.h.b16 %v1485
        %v2675 = vunpack.c.l.b16 %v1486
        %v2676 = vunpack.c.h.b16 %v1486
        %v2677 = vunpack.c.l.b16 %v1487
        %v2678 = vunpack.c.h.b16 %v1487
        %v2679 = vunpack.c.l.b16 %v1488
        %v2680 = vunpack.c.h.b16 %v1488
        %v2681 = vunpack.c.l.b16 %v1489
        %v2682 = vunpack.c.h.b16 %v1489
        %v2683 = vunpack.c.l.b16 %v1490
        %v2684 = vunpack.c.h.b16 %v1490
        %v2685 = vunpack.c.l.b16 %v1491
        %v2686 = vunpack.c.h.b16 %v1491
        %v2687 = vunpack.c.l.b16 %v1492
        %v2688 = vunpack.c.h.b16 %v1492
        %v2689 = vunpack.c.l.b16 %v1493
        %v2690 = vunpack.c.h.b16 %v1493
        %v2691 = vunpack.c.l.b16 %v1494
        %v2692 = vunpack.c.h.b16 %v1494
        %v2693 = vunpack.c.l.b16 %v1495
        %v2694 = vunpack.c.h.b16 %v1495
        %v2695 = vunpack.c.l.b16 %v1496
        %v2696 = vunpack.c.h.b16 %v1496
        %v2697 = vunpack.c.l.b16 %v1497
        %v2698 = vunpack.c.h.b16 %v1497
        %v2699 = vunpack.c.l.b16 %v1498
        %v2700 = vunpack.c.h.b16 %v1498
        %v2701 = vunpack.c.l.b16 %v1499
        %v2702 = vunpack.c.h.b16 %v1499
        %v2703 = vunpack.c.l.b16 %v1500
        %v2704 = vunpack.c.h.b16 %v1500
        %v2705 = vunpack.c.l.b16 %v1501
        %v2706 = vunpack.c.h.b16 %v1501
        %v2707 = vunpack.c.l.b16 %v1502
        %v2708 = vunpack.c.h.b16 %v1502
        %v2709 = vunpack.c.l.b16 %v1503
        %v2710 = vunpack.c.h.b16 %v1503
        %v2711 = vunpack.c.l.b16 %v1504
        %v2712 = vunpack.c.h.b16 %v1504
        %v2713 = vunpack.c.l.b16 %v1505
        %v2714 = vunpack.c.h.b16 %v1505
        %v2715 = vunpack.c.l.b16 %v1506
        %v2716 = vunpack.c.h.b16 %v1506
        %v2717 = vunpack.c.l.b16 %v1507
        %v2718 = vunpack.c.h.b16 %v1507
        %v2719 = vunpack.c.l.b16 %v1508
        %v2720 = vunpack.c.h.b16 %v1508
        %v2721 = vunpack.c.l.b16 %v1509
        %v2722 = vunpack.c.h.b16 %v1509
        %v2723 = vunpack.c.l.b16 %v1510
        %v2724 = vunpack.c.h.b16 %v1510
        %v2725 = vunpack.c.l.b16 %v1511
        %v2726 = vunpack.c.h.b16 %v1511
        %v2727 = vunpack.c.l.b16 %v1512
        %v2728 = vunpack.c.h.b16 %v1512
        %v2729 = vunpack.c.l.b16 %v1513
        %v2730 = vunpack.c.h.b16 %v1513
        %v2731 = vunpack.c.l.b16 %v1514
        %v2732 = vunpack.c.h.b16 %v1514
        %v2733 = vunpack.c.l.b16 %v1515
        %v2734 = vunpack.c.h.b16 %v1515
        %v2735 = vunpack.c.l.b16 %v1516
        %v2736 = vunpack.c.h.b16 %v1516
        %v2737 = vunpack.c.l.b16 %v1517
        %v2738 = vunpack.c.h.b16 %v1517
        %v2739 = vunpack.c.l.b16 %v1518
        %v2740 = vunpack.c.h.b16 %v1518
        %v2741 = vunpack.c.l.b16 %v1519
        %v2742 = vunpack.c.h.b16 %v1519
        %v2743 = vunpack.c.l.b16 %v1520
        %v2744 = vunpack.c.h.b16 %v1520
        %v2745 = vunpack.c.l.b16 %v1521
        %v2746 = vunpack.c.h.b16 %v1521
        %v2747 = vunpack.c.l.b16 %v1522
        %v2748 = vunpack.c.h.b16 %v1522
        %v2749 = vunpack.c.l.b16 %v1523
        %v2750 = vunpack.c.h.b16 %v1523
        %v2751 = vunpack.c.l.b16 %v1524
        %v2752 = vunpack.c.h.b16 %v1524
        %v2753 = vunpack.c.l.b16 %v1525
        %v2754 = vunpack.c.h.b16 %v1525
        %v2755 = vunpack.c.l.b16 %v1526
        %v2756 = vunpack.c.h.b16 %v1526
        %v2757 = vunpack.c.l.b16 %v1527
        %v2758 = vunpack.c.h.b16 %v1527
        %v2759 = vunpack.c.l.b16 %v1528
        %v2760 = vunpack.c.h.b16 %v1528
        %v2761 = vunpack.c.l.b16 %v1529
        %v2762 = vunpack.c.h.b16 %v1529
        %v2763 = vunpack.c.l.b16 %v1530
        %v2764 = vunpack.c.h.b16 %v1530
        %v2765 = vunpack.c.l.b16 %v1531
        %v2766 = vunpack.c.h.b16 %v1531
        %v2767 = vunpack.c.l.b16 %v1532
        %v2768 = vunpack.c.h.b16 %v1532
        %v2769 = vunpack.c.l.b16 %v1533
        %v2770 = vunpack.c.h.b16 %v1533
        %v2771 = vunpack.c.l.b16 %v1534
        %v2772 = vunpack.c.h.b16 %v1534
        %v2773 = vunpack.c.l.b16 %v1535
        %v2774 = vunpack.c.h.b16 %v1535
        %v2775 = vpack.c.b16 %v1979, %v1975
        %v2776 = vpack.c.b16 %v1980, %v1976
        %v2777 = vpack.c.b16 %v1981, %v1977
        %v2778 = vpack.c.b16 %v1982, %v1978
        %v2779 = vpack.c.b16 %v1987, %v1983
        %v2780 = vpack.c.b16 %v1988, %v1984
        %v2781 = vpack.c.b16 %v1989, %v1985
        %v2782 = vpack.c.b16 %v1990, %v1986
        %v2783 = vpack.c.b16 %v1995, %v1991
        %v2784 = vpack.c.b16 %v1996, %v1992
        %v2785 = vpack.c.b16 %v1997, %v1993
        %v2786 = vpack.c.b16 %v1998, %v1994
        %v2787 = vpack.c.b16 %v2003, %v1999
        %v2788 = vpack.c.b16 %v2004, %v2000
        %v2789 = vpack.c.b16 %v2005, %v2001
        %v2790 = vpack.c.b16 %v2006, %v2002
        %v2791 = vpack.c.b16 %v2011, %v2007
        %v2792 = vpack.c.b16 %v2012, %v2008
        %v2793 = vpack.c.b16 %v2013, %v2009
        %v2794 = vpack.c.b16 %v2014, %v2010
        %v2795 = vpack.c.b16 %v2019, %v2015
        %v2796 = vpack.c.b16 %v2020, %v2016
        %v2797 = vpack.c.b16 %v2021, %v2017
        %v2798 = vpack.c.b16 %v2022, %v2018
        %v2799 = vpack.c.b16 %v2027, %v2023
        %v2800 = vpack.c.b16 %v2028, %v2024
        %v2801 = vpack.c.b16 %v2029, %v2025
        %v2802 = vpack.c.b16 %v2030, %v2026
        %v2803 = vpack.c.b16 %v2035, %v2031
        %v2804 = vpack.c.b16 %v2036, %v2032
        %v2805 = vpack.c.b16 %v2037, %v2033
        %v2806 = vpack.c.b16 %v2038, %v2034
        %v2807 = vpack.c.b16 %v2043, %v2039
        %v2808 = vpack.c.b16 %v2044, %v2040
        %v2809 = vpack.c.b16 %v2045, %v2041
        %v2810 = vpack.c.b16 %v2046, %v2042
        %v2811 = vpack.c.b16 %v2051, %v2047
        %v2812 = vpack.c.b16 %v2052, %v2048
        %v2813 = vpack.c.b16 %v2053, %v2049
        %v2814 = vpack.c.b16 %v2054, %v2050
        %v2815 = vpack.c.b16 %v2059, %v2055
        %v2816 = vpack.c.b16 %v2060, %v2056
        %v2817 = vpack.c.b16 %v2061, %v2057
        %v2818 = vpack.c.b16 %v2062, %v2058
        %v2819 = vpack.c.b16 %v2067, %v2063
        %v2820 = vpack.c.b16 %v2068, %v2064
        %v2821 = vpack.c.b16 %v2069, %v2065
        %v2822 = vpack.c.b16 %v2070, %v2066
        %v2823 = vpack.c.b16 %v2075, %v2071
        %v2824 = vpack.c.b16 %v2076, %v2072
        %v2825 = vpack.c.b16 %v2077, %v2073
        %v2826 = vpack.c.b16 %v2078, %v2074
        %v2827 = vpack.c.b16 %v2083, %v2079
        %v2828 = vpack.c.b16 %v2084, %v2080
        %v2829 = vpack.c.b16 %v2085, %v2081
        %v2830 = vpack.c.b16 %v2086, %v2082
        %v2831 = vpack.c.b16 %v2091, %v2087
        %v2832 = vpack.c.b16 %v2092, %v2088
        %v2833 = vpack.c.b16 %v2093, %v2089
        %v2834 = vpack.c.b16 %v2094, %v2090
        %v2835 = vpack.c.b16 %v2099, %v2095
        %v2836 = vpack.c.b16 %v2100, %v2096
        %v2837 = vpack.c.b16 %v2101, %v2097
        %v2838 = vpack.c.b16 %v2102, %v2098
        %v2839 = vpack.c.b16 %v2107, %v2103
        %v2840 = vpack.c.b16 %v2108, %v2104
        %v2841 = vpack.c.b16 %v2109, %v2105
        %v2842 = vpack.c.b16 %v2110, %v2106
        %v2843 = vpack.c.b16 %v2115, %v2111
        %v2844 = vpack.c.b16 %v2116, %v2112
        %v2845 = vpack.c.b16 %v2117, %v2113
        %v2846 = vpack.c.b16 %v2118, %v2114
        %v2847 = vpack.c.b16 %v2123, %v2119
        %v2848 = vpack.c.b16 %v2124, %v2120
        %v2849 = vpack.c.b16 %v2125, %v2121
        %v2850 = vpack.c.b16 %v2126, %v2122
        %v2851 = vpack.c.b16 %v2131, %v2127
        %v2852 = vpack.c.b16 %v2132, %v2128
        %v2853 = vpack.c.b16 %v2133, %v2129
        %v2854 = vpack.c.b16 %v2134, %v2130
        %v2855 = vpack.c.b16 %v2139, %v2135
        %v2856 = vpack.c.b16 %v2140, %v2136
        %v2857 = vpack.c.b16 %v2141, %v2137
        %v2858 = vpack.c.b16 %v2142, %v2138
        %v2859 = vpack.c.b16 %v2147, %v2143
        %v2860 = vpack.c.b16 %v2148, %v2144
        %v2861 = vpack.c.b16 %v2149, %v2145
        %v2862 = vpack.c.b16 %v2150, %v2146
        %v2863 = vpack.c.b16 %v2155, %v2151
        %v2864 = vpack.c.b16 %v2156, %v2152
        %v2865 = vpack.c.b16 %v2157, %v2153
        %v2866 = vpack.c.b16 %v2158, %v2154
        %v2867 = vpack.c.b16 %v2163, %v2159
        %v2868 = vpack.c.b16 %v2164, %v2160
        %v2869 = vpack.c.b16 %v2165, %v2161
        %v2870 = vpack.c.b16 %v2166, %v2162
        %v2871 = vpack.c.b16 %v2171, %v2167
        %v2872 = vpack.c.b16 %v2172, %v2168
        %v2873 = vpack.c.b16 %v2173, %v2169
        %v2874 = vpack.c.b16 %v2174, %v2170
        %v2875 = vpack.c.b16 %v2179, %v2175
        %v2876 = vpack.c.b16 %v2180, %v2176
        %v2877 = vpack.c.b16 %v2181, %v2177
        %v2878 = vpack.c.b16 %v2182, %v2178
        %v2879 = vpack.c.b16 %v2187, %v2183
        %v2880 = vpack.c.b16 %v2188, %v2184
        %v2881 = vpack.c.b16 %v2189, %v2185
        %v2882 = vpack.c.b16 %v2190, %v2186
        %v2883 = vpack.c.b16 %v2195, %v2191
        %v2884 = vpack.c.b16 %v2196, %v2192
        %v2885 = vpack.c.b16 %v2197, %v2193
        %v2886 = vpack.c.b16 %v2198, %v2194
        %v2887 = vpack.c.b16 %v2203, %v2199
        %v2888 = vpack.c.b16 %v2204, %v2200
        %v2889 = vpack.c.b16 %v2205, %v2201
        %v2890 = vpack.c.b16 %v2206, %v2202
        %v2891 = vpack.c.b16 %v2211, %v2207
        %v2892 = vpack.c.b16 %v2212, %v2208
        %v2893 = vpack.c.b16 %v2213, %v2209
        %v2894 = vpack.c.b16 %v2214, %v2210
        %v2895 = vpack.c.b16 %v2219, %v2215
        %v2896 = vpack.c.b16 %v2220, %v2216
        %v2897 = vpack.c.b16 %v2221, %v2217
        %v2898 = vpack.c.b16 %v2222, %v2218
        %v2899 = vpack.c.b16 %v2227, %v2223
        %v2900 = vpack.c.b16 %v2228, %v2224
        %v2901 = vpack.c.b16 %v2229, %v2225
        %v2902 = vpack.c.b16 %v2230, %v2226
        %v2903 = vpack.c.b16 %v2235, %v2231
        %v2904 = vpack.c.b16 %v2236, %v2232
        %v2905 = vpack.c.b16 %v2237, %v2233
        %v2906 = vpack.c.b16 %v2238, %v2234
        %v2907 = vpack.c.b16 %v2243, %v2239
        %v2908 = vpack.c.b16 %v2244, %v2240
        %v2909 = vpack.c.b16 %v2245, %v2241
        %v2910 = vpack.c.b16 %v2246, %v2242
        %v2911 = vpack.c.b16 %v2251, %v2247
        %v2912 = vpack.c.b16 %v2252, %v2248
        %v2913 = vpack.c.b16 %v2253, %v2249
        %v2914 = vpack.c.b16 %v2254, %v2250
        %v2915 = vpack.c.b16 %v2259, %v2255
        %v2916 = vpack.c.b16 %v2260, %v2256
        %v2917 = vpack.c.b16 %v2261, %v2257
        %v2918 = vpack.c.b16 %v2262, %v2258
        %v2919 = vpack.c.b16 %v2267, %v2263
        %v2920 = vpack.c.b16 %v2268, %v2264
        %v2921 = vpack.c.b16 %v2269, %v2265
        %v2922 = vpack.c.b16 %v2270, %v2266
        %v2923 = vpack.c.b16 %v2275, %v2271
        %v2924 = vpack.c.b16 %v2276, %v2272
        %v2925 = vpack.c.b16 %v2277, %v2273
        %v2926 = vpack.c.b16 %v2278, %v2274
        %v2927 = vpack.c.b16 %v2283, %v2279
        %v2928 = vpack.c.b16 %v2284, %v2280
        %v2929 = vpack.c.b16 %v2285, %v2281
        %v2930 = vpack.c.b16 %v2286, %v2282
        %v2931 = vpack.c.b16 %v2291, %v2287
        %v2932 = vpack.c.b16 %v2292, %v2288
        %v2933 = vpack.c.b16 %v2293, %v2289
        %v2934 = vpack.c.b16 %v2294, %v2290
        %v2935 = vpack.c.b16 %v2299, %v2295
        %v2936 = vpack.c.b16 %v2300, %v2296
        %v2937 = vpack.c.b16 %v2301, %v2297
        %v2938 = vpack.c.b16 %v2302, %v2298
        %v2939 = vpack.c.b16 %v2307, %v2303
        %v2940 = vpack.c.b16 %v2308, %v2304
        %v2941 = vpack.c.b16 %v2309, %v2305
        %v2942 = vpack.c.b16 %v2310, %v2306
        %v2943 = vpack.c.b16 %v2315, %v2311
        %v2944 = vpack.c.b16 %v2316, %v2312
        %v2945 = vpack.c.b16 %v2317, %v2313
        %v2946 = vpack.c.b16 %v2318, %v2314
        %v2947 = vpack.c.b16 %v2323, %v2319
        %v2948 = vpack.c.b16 %v2324, %v2320
        %v2949 = vpack.c.b16 %v2325, %v2321
        %v2950 = vpack.c.b16 %v2326, %v2322
        %v2951 = vpack.c.b16 %v2331, %v2327
        %v2952 = vpack.c.b16 %v2332, %v2328
        %v2953 = vpack.c.b16 %v2333, %v2329
        %v2954 = vpack.c.b16 %v2334, %v2330
        %v2955 = vpack.c.b16 %v2339, %v2335
        %v2956 = vpack.c.b16 %v2340, %v2336
        %v2957 = vpack.c.b16 %v2341, %v2337
        %v2958 = vpack.c.b16 %v2342, %v2338
        %v2959 = vpack.c.b16 %v2347, %v2343
        %v2960 = vpack.c.b16 %v2348, %v2344
        %v2961 = vpack.c.b16 %v2349, %v2345
        %v2962 = vpack.c.b16 %v2350, %v2346
        %v2963 = vpack.c.b16 %v2355, %v2351
        %v2964 = vpack.c.b16 %v2356, %v2352
        %v2965 = vpack.c.b16 %v2357, %v2353
        %v2966 = vpack.c.b16 %v2358, %v2354
        %v2967 = vpack.c.b16 %v2363, %v2359
        %v2968 = vpack.c.b16 %v2364, %v2360
        %v2969 = vpack.c.b16 %v2365, %v2361
        %v2970 = vpack.c.b16 %v2366, %v2362
        %v2971 = vpack.c.b16 %v2371, %v2367
        %v2972 = vpack.c.b16 %v2372, %v2368
        %v2973 = vpack.c.b16 %v2373, %v2369
        %v2974 = vpack.c.b16 %v2374, %v2370
        %v2975 = vpack.c.b16 %v2379, %v2375
        %v2976 = vpack.c.b16 %v2380, %v2376
        %v2977 = vpack.c.b16 %v2381, %v2377
        %v2978 = vpack.c.b16 %v2382, %v2378
        %v2979 = vpack.c.b16 %v2387, %v2383
        %v2980 = vpack.c.b16 %v2388, %v2384
        %v2981 = vpack.c.b16 %v2389, %v2385
        %v2982 = vpack.c.b16 %v2390, %v2386
        %v2983 = vpack.c.b16 %v2395, %v2391
        %v2984 = vpack.c.b16 %v2396, %v2392
        %v2985 = vpack.c.b16 %v2397, %v2393
        %v2986 = vpack.c.b16 %v2398, %v2394
        %v2987 = vpack.c.b16 %v2403, %v2399
        %v2988 = vpack.c.b16 %v2404, %v2400
        %v2989 = vpack.c.b16 %v2405, %v2401
        %v2990 = vpack.c.b16 %v2406, %v2402
        %v2991 = vpack.c.b16 %v2411, %v2407
        %v2992 = vpack.c.b16 %v2412, %v2408
        %v2993 = vpack.c.b16 %v2413, %v2409
        %v2994 = vpack.c.b16 %v2414, %v2410
        %v2995 = vpack.c.b16 %v2419, %v2415
        %v2996 = vpack.c.b16 %v2420, %v2416
        %v2997 = vpack.c.b16 %v2421, %v2417
        %v2998 = vpack.c.b16 %v2422, %v2418
        %v2999 = vpack.c.b16 %v2427, %v2423
        %v3000 = vpack.c.b16 %v2428, %v2424
        %v3001 = vpack.c.b16 %v2429, %v2425
        %v3002 = vpack.c.b16 %v2430, %v2426
        %v3003 = vpack.c.b16 %v2435, %v2431
        %v3004 = vpack.c.b16 %v2436, %v2432
        %v3005 = vpack.c.b16 %v2437, %v2433
        %v3006 = vpack.c.b16 %v2438, %v2434
        %v3007 = vpack.c.b16 %v2443, %v2439
        %v3008 = vpack.c.b16 %v2444, %v2440
        %v3009 = vpack.c.b16 %v2445, %v2441
        %v3010 = vpack.c.b16 %v2446, %v2442
        %v3011 = vpack.c.b16 %v2451, %v2447
        %v3012 = vpack.c.b16 %v2452, %v2448
        %v3013 = vpack.c.b16 %v2453, %v2449
        %v3014 = vpack.c.b16 %v2454, %v2450
        %v3015 = vpack.c.b16 %v2459, %v2455
        %v3016 = vpack.c.b16 %v2460, %v2456
        %v3017 = vpack.c.b16 %v2461, %v2457
        %v3018 = vpack.c.b16 %v2462, %v2458
        %v3019 = vpack.c.b16 %v2467, %v2463
        %v3020 = vpack.c.b16 %v2468, %v2464
        %v3021 = vpack.c.b16 %v2469, %v2465
        %v3022 = vpack.c.b16 %v2470, %v2466
        %v3023 = vpack.c.b16 %v2475, %v2471
        %v3024 = vpack.c.b16 %v2476, %v2472
        %v3025 = vpack.c.b16 %v2477, %v2473
        %v3026 = vpack.c.b16 %v2478, %v2474
        %v3027 = vpack.c.b16 %v2483, %v2479
        %v3028 = vpack.c.b16 %v2484, %v2480
        %v3029 = vpack.c.b16 %v2485, %v2481
        %v3030 = vpack.c.b16 %v2486, %v2482
        %v3031 = vpack.c.b16 %v2491, %v2487
        %v3032 = vpack.c.b16 %v2492, %v2488
        %v3033 = vpack.c.b16 %v2493, %v2489
        %v3034 = vpack.c.b16 %v2494, %v2490
        %v3035 = vpack.c.b16 %v2499, %v2495
        %v3036 = vpack.c.b16 %v2500, %v2496
        %v3037 = vpack.c.b16 %v2501, %v2497
        %v3038 = vpack.c.b16 %v2502, %v2498
        %v3039 = vpack.c.b16 %v2507, %v2503
        %v3040 = vpack.c.b16 %v2508, %v2504
        %v3041 = vpack.c.b16 %v2509, %v2505
        %v3042 = vpack.c.b16 %v2510, %v2506
        %v3043 = vpack.c.b16 %v2515, %v2511
        %v3044 = vpack.c.b16 %v2516, %v2512
        %v3045 = vpack.c.b16 %v2517, %v2513
        %v3046 = vpack.c.b16 %v2518, %v2514
        %v3047 = vpack.c.b16 %v2523, %v2519
        %v3048 = vpack.c.b16 %v2524, %v2520
        %v3049 = vpack.c.b16 %v2525, %v2521
        %v3050 = vpack.c.b16 %v2526, %v2522
        %v3051 = vpack.c.b16 %v2531, %v2527
        %v3052 = vpack.c.b16 %v2532, %v2528
        %v3053 = vpack.c.b16 %v2533, %v2529
        %v3054 = vpack.c.b16 %v2534, %v2530
        %v3055 = vpack.c.b16 %v2539, %v2535
        %v3056 = vpack.c.b16 %v2540, %v2536
        %v3057 = vpack.c.b16 %v2541, %v2537
        %v3058 = vpack.c.b16 %v2542, %v2538
        %v3059 = vpack.c.b16 %v2547, %v2543
        %v3060 = vpack.c.b16 %v2548, %v2544
        %v3061 = vpack.c.b16 %v2549, %v2545
        %v3062 = vpack.c.b16 %v2550, %v2546
        %v3063 = vpack.c.b16 %v2555, %v2551
        %v3064 = vpack.c.b16 %v2556, %v2552
        %v3065 = vpack.c.b16 %v2557, %v2553
        %v3066 = vpack.c.b16 %v2558, %v2554
        %v3067 = vpack.c.b16 %v2563, %v2559
        %v3068 = vpack.c.b16 %v2564, %v2560
        %v3069 = vpack.c.b16 %v2565, %v2561
        %v3070 = vpack.c.b16 %v2566, %v2562
        %v3071 = vpack.c.b16 %v2571, %v2567
        %v3072 = vpack.c.b16 %v2572, %v2568
        %v3073 = vpack.c.b16 %v2573, %v2569
        %v3074 = vpack.c.b16 %v2574, %v2570
        %v3075 = vpack.c.b16 %v2579, %v2575
        %v3076 = vpack.c.b16 %v2580, %v2576
        %v3077 = vpack.c.b16 %v2581, %v2577
        %v3078 = vpack.c.b16 %v2582, %v2578
        %v3079 = vpack.c.b16 %v2587, %v2583
        %v3080 = vpack.c.b16 %v2588, %v2584
        %v3081 = vpack.c.b16 %v2589, %v2585
        %v3082 = vpack.c.b16 %v2590, %v2586
        %v3083 = vpack.c.b16 %v2595, %v2591
        %v3084 = vpack.c.b16 %v2596, %v2592
        %v3085 = vpack.c.b16 %v2597, %v2593
        %v3086 = vpack.c.b16 %v2598, %v2594
        %v3087 = vpack.c.b16 %v2603, %v2599
        %v3088 = vpack.c.b16 %v2604, %v2600
        %v3089 = vpack.c.b16 %v2605, %v2601
        %v3090 = vpack.c.b16 %v2606, %v2602
        %v3091 = vpack.c.b16 %v2611, %v2607
        %v3092 = vpack.c.b16 %v2612, %v2608
        %v3093 = vpack.c.b16 %v2613, %v2609
        %v3094 = vpack.c.b16 %v2614, %v2610
        %v3095 = vpack.c.b16 %v2619, %v2615
        %v3096 = vpack.c.b16 %v2620, %v2616
        %v3097 = vpack.c.b16 %v2621, %v2617
        %v3098 = vpack.c.b16 %v2622, %v2618
        %v3099 = vpack.c.b16 %v2627, %v2623
        %v3100 = vpack.c.b16 %v2628, %v2624
        %v3101 = vpack.c.b16 %v2629, %v2625
        %v3102 = vpack.c.b16 %v2630, %v2626
        %v3103 = vpack.c.b16 %v2635, %v2631
        %v3104 = vpack.c.b16 %v2636, %v2632
        %v3105 = vpack.c.b16 %v2637, %v2633
        %v3106 = vpack.c.b16 %v2638, %v2634
        %v3107 = vpack.c.b16 %v2643, %v2639
        %v3108 = vpack.c.b16 %v2644, %v2640
        %v3109 = vpack.c.b16 %v2645, %v2641
        %v3110 = vpack.c.b16 %v2646, %v2642
        %v3111 = vpack.c.b16 %v2651, %v2647
        %v3112 = vpack.c.b16 %v2652, %v2648
        %v3113 = vpack.c.b16 %v2653, %v2649
        %v3114 = vpack.c.b16 %v2654, %v2650
        %v3115 = vpack.c.b16 %v2659, %v2655
        %v3116 = vpack.c.b16 %v2660, %v2656
        %v3117 = vpack.c.b16 %v2661, %v2657
        %v3118 = vpack.c.b16 %v2662, %v2658
        %v3119 = vpack.c.b16 %v2667, %v2663
        %v3120 = vpack.c.b16 %v2668, %v2664
        %v3121 = vpack.c.b16 %v2669, %v2665
        %v3122 = vpack.c.b16 %v2670, %v2666
        %v3123 = vpack.c.b16 %v2675, %v2671
        %v3124 = vpack.c.b16 %v2676, %v2672
        %v3125 = vpack.c.b16 %v2677, %v2673
        %v3126 = vpack.c.b16 %v2678, %v2674
        %v3127 = vpack.c.b16 %v2683, %v2679
        %v3128 = vpack.c.b16 %v2684, %v2680
        %v3129 = vpack.c.b16 %v2685, %v2681
        %v3130 = vpack.c.b16 %v2686, %v2682
        %v3131 = vpack.c.b16 %v2691, %v2687
        %v3132 = vpack.c.b16 %v2692, %v2688
        %v3133 = vpack.c.b16 %v2693, %v2689
        %v3134 = vpack.c.b16 %v2694, %v2690
        %v3135 = vpack.c.b16 %v2699, %v2695
        %v3136 = vpack.c.b16 %v2700, %v2696
        %v3137 = vpack.c.b16 %v2701, %v2697
        %v3138 = vpack.c.b16 %v2702, %v2698
        %v3139 = vpack.c.b16 %v2707, %v2703
        %v3140 = vpack.c.b16 %v2708, %v2704
        %v3141 = vpack.c.b16 %v2709, %v2705
        %v3142 = vpack.c.b16 %v2710, %v2706
        %v3143 = vpack.c.b16 %v2715, %v2711
        %v3144 = vpack.c.b16 %v2716, %v2712
        %v3145 = vpack.c.b16 %v2717, %v2713
        %v3146 = vpack.c.b16 %v2718, %v2714
        %v3147 = vpack.c.b16 %v2723, %v2719
        %v3148 = vpack.c.b16 %v2724, %v2720
        %v3149 = vpack.c.b16 %v2725, %v2721
        %v3150 = vpack.c.b16 %v2726, %v2722
        %v3151 = vpack.c.b16 %v2731, %v2727
        %v3152 = vpack.c.b16 %v2732, %v2728
        %v3153 = vpack.c.b16 %v2733, %v2729
        %v3154 = vpack.c.b16 %v2734, %v2730
        %v3155 = vpack.c.b16 %v2739, %v2735
        %v3156 = vpack.c.b16 %v2740, %v2736
        %v3157 = vpack.c.b16 %v2741, %v2737
        %v3158 = vpack.c.b16 %v2742, %v2738
        %v3159 = vpack.c.b16 %v2747, %v2743
        %v3160 = vpack.c.b16 %v2748, %v2744
        %v3161 = vpack.c.b16 %v2749, %v2745
        %v3162 = vpack.c.b16 %v2750, %v2746
        %v3163 = vpack.c.b16 %v2755, %v2751
        %v3164 = vpack.c.b16 %v2756, %v2752
        %v3165 = vpack.c.b16 %v2757, %v2753
        %v3166 = vpack.c.b16 %v2758, %v2754
        %v3167 = vpack.c.b16 %v2763, %v2759
        %v3168 = vpack.c.b16 %v2764, %v2760
        %v3169 = vpack.c.b16 %v2765, %v2761
        %v3170 = vpack.c.b16 %v2766, %v2762
        %v3171 = vpack.c.b16 %v2771, %v2767
        %v3172 = vpack.c.b16 %v2772, %v2768
        %v3173 = vpack.c.b16 %v2773, %v2769
        %v3174 = vpack.c.b16 %v2774, %v2770
        %vm3575 = vcmask 523264
        %v3576 = vsel %vm3575, %v1562, 0
        %3578 = vmatpush.bf16.msra.mxu0 %v2803
        %3579 = vmatpush.bf16.msra.mxu0 %v2799
        %3580 = vmatpush.bf16.msra.mxu0 %v2795
        %3581 = vmatpush.bf16.msra.mxu0 %v2791
        %3582 = vmatpush.bf16.msra.mxu0 %v2787
        %3583 = vmatpush.bf16.msra.mxu0 %v2783
        %3584 = vmatpush.bf16.msra.mxu0 %v2779
        %3585 = vmatpush.bf16.msra.mxu0 %v2775
        %3586 = vmatmul.bf16.gmra.mxu0 %v1548
        %v3587 = vpop.f32.mrf.mxu0
        %v3588 = vadd.f32 %v1538, %v3587
        %v3589 = vpop.f32.mrf.mxu0
        %3590 = vdwg.mxu0
        %3591 = vmatpush.bf16.msra.mxu0 %v2835
        %3592 = vmatpush.bf16.msra.mxu0 %v2831
        %3593 = vmatpush.bf16.msra.mxu0 %v2827
        %3594 = vmatpush.bf16.msra.mxu0 %v2823
        %3595 = vmatpush.bf16.msra.mxu0 %v2819
        %3596 = vmatpush.bf16.msra.mxu0 %v2815
        %3597 = vmatpush.bf16.msra.mxu0 %v2811
        %3598 = vmatpush.bf16.msra.mxu0 %v2807
        %3599 = vmatmul.bf16.gmra.mxu0 %v1549
        %v3600 = vpop.f32.mrf.mxu0
        %v3601 = vadd.f32 %v3588, %v3600
        %v3602 = vpop.f32.mrf.mxu0
        %3603 = vdwg.mxu0
        %3604 = vmatpush.bf16.msra.mxu0 %v2867
        %3605 = vmatpush.bf16.msra.mxu0 %v2863
        %3606 = vmatpush.bf16.msra.mxu0 %v2859
        %3607 = vmatpush.bf16.msra.mxu0 %v2855
        %3608 = vmatpush.bf16.msra.mxu0 %v2851
        %3609 = vmatpush.bf16.msra.mxu0 %v2847
        %3610 = vmatpush.bf16.msra.mxu0 %v2843
        %3611 = vmatpush.bf16.msra.mxu0 %v2839
        %3612 = vmatmul.bf16.gmra.mxu0 %v1550
        %v3613 = vpop.f32.mrf.mxu0
        %v3614 = vadd.f32 %v3601, %v3613
        %v3615 = vpop.f32.mrf.mxu0
        %3616 = vdwg.mxu0
        %3617 = vmatpush.bf16.msra.mxu0 %v2899
        %3618 = vmatpush.bf16.msra.mxu0 %v2895
        %3619 = vmatpush.bf16.msra.mxu0 %v2891
        %3620 = vmatpush.bf16.msra.mxu0 %v2887
        %3621 = vmatpush.bf16.msra.mxu0 %v2883
        %3622 = vmatpush.bf16.msra.mxu0 %v2879
        %3623 = vmatpush.bf16.msra.mxu0 %v2875
        %3624 = vmatpush.bf16.msra.mxu0 %v2871
        %3625 = vmatmul.bf16.gmra.mxu0 %v1551
        %v3626 = vpop.f32.mrf.mxu0
        %v3627 = vadd.f32 %v3614, %v3626
        %v3628 = vpop.f32.mrf.mxu0
        %3629 = vdwg.mxu0
        %3630 = vmatpush.bf16.msra.mxu0 %v2931
        %3631 = vmatpush.bf16.msra.mxu0 %v2927
        %3632 = vmatpush.bf16.msra.mxu0 %v2923
        %3633 = vmatpush.bf16.msra.mxu0 %v2919
        %3634 = vmatpush.bf16.msra.mxu0 %v2915
        %3635 = vmatpush.bf16.msra.mxu0 %v2911
        %3636 = vmatpush.bf16.msra.mxu0 %v2907
        %3637 = vmatpush.bf16.msra.mxu0 %v2903
        %3638 = vmatmul.bf16.gmra.mxu0 %v1552
        %v3639 = vpop.f32.mrf.mxu0
        %v3640 = vadd.f32 %v3627, %v3639
        %v3641 = vpop.f32.mrf.mxu0
        %3642 = vdwg.mxu0
        %3643 = vmatpush.bf16.msra.mxu0 %v2963
        %3644 = vmatpush.bf16.msra.mxu0 %v2959
        %3645 = vmatpush.bf16.msra.mxu0 %v2955
        %3646 = vmatpush.bf16.msra.mxu0 %v2951
        %3647 = vmatpush.bf16.msra.mxu0 %v2947
        %3648 = vmatpush.bf16.msra.mxu0 %v2943
        %3649 = vmatpush.bf16.msra.mxu0 %v2939
        %3650 = vmatpush.bf16.msra.mxu0 %v2935
        %3651 = vmatmul.bf16.gmra.mxu0 %v1553
        %v3652 = vpop.f32.mrf.mxu0
        %v3653 = vadd.f32 %v3640, %v3652
        %v3654 = vpop.f32.mrf.mxu0
        %3655 = vdwg.mxu0
        %3656 = vmatpush.bf16.msra.mxu0 %v2995
        %3657 = vmatpush.bf16.msra.mxu0 %v2991
        %3658 = vmatpush.bf16.msra.mxu0 %v2987
        %3659 = vmatpush.bf16.msra.mxu0 %v2983
        %3660 = vmatpush.bf16.msra.mxu0 %v2979
        %3661 = vmatpush.bf16.msra.mxu0 %v2975
        %3662 = vmatpush.bf16.msra.mxu0 %v2971
        %3663 = vmatpush.bf16.msra.mxu0 %v2967
        %3664 = vmatmul.bf16.gmra.mxu0 %v1554
        %v3665 = vpop.f32.mrf.mxu0
        %v3666 = vadd.f32 %v3653, %v3665
        %v3667 = vpop.f32.mrf.mxu0
        %3668 = vdwg.mxu0
        %3669 = vmatpush.bf16.msra.mxu0 %v3027
        %3670 = vmatpush.bf16.msra.mxu0 %v3023
        %3671 = vmatpush.bf16.msra.mxu0 %v3019
        %3672 = vmatpush.bf16.msra.mxu0 %v3015
        %3673 = vmatpush.bf16.msra.mxu0 %v3011
        %3674 = vmatpush.bf16.msra.mxu0 %v3007
        %3675 = vmatpush.bf16.msra.mxu0 %v3003
        %3676 = vmatpush.bf16.msra.mxu0 %v2999
        %3677 = vmatmul.bf16.gmra.mxu0 %v1555
        %v3678 = vpop.f32.mrf.mxu0
        %v3679 = vadd.f32 %v3666, %v3678
        %v3680 = vpop.f32.mrf.mxu0
        %3681 = vdwg.mxu0
        %3682 = vmatpush.bf16.msra.mxu0 %v3059
        %3683 = vmatpush.bf16.msra.mxu0 %v3055
        %3684 = vmatpush.bf16.msra.mxu0 %v3051
        %3685 = vmatpush.bf16.msra.mxu0 %v3047
        %3686 = vmatpush.bf16.msra.mxu0 %v3043
        %3687 = vmatpush.bf16.msra.mxu0 %v3039
        %3688 = vmatpush.bf16.msra.mxu0 %v3035
        %3689 = vmatpush.bf16.msra.mxu0 %v3031
        %3690 = vmatmul.bf16.gmra.mxu0 %v1558
        %v3691 = vpop.f32.mrf.mxu0
        %v3692 = vadd.f32 %v3679, %v3691
        %v3693 = vpop.f32.mrf.mxu0
        %3694 = vdwg.mxu0
        %3695 = vmatpush.bf16.msra.mxu0 %v3091
        %3696 = vmatpush.bf16.msra.mxu0 %v3087
        %3697 = vmatpush.bf16.msra.mxu0 %v3083
        %3698 = vmatpush.bf16.msra.mxu0 %v3079
        %3699 = vmatpush.bf16.msra.mxu0 %v3075
        %3700 = vmatpush.bf16.msra.mxu0 %v3071
        %3701 = vmatpush.bf16.msra.mxu0 %v3067
        %3702 = vmatpush.bf16.msra.mxu0 %v3063
        %3703 = vmatmul.bf16.gmra.mxu0 %v1559
        %v3704 = vpop.f32.mrf.mxu0
        %v3705 = vadd.f32 %v3692, %v3704
        %v3706 = vpop.f32.mrf.mxu0
        %3707 = vdwg.mxu0
        %3708 = vmatpush.bf16.msra.mxu0 %v3123
        %3709 = vmatpush.bf16.msra.mxu0 %v3119
        %3710 = vmatpush.bf16.msra.mxu0 %v3115
        %3711 = vmatpush.bf16.msra.mxu0 %v3111
        %3712 = vmatpush.bf16.msra.mxu0 %v3107
        %3713 = vmatpush.bf16.msra.mxu0 %v3103
        %3714 = vmatpush.bf16.msra.mxu0 %v3099
        %3715 = vmatpush.bf16.msra.mxu0 %v3095
        %3716 = vmatmul.bf16.gmra.mxu0 %v1560
        %v3717 = vpop.f32.mrf.mxu0
        %v3718 = vadd.f32 %v3705, %v3717
        %v3719 = vpop.f32.mrf.mxu0
        %3720 = vdwg.mxu0
        %3721 = vmatpush.bf16.msra.mxu0 %v3155
        %3722 = vmatpush.bf16.msra.mxu0 %v3151
        %3723 = vmatpush.bf16.msra.mxu0 %v3147
        %3724 = vmatpush.bf16.msra.mxu0 %v3143
        %3725 = vmatpush.bf16.msra.mxu0 %v3139
        %3726 = vmatpush.bf16.msra.mxu0 %v3135
        %3727 = vmatpush.bf16.msra.mxu0 %v3131
        %3728 = vmatpush.bf16.msra.mxu0 %v3127
        %3729 = vmatmul.bf16.gmra.mxu0 %v1561
        %v3730 = vpop.f32.mrf.mxu0
        %v3731 = vadd.f32 %v3718, %v3730
        %v3732 = vpop.f32.mrf.mxu0
        %3733 = vdwg.mxu0
        %3734 = vmatpush.bf16.msra.mxu0 0
        %3735 = vmatpush.bf16.msra.mxu0 0
        %3736 = vmatpush.bf16.msra.mxu0 0
        %3737 = vmatpush.bf16.msra.mxu0 0
        %3738 = vmatpush.bf16.msra.mxu0 %v3171
        %3739 = vmatpush.bf16.msra.mxu0 %v3167
        %3740 = vmatpush.bf16.msra.mxu0 %v3163
        %3741 = vmatpush.bf16.msra.mxu0 %v3159
        %3742 = vmatmul.bf16.gmra.mxu0 %v3576
        %v3743 = vpop.f32.mrf.mxu0
        %v3744 = vadd.f32 %v3731, %v3743
        %v3745 = vpop.f32.mrf.mxu0
        %3746 = vdwg.mxu0
        %3747 = vmatpush.bf16.msra.mxu0 %v2804
        %3748 = vmatpush.bf16.msra.mxu0 %v2800
        %3749 = vmatpush.bf16.msra.mxu0 %v2796
        %3750 = vmatpush.bf16.msra.mxu0 %v2792
        %3751 = vmatpush.bf16.msra.mxu0 %v2788
        %3752 = vmatpush.bf16.msra.mxu0 %v2784
        %3753 = vmatpush.bf16.msra.mxu0 %v2780
        %3754 = vmatpush.bf16.msra.mxu0 %v2776
        %3755 = vmatmul.bf16.gmra.mxu0 %v1548
        %v3756 = vpop.f32.mrf.mxu0
        %v3757 = vadd.f32 %v1539, %v3756
        %v3758 = vpop.f32.mrf.mxu0
        %3759 = vdwg.mxu0
        %3760 = vmatpush.bf16.msra.mxu0 %v2836
        %3761 = vmatpush.bf16.msra.mxu0 %v2832
        %3762 = vmatpush.bf16.msra.mxu0 %v2828
        %3763 = vmatpush.bf16.msra.mxu0 %v2824
        %3764 = vmatpush.bf16.msra.mxu0 %v2820
        %3765 = vmatpush.bf16.msra.mxu0 %v2816
        %3766 = vmatpush.bf16.msra.mxu0 %v2812
        %3767 = vmatpush.bf16.msra.mxu0 %v2808
        %3768 = vmatmul.bf16.gmra.mxu0 %v1549
        %v3769 = vpop.f32.mrf.mxu0
        %v3770 = vadd.f32 %v3757, %v3769
        %v3771 = vpop.f32.mrf.mxu0
        %3772 = vdwg.mxu0
        %3773 = vmatpush.bf16.msra.mxu0 %v2868
        %3774 = vmatpush.bf16.msra.mxu0 %v2864
        %3775 = vmatpush.bf16.msra.mxu0 %v2860
        %3776 = vmatpush.bf16.msra.mxu0 %v2856
        %3777 = vmatpush.bf16.msra.mxu0 %v2852
        %3778 = vmatpush.bf16.msra.mxu0 %v2848
        %3779 = vmatpush.bf16.msra.mxu0 %v2844
        %3780 = vmatpush.bf16.msra.mxu0 %v2840
        %3781 = vmatmul.bf16.gmra.mxu0 %v1550
        %v3782 = vpop.f32.mrf.mxu0
        %v3783 = vadd.f32 %v3770, %v3782
        %v3784 = vpop.f32.mrf.mxu0
        %3785 = vdwg.mxu0
        %3786 = vmatpush.bf16.msra.mxu0 %v2900
        %3787 = vmatpush.bf16.msra.mxu0 %v2896
        %3788 = vmatpush.bf16.msra.mxu0 %v2892
        %3789 = vmatpush.bf16.msra.mxu0 %v2888
        %3790 = vmatpush.bf16.msra.mxu0 %v2884
        %3791 = vmatpush.bf16.msra.mxu0 %v2880
        %3792 = vmatpush.bf16.msra.mxu0 %v2876
        %3793 = vmatpush.bf16.msra.mxu0 %v2872
        %3794 = vmatmul.bf16.gmra.mxu0 %v1551
        %v3795 = vpop.f32.mrf.mxu0
        %v3796 = vadd.f32 %v3783, %v3795
        %v3797 = vpop.f32.mrf.mxu0
        %3798 = vdwg.mxu0
        %3799 = vmatpush.bf16.msra.mxu0 %v2932
        %3800 = vmatpush.bf16.msra.mxu0 %v2928
        %3801 = vmatpush.bf16.msra.mxu0 %v2924
        %3802 = vmatpush.bf16.msra.mxu0 %v2920
        %3803 = vmatpush.bf16.msra.mxu0 %v2916
        %3804 = vmatpush.bf16.msra.mxu0 %v2912
        %3805 = vmatpush.bf16.msra.mxu0 %v2908
        %3806 = vmatpush.bf16.msra.mxu0 %v2904
        %3807 = vmatmul.bf16.gmra.mxu0 %v1552
        %v3808 = vpop.f32.mrf.mxu0
        %v3809 = vadd.f32 %v3796, %v3808
        %v3810 = vpop.f32.mrf.mxu0
        %3811 = vdwg.mxu0
        %3812 = vmatpush.bf16.msra.mxu0 %v2964
        %3813 = vmatpush.bf16.msra.mxu0 %v2960
        %3814 = vmatpush.bf16.msra.mxu0 %v2956
        %3815 = vmatpush.bf16.msra.mxu0 %v2952
        %3816 = vmatpush.bf16.msra.mxu0 %v2948
        %3817 = vmatpush.bf16.msra.mxu0 %v2944
        %3818 = vmatpush.bf16.msra.mxu0 %v2940
        %3819 = vmatpush.bf16.msra.mxu0 %v2936
        %3820 = vmatmul.bf16.gmra.mxu0 %v1553
        %v3821 = vpop.f32.mrf.mxu0
        %v3822 = vadd.f32 %v3809, %v3821
        %v3823 = vpop.f32.mrf.mxu0
        %3824 = vdwg.mxu0
        %3825 = vmatpush.bf16.msra.mxu0 %v2996
        %3826 = vmatpush.bf16.msra.mxu0 %v2992
        %3827 = vmatpush.bf16.msra.mxu0 %v2988
        %3828 = vmatpush.bf16.msra.mxu0 %v2984
        %3829 = vmatpush.bf16.msra.mxu0 %v2980
        %3830 = vmatpush.bf16.msra.mxu0 %v2976
        %3831 = vmatpush.bf16.msra.mxu0 %v2972
        %3832 = vmatpush.bf16.msra.mxu0 %v2968
        %3833 = vmatmul.bf16.gmra.mxu0 %v1554
        %v3834 = vpop.f32.mrf.mxu0
        %v3835 = vadd.f32 %v3822, %v3834
        %v3836 = vpop.f32.mrf.mxu0
        %3837 = vdwg.mxu0
        %3838 = vmatpush.bf16.msra.mxu0 %v3028
        %3839 = vmatpush.bf16.msra.mxu0 %v3024
        %3840 = vmatpush.bf16.msra.mxu0 %v3020
        %3841 = vmatpush.bf16.msra.mxu0 %v3016
        %3842 = vmatpush.bf16.msra.mxu0 %v3012
        %3843 = vmatpush.bf16.msra.mxu0 %v3008
        %3844 = vmatpush.bf16.msra.mxu0 %v3004
        %3845 = vmatpush.bf16.msra.mxu0 %v3000
        %3846 = vmatmul.bf16.gmra.mxu0 %v1555
        %v3847 = vpop.f32.mrf.mxu0
        %v3848 = vadd.f32 %v3835, %v3847
        %v3849 = vpop.f32.mrf.mxu0
        %3850 = vdwg.mxu0
        %3851 = vmatpush.bf16.msra.mxu0 %v3060
        %3852 = vmatpush.bf16.msra.mxu0 %v3056
        %3853 = vmatpush.bf16.msra.mxu0 %v3052
        %3854 = vmatpush.bf16.msra.mxu0 %v3048
        %3855 = vmatpush.bf16.msra.mxu0 %v3044
        %3856 = vmatpush.bf16.msra.mxu0 %v3040
        %3857 = vmatpush.bf16.msra.mxu0 %v3036
        %3858 = vmatpush.bf16.msra.mxu0 %v3032
        %3859 = vmatmul.bf16.gmra.mxu0 %v1558
        %v3860 = vpop.f32.mrf.mxu0
        %v3861 = vadd.f32 %v3848, %v3860
        %v3862 = vpop.f32.mrf.mxu0
        %3863 = vdwg.mxu0
        %3864 = vmatpush.bf16.msra.mxu0 %v3092
        %3865 = vmatpush.bf16.msra.mxu0 %v3088
        %3866 = vmatpush.bf16.msra.mxu0 %v3084
        %3867 = vmatpush.bf16.msra.mxu0 %v3080
        %3868 = vmatpush.bf16.msra.mxu0 %v3076
        %3869 = vmatpush.bf16.msra.mxu0 %v3072
        %3870 = vmatpush.bf16.msra.mxu0 %v3068
        %3871 = vmatpush.bf16.msra.mxu0 %v3064
        %3872 = vmatmul.bf16.gmra.mxu0 %v1559
        %v3873 = vpop.f32.mrf.mxu0
        %v3874 = vadd.f32 %v3861, %v3873
        %v3875 = vpop.f32.mrf.mxu0
        %3876 = vdwg.mxu0
        %3877 = vmatpush.bf16.msra.mxu0 %v3124
        %3878 = vmatpush.bf16.msra.mxu0 %v3120
        %3879 = vmatpush.bf16.msra.mxu0 %v3116
        %3880 = vmatpush.bf16.msra.mxu0 %v3112
        %3881 = vmatpush.bf16.msra.mxu0 %v3108
        %3882 = vmatpush.bf16.msra.mxu0 %v3104
        %3883 = vmatpush.bf16.msra.mxu0 %v3100
        %3884 = vmatpush.bf16.msra.mxu0 %v3096
        %3885 = vmatmul.bf16.gmra.mxu0 %v1560
        %v3886 = vpop.f32.mrf.mxu0
        %v3887 = vadd.f32 %v3874, %v3886
        %v3888 = vpop.f32.mrf.mxu0
        %3889 = vdwg.mxu0
        %3890 = vmatpush.bf16.msra.mxu0 %v3156
        %3891 = vmatpush.bf16.msra.mxu0 %v3152
        %3892 = vmatpush.bf16.msra.mxu0 %v3148
        %3893 = vmatpush.bf16.msra.mxu0 %v3144
        %3894 = vmatpush.bf16.msra.mxu0 %v3140
        %3895 = vmatpush.bf16.msra.mxu0 %v3136
        %3896 = vmatpush.bf16.msra.mxu0 %v3132
        %3897 = vmatpush.bf16.msra.mxu0 %v3128
        %3898 = vmatmul.bf16.gmra.mxu0 %v1561
        %v3899 = vpop.f32.mrf.mxu0
        %v3900 = vadd.f32 %v3887, %v3899
        %v3901 = vpop.f32.mrf.mxu0
        %3902 = vdwg.mxu0
        %3903 = vmatpush.bf16.msra.mxu0 0
        %3904 = vmatpush.bf16.msra.mxu0 0
        %3905 = vmatpush.bf16.msra.mxu0 0
        %3906 = vmatpush.bf16.msra.mxu0 0
        %3907 = vmatpush.bf16.msra.mxu0 %v3172
        %3908 = vmatpush.bf16.msra.mxu0 %v3168
        %3909 = vmatpush.bf16.msra.mxu0 %v3164
        %3910 = vmatpush.bf16.msra.mxu0 %v3160
        %3911 = vmatmul.bf16.gmra.mxu0 %v3576
        %v3912 = vpop.f32.mrf.mxu0
        %v3913 = vadd.f32 %v3900, %v3912
        %v3914 = vpop.f32.mrf.mxu0
        %3915 = vdwg.mxu0
        %3916 = vmatpush.bf16.msra.mxu0 %v2805
        %3917 = vmatpush.bf16.msra.mxu0 %v2801
        %3918 = vmatpush.bf16.msra.mxu0 %v2797
        %3919 = vmatpush.bf16.msra.mxu0 %v2793
        %3920 = vmatpush.bf16.msra.mxu0 %v2789
        %3921 = vmatpush.bf16.msra.mxu0 %v2785
        %3922 = vmatpush.bf16.msra.mxu0 %v2781
        %3923 = vmatpush.bf16.msra.mxu0 %v2777
        %3924 = vmatmul.bf16.gmra.mxu0 %v1548
        %v3925 = vpop.f32.mrf.mxu0
        %v3926 = vadd.f32 %v1540, %v3925
        %v3927 = vpop.f32.mrf.mxu0
        %3928 = vdwg.mxu0
        %3929 = vmatpush.bf16.msra.mxu0 %v2837
        %3930 = vmatpush.bf16.msra.mxu0 %v2833
        %3931 = vmatpush.bf16.msra.mxu0 %v2829
        %3932 = vmatpush.bf16.msra.mxu0 %v2825
        %3933 = vmatpush.bf16.msra.mxu0 %v2821
        %3934 = vmatpush.bf16.msra.mxu0 %v2817
        %3935 = vmatpush.bf16.msra.mxu0 %v2813
        %3936 = vmatpush.bf16.msra.mxu0 %v2809
        %3937 = vmatmul.bf16.gmra.mxu0 %v1549
        %v3938 = vpop.f32.mrf.mxu0
        %v3939 = vadd.f32 %v3926, %v3938
        %v3940 = vpop.f32.mrf.mxu0
        %3941 = vdwg.mxu0
        %3942 = vmatpush.bf16.msra.mxu0 %v2869
        %3943 = vmatpush.bf16.msra.mxu0 %v2865
        %3944 = vmatpush.bf16.msra.mxu0 %v2861
        %3945 = vmatpush.bf16.msra.mxu0 %v2857
        %3946 = vmatpush.bf16.msra.mxu0 %v2853
        %3947 = vmatpush.bf16.msra.mxu0 %v2849
        %3948 = vmatpush.bf16.msra.mxu0 %v2845
        %3949 = vmatpush.bf16.msra.mxu0 %v2841
        %3950 = vmatmul.bf16.gmra.mxu0 %v1550
        %v3951 = vpop.f32.mrf.mxu0
        %v3952 = vadd.f32 %v3939, %v3951
        %v3953 = vpop.f32.mrf.mxu0
        %3954 = vdwg.mxu0
        %3955 = vmatpush.bf16.msra.mxu0 %v2901
        %3956 = vmatpush.bf16.msra.mxu0 %v2897
        %3957 = vmatpush.bf16.msra.mxu0 %v2893
        %3958 = vmatpush.bf16.msra.mxu0 %v2889
        %3959 = vmatpush.bf16.msra.mxu0 %v2885
        %3960 = vmatpush.bf16.msra.mxu0 %v2881
        %3961 = vmatpush.bf16.msra.mxu0 %v2877
        %3962 = vmatpush.bf16.msra.mxu0 %v2873
        %3963 = vmatmul.bf16.gmra.mxu0 %v1551
        %v3964 = vpop.f32.mrf.mxu0
        %v3965 = vadd.f32 %v3952, %v3964
        %v3966 = vpop.f32.mrf.mxu0
        %3967 = vdwg.mxu0
        %3968 = vmatpush.bf16.msra.mxu0 %v2933
        %3969 = vmatpush.bf16.msra.mxu0 %v2929
        %3970 = vmatpush.bf16.msra.mxu0 %v2925
        %3971 = vmatpush.bf16.msra.mxu0 %v2921
        %3972 = vmatpush.bf16.msra.mxu0 %v2917
        %3973 = vmatpush.bf16.msra.mxu0 %v2913
        %3974 = vmatpush.bf16.msra.mxu0 %v2909
        %3975 = vmatpush.bf16.msra.mxu0 %v2905
        %3976 = vmatmul.bf16.gmra.mxu0 %v1552
        %v3977 = vpop.f32.mrf.mxu0
        %v3978 = vadd.f32 %v3965, %v3977
        %v3979 = vpop.f32.mrf.mxu0
        %3980 = vdwg.mxu0
        %3981 = vmatpush.bf16.msra.mxu0 %v2965
        %3982 = vmatpush.bf16.msra.mxu0 %v2961
        %3983 = vmatpush.bf16.msra.mxu0 %v2957
        %3984 = vmatpush.bf16.msra.mxu0 %v2953
        %3985 = vmatpush.bf16.msra.mxu0 %v2949
        %3986 = vmatpush.bf16.msra.mxu0 %v2945
        %3987 = vmatpush.bf16.msra.mxu0 %v2941
        %3988 = vmatpush.bf16.msra.mxu0 %v2937
        %3989 = vmatmul.bf16.gmra.mxu0 %v1553
        %v3990 = vpop.f32.mrf.mxu0
        %v3991 = vadd.f32 %v3978, %v3990
        %v3992 = vpop.f32.mrf.mxu0
        %3993 = vdwg.mxu0
        %3994 = vmatpush.bf16.msra.mxu0 %v2997
        %3995 = vmatpush.bf16.msra.mxu0 %v2993
        %3996 = vmatpush.bf16.msra.mxu0 %v2989
        %3997 = vmatpush.bf16.msra.mxu0 %v2985
        %3998 = vmatpush.bf16.msra.mxu0 %v2981
        %3999 = vmatpush.bf16.msra.mxu0 %v2977
        %4000 = vmatpush.bf16.msra.mxu0 %v2973
        %4001 = vmatpush.bf16.msra.mxu0 %v2969
        %4002 = vmatmul.bf16.gmra.mxu0 %v1554
        %v4003 = vpop.f32.mrf.mxu0
        %v4004 = vadd.f32 %v3991, %v4003
        %v4005 = vpop.f32.mrf.mxu0
        %4006 = vdwg.mxu0
        %4007 = vmatpush.bf16.msra.mxu0 %v3029
        %4008 = vmatpush.bf16.msra.mxu0 %v3025
        %4009 = vmatpush.bf16.msra.mxu0 %v3021
        %4010 = vmatpush.bf16.msra.mxu0 %v3017
        %4011 = vmatpush.bf16.msra.mxu0 %v3013
        %4012 = vmatpush.bf16.msra.mxu0 %v3009
        %4013 = vmatpush.bf16.msra.mxu0 %v3005
        %4014 = vmatpush.bf16.msra.mxu0 %v3001
        %4015 = vmatmul.bf16.gmra.mxu0 %v1555
        %v4016 = vpop.f32.mrf.mxu0
        %v4017 = vadd.f32 %v4004, %v4016
        %v4018 = vpop.f32.mrf.mxu0
        %4019 = vdwg.mxu0
        %4020 = vmatpush.bf16.msra.mxu0 %v3061
        %4021 = vmatpush.bf16.msra.mxu0 %v3057
        %4022 = vmatpush.bf16.msra.mxu0 %v3053
        %4023 = vmatpush.bf16.msra.mxu0 %v3049
        %4024 = vmatpush.bf16.msra.mxu0 %v3045
        %4025 = vmatpush.bf16.msra.mxu0 %v3041
        %4026 = vmatpush.bf16.msra.mxu0 %v3037
        %4027 = vmatpush.bf16.msra.mxu0 %v3033
        %4028 = vmatmul.bf16.gmra.mxu0 %v1558
        %v4029 = vpop.f32.mrf.mxu0
        %v4030 = vadd.f32 %v4017, %v4029
        %v4031 = vpop.f32.mrf.mxu0
        %4032 = vdwg.mxu0
        %4033 = vmatpush.bf16.msra.mxu0 %v3093
        %4034 = vmatpush.bf16.msra.mxu0 %v3089
        %4035 = vmatpush.bf16.msra.mxu0 %v3085
        %4036 = vmatpush.bf16.msra.mxu0 %v3081
        %4037 = vmatpush.bf16.msra.mxu0 %v3077
        %4038 = vmatpush.bf16.msra.mxu0 %v3073
        %4039 = vmatpush.bf16.msra.mxu0 %v3069
        %4040 = vmatpush.bf16.msra.mxu0 %v3065
        %4041 = vmatmul.bf16.gmra.mxu0 %v1559
        %v4042 = vpop.f32.mrf.mxu0
        %v4043 = vadd.f32 %v4030, %v4042
        %v4044 = vpop.f32.mrf.mxu0
        %4045 = vdwg.mxu0
        %4046 = vmatpush.bf16.msra.mxu0 %v3125
        %4047 = vmatpush.bf16.msra.mxu0 %v3121
        %4048 = vmatpush.bf16.msra.mxu0 %v3117
        %4049 = vmatpush.bf16.msra.mxu0 %v3113
        %4050 = vmatpush.bf16.msra.mxu0 %v3109
        %4051 = vmatpush.bf16.msra.mxu0 %v3105
        %4052 = vmatpush.bf16.msra.mxu0 %v3101
        %4053 = vmatpush.bf16.msra.mxu0 %v3097
        %4054 = vmatmul.bf16.gmra.mxu0 %v1560
        %v4055 = vpop.f32.mrf.mxu0
        %v4056 = vadd.f32 %v4043, %v4055
        %v4057 = vpop.f32.mrf.mxu0
        %4058 = vdwg.mxu0
        %4059 = vmatpush.bf16.msra.mxu0 %v3157
        %4060 = vmatpush.bf16.msra.mxu0 %v3153
        %4061 = vmatpush.bf16.msra.mxu0 %v3149
        %4062 = vmatpush.bf16.msra.mxu0 %v3145
        %4063 = vmatpush.bf16.msra.mxu0 %v3141
        %4064 = vmatpush.bf16.msra.mxu0 %v3137
        %4065 = vmatpush.bf16.msra.mxu0 %v3133
        %4066 = vmatpush.bf16.msra.mxu0 %v3129
        %4067 = vmatmul.bf16.gmra.mxu0 %v1561
        %v4068 = vpop.f32.mrf.mxu0
        %v4069 = vadd.f32 %v4056, %v4068
        %v4070 = vpop.f32.mrf.mxu0
        %4071 = vdwg.mxu0
        %4072 = vmatpush.bf16.msra.mxu0 0
        %4073 = vmatpush.bf16.msra.mxu0 0
        %4074 = vmatpush.bf16.msra.mxu0 0
        %4075 = vmatpush.bf16.msra.mxu0 0
        %4076 = vmatpush.bf16.msra.mxu0 %v3173
        %4077 = vmatpush.bf16.msra.mxu0 %v3169
        %4078 = vmatpush.bf16.msra.mxu0 %v3165
        %4079 = vmatpush.bf16.msra.mxu0 %v3161
        %4080 = vmatmul.bf16.gmra.mxu0 %v3576
        %v4081 = vpop.f32.mrf.mxu0
        %v4082 = vadd.f32 %v4069, %v4081
        %v4083 = vpop.f32.mrf.mxu0
        %4084 = vdwg.mxu0
        %4085 = vmatpush.bf16.msra.mxu0 %v2806
        %4086 = vmatpush.bf16.msra.mxu0 %v2802
        %4087 = vmatpush.bf16.msra.mxu0 %v2798
        %4088 = vmatpush.bf16.msra.mxu0 %v2794
        %4089 = vmatpush.bf16.msra.mxu0 %v2790
        %4090 = vmatpush.bf16.msra.mxu0 %v2786
        %4091 = vmatpush.bf16.msra.mxu0 %v2782
        %4092 = vmatpush.bf16.msra.mxu0 %v2778
        %4093 = vmatmul.bf16.gmra.mxu0 %v1548
        %v4094 = vpop.f32.mrf.mxu0
        %v4095 = vadd.f32 %v1541, %v4094
        %v4096 = vpop.f32.mrf.mxu0
        %4097 = vdwg.mxu0
        %4098 = vmatpush.bf16.msra.mxu0 %v2838
        %4099 = vmatpush.bf16.msra.mxu0 %v2834
        %4100 = vmatpush.bf16.msra.mxu0 %v2830
        %4101 = vmatpush.bf16.msra.mxu0 %v2826
        %4102 = vmatpush.bf16.msra.mxu0 %v2822
        %4103 = vmatpush.bf16.msra.mxu0 %v2818
        %4104 = vmatpush.bf16.msra.mxu0 %v2814
        %4105 = vmatpush.bf16.msra.mxu0 %v2810
        %4106 = vmatmul.bf16.gmra.mxu0 %v1549
        %v4107 = vpop.f32.mrf.mxu0
        %v4108 = vadd.f32 %v4095, %v4107
        %v4109 = vpop.f32.mrf.mxu0
        %4110 = vdwg.mxu0
        %4111 = vmatpush.bf16.msra.mxu0 %v2870
        %4112 = vmatpush.bf16.msra.mxu0 %v2866
        %4113 = vmatpush.bf16.msra.mxu0 %v2862
        %4114 = vmatpush.bf16.msra.mxu0 %v2858
        %4115 = vmatpush.bf16.msra.mxu0 %v2854
        %4116 = vmatpush.bf16.msra.mxu0 %v2850
        %4117 = vmatpush.bf16.msra.mxu0 %v2846
        %4118 = vmatpush.bf16.msra.mxu0 %v2842
        %4119 = vmatmul.bf16.gmra.mxu0 %v1550
        %v4120 = vpop.f32.mrf.mxu0
        %v4121 = vadd.f32 %v4108, %v4120
        %v4122 = vpop.f32.mrf.mxu0
        %4123 = vdwg.mxu0
        %4124 = vmatpush.bf16.msra.mxu0 %v2902
        %4125 = vmatpush.bf16.msra.mxu0 %v2898
        %4126 = vmatpush.bf16.msra.mxu0 %v2894
        %4127 = vmatpush.bf16.msra.mxu0 %v2890
        %4128 = vmatpush.bf16.msra.mxu0 %v2886
        %4129 = vmatpush.bf16.msra.mxu0 %v2882
        %4130 = vmatpush.bf16.msra.mxu0 %v2878
        %4131 = vmatpush.bf16.msra.mxu0 %v2874
        %4132 = vmatmul.bf16.gmra.mxu0 %v1551
        %v4133 = vpop.f32.mrf.mxu0
        %v4134 = vadd.f32 %v4121, %v4133
        %v4135 = vpop.f32.mrf.mxu0
        %4136 = vdwg.mxu0
        %4137 = vmatpush.bf16.msra.mxu0 %v2934
        %4138 = vmatpush.bf16.msra.mxu0 %v2930
        %4139 = vmatpush.bf16.msra.mxu0 %v2926
        %4140 = vmatpush.bf16.msra.mxu0 %v2922
        %4141 = vmatpush.bf16.msra.mxu0 %v2918
        %4142 = vmatpush.bf16.msra.mxu0 %v2914
        %4143 = vmatpush.bf16.msra.mxu0 %v2910
        %4144 = vmatpush.bf16.msra.mxu0 %v2906
        %4145 = vmatmul.bf16.gmra.mxu0 %v1552
        %v4146 = vpop.f32.mrf.mxu0
        %v4147 = vadd.f32 %v4134, %v4146
        %v4148 = vpop.f32.mrf.mxu0
        %4149 = vdwg.mxu0
        %4150 = vmatpush.bf16.msra.mxu0 %v2966
        %4151 = vmatpush.bf16.msra.mxu0 %v2962
        %4152 = vmatpush.bf16.msra.mxu0 %v2958
        %4153 = vmatpush.bf16.msra.mxu0 %v2954
        %4154 = vmatpush.bf16.msra.mxu0 %v2950
        %4155 = vmatpush.bf16.msra.mxu0 %v2946
        %4156 = vmatpush.bf16.msra.mxu0 %v2942
        %4157 = vmatpush.bf16.msra.mxu0 %v2938
        %4158 = vmatmul.bf16.gmra.mxu0 %v1553
        %v4159 = vpop.f32.mrf.mxu0
        %v4160 = vadd.f32 %v4147, %v4159
        %v4161 = vpop.f32.mrf.mxu0
        %4162 = vdwg.mxu0
        %4163 = vmatpush.bf16.msra.mxu0 %v2998
        %4164 = vmatpush.bf16.msra.mxu0 %v2994
        %4165 = vmatpush.bf16.msra.mxu0 %v2990
        %4166 = vmatpush.bf16.msra.mxu0 %v2986
        %4167 = vmatpush.bf16.msra.mxu0 %v2982
        %4168 = vmatpush.bf16.msra.mxu0 %v2978
        %4169 = vmatpush.bf16.msra.mxu0 %v2974
        %4170 = vmatpush.bf16.msra.mxu0 %v2970
        %4171 = vmatmul.bf16.gmra.mxu0 %v1554
        %v4172 = vpop.f32.mrf.mxu0
        %v4173 = vadd.f32 %v4160, %v4172
        %v4174 = vpop.f32.mrf.mxu0
        %4175 = vdwg.mxu0
        %4176 = vmatpush.bf16.msra.mxu0 %v3030
        %4177 = vmatpush.bf16.msra.mxu0 %v3026
        %4178 = vmatpush.bf16.msra.mxu0 %v3022
        %4179 = vmatpush.bf16.msra.mxu0 %v3018
        %4180 = vmatpush.bf16.msra.mxu0 %v3014
        %4181 = vmatpush.bf16.msra.mxu0 %v3010
        %4182 = vmatpush.bf16.msra.mxu0 %v3006
        %4183 = vmatpush.bf16.msra.mxu0 %v3002
        %4184 = vmatmul.bf16.gmra.mxu0 %v1555
        %v4185 = vpop.f32.mrf.mxu0
        %v4186 = vadd.f32 %v4173, %v4185
        %v4187 = vpop.f32.mrf.mxu0
        %4188 = vdwg.mxu0
        %4189 = vmatpush.bf16.msra.mxu0 %v3062
        %4190 = vmatpush.bf16.msra.mxu0 %v3058
        %4191 = vmatpush.bf16.msra.mxu0 %v3054
        %4192 = vmatpush.bf16.msra.mxu0 %v3050
        %4193 = vmatpush.bf16.msra.mxu0 %v3046
        %4194 = vmatpush.bf16.msra.mxu0 %v3042
        %4195 = vmatpush.bf16.msra.mxu0 %v3038
        %4196 = vmatpush.bf16.msra.mxu0 %v3034
        %4197 = vmatmul.bf16.gmra.mxu0 %v1558
        %v4198 = vpop.f32.mrf.mxu0
        %v4199 = vadd.f32 %v4186, %v4198
        %v4200 = vpop.f32.mrf.mxu0
        %4201 = vdwg.mxu0
        %4202 = vmatpush.bf16.msra.mxu0 %v3094
        %4203 = vmatpush.bf16.msra.mxu0 %v3090
        %4204 = vmatpush.bf16.msra.mxu0 %v3086
        %4205 = vmatpush.bf16.msra.mxu0 %v3082
        %4206 = vmatpush.bf16.msra.mxu0 %v3078
        %4207 = vmatpush.bf16.msra.mxu0 %v3074
        %4208 = vmatpush.bf16.msra.mxu0 %v3070
        %4209 = vmatpush.bf16.msra.mxu0 %v3066
        %4210 = vmatmul.bf16.gmra.mxu0 %v1559
        %v4211 = vpop.f32.mrf.mxu0
        %v4212 = vadd.f32 %v4199, %v4211
        %v4213 = vpop.f32.mrf.mxu0
        %4214 = vdwg.mxu0
        %4215 = vmatpush.bf16.msra.mxu0 %v3126
        %4216 = vmatpush.bf16.msra.mxu0 %v3122
        %4217 = vmatpush.bf16.msra.mxu0 %v3118
        %4218 = vmatpush.bf16.msra.mxu0 %v3114
        %4219 = vmatpush.bf16.msra.mxu0 %v3110
        %4220 = vmatpush.bf16.msra.mxu0 %v3106
        %4221 = vmatpush.bf16.msra.mxu0 %v3102
        %4222 = vmatpush.bf16.msra.mxu0 %v3098
        %4223 = vmatmul.bf16.gmra.mxu0 %v1560
        %v4224 = vpop.f32.mrf.mxu0
        %v4225 = vadd.f32 %v4212, %v4224
        %v4226 = vpop.f32.mrf.mxu0
        %4227 = vdwg.mxu0
        %4228 = vmatpush.bf16.msra.mxu0 %v3158
        %4229 = vmatpush.bf16.msra.mxu0 %v3154
        %4230 = vmatpush.bf16.msra.mxu0 %v3150
        %4231 = vmatpush.bf16.msra.mxu0 %v3146
        %4232 = vmatpush.bf16.msra.mxu0 %v3142
        %4233 = vmatpush.bf16.msra.mxu0 %v3138
        %4234 = vmatpush.bf16.msra.mxu0 %v3134
        %4235 = vmatpush.bf16.msra.mxu0 %v3130
        %4236 = vmatmul.bf16.gmra.mxu0 %v1561
        %v4237 = vpop.f32.mrf.mxu0
        %v4238 = vadd.f32 %v4225, %v4237
        %v4239 = vpop.f32.mrf.mxu0
        %4240 = vdwg.mxu0
        %4241 = vmatpush.bf16.msra.mxu0 0
        %4242 = vmatpush.bf16.msra.mxu0 0
        %4243 = vmatpush.bf16.msra.mxu0 0
        %4244 = vmatpush.bf16.msra.mxu0 0
        %4245 = vmatpush.bf16.msra.mxu0 %v3174
        %4246 = vmatpush.bf16.msra.mxu0 %v3170
        %4247 = vmatpush.bf16.msra.mxu0 %v3166
        %4248 = vmatpush.bf16.msra.mxu0 %v3162
        %4249 = vmatmul.bf16.gmra.mxu0 %v3576
        %v4250 = vpop.f32.mrf.mxu0
        %v4251 = vadd.f32 %v4238, %v4250
        %v4252 = vpop.f32.mrf.mxu0
        %4253 = vdwg.mxu0
        %v4254 = vmax.f32 %v3744, 0.0
        %v4255 = vmax.f32 %v3913, 0.0
        %v4256 = vmax.f32 %v4082, 0.0
        %v4257 = vmax.f32 %v4251, 0.0
        %v4258 = vpack.c.bf16 %v4254, %v4254
        %v4259 = vpack.c.bf16 %v4255, %v4255
        %v4260 = vpack.c.bf16 %v4256, %v4256
        %v4261 = vpack.c.bf16 %v4257, %v4257
        %v4262 = vld [vmem:[#allocation2] sm:$0xf]
        %v4263 = vld [vmem:[%s1126] sm:$0xff]
        %v4264 = vld [vmem:[%s1126 + $0x8] sm:$0xff]
        %v4265 = vld [vmem:[%s1126 + $0x10] sm:$0xff]
        %v4266 = vld [vmem:[%s1126 + $0x18] sm:$0xff]
        %v4267 = vld [vmem:[%s1126 + $0x20] sm:$0xff]
        %v4268 = vld [vmem:[%s1126 + $0x28] sm:$0xff]
        %v4269 = vld [vmem:[%s1126 + $0x30] sm:$0xff]
        %v4270 = vld [vmem:[%s1126 + $0x38] sm:$0xff]
        %v4271 = vld [vmem:[%s1126 + $0x40] sm:$0xff]
        %v4272 = vld [vmem:[%s1126 + $0x48] sm:$0xff]
        %v4273 = vld [vmem:[%s1126 + $0x50] sm:$0xff]
        %v4274 = vld [vmem:[%s1126 + $0x58] sm:$0xff]
        %v4275 = vld [vmem:[%s1126 + $0x60] sm:$0xff]
        %v4276 = vld [vmem:[%s1126 + $0x68] sm:$0xff]
        %v4277 = vld [vmem:[%s1126 + $0x70] sm:$0xff]
        %v4278 = vld [vmem:[%s1126 + $0x78] sm:$0xff]
        %v4279 = vld [vmem:[%s1126 + $0x80] sm:$0xff]
        %v4280 = vld [vmem:[%s1126 + $0x88] sm:$0xff]
        %v4281 = vld [vmem:[%s1126 + $0x90] sm:$0xff]
        %v4282 = vld [vmem:[%s1126 + $0x98] sm:$0xff]
        %v4283 = vld [vmem:[%s1126 + $0xa0] sm:$0xff]
        %v4284 = vld [vmem:[%s1126 + $0xa8] sm:$0xff]
        %v4285 = vld [vmem:[%s1126 + $0xb0] sm:$0xff]
        %v4286 = vld [vmem:[%s1126 + $0xb8] sm:$0xff]
        %v4287 = vld [vmem:[%s1126 + $0xc0] sm:$0xff]
        %v4288 = vld [vmem:[%s1126 + $0xc8] sm:$0xff]
        %v4289 = vld [vmem:[%s1126 + $0xd0] sm:$0xff]
        %v4290 = vld [vmem:[%s1126 + $0xd8] sm:$0xff]
        %v4291 = vld [vmem:[%s1126 + $0xe0] sm:$0xff]
        %v4292 = vld [vmem:[%s1126 + $0xe8] sm:$0xff]
        %v4293 = vld [vmem:[%s1126 + $0xf0] sm:$0xff]
        %v4294 = vld [vmem:[%s1126 + $0xf8] sm:$0xff]
        %v4295 = vld [vmem:[%s1126 + $0x100] sm:$0xff]
        %v4296 = vld [vmem:[%s1126 + $0x108] sm:$0xff]
        %v4297 = vld [vmem:[%s1126 + $0x110] sm:$0xff]
        %v4298 = vld [vmem:[%s1126 + $0x118] sm:$0xff]
        %v4299 = vld [vmem:[%s1126 + $0x120] sm:$0xff]
        %v4300 = vld [vmem:[%s1126 + $0x128] sm:$0xff]
        %v4301 = vld [vmem:[%s1126 + $0x130] sm:$0xff]
        %v4302 = vld [vmem:[%s1126 + $0x138] sm:$0xff]
        %v4303 = vld [vmem:[%s1126 + $0x140] sm:$0xff]
        %v4304 = vld [vmem:[%s1126 + $0x148] sm:$0xff]
        %v4305 = vld [vmem:[%s1126 + $0x150] sm:$0xff]
        %v4306 = vld [vmem:[%s1126 + $0x158] sm:$0xff]
        %v4307 = vld [vmem:[%s1126 + $0x160] sm:$0xff]
        %v4308 = vld [vmem:[%s1126 + $0x168] sm:$0xff]
        %v4309 = vld [vmem:[%s1126 + $0x170] sm:$0xff]
        %v4310 = vld [vmem:[%s1126 + $0x178] sm:$0xff]
        %v4311 = vld [vmem:[%s1126 + $0x180] sm:$0xff]
        %v4312 = vld [vmem:[%s1126 + $0x188] sm:$0xff]
        %v4313 = vld [vmem:[%s1126 + $0x190] sm:$0xff]
        %v4314 = vld [vmem:[%s1126 + $0x198] sm:$0xff]
        %v4315 = vld [vmem:[%s1126 + $0x1a0] sm:$0xff]
        %v4316 = vld [vmem:[%s1126 + $0x1a8] sm:$0xff]
        %v4317 = vld [vmem:[%s1126 + $0x1b0] sm:$0xff]
        %v4318 = vld [vmem:[%s1126 + $0x1b8] sm:$0xff]
        %v4319 = vld [vmem:[%s1126 + $0x1c0] sm:$0xff]
        %v4320 = vld [vmem:[%s1126 + $0x1c8] sm:$0xff]
        %v4321 = vld [vmem:[%s1126 + $0x1d0] sm:$0xff]
        %v4322 = vld [vmem:[%s1126 + $0x1d8] sm:$0xff]
        %v4323 = vld [vmem:[%s1126 + $0x1e0] sm:$0xff]
        %v4324 = vld [vmem:[%s1126 + $0x1e8] sm:$0xff]
        %v4325 = vld [vmem:[%s1126 + $0x1f0] sm:$0xff]
        %v4326 = vld [vmem:[%s1126 + $0x1f8] sm:$0xff]
        %v4391 = vunpack.c.l.b16 %v4263
        %v4392 = vunpack.c.h.b16 %v4263
        %v4393 = vunpack.c.l.b16 %v4264
        %v4394 = vunpack.c.h.b16 %v4264
        %v4395 = vunpack.c.l.b16 %v4265
        %v4396 = vunpack.c.h.b16 %v4265
        %v4397 = vunpack.c.l.b16 %v4266
        %v4398 = vunpack.c.h.b16 %v4266
        %v4399 = vunpack.c.l.b16 %v4267
        %v4400 = vunpack.c.h.b16 %v4267
        %v4401 = vunpack.c.l.b16 %v4268
        %v4402 = vunpack.c.h.b16 %v4268
        %v4403 = vunpack.c.l.b16 %v4269
        %v4404 = vunpack.c.h.b16 %v4269
        %v4405 = vunpack.c.l.b16 %v4270
        %v4406 = vunpack.c.h.b16 %v4270
        %v4407 = vunpack.c.l.b16 %v4271
        %v4408 = vunpack.c.h.b16 %v4271
        %v4409 = vunpack.c.l.b16 %v4272
        %v4410 = vunpack.c.h.b16 %v4272
        %v4411 = vunpack.c.l.b16 %v4273
        %v4412 = vunpack.c.h.b16 %v4273
        %v4413 = vunpack.c.l.b16 %v4274
        %v4414 = vunpack.c.h.b16 %v4274
        %v4415 = vunpack.c.l.b16 %v4275
        %v4416 = vunpack.c.h.b16 %v4275
        %v4417 = vunpack.c.l.b16 %v4276
        %v4418 = vunpack.c.h.b16 %v4276
        %v4419 = vunpack.c.l.b16 %v4277
        %v4420 = vunpack.c.h.b16 %v4277
        %v4421 = vunpack.c.l.b16 %v4278
        %v4422 = vunpack.c.h.b16 %v4278
        %v4423 = vunpack.c.l.b16 %v4279
        %v4424 = vunpack.c.h.b16 %v4279
        %v4425 = vunpack.c.l.b16 %v4280
        %v4426 = vunpack.c.h.b16 %v4280
        %v4427 = vunpack.c.l.b16 %v4281
        %v4428 = vunpack.c.h.b16 %v4281
        %v4429 = vunpack.c.l.b16 %v4282
        %v4430 = vunpack.c.h.b16 %v4282
        %v4431 = vunpack.c.l.b16 %v4283
        %v4432 = vunpack.c.h.b16 %v4283
        %v4433 = vunpack.c.l.b16 %v4284
        %v4434 = vunpack.c.h.b16 %v4284
        %v4435 = vunpack.c.l.b16 %v4285
        %v4436 = vunpack.c.h.b16 %v4285
        %v4437 = vunpack.c.l.b16 %v4286
        %v4438 = vunpack.c.h.b16 %v4286
        %v4439 = vunpack.c.l.b16 %v4287
        %v4440 = vunpack.c.h.b16 %v4287
        %v4441 = vunpack.c.l.b16 %v4288
        %v4442 = vunpack.c.h.b16 %v4288
        %v4443 = vunpack.c.l.b16 %v4289
        %v4444 = vunpack.c.h.b16 %v4289
        %v4445 = vunpack.c.l.b16 %v4290
        %v4446 = vunpack.c.h.b16 %v4290
        %v4447 = vunpack.c.l.b16 %v4291
        %v4448 = vunpack.c.h.b16 %v4291
        %v4449 = vunpack.c.l.b16 %v4292
        %v4450 = vunpack.c.h.b16 %v4292
        %v4451 = vunpack.c.l.b16 %v4293
        %v4452 = vunpack.c.h.b16 %v4293
        %v4453 = vunpack.c.l.b16 %v4294
        %v4454 = vunpack.c.h.b16 %v4294
        %v4455 = vunpack.c.l.b16 %v4295
        %v4456 = vunpack.c.h.b16 %v4295
        %v4457 = vunpack.c.l.b16 %v4296
        %v4458 = vunpack.c.h.b16 %v4296
        %v4459 = vunpack.c.l.b16 %v4297
        %v4460 = vunpack.c.h.b16 %v4297
        %v4461 = vunpack.c.l.b16 %v4298
        %v4462 = vunpack.c.h.b16 %v4298
        %v4463 = vunpack.c.l.b16 %v4299
        %v4464 = vunpack.c.h.b16 %v4299
        %v4465 = vunpack.c.l.b16 %v4300
        %v4466 = vunpack.c.h.b16 %v4300
        %v4467 = vunpack.c.l.b16 %v4301
        %v4468 = vunpack.c.h.b16 %v4301
        %v4469 = vunpack.c.l.b16 %v4302
        %v4470 = vunpack.c.h.b16 %v4302
        %v4471 = vunpack.c.l.b16 %v4303
        %v4472 = vunpack.c.h.b16 %v4303
        %v4473 = vunpack.c.l.b16 %v4304
        %v4474 = vunpack.c.h.b16 %v4304
        %v4475 = vunpack.c.l.b16 %v4305
        %v4476 = vunpack.c.h.b16 %v4305
        %v4477 = vunpack.c.l.b16 %v4306
        %v4478 = vunpack.c.h.b16 %v4306
        %v4479 = vunpack.c.l.b16 %v4307
        %v4480 = vunpack.c.h.b16 %v4307
        %v4481 = vunpack.c.l.b16 %v4308
        %v4482 = vunpack.c.h.b16 %v4308
        %v4483 = vunpack.c.l.b16 %v4309
        %v4484 = vunpack.c.h.b16 %v4309
        %v4485 = vunpack.c.l.b16 %v4310
        %v4486 = vunpack.c.h.b16 %v4310
        %v4487 = vunpack.c.l.b16 %v4311
        %v4488 = vunpack.c.h.b16 %v4311
        %v4489 = vunpack.c.l.b16 %v4312
        %v4490 = vunpack.c.h.b16 %v4312
        %v4491 = vunpack.c.l.b16 %v4313
        %v4492 = vunpack.c.h.b16 %v4313
        %v4493 = vunpack.c.l.b16 %v4314
        %v4494 = vunpack.c.h.b16 %v4314
        %v4495 = vunpack.c.l.b16 %v4315
        %v4496 = vunpack.c.h.b16 %v4315
        %v4497 = vunpack.c.l.b16 %v4316
        %v4498 = vunpack.c.h.b16 %v4316
        %v4499 = vunpack.c.l.b16 %v4317
        %v4500 = vunpack.c.h.b16 %v4317
        %v4501 = vunpack.c.l.b16 %v4318
        %v4502 = vunpack.c.h.b16 %v4318
        %v4503 = vunpack.c.l.b16 %v4319
        %v4504 = vunpack.c.h.b16 %v4319
        %v4505 = vunpack.c.l.b16 %v4320
        %v4506 = vunpack.c.h.b16 %v4320
        %v4507 = vunpack.c.l.b16 %v4321
        %v4508 = vunpack.c.h.b16 %v4321
        %v4509 = vunpack.c.l.b16 %v4322
        %v4510 = vunpack.c.h.b16 %v4322
        %v4511 = vunpack.c.l.b16 %v4323
        %v4512 = vunpack.c.h.b16 %v4323
        %v4513 = vunpack.c.l.b16 %v4324
        %v4514 = vunpack.c.h.b16 %v4324
        %v4515 = vunpack.c.l.b16 %v4325
        %v4516 = vunpack.c.h.b16 %v4325
        %v4517 = vunpack.c.l.b16 %v4326
        %v4518 = vunpack.c.h.b16 %v4326
        %v4519 = vpack.c.b16 %v4393, %v4391
        %v4520 = vpack.c.b16 %v4394, %v4392
        %v4521 = vpack.c.b16 %v4397, %v4395
        %v4522 = vpack.c.b16 %v4398, %v4396
        %v4523 = vpack.c.b16 %v4401, %v4399
        %v4524 = vpack.c.b16 %v4402, %v4400
        %v4525 = vpack.c.b16 %v4405, %v4403
        %v4526 = vpack.c.b16 %v4406, %v4404
        %v4527 = vpack.c.b16 %v4409, %v4407
        %v4528 = vpack.c.b16 %v4410, %v4408
        %v4529 = vpack.c.b16 %v4413, %v4411
        %v4530 = vpack.c.b16 %v4414, %v4412
        %v4531 = vpack.c.b16 %v4417, %v4415
        %v4532 = vpack.c.b16 %v4418, %v4416
        %v4533 = vpack.c.b16 %v4421, %v4419
        %v4534 = vpack.c.b16 %v4422, %v4420
        %v4535 = vpack.c.b16 %v4425, %v4423
        %v4536 = vpack.c.b16 %v4426, %v4424
        %v4537 = vpack.c.b16 %v4429, %v4427
        %v4538 = vpack.c.b16 %v4430, %v4428
        %v4539 = vpack.c.b16 %v4433, %v4431
        %v4540 = vpack.c.b16 %v4434, %v4432
        %v4541 = vpack.c.b16 %v4437, %v4435
        %v4542 = vpack.c.b16 %v4438, %v4436
        %v4543 = vpack.c.b16 %v4441, %v4439
        %v4544 = vpack.c.b16 %v4442, %v4440
        %v4545 = vpack.c.b16 %v4445, %v4443
        %v4546 = vpack.c.b16 %v4446, %v4444
        %v4547 = vpack.c.b16 %v4449, %v4447
        %v4548 = vpack.c.b16 %v4450, %v4448
        %v4549 = vpack.c.b16 %v4453, %v4451
        %v4550 = vpack.c.b16 %v4454, %v4452
        %v4551 = vpack.c.b16 %v4457, %v4455
        %v4552 = vpack.c.b16 %v4458, %v4456
        %v4553 = vpack.c.b16 %v4461, %v4459
        %v4554 = vpack.c.b16 %v4462, %v4460
        %v4555 = vpack.c.b16 %v4465, %v4463
        %v4556 = vpack.c.b16 %v4466, %v4464
        %v4557 = vpack.c.b16 %v4469, %v4467
        %v4558 = vpack.c.b16 %v4470, %v4468
        %v4559 = vpack.c.b16 %v4473, %v4471
        %v4560 = vpack.c.b16 %v4474, %v4472
        %v4561 = vpack.c.b16 %v4477, %v4475
        %v4562 = vpack.c.b16 %v4478, %v4476
        %v4563 = vpack.c.b16 %v4481, %v4479
        %v4564 = vpack.c.b16 %v4482, %v4480
        %v4565 = vpack.c.b16 %v4485, %v4483
        %v4566 = vpack.c.b16 %v4486, %v4484
        %v4567 = vpack.c.b16 %v4489, %v4487
        %v4568 = vpack.c.b16 %v4490, %v4488
        %v4569 = vpack.c.b16 %v4493, %v4491
        %v4570 = vpack.c.b16 %v4494, %v4492
        %v4571 = vpack.c.b16 %v4497, %v4495
        %v4572 = vpack.c.b16 %v4498, %v4496
        %v4573 = vpack.c.b16 %v4501, %v4499
        %v4574 = vpack.c.b16 %v4502, %v4500
        %v4575 = vpack.c.b16 %v4505, %v4503
        %v4576 = vpack.c.b16 %v4506, %v4504
        %v4577 = vpack.c.b16 %v4509, %v4507
        %v4578 = vpack.c.b16 %v4510, %v4508
        %v4579 = vpack.c.b16 %v4513, %v4511
        %v4580 = vpack.c.b16 %v4514, %v4512
        %v4581 = vpack.c.b16 %v4517, %v4515
        %v4582 = vpack.c.b16 %v4518, %v4516
        %4647 = vmatpush.bf16.msra.mxu0 %v4533
        %4648 = vmatpush.bf16.msra.mxu0 %v4531
        %4649 = vmatpush.bf16.msra.mxu0 %v4529
        %4650 = vmatpush.bf16.msra.mxu0 %v4527
        %4651 = vmatpush.bf16.msra.mxu0 %v4525
        %4652 = vmatpush.bf16.msra.mxu0 %v4523
        %4653 = vmatpush.bf16.msra.mxu0 %v4521
        %4654 = vmatpush.bf16.msra.mxu0 %v4519
        %4655 = vmatmul.bf16.gmra.mxu0 %v4258
        %v4656 = vpop.f32.mrf.mxu0
        %v4657 = vadd.f32 0.0, %v4656
        %v4658 = vpop.f32.mrf.mxu0
        %4659 = vdwg.mxu0
        %4660 = vmatpush.bf16.msra.mxu0 %v4549
        %4661 = vmatpush.bf16.msra.mxu0 %v4547
        %4662 = vmatpush.bf16.msra.mxu0 %v4545
        %4663 = vmatpush.bf16.msra.mxu0 %v4543
        %4664 = vmatpush.bf16.msra.mxu0 %v4541
        %4665 = vmatpush.bf16.msra.mxu0 %v4539
        %4666 = vmatpush.bf16.msra.mxu0 %v4537
        %4667 = vmatpush.bf16.msra.mxu0 %v4535
        %4668 = vmatmul.bf16.gmra.mxu0 %v4259
        %v4669 = vpop.f32.mrf.mxu0
        %v4670 = vadd.f32 %v4657, %v4669
        %v4671 = vpop.f32.mrf.mxu0
        %4672 = vdwg.mxu0
        %4673 = vmatpush.bf16.msra.mxu0 %v4565
        %4674 = vmatpush.bf16.msra.mxu0 %v4563
        %4675 = vmatpush.bf16.msra.mxu0 %v4561
        %4676 = vmatpush.bf16.msra.mxu0 %v4559
        %4677 = vmatpush.bf16.msra.mxu0 %v4557
        %4678 = vmatpush.bf16.msra.mxu0 %v4555
        %4679 = vmatpush.bf16.msra.mxu0 %v4553
        %4680 = vmatpush.bf16.msra.mxu0 %v4551
        %4681 = vmatmul.bf16.gmra.mxu0 %v4260
        %v4682 = vpop.f32.mrf.mxu0
        %v4683 = vadd.f32 %v4670, %v4682
        %v4684 = vpop.f32.mrf.mxu0
        %4685 = vdwg.mxu0
        %4686 = vmatpush.bf16.msra.mxu0 %v4581
        %4687 = vmatpush.bf16.msra.mxu0 %v4579
        %4688 = vmatpush.bf16.msra.mxu0 %v4577
        %4689 = vmatpush.bf16.msra.mxu0 %v4575
        %4690 = vmatpush.bf16.msra.mxu0 %v4573
        %4691 = vmatpush.bf16.msra.mxu0 %v4571
        %4692 = vmatpush.bf16.msra.mxu0 %v4569
        %4693 = vmatpush.bf16.msra.mxu0 %v4567
        %4694 = vmatmul.bf16.gmra.mxu0 %v4261
        %v4695 = vpop.f32.mrf.mxu0
        %v4696 = vadd.f32 %v4683, %v4695
        %v4697 = vpop.f32.mrf.mxu0
        %4698 = vdwg.mxu0
        %4699 = vmatpush.bf16.msra.mxu0 %v4534
        %4700 = vmatpush.bf16.msra.mxu0 %v4532
        %4701 = vmatpush.bf16.msra.mxu0 %v4530
        %4702 = vmatpush.bf16.msra.mxu0 %v4528
        %4703 = vmatpush.bf16.msra.mxu0 %v4526
        %4704 = vmatpush.bf16.msra.mxu0 %v4524
        %4705 = vmatpush.bf16.msra.mxu0 %v4522
        %4706 = vmatpush.bf16.msra.mxu0 %v4520
        %4707 = vmatmul.bf16.gmra.mxu0 %v4258
        %v4708 = vpop.f32.mrf.mxu0
        %v4709 = vadd.f32 0.0, %v4708
        %v4710 = vpop.f32.mrf.mxu0
        %4711 = vdwg.mxu0
        %4712 = vmatpush.bf16.msra.mxu0 %v4550
        %4713 = vmatpush.bf16.msra.mxu0 %v4548
        %4714 = vmatpush.bf16.msra.mxu0 %v4546
        %4715 = vmatpush.bf16.msra.mxu0 %v4544
        %4716 = vmatpush.bf16.msra.mxu0 %v4542
        %4717 = vmatpush.bf16.msra.mxu0 %v4540
        %4718 = vmatpush.bf16.msra.mxu0 %v4538
        %4719 = vmatpush.bf16.msra.mxu0 %v4536
        %4720 = vmatmul.bf16.gmra.mxu0 %v4259
        %v4721 = vpop.f32.mrf.mxu0
        %v4722 = vadd.f32 %v4709, %v4721
        %v4723 = vpop.f32.mrf.mxu0
        %4724 = vdwg.mxu0
        %4725 = vmatpush.bf16.msra.mxu0 %v4566
        %4726 = vmatpush.bf16.msra.mxu0 %v4564
        %4727 = vmatpush.bf16.msra.mxu0 %v4562
        %4728 = vmatpush.bf16.msra.mxu0 %v4560
        %4729 = vmatpush.bf16.msra.mxu0 %v4558
        %4730 = vmatpush.bf16.msra.mxu0 %v4556
        %4731 = vmatpush.bf16.msra.mxu0 %v4554
        %4732 = vmatpush.bf16.msra.mxu0 %v4552
        %4733 = vmatmul.bf16.gmra.mxu0 %v4260
        %v4734 = vpop.f32.mrf.mxu0
        %v4735 = vadd.f32 %v4722, %v4734
        %v4736 = vpop.f32.mrf.mxu0
        %4737 = vdwg.mxu0
        %4738 = vmatpush.bf16.msra.mxu0 %v4582
        %4739 = vmatpush.bf16.msra.mxu0 %v4580
        %4740 = vmatpush.bf16.msra.mxu0 %v4578
        %4741 = vmatpush.bf16.msra.mxu0 %v4576
        %4742 = vmatpush.bf16.msra.mxu0 %v4574
        %4743 = vmatpush.bf16.msra.mxu0 %v4572
        %4744 = vmatpush.bf16.msra.mxu0 %v4570
        %4745 = vmatpush.bf16.msra.mxu0 %v4568
        %4746 = vmatmul.bf16.gmra.mxu0 %v4261
        %v4747 = vpop.f32.mrf.mxu0
        %v4748 = vadd.f32 %v4735, %v4747
        %v4749 = vpop.f32.mrf.mxu0
        %4750 = vdwg.mxu0
        %v4753 = vrot.slane %v4748, 6
        %vm4754 = vcmask 1041408
        %v4755 = vsel %vm4754, %v4696, %v4753
        %v4757 = vadd.f32 %v4262, %v4755
        %4758 = vst [vmem:[#allocation2] sm:$0xf] %v4757
        %p4759 = scmp.eq.s32.totalorder %s19, 3
        // Predicated region
        $region76: #{forward.9} parent=66 // pred_check
          %p4760 = pneg %p4759
        $region77: #{forward.9} parent=66 // pred_check_branch
          %4762 = sbr.rel (%p4760) target = $region79
        $region78: #{forward.9} parent=66 // pred_region
          %v4763 = vld [vmem:[#allocation2] sm:$0xf]
          %v4764 = vld [vmem:[%s4] sm:$0x3]
          %v4766 = vperm.slane %v4764, 0
          %v4767 = vperm.slane %v4764, 1
          %v4768 = vrot.slane %v4767, 6
          %v4769 = vsel %vm4754, %v4766, %v4768
          %v4771 = vadd.f32 %v4763, %v4769
          %v4772 = vmax.f32 %v4771, 0.0
          %4774 = vst [vmem:[#allocation1] ss:$4 sm:$0xff] %v4772
          %v4775 = vld.sshfl [vmem:[#allocation1] sm:$0xff pattern:$0x73625140]
          %v4776 = vld.sshfl [vmem:[#allocation1 + $0x8] sm:$0xff pattern:$0x73625140]
          %v4779 = vpack.c.bf16 %v4775, %v4775
          %v4780 = vpack.c.bf16 %v4776, %v4776
          %v4781 = vld [vmem:[%s5] sm:$0xf]
          %v4782 = vld [vmem:[%s5 + $0x4] sm:$0xf]
          %v4783 = vld [vmem:[%s5 + $0x8] sm:$0xf]
          %v4784 = vld [vmem:[%s5 + $0xc] sm:$0xf]
          %v4785 = vld [vmem:[%s5 + $0x10] sm:$0xf]
          %v4786 = vld [vmem:[%s5 + $0x14] sm:$0xf]
          %v4787 = vld [vmem:[%s5 + $0x18] sm:$0xf]
          %v4788 = vld [vmem:[%s5 + $0x1c] sm:$0xf]
          %v4789 = vld [vmem:[%s5 + $0x20] sm:$0xf]
          %v4790 = vld [vmem:[%s5 + $0x24] sm:$0xf]
          %v4791 = vld [vmem:[%s5 + $0x28] sm:$0xf]
          %v4792 = vld [vmem:[%s5 + $0x2c] sm:$0xf]
          %v4793 = vld [vmem:[%s5 + $0x30] sm:$0xf]
          %v4794 = vld [vmem:[%s5 + $0x34] sm:$0xf]
          %v4795 = vld [vmem:[%s5 + $0x38] sm:$0xf]
          %v4796 = vld [vmem:[%s5 + $0x3c] sm:$0xf]
          %v4797 = vld [vmem:[%s5 + $0x40] sm:$0xf]
          %v4798 = vld [vmem:[%s5 + $0x44] sm:$0xf]
          %v4799 = vld [vmem:[%s5 + $0x48] sm:$0xf]
          %v4800 = vld [vmem:[%s5 + $0x4c] sm:$0xf]
          %v4801 = vld [vmem:[%s5 + $0x50] sm:$0xf]
          %v4802 = vld [vmem:[%s5 + $0x54] sm:$0xf]
          %v4803 = vld [vmem:[%s5 + $0x58] sm:$0xf]
          %v4804 = vld [vmem:[%s5 + $0x5c] sm:$0xf]
          %v4805 = vld [vmem:[%s5 + $0x60] sm:$0xf]
          %v4806 = vld [vmem:[%s5 + $0x64] sm:$0xf]
          %v4807 = vld [vmem:[%s5 + $0x68] sm:$0xf]
          %v4808 = vld [vmem:[%s5 + $0x6c] sm:$0xf]
          %v4809 = vld [vmem:[%s5 + $0x70] sm:$0xf]
          %v4810 = vld [vmem:[%s5 + $0x74] sm:$0xf]
          %v4811 = vld [vmem:[%s5 + $0x78] sm:$0xf]
          %v4812 = vld [vmem:[%s5 + $0x7c] sm:$0xf]
          %v4813 = vld [vmem:[%s6] sm:$0x1]
          %v4815 = vperm.slane %v4813, 0
          %v4849 = vunpack.c.l.b16 %v4781
          %v4850 = vunpack.c.l.b16 %v4782
          %v4851 = vunpack.c.l.b16 %v4783
          %v4852 = vunpack.c.l.b16 %v4784
          %v4853 = vunpack.c.l.b16 %v4785
          %v4854 = vunpack.c.l.b16 %v4786
          %v4855 = vunpack.c.l.b16 %v4787
          %v4856 = vunpack.c.l.b16 %v4788
          %v4857 = vunpack.c.l.b16 %v4789
          %v4858 = vunpack.c.l.b16 %v4790
          %v4859 = vunpack.c.l.b16 %v4791
          %v4860 = vunpack.c.l.b16 %v4792
          %v4861 = vunpack.c.l.b16 %v4793
          %v4862 = vunpack.c.l.b16 %v4794
          %v4863 = vunpack.c.l.b16 %v4795
          %v4864 = vunpack.c.l.b16 %v4796
          %v4865 = vunpack.c.l.b16 %v4797
          %v4866 = vunpack.c.l.b16 %v4798
          %v4867 = vunpack.c.l.b16 %v4799
          %v4868 = vunpack.c.l.b16 %v4800
          %v4869 = vunpack.c.l.b16 %v4801
          %v4870 = vunpack.c.l.b16 %v4802
          %v4871 = vunpack.c.l.b16 %v4803
          %v4872 = vunpack.c.l.b16 %v4804
          %v4873 = vunpack.c.l.b16 %v4805
          %v4874 = vunpack.c.l.b16 %v4806
          %v4875 = vunpack.c.l.b16 %v4807
          %v4876 = vunpack.c.l.b16 %v4808
          %v4877 = vunpack.c.l.b16 %v4809
          %v4878 = vunpack.c.l.b16 %v4810
          %v4879 = vunpack.c.l.b16 %v4811
          %v4880 = vunpack.c.l.b16 %v4812
          %v4881 = vpack.c.b16 %v4850, %v4849
          %v4882 = vpack.c.b16 %v4852, %v4851
          %v4883 = vpack.c.b16 %v4854, %v4853
          %v4884 = vpack.c.b16 %v4856, %v4855
          %v4885 = vpack.c.b16 %v4858, %v4857
          %v4886 = vpack.c.b16 %v4860, %v4859
          %v4887 = vpack.c.b16 %v4862, %v4861
          %v4888 = vpack.c.b16 %v4864, %v4863
          %v4889 = vpack.c.b16 %v4866, %v4865
          %v4890 = vpack.c.b16 %v4868, %v4867
          %v4891 = vpack.c.b16 %v4870, %v4869
          %v4892 = vpack.c.b16 %v4872, %v4871
          %v4893 = vpack.c.b16 %v4874, %v4873
          %v4894 = vpack.c.b16 %v4876, %v4875
          %v4895 = vpack.c.b16 %v4878, %v4877
          %v4896 = vpack.c.b16 %v4880, %v4879
          %4913 = vmatpush.bf16.msra.mxu0 %v4888
          %4914 = vmatpush.bf16.msra.mxu0 %v4887
          %4915 = vmatpush.bf16.msra.mxu0 %v4886
          %4916 = vmatpush.bf16.msra.mxu0 %v4885
          %4917 = vmatpush.bf16.msra.mxu0 %v4884
          %4918 = vmatpush.bf16.msra.mxu0 %v4883
          %4919 = vmatpush.bf16.msra.mxu0 %v4882
          %4920 = vmatpush.bf16.msra.mxu0 %v4881
          %4921 = vmatmul.bf16.gmra.mxu0 %v4779
          %v4922 = vpop.f32.mrf.mxu0
          %v4923 = vadd.f32 %v4815, %v4922
          %v4924 = vpop.f32.mrf.mxu0
          %4925 = vdwg.mxu0
          %4926 = vmatpush.bf16.msra.mxu0 %v4896
          %4927 = vmatpush.bf16.msra.mxu0 %v4895
          %4928 = vmatpush.bf16.msra.mxu0 %v4894
          %4929 = vmatpush.bf16.msra.mxu0 %v4893
          %4930 = vmatpush.bf16.msra.mxu0 %v4892
          %4931 = vmatpush.bf16.msra.mxu0 %v4891
          %4932 = vmatpush.bf16.msra.mxu0 %v4890
          %4933 = vmatpush.bf16.msra.mxu0 %v4889
          %4934 = vmatmul.bf16.gmra.mxu0 %v4780
          %v4935 = vpop.f32.mrf.mxu0
          %v4936 = vadd.f32 %v4923, %v4935
          %v4937 = vpop.f32.mrf.mxu0
          %4938 = vdwg.mxu0
          %4939 = vst [vmem:[#allocation4] sm:$0x3] %v4936
        $region79: #{forward.9} parent=66 // pred_fallthru
          _
        // Predicated region
        $region80: #{forward.9} parent=66 // pred_check
          %p4940 = pneg %p194
        $region81: #{forward.9} parent=66 // pred_check_branch
          %4942 = sbr.rel (%p4940) target = $region83
        $region82: #{forward.9} parent=66 // pred_region
          %4944 = vsyncadd [#allocation5], 0
          %s4946 = sshll.u32 [#allocation4], 4
          %s4947 = int_to_ptr.vmem [resolvable:$true] %s4946
          %s4948 = sshll.u32 %s7, 4
          %s4949 = int_to_ptr.hbm [resolvable:$true] %s4948
          %4951 = dma.vmem_to_hbm [thread:$0]  %s4947, 32, %s4949, [#allocation5]
        $region83: #{forward.9} parent=66 // pred_fallthru
          _
        // Predicated region
        $region84: #{forward.9} parent=66 // pred_check
          %p4952 = pneg %p194
        $region85: #{forward.9} parent=66 // pred_check_branch
          %4954 = sbr.rel (%p4952) target = $region87
        $region86: #{forward.9} parent=66 // pred_region
          %4956 = dma.done [#allocation5], 32
        $region87: #{forward.9} parent=66 // pred_fallthru
          _
      $region67: #{forward.9} parent=5 // pred_fallthru
        _
      %p4957 = scmp.le.s32.totalorder 2, %s14
      // Predicated region
      $region88: #{forward.9} parent=5 // pred_check
        %p4958 = pneg %p4957
      $region89: #{forward.9} parent=5 // pred_check_branch
        %4960 = sbr.rel (%p4958) target = $region91
      $region90: #{forward.9} parent=5 // pred_region
        %s4961 = ssub.s32 %s14, 2
      $region91: #{forward.9} parent=5 // pred_fallthru
        _
    $region6: #{forward.9} parent=1 // loop_footer
      %s18 = sadd.s32 1, %s14
    $region7: #{forward.9} parent=1 // loop_footer_branch
      %13 = sbr.rel target = $region3
    $region8: #{forward.9} parent=1 // loop_exit
      _
    %4962 = vsyncpa [#allocation5], 1
    %s4963 = scalar_lea.sflag [#allocation5], 1
    %4964 = vsyncpa %s4963, 1

</llo_original>
